<compile_context>
chip_gen: v6e
topology: v6e:2x2x1
jax: 0.10.0
libtpu: 0.0.40
codegen_flags: <defaults>
</compile_context>

<pallas_src>
import functools

import numpy as np
import jax
import jax.numpy as jnp
from jax import lax
from jax.experimental import pallas as pl

_EPS = 1e-5      # PyTorch BatchNorm1d default eps
_LANE = 128      # TPU lane width


# --------------------------------------------------------------------------
# Pallas kernels
# --------------------------------------------------------------------------
def _conv_relu(x_ref, w_ref, b_ref, n, ksize, l_out):
    """Conv1d(stride=1, input pre-padded) + bias + ReLU for batch element n.

    x_ref: (N, L_pad, Cin) f32, w_ref: (K, Cin, Cout) bf16, b_ref: (1, Cout) f32.
    Returns (l_out, Cout) f32 (f32 accumulation on the MXU).
    """
    acc = None
    for k in range(ksize):
        xk = x_ref[n, k:k + l_out, :].astype(jnp.bfloat16)       # (l_out, Cin)
        part = jnp.dot(xk, w_ref[k], preferred_element_type=jnp.float32)
        acc = part if acc is None else acc + part
    return jnp.maximum(acc + b_ref[...], 0.0)


def _conv_pool_bn_kernel(x_ref, w_ref, b_ref, g_ref, be_ref, s_ref, o_ref,
                         *, n_batch, ksize, l_out, l_pool):
    """Fused Conv1d + ReLU + MaxPool1d(4,2) + BatchNorm1d (batch statistics).

    Output is (N, l_pool + 2, Cout) with zero halo rows (padding for next conv).
    """
    o_ref[...] = jnp.zeros_like(o_ref)          # zero halo rows (and everything)

    pooled = []
    total = None
    for n in range(n_batch):                    # unrolled (N is tiny)
        y = _conv_relu(x_ref, w_ref, b_ref, n, ksize, l_out)      # (l_out, C)
        # sliding-window max, kernel 4, stride 1 (unit-stride value slices) ...
        m = jnp.maximum(jnp.maximum(y[0:l_out - 3, :], y[1:l_out - 2, :]),
                        jnp.maximum(y[2:l_out - 1, :], y[3:l_out, :]))
        # ... then the stride-2 downsample as an exact 0/1 selection matmul.
        p = jnp.dot(s_ref[...], m, preferred_element_type=jnp.float32)  # (l_pool, C)
        pooled.append(p)
        ps = jnp.sum(p, axis=0, keepdims=True)
        total = ps if total is None else total + ps

    inv_count = 1.0 / float(n_batch * l_pool)
    mean = total * inv_count
    sq = None
    for p in pooled:
        d = p - mean
        s = jnp.sum(d * d, axis=0, keepdims=True)
        sq = s if sq is None else sq + s
    var = sq * inv_count                                  # biased (training mode)

    scale = g_ref[...] * lax.rsqrt(var + _EPS)            # (1, C)
    shift = be_ref[...] - mean * scale                    # (1, C)
    for n in range(n_batch):
        o_ref[n, 1:l_pool + 1, :] = pooled[n] * scale + shift


def _conv_bn_avgpool_kernel(x_ref, w_ref, b_ref, g_ref, be_ref, a_ref, o_ref,
                            *, n_batch, ksize, l_out):
    """Fused Conv1d + ReLU + BatchNorm1d + AdaptiveAvgPool1d (as a matmul).

    a_ref: (out_size, l_out) averaging matrix.  Output: (N, out_size, Cout).
    """
    ys = []
    total = None
    for n in range(n_batch):
        y = _conv_relu(x_ref, w_ref, b_ref, n, ksize, l_out)      # (l_out, C)
        ys.append(y)
        s = jnp.sum(y, axis=0, keepdims=True)
        total = s if total is None else total + s

    inv_count = 1.0 / float(n_batch * l_out)
    mean = total * inv_count
    sq = None
    for y in ys:
        d = y - mean
        s = jnp.sum(d * d, axis=0, keepdims=True)
        sq = s if sq is None else sq + s
    var = sq * inv_count

    scale = g_ref[...] * lax.rsqrt(var + _EPS)
    shift = be_ref[...] - mean * scale
    for n in range(n_batch):
        yn = ys[n] * scale + shift                                # (l_out, C)
        o_ref[n] = jnp.dot(a_ref[...], yn, preferred_element_type=jnp.float32)


# --------------------------------------------------------------------------
# Host-side constants & pallas_call wrappers
# --------------------------------------------------------------------------
def _pool_select_matrix(l_out):
    # MaxPool1d(kernel=4, stride=2): output i picks sliding-max position 2*i.
    l_pool = (l_out - 4) // 2 + 1
    s = np.zeros((l_pool, l_out - 3), np.float32)
    s[np.arange(l_pool), 2 * np.arange(l_pool)] = 1.0
    return s, l_pool


def _adaptive_avg_matrix(l_in, out_size):
    # AdaptiveAvgPool1d: out[i] = mean(x[floor(i*L/O) : ceil((i+1)*L/O)])
    a = np.zeros((out_size, l_in), np.float32)
    for i in range(out_size):
        s = (i * l_in) // out_size
        e = -((-(i + 1) * l_in) // out_size)
        a[i, s:e] = 1.0 / (e - s)
    return a


def _full_spec(shape):
    nd = len(shape)
    return pl.BlockSpec(shape, lambda *_: (0,) * nd)


def conv_relu_pool_bn(x_pad, w, b, gamma, beta):
    """x_pad: (N, L_pad, Cin) f32 with zero halo rows already included.
    Returns (N, L_pool + 2, Cout) f32 with zero halo rows for the next conv."""
    n, l_pad, c_in = x_pad.shape
    ksize, _, c_out = w.shape
    l_out = l_pad - ksize + 1
    sel, l_pool = _pool_select_matrix(l_out)
    kern = functools.partial(_conv_pool_bn_kernel, n_batch=n, ksize=ksize,
                             l_out=l_out, l_pool=l_pool)
    return pl.pallas_call(
        kern,
        grid=(1,),
        in_specs=[
            _full_spec((n, l_pad, c_in)),
            _full_spec((ksize, c_in, c_out)),
            _full_spec((1, c_out)),
            _full_spec((1, c_out)),
            _full_spec((1, c_out)),
            _full_spec(sel.shape),
        ],
        out_specs=_full_spec((n, l_pool + 2, c_out)),
        out_shape=jax.ShapeDtypeStruct((n, l_pool + 2, c_out), jnp.float32),
    )(x_pad, w, b.reshape(1, c_out), gamma.reshape(1, c_out),
      beta.reshape(1, c_out), jnp.asarray(sel))


def conv_relu_bn_avgpool(x_pad, w, b, gamma, beta, out_size):
    """Final stage: conv + relu + bnorm + AdaptiveAvgPool1d(out_size).
    Returns channels-last (N, out_size, Cout) f32."""
    n, l_pad, c_in = x_pad.shape
    ksize, _, c_out = w.shape
    l_out = l_pad - ksize + 1
    a = _adaptive_avg_matrix(l_out, out_size)
    kern = functools.partial(_conv_bn_avgpool_kernel, n_batch=n, ksize=ksize,
                             l_out=l_out)
    return pl.pallas_call(
        kern,
        grid=(1,),
        in_specs=[
            _full_spec((n, l_pad, c_in)),
            _full_spec((ksize, c_in, c_out)),
            _full_spec((1, c_out)),
            _full_spec((1, c_out)),
            _full_spec((1, c_out)),
            _full_spec(a.shape),
        ],
        out_specs=_full_spec((n, out_size, c_out)),
        out_shape=jax.ShapeDtypeStruct((n, out_size, c_out), jnp.float32),
    )(x_pad, w, b.reshape(1, c_out), gamma.reshape(1, c_out),
      beta.reshape(1, c_out), jnp.asarray(a))


# --------------------------------------------------------------------------
# Parameter prep (layout + lane padding + bf16 cast) and forward
# --------------------------------------------------------------------------
def _prep_conv(w, b, gamma, beta, c_in_pad, c_out_pad):
    # torch Conv1d weight (Cout, Cin, K) -> (K, Cin_pad, Cout_pad) bf16.
    c_out, c_in, _ = w.shape
    wt = jnp.transpose(w, (2, 1, 0))                        # (K, Cin, Cout)
    wt = jnp.pad(wt, ((0, 0), (0, c_in_pad - c_in), (0, c_out_pad - c_out)))
    pad1 = (0, c_out_pad - c_out)                           # zero-pad => padded
    return (wt.astype(jnp.bfloat16), jnp.pad(b, pad1),      # channels stay 0
            jnp.pad(gamma, pad1), jnp.pad(beta, pad1))


def cnn_feature_extractor(x, p):
    # x: (N, C_in, L) f32  ->  (N, 256, 128) f32  (matches the PyTorch module)
    n, c_in, _ = x.shape
    c1_in = max(c_in, _LANE)                   # pad Cin up to a full lane tile

    w1, b1, g1, be1 = _prep_conv(p["w1"], p["b1"], p["g1"], p["be1"], c1_in, _LANE)
    w2, b2, g2, be2 = _prep_conv(p["w2"], p["b2"], p["g2"], p["be2"], _LANE, _LANE)
    w3, b3, g3, be3 = _prep_conv(p["w3"], p["b3"], p["g3"], p["be3"], _LANE, 256)

    # channels-last + zero halo rows (Conv1d padding=1); layout kept end-to-end
    xt = jnp.transpose(x, (0, 2, 1))                               # (N, L, Cin)
    xt = jnp.pad(xt, ((0, 0), (1, 1), (0, c1_in - c_in)))          # (N, L+2, 128)

    h = conv_relu_pool_bn(xt, w1, b1, g1, be1)          # conv1+relu1+pool1+bn1
    h = conv_relu_pool_bn(h, w2, b2, g2, be2)           # conv2+relu2+pool2+bn2
    h = conv_relu_bn_avgpool(h, w3, b3, g3, be3, 128)   # conv3+relu3+bn3+pool3
    return jnp.transpose(h, (0, 2, 1))                  # (N, 256, 128)


# --------------------------------------------------------------------------
# Parameters + main
# --------------------------------------------------------------------------
def init_params(key, input_channels):
    ks = jax.random.split(key, 12)

    def conv_init(kw, kb, cout, cin, ksz):
        fan_in = cin * ksz
        w = jax.random.normal(kw, (cout, cin, ksz), jnp.float32) / np.sqrt(fan_in)
        b = jax.random.uniform(kb, (cout,), jnp.float32, -0.1, 0.1)
        return w, b

    def bn_init(kg, kb, c):
        g = jax.random.uniform(kg, (c,), jnp.float32, 0.8, 1.2)
        b = jax.random.uniform(kb, (c,), jnp.float32, -0.1, 0.1)
        return g, b

    w1, b1 = conv_init(ks[0], ks[1], 64, input_channels, 9)
    g1, be1 = bn_init(ks[2], ks[3], 64)
    w2, b2 = conv_init(ks[4], ks[5], 128, 64, 9)
    g2, be2 = bn_init(ks[6], ks[7], 128)
    w3, b3 = conv_init(ks[8], ks[9], 256, 128, 9)
    g3, be3 = bn_init(ks[10], ks[11], 256)
    return dict(w1=w1, b1=b1, g1=g1, be1=be1,
                w2=w2, b2=b2, g2=g2, be2=be2,
                w3=w3, b3=b3, g3=g3, be3=be3)


if __name__ == "__main__":
    N, C_IN, L_IN = 2, 4, 96
    key = jax.random.PRNGKey(0)
    kx, kp = jax.random.split(key)
    x = jax.random.normal(kx, (N, C_IN, L_IN), jnp.float32)
    params = init_params(kp, C_IN)

    fwd = jax.jit(cnn_feature_extractor)
    out = jax.block_until_ready(fwd(x, params))

    assert out.shape == (N, 256, 128), out.shape
    assert out.dtype == jnp.float32
    assert bool(jnp.all(jnp.isfinite(out)))
    print("KERNEL_OK")
</pallas_src>

<mosaic_0001>
module attributes {stable_mosaic.version = 11 : i64} {
  func.func @_conv_pool_bn_kernel(%arg0: i32, %arg1: memref<2x98x128xf32, #tpu.memory_space<vmem>>, %arg2: memref<9x128x128xbf16, #tpu.memory_space<vmem>>, %arg3: memref<1x128xf32, #tpu.memory_space<vmem>>, %arg4: memref<1x128xf32, #tpu.memory_space<vmem>>, %arg5: memref<1x128xf32, #tpu.memory_space<vmem>>, %arg6: memref<44x87xf32, #tpu.memory_space<vmem>>, %arg7: memref<2x46x128xf32, #tpu.memory_space<vmem>>) attributes {dimension_semantics = [#tpu.dimension_semantics<arbitrary>], iteration_bounds = array<i64: 1>, scalar_prefetch = 0 : i64, scratch_operands = 0 : i64, tpu.core_type = #tpu.core_type<tc>, window_params = [{pipeline_mode = #tpu.pipeline_mode<synchronous>, transform_indices = @transform_0, window_bounds = array<i64: 2, 98, 128>}, {pipeline_mode = #tpu.pipeline_mode<synchronous>, transform_indices = @transform_1, window_bounds = array<i64: 9, 128, 128>}, {pipeline_mode = #tpu.pipeline_mode<synchronous>, transform_indices = @transform_2, window_bounds = array<i64: 1, 128>}, {pipeline_mode = #tpu.pipeline_mode<synchronous>, transform_indices = @transform_3, window_bounds = array<i64: 1, 128>}, {pipeline_mode = #tpu.pipeline_mode<synchronous>, transform_indices = @transform_4, window_bounds = array<i64: 1, 128>}, {pipeline_mode = #tpu.pipeline_mode<synchronous>, transform_indices = @transform_5, window_bounds = array<i64: 44, 87>}, {pipeline_mode = #tpu.pipeline_mode<synchronous>, transform_indices = @transform_6, window_bounds = array<i64: 2, 46, 128>}]} {
    %cst = arith.constant 0.000000e+00 : f32
    %0 = vector.broadcast %cst : f32 to vector<2x46x128xf32>
    %c0 = arith.constant 0 : index
    %c0_0 = arith.constant 0 : index
    %c0_1 = arith.constant 0 : index
    %1 = vector.load %arg7[%c0, %c0_0, %c0_1] : memref<2x46x128xf32, #tpu.memory_space<vmem>>, vector<2x46x128xf32>
    tpu.vector_store %arg7[%c0, %c0_0, %c0_1], %0 {strides = array<i32>} : memref<2x46x128xf32, #tpu.memory_space<vmem>>, vector<2x46x128xf32>,
    %c0_2 = arith.constant 0 : index
    %c0_3 = arith.constant 0 : index
    %c0_4 = arith.constant 0 : index
    %2 = vector.load %arg1[%c0_2, %c0_3, %c0_4] : memref<2x98x128xf32, #tpu.memory_space<vmem>>, vector<1x90x128xf32>
    %3 = vector.shape_cast %2 : vector<1x90x128xf32> to vector<90x128xf32>
    %4 = arith.truncf %3 : vector<90x128xf32> to vector<90x128xbf16>
    %c0_5 = arith.constant 0 : index
    %c0_6 = arith.constant 0 : index
    %c0_7 = arith.constant 0 : index
    %5 = vector.load %arg2[%c0_5, %c0_6, %c0_7] : memref<9x128x128xbf16, #tpu.memory_space<vmem>>, vector<1x128x128xbf16>
    %6 = vector.shape_cast %5 : vector<1x128x128xbf16> to vector<128x128xbf16>
    %cst_8 = arith.constant dense<0.000000e+00> : vector<90x128xf32>
    %7 = tpu.matmul %4, %6, %cst_8 {dimension_numbers = #tpu.dot_dimension_numbers<[1], [0], [0], [1], [0, 0, 1, 1], [], []>} : vector<90x128xbf16>, vector<128x128xbf16>, vector<90x128xf32> -> vector<90x128xf32>
    %c0_9 = arith.constant 0 : index
    %c1 = arith.constant 1 : index
    %c0_10 = arith.constant 0 : index
    %8 = vector.load %arg1[%c0_9, %c1, %c0_10] : memref<2x98x128xf32, #tpu.memory_space<vmem>>, vector<1x90x128xf32>
    %9 = vector.shape_cast %8 : vector<1x90x128xf32> to vector<90x128xf32>
    %10 = arith.truncf %9 : vector<90x128xf32> to vector<90x128xbf16>
    %c1_11 = arith.constant 1 : index
    %c0_12 = arith.constant 0 : index
    %c0_13 = arith.constant 0 : index
    %11 = vector.load %arg2[%c1_11, %c0_12, %c0_13] : memref<9x128x128xbf16, #tpu.memory_space<vmem>>, vector<1x128x128xbf16>
    %12 = vector.shape_cast %11 : vector<1x128x128xbf16> to vector<128x128xbf16>
    %cst_14 = arith.constant dense<0.000000e+00> : vector<90x128xf32>
    %13 = tpu.matmul %10, %12, %cst_14 {dimension_numbers = #tpu.dot_dimension_numbers<[1], [0], [0], [1], [0, 0, 1, 1], [], []>} : vector<90x128xbf16>, vector<128x128xbf16>, vector<90x128xf32> -> vector<90x128xf32>
    %14 = arith.addf %7, %13 : vector<90x128xf32>
    %c0_15 = arith.constant 0 : index
    %c2 = arith.constant 2 : index
    %c0_16 = arith.constant 0 : index
    %15 = vector.load %arg1[%c0_15, %c2, %c0_16] : memref<2x98x128xf32, #tpu.memory_space<vmem>>, vector<1x90x128xf32>
    %16 = vector.shape_cast %15 : vector<1x90x128xf32> to vector<90x128xf32>
    %17 = arith.truncf %16 : vector<90x128xf32> to vector<90x128xbf16>
    %c2_17 = arith.constant 2 : index
    %c0_18 = arith.constant 0 : index
    %c0_19 = arith.constant 0 : index
    %18 = vector.load %arg2[%c2_17, %c0_18, %c0_19] : memref<9x128x128xbf16, #tpu.memory_space<vmem>>, vector<1x128x128xbf16>
    %19 = vector.shape_cast %18 : vector<1x128x128xbf16> to vector<128x128xbf16>
    %cst_20 = arith.constant dense<0.000000e+00> : vector<90x128xf32>
    %20 = tpu.matmul %17, %19, %cst_20 {dimension_numbers = #tpu.dot_dimension_numbers<[1], [0], [0], [1], [0, 0, 1, 1], [], []>} : vector<90x128xbf16>, vector<128x128xbf16>, vector<90x128xf32> -> vector<90x128xf32>
    %21 = arith.addf %14, %20 : vector<90x128xf32>
    %c0_21 = arith.constant 0 : index
    %c3 = arith.constant 3 : index
    %c0_22 = arith.constant 0 : index
    %22 = vector.load %arg1[%c0_21, %c3, %c0_22] : memref<2x98x128xf32, #tpu.memory_space<vmem>>, vector<1x90x128xf32>
    %23 = vector.shape_cast %22 : vector<1x90x128xf32> to vector<90x128xf32>
    %24 = arith.truncf %23 : vector<90x128xf32> to vector<90x128xbf16>
    %c3_23 = arith.constant 3 : index
    %c0_24 = arith.constant 0 : index
    %c0_25 = arith.constant 0 : index
    %25 = vector.load %arg2[%c3_23, %c0_24, %c0_25] : memref<9x128x128xbf16, #tpu.memory_space<vmem>>, vector<1x128x128xbf16>
    %26 = vector.shape_cast %25 : vector<1x128x128xbf16> to vector<128x128xbf16>
    %cst_26 = arith.constant dense<0.000000e+00> : vector<90x128xf32>
    %27 = tpu.matmul %24, %26, %cst_26 {dimension_numbers = #tpu.dot_dimension_numbers<[1], [0], [0], [1], [0, 0, 1, 1], [], []>} : vector<90x128xbf16>, vector<128x128xbf16>, vector<90x128xf32> -> vector<90x128xf32>
    %28 = arith.addf %21, %27 : vector<90x128xf32>
    %c0_27 = arith.constant 0 : index
    %c4 = arith.constant 4 : index
    %c0_28 = arith.constant 0 : index
    %29 = vector.load %arg1[%c0_27, %c4, %c0_28] : memref<2x98x128xf32, #tpu.memory_space<vmem>>, vector<1x90x128xf32>
    %30 = vector.shape_cast %29 : vector<1x90x128xf32> to vector<90x128xf32>
    %31 = arith.truncf %30 : vector<90x128xf32> to vector<90x128xbf16>
    %c4_29 = arith.constant 4 : index
    %c0_30 = arith.constant 0 : index
    %c0_31 = arith.constant 0 : index
    %32 = vector.load %arg2[%c4_29, %c0_30, %c0_31] : memref<9x128x128xbf16, #tpu.memory_space<vmem>>, vector<1x128x128xbf16>
    %33 = vector.shape_cast %32 : vector<1x128x128xbf16> to vector<128x128xbf16>
    %cst_32 = arith.constant dense<0.000000e+00> : vector<90x128xf32>
    %34 = tpu.matmul %31, %33, %cst_32 {dimension_numbers = #tpu.dot_dimension_numbers<[1], [0], [0], [1], [0, 0, 1, 1], [], []>} : vector<90x128xbf16>, vector<128x128xbf16>, vector<90x128xf32> -> vector<90x128xf32>
    %35 = arith.addf %28, %34 : vector<90x128xf32>
    %c0_33 = arith.constant 0 : index
    %c5 = arith.constant 5 : index
    %c0_34 = arith.constant 0 : index
    %36 = vector.load %arg1[%c0_33, %c5, %c0_34] : memref<2x98x128xf32, #tpu.memory_space<vmem>>, vector<1x90x128xf32>
    %37 = vector.shape_cast %36 : vector<1x90x128xf32> to vector<90x128xf32>
    %38 = arith.truncf %37 : vector<90x128xf32> to vector<90x128xbf16>
    %c5_35 = arith.constant 5 : index
    %c0_36 = arith.constant 0 : index
    %c0_37 = arith.constant 0 : index
    %39 = vector.load %arg2[%c5_35, %c0_36, %c0_37] : memref<9x128x128xbf16, #tpu.memory_space<vmem>>, vector<1x128x128xbf16>
    %40 = vector.shape_cast %39 : vector<1x128x128xbf16> to vector<128x128xbf16>
    %cst_38 = arith.constant dense<0.000000e+00> : vector<90x128xf32>
    %41 = tpu.matmul %38, %40, %cst_38 {dimension_numbers = #tpu.dot_dimension_numbers<[1], [0], [0], [1], [0, 0, 1, 1], [], []>} : vector<90x128xbf16>, vector<128x128xbf16>, vector<90x128xf32> -> vector<90x128xf32>
    %42 = arith.addf %35, %41 : vector<90x128xf32>
    %c0_39 = arith.constant 0 : index
    %c6 = arith.constant 6 : index
    %c0_40 = arith.constant 0 : index
    %43 = vector.load %arg1[%c0_39, %c6, %c0_40] : memref<2x98x128xf32, #tpu.memory_space<vmem>>, vector<1x90x128xf32>
    %44 = vector.shape_cast %43 : vector<1x90x128xf32> to vector<90x128xf32>
    %45 = arith.truncf %44 : vector<90x128xf32> to vector<90x128xbf16>
    %c6_41 = arith.constant 6 : index
    %c0_42 = arith.constant 0 : index
    %c0_43 = arith.constant 0 : index
    %46 = vector.load %arg2[%c6_41, %c0_42, %c0_43] : memref<9x128x128xbf16, #tpu.memory_space<vmem>>, vector<1x128x128xbf16>
    %47 = vector.shape_cast %46 : vector<1x128x128xbf16> to vector<128x128xbf16>
    %cst_44 = arith.constant dense<0.000000e+00> : vector<90x128xf32>
    %48 = tpu.matmul %45, %47, %cst_44 {dimension_numbers = #tpu.dot_dimension_numbers<[1], [0], [0], [1], [0, 0, 1, 1], [], []>} : vector<90x128xbf16>, vector<128x128xbf16>, vector<90x128xf32> -> vector<90x128xf32>
    %49 = arith.addf %42, %48 : vector<90x128xf32>
    %c0_45 = arith.constant 0 : index
    %c7 = arith.constant 7 : index
    %c0_46 = arith.constant 0 : index
    %50 = vector.load %arg1[%c0_45, %c7, %c0_46] : memref<2x98x128xf32, #tpu.memory_space<vmem>>, vector<1x90x128xf32>
    %51 = vector.shape_cast %50 : vector<1x90x128xf32> to vector<90x128xf32>
    %52 = arith.truncf %51 : vector<90x128xf32> to vector<90x128xbf16>
    %c7_47 = arith.constant 7 : index
    %c0_48 = arith.constant 0 : index
    %c0_49 = arith.constant 0 : index
    %53 = vector.load %arg2[%c7_47, %c0_48, %c0_49] : memref<9x128x128xbf16, #tpu.memory_space<vmem>>, vector<1x128x128xbf16>
    %54 = vector.shape_cast %53 : vector<1x128x128xbf16> to vector<128x128xbf16>
    %cst_50 = arith.constant dense<0.000000e+00> : vector<90x128xf32>
    %55 = tpu.matmul %52, %54, %cst_50 {dimension_numbers = #tpu.dot_dimension_numbers<[1], [0], [0], [1], [0, 0, 1, 1], [], []>} : vector<90x128xbf16>, vector<128x128xbf16>, vector<90x128xf32> -> vector<90x128xf32>
    %56 = arith.addf %49, %55 : vector<90x128xf32>
    %c0_51 = arith.constant 0 : index
    %c8 = arith.constant 8 : index
    %c0_52 = arith.constant 0 : index
    %57 = vector.load %arg1[%c0_51, %c8, %c0_52] : memref<2x98x128xf32, #tpu.memory_space<vmem>>, vector<1x90x128xf32>
    %58 = vector.shape_cast %57 : vector<1x90x128xf32> to vector<90x128xf32>
    %59 = arith.truncf %58 : vector<90x128xf32> to vector<90x128xbf16>
    %c8_53 = arith.constant 8 : index
    %c0_54 = arith.constant 0 : index
    %c0_55 = arith.constant 0 : index
    %60 = vector.load %arg2[%c8_53, %c0_54, %c0_55] : memref<9x128x128xbf16, #tpu.memory_space<vmem>>, vector<1x128x128xbf16>
    %61 = vector.shape_cast %60 : vector<1x128x128xbf16> to vector<128x128xbf16>
    %cst_56 = arith.constant dense<0.000000e+00> : vector<90x128xf32>
    %62 = tpu.matmul %59, %61, %cst_56 {dimension_numbers = #tpu.dot_dimension_numbers<[1], [0], [0], [1], [0, 0, 1, 1], [], []>} : vector<90x128xbf16>, vector<128x128xbf16>, vector<90x128xf32> -> vector<90x128xf32>
    %63 = arith.addf %56, %62 : vector<90x128xf32>
    %c0_57 = arith.constant 0 : index
    %c0_58 = arith.constant 0 : index
    %64 = vector.load %arg3[%c0_57, %c0_58] : memref<1x128xf32, #tpu.memory_space<vmem>>, vector<1x128xf32>
    %65 = vector.broadcast %64 : vector<1x128xf32> to vector<90x128xf32>
    %66 = arith.addf %63, %65 : vector<90x128xf32>
    %cst_59 = arith.constant 0.000000e+00 : f32
    %67 = vector.broadcast %cst_59 : f32 to vector<90x128xf32>
    %68 = arith.maximumf %66, %67 : vector<90x128xf32>
    %69 = vector.extract_strided_slice %68 {offsets = [0, 0], sizes = [87, 128], strides = [1, 1]} : vector<90x128xf32> to vector<87x128xf32>
    %70 = vector.extract_strided_slice %68 {offsets = [1, 0], sizes = [87, 128], strides = [1, 1]} : vector<90x128xf32> to vector<87x128xf32>
    %71 = arith.maximumf %69, %70 : vector<87x128xf32>
    %72 = vector.extract_strided_slice %68 {offsets = [2, 0], sizes = [87, 128], strides = [1, 1]} : vector<90x128xf32> to vector<87x128xf32>
    %73 = vector.extract_strided_slice %68 {offsets = [3, 0], sizes = [87, 128], strides = [1, 1]} : vector<90x128xf32> to vector<87x128xf32>
    %74 = arith.maximumf %72, %73 : vector<87x128xf32>
    %75 = arith.maximumf %71, %74 : vector<87x128xf32>
    %c0_60 = arith.constant 0 : index
    %c0_61 = arith.constant 0 : index
    %76 = vector.load %arg6[%c0_60, %c0_61] : memref<44x87xf32, #tpu.memory_space<vmem>>, vector<44x87xf32>
    %cst_62 = arith.constant dense<0.000000e+00> : vector<44x128xf32>
    %77 = tpu.matmul %76, %75, %cst_62 {dimension_numbers = #tpu.dot_dimension_numbers<[1], [0], [0], [1], [0, 0, 1, 1], [], []>} : vector<44x87xf32>, vector<87x128xf32>, vector<44x128xf32> -> vector<44x128xf32>
    %cst_63 = arith.constant dense<0.000000e+00> : vector<128xf32>
    %78 = vector.multi_reduction <add>, %77, %cst_63 [0] : vector<44x128xf32> to vector<128xf32>
    %79 = vector.shape_cast %78 : vector<128xf32> to vector<1x128xf32>
    %c1_64 = arith.constant 1 : index
    %c0_65 = arith.constant 0 : index
    %c0_66 = arith.constant 0 : index
    %80 = vector.load %arg1[%c1_64, %c0_65, %c0_66] : memref<2x98x128xf32, #tpu.memory_space<vmem>>, vector<1x90x128xf32>
    %81 = vector.shape_cast %80 : vector<1x90x128xf32> to vector<90x128xf32>
    %82 = arith.truncf %81 : vector<90x128xf32> to vector<90x128xbf16>
    %c0_67 = arith.constant 0 : index
    %c0_68 = arith.constant 0 : index
    %c0_69 = arith.constant 0 : index
    %83 = vector.load %arg2[%c0_67, %c0_68, %c0_69] : memref<9x128x128xbf16, #tpu.memory_space<vmem>>, vector<1x128x128xbf16>
    %84 = vector.shape_cast %83 : vector<1x128x128xbf16> to vector<128x128xbf16>
    %cst_70 = arith.constant dense<0.000000e+00> : vector<90x128xf32>
    %85 = tpu.matmul %82, %84, %cst_70 {dimension_numbers = #tpu.dot_dimension_numbers<[1], [0], [0], [1], [0, 0, 1, 1], [], []>} : vector<90x128xbf16>, vector<128x128xbf16>, vector<90x128xf32> -> vector<90x128xf32>
    %c1_71 = arith.constant 1 : index
    %c1_72 = arith.constant 1 : index
    %c0_73 = arith.constant 0 : index
    %86 = vector.load %arg1[%c1_71, %c1_72, %c0_73] : memref<2x98x128xf32, #tpu.memory_space<vmem>>, vector<1x90x128xf32>
    %87 = vector.shape_cast %86 : vector<1x90x128xf32> to vector<90x128xf32>
    %88 = arith.truncf %87 : vector<90x128xf32> to vector<90x128xbf16>
    %c1_74 = arith.constant 1 : index
    %c0_75 = arith.constant 0 : index
    %c0_76 = arith.constant 0 : index
    %89 = vector.load %arg2[%c1_74, %c0_75, %c0_76] : memref<9x128x128xbf16, #tpu.memory_space<vmem>>, vector<1x128x128xbf16>
    %90 = vector.shape_cast %89 : vector<1x128x128xbf16> to vector<128x128xbf16>
    %cst_77 = arith.constant dense<0.000000e+00> : vector<90x128xf32>
    %91 = tpu.matmul %88, %90, %cst_77 {dimension_numbers = #tpu.dot_dimension_numbers<[1], [0], [0], [1], [0, 0, 1, 1], [], []>} : vector<90x128xbf16>, vector<128x128xbf16>, vector<90x128xf32> -> vector<90x128xf32>
    %92 = arith.addf %85, %91 : vector<90x128xf32>
    %c1_78 = arith.constant 1 : index
    %c2_79 = arith.constant 2 : index
    %c0_80 = arith.constant 0 : index
    %93 = vector.load %arg1[%c1_78, %c2_79, %c0_80] : memref<2x98x128xf32, #tpu.memory_space<vmem>>, vector<1x90x128xf32>
    %94 = vector.shape_cast %93 : vector<1x90x128xf32> to vector<90x128xf32>
    %95 = arith.truncf %94 : vector<90x128xf32> to vector<90x128xbf16>
    %c2_81 = arith.constant 2 : index
    %c0_82 = arith.constant 0 : index
    %c0_83 = arith.constant 0 : index
    %96 = vector.load %arg2[%c2_81, %c0_82, %c0_83] : memref<9x128x128xbf16, #tpu.memory_space<vmem>>, vector<1x128x128xbf16>
    %97 = vector.shape_cast %96 : vector<1x128x128xbf16> to vector<128x128xbf16>
    %cst_84 = arith.constant dense<0.000000e+00> : vector<90x128xf32>
    %98 = tpu.matmul %95, %97, %cst_84 {dimension_numbers = #tpu.dot_dimension_numbers<[1], [0], [0], [1], [0, 0, 1, 1], [], []>} : vector<90x128xbf16>, vector<128x128xbf16>, vector<90x128xf32> -> vector<90x128xf32>
    %99 = arith.addf %92, %98 : vector<90x128xf32>
    %c1_85 = arith.constant 1 : index
    %c3_86 = arith.constant 3 : index
    %c0_87 = arith.constant 0 : index
    %100 = vector.load %arg1[%c1_85, %c3_86, %c0_87] : memref<2x98x128xf32, #tpu.memory_space<vmem>>, vector<1x90x128xf32>
    %101 = vector.shape_cast %100 : vector<1x90x128xf32> to vector<90x128xf32>
    %102 = arith.truncf %101 : vector<90x128xf32> to vector<90x128xbf16>
    %c3_88 = arith.constant 3 : index
    %c0_89 = arith.constant 0 : index
    %c0_90 = arith.constant 0 : index
    %103 = vector.load %arg2[%c3_88, %c0_89, %c0_90] : memref<9x128x128xbf16, #tpu.memory_space<vmem>>, vector<1x128x128xbf16>
    %104 = vector.shape_cast %103 : vector<1x128x128xbf16> to vector<128x128xbf16>
    %cst_91 = arith.constant dense<0.000000e+00> : vector<90x128xf32>
    %105 = tpu.matmul %102, %104, %cst_91 {dimension_numbers = #tpu.dot_dimension_numbers<[1], [0], [0], [1], [0, 0, 1, 1], [], []>} : vector<90x128xbf16>, vector<128x128xbf16>, vector<90x128xf32> -> vector<90x128xf32>
    %106 = arith.addf %99, %105 : vector<90x128xf32>
    %c1_92 = arith.constant 1 : index
    %c4_93 = arith.constant 4 : index
    %c0_94 = arith.constant 0 : index
    %107 = vector.load %arg1[%c1_92, %c4_93, %c0_94] : memref<2x98x128xf32, #tpu.memory_space<vmem>>, vector<1x90x128xf32>
    %108 = vector.shape_cast %107 : vector<1x90x128xf32> to vector<90x128xf32>
    %109 = arith.truncf %108 : vector<90x128xf32> to vector<90x128xbf16>
    %c4_95 = arith.constant 4 : index
    %c0_96 = arith.constant 0 : index
    %c0_97 = arith.constant 0 : index
    %110 = vector.load %arg2[%c4_95, %c0_96, %c0_97] : memref<9x128x128xbf16, #tpu.memory_space<vmem>>, vector<1x128x128xbf16>
    %111 = vector.shape_cast %110 : vector<1x128x128xbf16> to vector<128x128xbf16>
    %cst_98 = arith.constant dense<0.000000e+00> : vector<90x128xf32>
    %112 = tpu.matmul %109, %111, %cst_98 {dimension_numbers = #tpu.dot_dimension_numbers<[1], [0], [0], [1], [0, 0, 1, 1], [], []>} : vector<90x128xbf16>, vector<128x128xbf16>, vector<90x128xf32> -> vector<90x128xf32>
    %113 = arith.addf %106, %112 : vector<90x128xf32>
    %c1_99 = arith.constant 1 : index
    %c5_100 = arith.constant 5 : index
    %c0_101 = arith.constant 0 : index
    %114 = vector.load %arg1[%c1_99, %c5_100, %c0_101] : memref<2x98x128xf32, #tpu.memory_space<vmem>>, vector<1x90x128xf32>
    %115 = vector.shape_cast %114 : vector<1x90x128xf32> to vector<90x128xf32>
    %116 = arith.truncf %115 : vector<90x128xf32> to vector<90x128xbf16>
    %c5_102 = arith.constant 5 : index
    %c0_103 = arith.constant 0 : index
    %c0_104 = arith.constant 0 : index
    %117 = vector.load %arg2[%c5_102, %c0_103, %c0_104] : memref<9x128x128xbf16, #tpu.memory_space<vmem>>, vector<1x128x128xbf16>
    %118 = vector.shape_cast %117 : vector<1x128x128xbf16> to vector<128x128xbf16>
    %cst_105 = arith.constant dense<0.000000e+00> : vector<90x128xf32>
    %119 = tpu.matmul %116, %118, %cst_105 {dimension_numbers = #tpu.dot_dimension_numbers<[1], [0], [0], [1], [0, 0, 1, 1], [], []>} : vector<90x128xbf16>, vector<128x128xbf16>, vector<90x128xf32> -> vector<90x128xf32>
    %120 = arith.addf %113, %119 : vector<90x128xf32>
    %c1_106 = arith.constant 1 : index
    %c6_107 = arith.constant 6 : index
    %c0_108 = arith.constant 0 : index
    %121 = vector.load %arg1[%c1_106, %c6_107, %c0_108] : memref<2x98x128xf32, #tpu.memory_space<vmem>>, vector<1x90x128xf32>
    %122 = vector.shape_cast %121 : vector<1x90x128xf32> to vector<90x128xf32>
    %123 = arith.truncf %122 : vector<90x128xf32> to vector<90x128xbf16>
    %c6_109 = arith.constant 6 : index
    %c0_110 = arith.constant 0 : index
    %c0_111 = arith.constant 0 : index
    %124 = vector.load %arg2[%c6_109, %c0_110, %c0_111] : memref<9x128x128xbf16, #tpu.memory_space<vmem>>, vector<1x128x128xbf16>
    %125 = vector.shape_cast %124 : vector<1x128x128xbf16> to vector<128x128xbf16>
    %cst_112 = arith.constant dense<0.000000e+00> : vector<90x128xf32>
    %126 = tpu.matmul %123, %125, %cst_112 {dimension_numbers = #tpu.dot_dimension_numbers<[1], [0], [0], [1], [0, 0, 1, 1], [], []>} : vector<90x128xbf16>, vector<128x128xbf16>, vector<90x128xf32> -> vector<90x128xf32>
    %127 = arith.addf %120, %126 : vector<90x128xf32>
    %c1_113 = arith.constant 1 : index
    %c7_114 = arith.constant 7 : index
    %c0_115 = arith.constant 0 : index
    %128 = vector.load %arg1[%c1_113, %c7_114, %c0_115] : memref<2x98x128xf32, #tpu.memory_space<vmem>>, vector<1x90x128xf32>
    %129 = vector.shape_cast %128 : vector<1x90x128xf32> to vector<90x128xf32>
    %130 = arith.truncf %129 : vector<90x128xf32> to vector<90x128xbf16>
    %c7_116 = arith.constant 7 : index
    %c0_117 = arith.constant 0 : index
    %c0_118 = arith.constant 0 : index
    %131 = vector.load %arg2[%c7_116, %c0_117, %c0_118] : memref<9x128x128xbf16, #tpu.memory_space<vmem>>, vector<1x128x128xbf16>
    %132 = vector.shape_cast %131 : vector<1x128x128xbf16> to vector<128x128xbf16>
    %cst_119 = arith.constant dense<0.000000e+00> : vector<90x128xf32>
    %133 = tpu.matmul %130, %132, %cst_119 {dimension_numbers = #tpu.dot_dimension_numbers<[1], [0], [0], [1], [0, 0, 1, 1], [], []>} : vector<90x128xbf16>, vector<128x128xbf16>, vector<90x128xf32> -> vector<90x128xf32>
    %134 = arith.addf %127, %133 : vector<90x128xf32>
    %c1_120 = arith.constant 1 : index
    %c8_121 = arith.constant 8 : index
    %c0_122 = arith.constant 0 : index
    %135 = vector.load %arg1[%c1_120, %c8_121, %c0_122] : memref<2x98x128xf32, #tpu.memory_space<vmem>>, vector<1x90x128xf32>
    %136 = vector.shape_cast %135 : vector<1x90x128xf32> to vector<90x128xf32>
    %137 = arith.truncf %136 : vector<90x128xf32> to vector<90x128xbf16>
    %c8_123 = arith.constant 8 : index
    %c0_124 = arith.constant 0 : index
    %c0_125 = arith.constant 0 : index
    %138 = vector.load %arg2[%c8_123, %c0_124, %c0_125] : memref<9x128x128xbf16, #tpu.memory_space<vmem>>, vector<1x128x128xbf16>
    %139 = vector.shape_cast %138 : vector<1x128x128xbf16> to vector<128x128xbf16>
    %cst_126 = arith.constant dense<0.000000e+00> : vector<90x128xf32>
    %140 = tpu.matmul %137, %139, %cst_126 {dimension_numbers = #tpu.dot_dimension_numbers<[1], [0], [0], [1], [0, 0, 1, 1], [], []>} : vector<90x128xbf16>, vector<128x128xbf16>, vector<90x128xf32> -> vector<90x128xf32>
    %141 = arith.addf %134, %140 : vector<90x128xf32>
    %c0_127 = arith.constant 0 : index
    %c0_128 = arith.constant 0 : index
    %142 = vector.load %arg3[%c0_127, %c0_128] : memref<1x128xf32, #tpu.memory_space<vmem>>, vector<1x128xf32>
    %143 = vector.broadcast %142 : vector<1x128xf32> to vector<90x128xf32>
    %144 = arith.addf %141, %143 : vector<90x128xf32>
    %cst_129 = arith.constant 0.000000e+00 : f32
    %145 = vector.broadcast %cst_129 : f32 to vector<90x128xf32>
    %146 = arith.maximumf %144, %145 : vector<90x128xf32>
    %147 = vector.extract_strided_slice %146 {offsets = [0, 0], sizes = [87, 128], strides = [1, 1]} : vector<90x128xf32> to vector<87x128xf32>
    %148 = vector.extract_strided_slice %146 {offsets = [1, 0], sizes = [87, 128], strides = [1, 1]} : vector<90x128xf32> to vector<87x128xf32>
    %149 = arith.maximumf %147, %148 : vector<87x128xf32>
    %150 = vector.extract_strided_slice %146 {offsets = [2, 0], sizes = [87, 128], strides = [1, 1]} : vector<90x128xf32> to vector<87x128xf32>
    %151 = vector.extract_strided_slice %146 {offsets = [3, 0], sizes = [87, 128], strides = [1, 1]} : vector<90x128xf32> to vector<87x128xf32>
    %152 = arith.maximumf %150, %151 : vector<87x128xf32>
    %153 = arith.maximumf %149, %152 : vector<87x128xf32>
    %c0_130 = arith.constant 0 : index
    %c0_131 = arith.constant 0 : index
    %154 = vector.load %arg6[%c0_130, %c0_131] : memref<44x87xf32, #tpu.memory_space<vmem>>, vector<44x87xf32>
    %cst_132 = arith.constant dense<0.000000e+00> : vector<44x128xf32>
    %155 = tpu.matmul %154, %153, %cst_132 {dimension_numbers = #tpu.dot_dimension_numbers<[1], [0], [0], [1], [0, 0, 1, 1], [], []>} : vector<44x87xf32>, vector<87x128xf32>, vector<44x128xf32> -> vector<44x128xf32>
    %cst_133 = arith.constant dense<0.000000e+00> : vector<128xf32>
    %156 = vector.multi_reduction <add>, %155, %cst_133 [0] : vector<44x128xf32> to vector<128xf32>
    %157 = vector.shape_cast %156 : vector<128xf32> to vector<1x128xf32>
    %158 = arith.addf %79, %157 : vector<1x128xf32>
    %cst_134 = arith.constant 0.0113636367 : f32
    %159 = vector.broadcast %cst_134 : f32 to vector<1x128xf32>
    %160 = arith.mulf %158, %159 : vector<1x128xf32>
    %161 = vector.broadcast %160 : vector<1x128xf32> to vector<44x128xf32>
    %162 = arith.subf %77, %161 : vector<44x128xf32>
    %163 = arith.mulf %162, %162 : vector<44x128xf32>
    %cst_135 = arith.constant dense<0.000000e+00> : vector<128xf32>
    %164 = vector.multi_reduction <add>, %163, %cst_135 [0] : vector<44x128xf32> to vector<128xf32>
    %165 = vector.shape_cast %164 : vector<128xf32> to vector<1x128xf32>
    %166 = vector.broadcast %160 : vector<1x128xf32> to vector<44x128xf32>
    %167 = arith.subf %155, %166 : vector<44x128xf32>
    %168 = arith.mulf %167, %167 : vector<44x128xf32>
    %cst_136 = arith.constant dense<0.000000e+00> : vector<128xf32>
    %169 = vector.multi_reduction <add>, %168, %cst_136 [0] : vector<44x128xf32> to vector<128xf32>
    %170 = vector.shape_cast %169 : vector<128xf32> to vector<1x128xf32>
    %171 = arith.addf %165, %170 : vector<1x128xf32>
    %cst_137 = arith.constant 0.0113636367 : f32
    %172 = vector.broadcast %cst_137 : f32 to vector<1x128xf32>
    %173 = arith.mulf %171, %172 : vector<1x128xf32>
    %c0_138 = arith.constant 0 : index
    %c0_139 = arith.constant 0 : index
    %174 = vector.load %arg4[%c0_138, %c0_139] : memref<1x128xf32, #tpu.memory_space<vmem>>, vector<1x128xf32>
    %cst_140 = arith.constant 9.99999974E-6 : f32
    %175 = vector.broadcast %cst_140 : f32 to vector<1x128xf32>
    %176 = arith.addf %173, %175 : vector<1x128xf32>
    %177 = math.rsqrt %176 : vector<1x128xf32>
    %178 = arith.mulf %174, %177 : vector<1x128xf32>
    %c0_141 = arith.constant 0 : index
    %c0_142 = arith.constant 0 : index
    %179 = vector.load %arg5[%c0_141, %c0_142] : memref<1x128xf32, #tpu.memory_space<vmem>>, vector<1x128xf32>
    %180 = arith.mulf %160, %178 : vector<1x128xf32>
    %181 = arith.subf %179, %180 : vector<1x128xf32>
    %182 = vector.broadcast %178 : vector<1x128xf32> to vector<44x128xf32>
    %183 = arith.mulf %77, %182 : vector<44x128xf32>
    %184 = vector.broadcast %181 : vector<1x128xf32> to vector<44x128xf32>
    %185 = arith.addf %183, %184 : vector<44x128xf32>
    %c0_143 = arith.constant 0 : index
    %c1_144 = arith.constant 1 : index
    %c0_145 = arith.constant 0 : index
    %186 = vector.load %arg7[%c0_143, %c1_144, %c0_145] : memref<2x46x128xf32, #tpu.memory_space<vmem>>, vector<1x44x128xf32>
    %187 = vector.shape_cast %186 : vector<1x44x128xf32> to vector<44x128xf32>
    %188 = vector.shape_cast %185 : vector<44x128xf32> to vector<1x44x128xf32>
    tpu.vector_store %arg7[%c0_143, %c1_144, %c0_145], %188 {strides = array<i32>} : memref<2x46x128xf32, #tpu.memory_space<vmem>>, vector<1x44x128xf32>,
    %189 = vector.broadcast %178 : vector<1x128xf32> to vector<44x128xf32>
    %190 = arith.mulf %155, %189 : vector<44x128xf32>
    %191 = vector.broadcast %181 : vector<1x128xf32> to vector<44x128xf32>
    %192 = arith.addf %190, %191 : vector<44x128xf32>
    %c1_146 = arith.constant 1 : index
    %c1_147 = arith.constant 1 : index
    %c0_148 = arith.constant 0 : index
    %193 = vector.load %arg7[%c1_146, %c1_147, %c0_148] : memref<2x46x128xf32, #tpu.memory_space<vmem>>, vector<1x44x128xf32>
    %194 = vector.shape_cast %193 : vector<1x44x128xf32> to vector<44x128xf32>
    %195 = vector.shape_cast %192 : vector<44x128xf32> to vector<1x44x128xf32>
    tpu.vector_store %arg7[%c1_146, %c1_147, %c0_148], %195 {strides = array<i32>} : memref<2x46x128xf32, #tpu.memory_space<vmem>>, vector<1x44x128xf32>,
    return
  }
  func.func @transform_0(%arg0: i32) -> (i32, i32, i32) {
    %c0_i32 = arith.constant 0 : i32
    %c0_i32_0 = arith.constant 0 : i32
    %c0_i32_1 = arith.constant 0 : i32
    %c0_i32_2 = arith.constant 0 : i32
    return %c0_i32, %c0_i32_0, %c0_i32_1 : i32, i32, i32
  }
  func.func @transform_1(%arg0: i32) -> (i32, i32, i32) {
    %c0_i32 = arith.constant 0 : i32
    %c0_i32_0 = arith.constant 0 : i32
    %c0_i32_1 = arith.constant 0 : i32
    %c0_i32_2 = arith.constant 0 : i32
    return %c0_i32, %c0_i32_0, %c0_i32_1 : i32, i32, i32
  }
  func.func @transform_2(%arg0: i32) -> (i32, i32) {
    %c0_i32 = arith.constant 0 : i32
    %c0_i32_0 = arith.constant 0 : i32
    %c0_i32_1 = arith.constant 0 : i32
    return %c0_i32, %c0_i32_0 : i32, i32
  }
  func.func @transform_3(%arg0: i32) -> (i32, i32) {
    %c0_i32 = arith.constant 0 : i32
    %c0_i32_0 = arith.constant 0 : i32
    %c0_i32_1 = arith.constant 0 : i32
    return %c0_i32, %c0_i32_0 : i32, i32
  }
  func.func @transform_4(%arg0: i32) -> (i32, i32) {
    %c0_i32 = arith.constant 0 : i32
    %c0_i32_0 = arith.constant 0 : i32
    %c0_i32_1 = arith.constant 0 : i32
    return %c0_i32, %c0_i32_0 : i32, i32
  }
  func.func @transform_5(%arg0: i32) -> (i32, i32) {
    %c0_i32 = arith.constant 0 : i32
    %c0_i32_0 = arith.constant 0 : i32
    %c0_i32_1 = arith.constant 0 : i32
    return %c0_i32, %c0_i32_0 : i32, i32
  }
  func.func @transform_6(%arg0: i32) -> (i32, i32, i32) {
    %c0_i32 = arith.constant 0 : i32
    %c0_i32_0 = arith.constant 0 : i32
    %c0_i32_1 = arith.constant 0 : i32
    %c0_i32_2 = arith.constant 0 : i32
    return %c0_i32, %c0_i32_0, %c0_i32_1 : i32, i32, i32
  }
}

module attributes {stable_mosaic.version = 11 : i64} {
  func.func @_conv_pool_bn_kernel(%arg0: i32, %arg1: memref<2x46x128xf32, #tpu.memory_space<vmem>>, %arg2: memref<9x128x128xbf16, #tpu.memory_space<vmem>>, %arg3: memref<1x128xf32, #tpu.memory_space<vmem>>, %arg4: memref<1x128xf32, #tpu.memory_space<vmem>>, %arg5: memref<1x128xf32, #tpu.memory_space<vmem>>, %arg6: memref<18x35xf32, #tpu.memory_space<vmem>>, %arg7: memref<2x20x128xf32, #tpu.memory_space<vmem>>) attributes {dimension_semantics = [#tpu.dimension_semantics<arbitrary>], iteration_bounds = array<i64: 1>, scalar_prefetch = 0 : i64, scratch_operands = 0 : i64, tpu.core_type = #tpu.core_type<tc>, window_params = [{pipeline_mode = #tpu.pipeline_mode<synchronous>, transform_indices = @transform_0, window_bounds = array<i64: 2, 46, 128>}, {pipeline_mode = #tpu.pipeline_mode<synchronous>, transform_indices = @transform_1, window_bounds = array<i64: 9, 128, 128>}, {pipeline_mode = #tpu.pipeline_mode<synchronous>, transform_indices = @transform_2, window_bounds = array<i64: 1, 128>}, {pipeline_mode = #tpu.pipeline_mode<synchronous>, transform_indices = @transform_3, window_bounds = array<i64: 1, 128>}, {pipeline_mode = #tpu.pipeline_mode<synchronous>, transform_indices = @transform_4, window_bounds = array<i64: 1, 128>}, {pipeline_mode = #tpu.pipeline_mode<synchronous>, transform_indices = @transform_5, window_bounds = array<i64: 18, 35>}, {pipeline_mode = #tpu.pipeline_mode<synchronous>, transform_indices = @transform_6, window_bounds = array<i64: 2, 20, 128>}]} {
    %cst = arith.constant 0.000000e+00 : f32
    %0 = vector.broadcast %cst : f32 to vector<2x20x128xf32>
    %c0 = arith.constant 0 : index
    %c0_0 = arith.constant 0 : index
    %c0_1 = arith.constant 0 : index
    %1 = vector.load %arg7[%c0, %c0_0, %c0_1] : memref<2x20x128xf32, #tpu.memory_space<vmem>>, vector<2x20x128xf32>
    tpu.vector_store %arg7[%c0, %c0_0, %c0_1], %0 {strides = array<i32>} : memref<2x20x128xf32, #tpu.memory_space<vmem>>, vector<2x20x128xf32>,
    %c0_2 = arith.constant 0 : index
    %c0_3 = arith.constant 0 : index
    %c0_4 = arith.constant 0 : index
    %2 = vector.load %arg1[%c0_2, %c0_3, %c0_4] : memref<2x46x128xf32, #tpu.memory_space<vmem>>, vector<1x38x128xf32>
    %3 = vector.shape_cast %2 : vector<1x38x128xf32> to vector<38x128xf32>
    %4 = arith.truncf %3 : vector<38x128xf32> to vector<38x128xbf16>
    %c0_5 = arith.constant 0 : index
    %c0_6 = arith.constant 0 : index
    %c0_7 = arith.constant 0 : index
    %5 = vector.load %arg2[%c0_5, %c0_6, %c0_7] : memref<9x128x128xbf16, #tpu.memory_space<vmem>>, vector<1x128x128xbf16>
    %6 = vector.shape_cast %5 : vector<1x128x128xbf16> to vector<128x128xbf16>
    %cst_8 = arith.constant dense<0.000000e+00> : vector<38x128xf32>
    %7 = tpu.matmul %4, %6, %cst_8 {dimension_numbers = #tpu.dot_dimension_numbers<[1], [0], [0], [1], [0, 0, 1, 1], [], []>} : vector<38x128xbf16>, vector<128x128xbf16>, vector<38x128xf32> -> vector<38x128xf32>
    %c0_9 = arith.constant 0 : index
    %c1 = arith.constant 1 : index
    %c0_10 = arith.constant 0 : index
    %8 = vector.load %arg1[%c0_9, %c1, %c0_10] : memref<2x46x128xf32, #tpu.memory_space<vmem>>, vector<1x38x128xf32>
    %9 = vector.shape_cast %8 : vector<1x38x128xf32> to vector<38x128xf32>
    %10 = arith.truncf %9 : vector<38x128xf32> to vector<38x128xbf16>
    %c1_11 = arith.constant 1 : index
    %c0_12 = arith.constant 0 : index
    %c0_13 = arith.constant 0 : index
    %11 = vector.load %arg2[%c1_11, %c0_12, %c0_13] : memref<9x128x128xbf16, #tpu.memory_space<vmem>>, vector<1x128x128xbf16>
    %12 = vector.shape_cast %11 : vector<1x128x128xbf16> to vector<128x128xbf16>
    %cst_14 = arith.constant dense<0.000000e+00> : vector<38x128xf32>
    %13 = tpu.matmul %10, %12, %cst_14 {dimension_numbers = #tpu.dot_dimension_numbers<[1], [0], [0], [1], [0, 0, 1, 1], [], []>} : vector<38x128xbf16>, vector<128x128xbf16>, vector<38x128xf32> -> vector<38x128xf32>
    %14 = arith.addf %7, %13 : vector<38x128xf32>
    %c0_15 = arith.constant 0 : index
    %c2 = arith.constant 2 : index
    %c0_16 = arith.constant 0 : index
    %15 = vector.load %arg1[%c0_15, %c2, %c0_16] : memref<2x46x128xf32, #tpu.memory_space<vmem>>, vector<1x38x128xf32>
    %16 = vector.shape_cast %15 : vector<1x38x128xf32> to vector<38x128xf32>
    %17 = arith.truncf %16 : vector<38x128xf32> to vector<38x128xbf16>
    %c2_17 = arith.constant 2 : index
    %c0_18 = arith.constant 0 : index
    %c0_19 = arith.constant 0 : index
    %18 = vector.load %arg2[%c2_17, %c0_18, %c0_19] : memref<9x128x128xbf16, #tpu.memory_space<vmem>>, vector<1x128x128xbf16>
    %19 = vector.shape_cast %18 : vector<1x128x128xbf16> to vector<128x128xbf16>
    %cst_20 = arith.constant dense<0.000000e+00> : vector<38x128xf32>
    %20 = tpu.matmul %17, %19, %cst_20 {dimension_numbers = #tpu.dot_dimension_numbers<[1], [0], [0], [1], [0, 0, 1, 1], [], []>} : vector<38x128xbf16>, vector<128x128xbf16>, vector<38x128xf32> -> vector<38x128xf32>
    %21 = arith.addf %14, %20 : vector<38x128xf32>
    %c0_21 = arith.constant 0 : index
    %c3 = arith.constant 3 : index
    %c0_22 = arith.constant 0 : index
    %22 = vector.load %arg1[%c0_21, %c3, %c0_22] : memref<2x46x128xf32, #tpu.memory_space<vmem>>, vector<1x38x128xf32>
    %23 = vector.shape_cast %22 : vector<1x38x128xf32> to vector<38x128xf32>
    %24 = arith.truncf %23 : vector<38x128xf32> to vector<38x128xbf16>
    %c3_23 = arith.constant 3 : index
    %c0_24 = arith.constant 0 : index
    %c0_25 = arith.constant 0 : index
    %25 = vector.load %arg2[%c3_23, %c0_24, %c0_25] : memref<9x128x128xbf16, #tpu.memory_space<vmem>>, vector<1x128x128xbf16>
    %26 = vector.shape_cast %25 : vector<1x128x128xbf16> to vector<128x128xbf16>
    %cst_26 = arith.constant dense<0.000000e+00> : vector<38x128xf32>
    %27 = tpu.matmul %24, %26, %cst_26 {dimension_numbers = #tpu.dot_dimension_numbers<[1], [0], [0], [1], [0, 0, 1, 1], [], []>} : vector<38x128xbf16>, vector<128x128xbf16>, vector<38x128xf32> -> vector<38x128xf32>
    %28 = arith.addf %21, %27 : vector<38x128xf32>
    %c0_27 = arith.constant 0 : index
    %c4 = arith.constant 4 : index
    %c0_28 = arith.constant 0 : index
    %29 = vector.load %arg1[%c0_27, %c4, %c0_28] : memref<2x46x128xf32, #tpu.memory_space<vmem>>, vector<1x38x128xf32>
    %30 = vector.shape_cast %29 : vector<1x38x128xf32> to vector<38x128xf32>
    %31 = arith.truncf %30 : vector<38x128xf32> to vector<38x128xbf16>
    %c4_29 = arith.constant 4 : index
    %c0_30 = arith.constant 0 : index
    %c0_31 = arith.constant 0 : index
    %32 = vector.load %arg2[%c4_29, %c0_30, %c0_31] : memref<9x128x128xbf16, #tpu.memory_space<vmem>>, vector<1x128x128xbf16>
    %33 = vector.shape_cast %32 : vector<1x128x128xbf16> to vector<128x128xbf16>
    %cst_32 = arith.constant dense<0.000000e+00> : vector<38x128xf32>
    %34 = tpu.matmul %31, %33, %cst_32 {dimension_numbers = #tpu.dot_dimension_numbers<[1], [0], [0], [1], [0, 0, 1, 1], [], []>} : vector<38x128xbf16>, vector<128x128xbf16>, vector<38x128xf32> -> vector<38x128xf32>
    %35 = arith.addf %28, %34 : vector<38x128xf32>
    %c0_33 = arith.constant 0 : index
    %c5 = arith.constant 5 : index
    %c0_34 = arith.constant 0 : index
    %36 = vector.load %arg1[%c0_33, %c5, %c0_34] : memref<2x46x128xf32, #tpu.memory_space<vmem>>, vector<1x38x128xf32>
    %37 = vector.shape_cast %36 : vector<1x38x128xf32> to vector<38x128xf32>
    %38 = arith.truncf %37 : vector<38x128xf32> to vector<38x128xbf16>
    %c5_35 = arith.constant 5 : index
    %c0_36 = arith.constant 0 : index
    %c0_37 = arith.constant 0 : index
    %39 = vector.load %arg2[%c5_35, %c0_36, %c0_37] : memref<9x128x128xbf16, #tpu.memory_space<vmem>>, vector<1x128x128xbf16>
    %40 = vector.shape_cast %39 : vector<1x128x128xbf16> to vector<128x128xbf16>
    %cst_38 = arith.constant dense<0.000000e+00> : vector<38x128xf32>
    %41 = tpu.matmul %38, %40, %cst_38 {dimension_numbers = #tpu.dot_dimension_numbers<[1], [0], [0], [1], [0, 0, 1, 1], [], []>} : vector<38x128xbf16>, vector<128x128xbf16>, vector<38x128xf32> -> vector<38x128xf32>
    %42 = arith.addf %35, %41 : vector<38x128xf32>
    %c0_39 = arith.constant 0 : index
    %c6 = arith.constant 6 : index
    %c0_40 = arith.constant 0 : index
    %43 = vector.load %arg1[%c0_39, %c6, %c0_40] : memref<2x46x128xf32, #tpu.memory_space<vmem>>, vector<1x38x128xf32>
    %44 = vector.shape_cast %43 : vector<1x38x128xf32> to vector<38x128xf32>
    %45 = arith.truncf %44 : vector<38x128xf32> to vector<38x128xbf16>
    %c6_41 = arith.constant 6 : index
    %c0_42 = arith.constant 0 : index
    %c0_43 = arith.constant 0 : index
    %46 = vector.load %arg2[%c6_41, %c0_42, %c0_43] : memref<9x128x128xbf16, #tpu.memory_space<vmem>>, vector<1x128x128xbf16>
    %47 = vector.shape_cast %46 : vector<1x128x128xbf16> to vector<128x128xbf16>
    %cst_44 = arith.constant dense<0.000000e+00> : vector<38x128xf32>
    %48 = tpu.matmul %45, %47, %cst_44 {dimension_numbers = #tpu.dot_dimension_numbers<[1], [0], [0], [1], [0, 0, 1, 1], [], []>} : vector<38x128xbf16>, vector<128x128xbf16>, vector<38x128xf32> -> vector<38x128xf32>
    %49 = arith.addf %42, %48 : vector<38x128xf32>
    %c0_45 = arith.constant 0 : index
    %c7 = arith.constant 7 : index
    %c0_46 = arith.constant 0 : index
    %50 = vector.load %arg1[%c0_45, %c7, %c0_46] : memref<2x46x128xf32, #tpu.memory_space<vmem>>, vector<1x38x128xf32>
    %51 = vector.shape_cast %50 : vector<1x38x128xf32> to vector<38x128xf32>
    %52 = arith.truncf %51 : vector<38x128xf32> to vector<38x128xbf16>
    %c7_47 = arith.constant 7 : index
    %c0_48 = arith.constant 0 : index
    %c0_49 = arith.constant 0 : index
    %53 = vector.load %arg2[%c7_47, %c0_48, %c0_49] : memref<9x128x128xbf16, #tpu.memory_space<vmem>>, vector<1x128x128xbf16>
    %54 = vector.shape_cast %53 : vector<1x128x128xbf16> to vector<128x128xbf16>
    %cst_50 = arith.constant dense<0.000000e+00> : vector<38x128xf32>
    %55 = tpu.matmul %52, %54, %cst_50 {dimension_numbers = #tpu.dot_dimension_numbers<[1], [0], [0], [1], [0, 0, 1, 1], [], []>} : vector<38x128xbf16>, vector<128x128xbf16>, vector<38x128xf32> -> vector<38x128xf32>
    %56 = arith.addf %49, %55 : vector<38x128xf32>
    %c0_51 = arith.constant 0 : index
    %c8 = arith.constant 8 : index
    %c0_52 = arith.constant 0 : index
    %57 = vector.load %arg1[%c0_51, %c8, %c0_52] : memref<2x46x128xf32, #tpu.memory_space<vmem>>, vector<1x38x128xf32>
    %58 = vector.shape_cast %57 : vector<1x38x128xf32> to vector<38x128xf32>
    %59 = arith.truncf %58 : vector<38x128xf32> to vector<38x128xbf16>
    %c8_53 = arith.constant 8 : index
    %c0_54 = arith.constant 0 : index
    %c0_55 = arith.constant 0 : index
    %60 = vector.load %arg2[%c8_53, %c0_54, %c0_55] : memref<9x128x128xbf16, #tpu.memory_space<vmem>>, vector<1x128x128xbf16>
    %61 = vector.shape_cast %60 : vector<1x128x128xbf16> to vector<128x128xbf16>
    %cst_56 = arith.constant dense<0.000000e+00> : vector<38x128xf32>
    %62 = tpu.matmul %59, %61, %cst_56 {dimension_numbers = #tpu.dot_dimension_numbers<[1], [0], [0], [1], [0, 0, 1, 1], [], []>} : vector<38x128xbf16>, vector<128x128xbf16>, vector<38x128xf32> -> vector<38x128xf32>
    %63 = arith.addf %56, %62 : vector<38x128xf32>
    %c0_57 = arith.constant 0 : index
    %c0_58 = arith.constant 0 : index
    %64 = vector.load %arg3[%c0_57, %c0_58] : memref<1x128xf32, #tpu.memory_space<vmem>>, vector<1x128xf32>
    %65 = vector.broadcast %64 : vector<1x128xf32> to vector<38x128xf32>
    %66 = arith.addf %63, %65 : vector<38x128xf32>
    %cst_59 = arith.constant 0.000000e+00 : f32
    %67 = vector.broadcast %cst_59 : f32 to vector<38x128xf32>
    %68 = arith.maximumf %66, %67 : vector<38x128xf32>
    %69 = vector.extract_strided_slice %68 {offsets = [0, 0], sizes = [35, 128], strides = [1, 1]} : vector<38x128xf32> to vector<35x128xf32>
    %70 = vector.extract_strided_slice %68 {offsets = [1, 0], sizes = [35, 128], strides = [1, 1]} : vector<38x128xf32> to vector<35x128xf32>
    %71 = arith.maximumf %69, %70 : vector<35x128xf32>
    %72 = vector.extract_strided_slice %68 {offsets = [2, 0], sizes = [35, 128], strides = [1, 1]} : vector<38x128xf32> to vector<35x128xf32>
    %73 = vector.extract_strided_slice %68 {offsets = [3, 0], sizes = [35, 128], strides = [1, 1]} : vector<38x128xf32> to vector<35x128xf32>
    %74 = arith.maximumf %72, %73 : vector<35x128xf32>
    %75 = arith.maximumf %71, %74 : vector<35x128xf32>
    %c0_60 = arith.constant 0 : index
    %c0_61 = arith.constant 0 : index
    %76 = vector.load %arg6[%c0_60, %c0_61] : memref<18x35xf32, #tpu.memory_space<vmem>>, vector<18x35xf32>
    %cst_62 = arith.constant dense<0.000000e+00> : vector<18x128xf32>
    %77 = tpu.matmul %76, %75, %cst_62 {dimension_numbers = #tpu.dot_dimension_numbers<[1], [0], [0], [1], [0, 0, 1, 1], [], []>} : vector<18x35xf32>, vector<35x128xf32>, vector<18x128xf32> -> vector<18x128xf32>
    %cst_63 = arith.constant dense<0.000000e+00> : vector<128xf32>
    %78 = vector.multi_reduction <add>, %77, %cst_63 [0] : vector<18x128xf32> to vector<128xf32>
    %79 = vector.shape_cast %78 : vector<128xf32> to vector<1x128xf32>
    %c1_64 = arith.constant 1 : index
    %c0_65 = arith.constant 0 : index
    %c0_66 = arith.constant 0 : index
    %80 = vector.load %arg1[%c1_64, %c0_65, %c0_66] : memref<2x46x128xf32, #tpu.memory_space<vmem>>, vector<1x38x128xf32>
    %81 = vector.shape_cast %80 : vector<1x38x128xf32> to vector<38x128xf32>
    %82 = arith.truncf %81 : vector<38x128xf32> to vector<38x128xbf16>
    %c0_67 = arith.constant 0 : index
    %c0_68 = arith.constant 0 : index
    %c0_69 = arith.constant 0 : index
    %83 = vector.load %arg2[%c0_67, %c0_68, %c0_69] : memref<9x128x128xbf16, #tpu.memory_space<vmem>>, vector<1x128x128xbf16>
    %84 = vector.shape_cast %83 : vector<1x128x128xbf16> to vector<128x128xbf16>
    %cst_70 = arith.constant dense<0.000000e+00> : vector<38x128xf32>
    %85 = tpu.matmul %82, %84, %cst_70 {dimension_numbers = #tpu.dot_dimension_numbers<[1], [0], [0], [1], [0, 0, 1, 1], [], []>} : vector<38x128xbf16>, vector<128x128xbf16>, vector<38x128xf32> -> vector<38x128xf32>
    %c1_71 = arith.constant 1 : index
    %c1_72 = arith.constant 1 : index
    %c0_73 = arith.constant 0 : index
    %86 = vector.load %arg1[%c1_71, %c1_72, %c0_73] : memref<2x46x128xf32, #tpu.memory_space<vmem>>, vector<1x38x128xf32>
    %87 = vector.shape_cast %86 : vector<1x38x128xf32> to vector<38x128xf32>
    %88 = arith.truncf %87 : vector<38x128xf32> to vector<38x128xbf16>
    %c1_74 = arith.constant 1 : index
    %c0_75 = arith.constant 0 : index
    %c0_76 = arith.constant 0 : index
    %89 = vector.load %arg2[%c1_74, %c0_75, %c0_76] : memref<9x128x128xbf16, #tpu.memory_space<vmem>>, vector<1x128x128xbf16>
    %90 = vector.shape_cast %89 : vector<1x128x128xbf16> to vector<128x128xbf16>
    %cst_77 = arith.constant dense<0.000000e+00> : vector<38x128xf32>
    %91 = tpu.matmul %88, %90, %cst_77 {dimension_numbers = #tpu.dot_dimension_numbers<[1], [0], [0], [1], [0, 0, 1, 1], [], []>} : vector<38x128xbf16>, vector<128x128xbf16>, vector<38x128xf32> -> vector<38x128xf32>
    %92 = arith.addf %85, %91 : vector<38x128xf32>
    %c1_78 = arith.constant 1 : index
    %c2_79 = arith.constant 2 : index
    %c0_80 = arith.constant 0 : index
    %93 = vector.load %arg1[%c1_78, %c2_79, %c0_80] : memref<2x46x128xf32, #tpu.memory_space<vmem>>, vector<1x38x128xf32>
    %94 = vector.shape_cast %93 : vector<1x38x128xf32> to vector<38x128xf32>
    %95 = arith.truncf %94 : vector<38x128xf32> to vector<38x128xbf16>
    %c2_81 = arith.constant 2 : index
    %c0_82 = arith.constant 0 : index
    %c0_83 = arith.constant 0 : index
    %96 = vector.load %arg2[%c2_81, %c0_82, %c0_83] : memref<9x128x128xbf16, #tpu.memory_space<vmem>>, vector<1x128x128xbf16>
    %97 = vector.shape_cast %96 : vector<1x128x128xbf16> to vector<128x128xbf16>
    %cst_84 = arith.constant dense<0.000000e+00> : vector<38x128xf32>
    %98 = tpu.matmul %95, %97, %cst_84 {dimension_numbers = #tpu.dot_dimension_numbers<[1], [0], [0], [1], [0, 0, 1, 1], [], []>} : vector<38x128xbf16>, vector<128x128xbf16>, vector<38x128xf32> -> vector<38x128xf32>
    %99 = arith.addf %92, %98 : vector<38x128xf32>
    %c1_85 = arith.constant 1 : index
    %c3_86 = arith.constant 3 : index
    %c0_87 = arith.constant 0 : index
    %100 = vector.load %arg1[%c1_85, %c3_86, %c0_87] : memref<2x46x128xf32, #tpu.memory_space<vmem>>, vector<1x38x128xf32>
    %101 = vector.shape_cast %100 : vector<1x38x128xf32> to vector<38x128xf32>
    %102 = arith.truncf %101 : vector<38x128xf32> to vector<38x128xbf16>
    %c3_88 = arith.constant 3 : index
    %c0_89 = arith.constant 0 : index
    %c0_90 = arith.constant 0 : index
    %103 = vector.load %arg2[%c3_88, %c0_89, %c0_90] : memref<9x128x128xbf16, #tpu.memory_space<vmem>>, vector<1x128x128xbf16>
    %104 = vector.shape_cast %103 : vector<1x128x128xbf16> to vector<128x128xbf16>
    %cst_91 = arith.constant dense<0.000000e+00> : vector<38x128xf32>
    %105 = tpu.matmul %102, %104, %cst_91 {dimension_numbers = #tpu.dot_dimension_numbers<[1], [0], [0], [1], [0, 0, 1, 1], [], []>} : vector<38x128xbf16>, vector<128x128xbf16>, vector<38x128xf32> -> vector<38x128xf32>
    %106 = arith.addf %99, %105 : vector<38x128xf32>
    %c1_92 = arith.constant 1 : index
    %c4_93 = arith.constant 4 : index
    %c0_94 = arith.constant 0 : index
    %107 = vector.load %arg1[%c1_92, %c4_93, %c0_94] : memref<2x46x128xf32, #tpu.memory_space<vmem>>, vector<1x38x128xf32>
    %108 = vector.shape_cast %107 : vector<1x38x128xf32> to vector<38x128xf32>
    %109 = arith.truncf %108 : vector<38x128xf32> to vector<38x128xbf16>
    %c4_95 = arith.constant 4 : index
    %c0_96 = arith.constant 0 : index
    %c0_97 = arith.constant 0 : index
    %110 = vector.load %arg2[%c4_95, %c0_96, %c0_97] : memref<9x128x128xbf16, #tpu.memory_space<vmem>>, vector<1x128x128xbf16>
    %111 = vector.shape_cast %110 : vector<1x128x128xbf16> to vector<128x128xbf16>
    %cst_98 = arith.constant dense<0.000000e+00> : vector<38x128xf32>
    %112 = tpu.matmul %109, %111, %cst_98 {dimension_numbers = #tpu.dot_dimension_numbers<[1], [0], [0], [1], [0, 0, 1, 1], [], []>} : vector<38x128xbf16>, vector<128x128xbf16>, vector<38x128xf32> -> vector<38x128xf32>
    %113 = arith.addf %106, %112 : vector<38x128xf32>
    %c1_99 = arith.constant 1 : index
    %c5_100 = arith.constant 5 : index
    %c0_101 = arith.constant 0 : index
    %114 = vector.load %arg1[%c1_99, %c5_100, %c0_101] : memref<2x46x128xf32, #tpu.memory_space<vmem>>, vector<1x38x128xf32>
    %115 = vector.shape_cast %114 : vector<1x38x128xf32> to vector<38x128xf32>
    %116 = arith.truncf %115 : vector<38x128xf32> to vector<38x128xbf16>
    %c5_102 = arith.constant 5 : index
    %c0_103 = arith.constant 0 : index
    %c0_104 = arith.constant 0 : index
    %117 = vector.load %arg2[%c5_102, %c0_103, %c0_104] : memref<9x128x128xbf16, #tpu.memory_space<vmem>>, vector<1x128x128xbf16>
    %118 = vector.shape_cast %117 : vector<1x128x128xbf16> to vector<128x128xbf16>
    %cst_105 = arith.constant dense<0.000000e+00> : vector<38x128xf32>
    %119 = tpu.matmul %116, %118, %cst_105 {dimension_numbers = #tpu.dot_dimension_numbers<[1], [0], [0], [1], [0, 0, 1, 1], [], []>} : vector<38x128xbf16>, vector<128x128xbf16>, vector<38x128xf32> -> vector<38x128xf32>
    %120 = arith.addf %113, %119 : vector<38x128xf32>
    %c1_106 = arith.constant 1 : index
    %c6_107 = arith.constant 6 : index
    %c0_108 = arith.constant 0 : index
    %121 = vector.load %arg1[%c1_106, %c6_107, %c0_108] : memref<2x46x128xf32, #tpu.memory_space<vmem>>, vector<1x38x128xf32>
    %122 = vector.shape_cast %121 : vector<1x38x128xf32> to vector<38x128xf32>
    %123 = arith.truncf %122 : vector<38x128xf32> to vector<38x128xbf16>
    %c6_109 = arith.constant 6 : index
    %c0_110 = arith.constant 0 : index
    %c0_111 = arith.constant 0 : index
    %124 = vector.load %arg2[%c6_109, %c0_110, %c0_111] : memref<9x128x128xbf16, #tpu.memory_space<vmem>>, vector<1x128x128xbf16>
    %125 = vector.shape_cast %124 : vector<1x128x128xbf16> to vector<128x128xbf16>
    %cst_112 = arith.constant dense<0.000000e+00> : vector<38x128xf32>
    %126 = tpu.matmul %123, %125, %cst_112 {dimension_numbers = #tpu.dot_dimension_numbers<[1], [0], [0], [1], [0, 0, 1, 1], [], []>} : vector<38x128xbf16>, vector<128x128xbf16>, vector<38x128xf32> -> vector<38x128xf32>
    %127 = arith.addf %120, %126 : vector<38x128xf32>
    %c1_113 = arith.constant 1 : index
    %c7_114 = arith.constant 7 : index
    %c0_115 = arith.constant 0 : index
    %128 = vector.load %arg1[%c1_113, %c7_114, %c0_115] : memref<2x46x128xf32, #tpu.memory_space<vmem>>, vector<1x38x128xf32>
    %129 = vector.shape_cast %128 : vector<1x38x128xf32> to vector<38x128xf32>
    %130 = arith.truncf %129 : vector<38x128xf32> to vector<38x128xbf16>
    %c7_116 = arith.constant 7 : index
    %c0_117 = arith.constant 0 : index
    %c0_118 = arith.constant 0 : index
    %131 = vector.load %arg2[%c7_116, %c0_117, %c0_118] : memref<9x128x128xbf16, #tpu.memory_space<vmem>>, vector<1x128x128xbf16>
    %132 = vector.shape_cast %131 : vector<1x128x128xbf16> to vector<128x128xbf16>
    %cst_119 = arith.constant dense<0.000000e+00> : vector<38x128xf32>
    %133 = tpu.matmul %130, %132, %cst_119 {dimension_numbers = #tpu.dot_dimension_numbers<[1], [0], [0], [1], [0, 0, 1, 1], [], []>} : vector<38x128xbf16>, vector<128x128xbf16>, vector<38x128xf32> -> vector<38x128xf32>
    %134 = arith.addf %127, %133 : vector<38x128xf32>
    %c1_120 = arith.constant 1 : index
    %c8_121 = arith.constant 8 : index
    %c0_122 = arith.constant 0 : index
    %135 = vector.load %arg1[%c1_120, %c8_121, %c0_122] : memref<2x46x128xf32, #tpu.memory_space<vmem>>, vector<1x38x128xf32>
    %136 = vector.shape_cast %135 : vector<1x38x128xf32> to vector<38x128xf32>
    %137 = arith.truncf %136 : vector<38x128xf32> to vector<38x128xbf16>
    %c8_123 = arith.constant 8 : index
    %c0_124 = arith.constant 0 : index
    %c0_125 = arith.constant 0 : index
    %138 = vector.load %arg2[%c8_123, %c0_124, %c0_125] : memref<9x128x128xbf16, #tpu.memory_space<vmem>>, vector<1x128x128xbf16>
    %139 = vector.shape_cast %138 : vector<1x128x128xbf16> to vector<128x128xbf16>
    %cst_126 = arith.constant dense<0.000000e+00> : vector<38x128xf32>
    %140 = tpu.matmul %137, %139, %cst_126 {dimension_numbers = #tpu.dot_dimension_numbers<[1], [0], [0], [1], [0, 0, 1, 1], [], []>} : vector<38x128xbf16>, vector<128x128xbf16>, vector<38x128xf32> -> vector<38x128xf32>
    %141 = arith.addf %134, %140 : vector<38x128xf32>
    %c0_127 = arith.constant 0 : index
    %c0_128 = arith.constant 0 : index
    %142 = vector.load %arg3[%c0_127, %c0_128] : memref<1x128xf32, #tpu.memory_space<vmem>>, vector<1x128xf32>
    %143 = vector.broadcast %142 : vector<1x128xf32> to vector<38x128xf32>
    %144 = arith.addf %141, %143 : vector<38x128xf32>
    %cst_129 = arith.constant 0.000000e+00 : f32
    %145 = vector.broadcast %cst_129 : f32 to vector<38x128xf32>
    %146 = arith.maximumf %144, %145 : vector<38x128xf32>
    %147 = vector.extract_strided_slice %146 {offsets = [0, 0], sizes = [35, 128], strides = [1, 1]} : vector<38x128xf32> to vector<35x128xf32>
    %148 = vector.extract_strided_slice %146 {offsets = [1, 0], sizes = [35, 128], strides = [1, 1]} : vector<38x128xf32> to vector<35x128xf32>
    %149 = arith.maximumf %147, %148 : vector<35x128xf32>
    %150 = vector.extract_strided_slice %146 {offsets = [2, 0], sizes = [35, 128], strides = [1, 1]} : vector<38x128xf32> to vector<35x128xf32>
    %151 = vector.extract_strided_slice %146 {offsets = [3, 0], sizes = [35, 128], strides = [1, 1]} : vector<38x128xf32> to vector<35x128xf32>
    %152 = arith.maximumf %150, %151 : vector<35x128xf32>
    %153 = arith.maximumf %149, %152 : vector<35x128xf32>
    %c0_130 = arith.constant 0 : index
    %c0_131 = arith.constant 0 : index
    %154 = vector.load %arg6[%c0_130, %c0_131] : memref<18x35xf32, #tpu.memory_space<vmem>>, vector<18x35xf32>
    %cst_132 = arith.constant dense<0.000000e+00> : vector<18x128xf32>
    %155 = tpu.matmul %154, %153, %cst_132 {dimension_numbers = #tpu.dot_dimension_numbers<[1], [0], [0], [1], [0, 0, 1, 1], [], []>} : vector<18x35xf32>, vector<35x128xf32>, vector<18x128xf32> -> vector<18x128xf32>
    %cst_133 = arith.constant dense<0.000000e+00> : vector<128xf32>
    %156 = vector.multi_reduction <add>, %155, %cst_133 [0] : vector<18x128xf32> to vector<128xf32>
    %157 = vector.shape_cast %156 : vector<128xf32> to vector<1x128xf32>
    %158 = arith.addf %79, %157 : vector<1x128xf32>
    %cst_134 = arith.constant 0.027777778 : f32
    %159 = vector.broadcast %cst_134 : f32 to vector<1x128xf32>
    %160 = arith.mulf %158, %159 : vector<1x128xf32>
    %161 = vector.broadcast %160 : vector<1x128xf32> to vector<18x128xf32>
    %162 = arith.subf %77, %161 : vector<18x128xf32>
    %163 = arith.mulf %162, %162 : vector<18x128xf32>
    %cst_135 = arith.constant dense<0.000000e+00> : vector<128xf32>
    %164 = vector.multi_reduction <add>, %163, %cst_135 [0] : vector<18x128xf32> to vector<128xf32>
    %165 = vector.shape_cast %164 : vector<128xf32> to vector<1x128xf32>
    %166 = vector.broadcast %160 : vector<1x128xf32> to vector<18x128xf32>
    %167 = arith.subf %155, %166 : vector<18x128xf32>
    %168 = arith.mulf %167, %167 : vector<18x128xf32>
    %cst_136 = arith.constant dense<0.000000e+00> : vector<128xf32>
    %169 = vector.multi_reduction <add>, %168, %cst_136 [0] : vector<18x128xf32> to vector<128xf32>
    %170 = vector.shape_cast %169 : vector<128xf32> to vector<1x128xf32>
    %171 = arith.addf %165, %170 : vector<1x128xf32>
    %cst_137 = arith.constant 0.027777778 : f32
    %172 = vector.broadcast %cst_137 : f32 to vector<1x128xf32>
    %173 = arith.mulf %171, %172 : vector<1x128xf32>
    %c0_138 = arith.constant 0 : index
    %c0_139 = arith.constant 0 : index
    %174 = vector.load %arg4[%c0_138, %c0_139] : memref<1x128xf32, #tpu.memory_space<vmem>>, vector<1x128xf32>
    %cst_140 = arith.constant 9.99999974E-6 : f32
    %175 = vector.broadcast %cst_140 : f32 to vector<1x128xf32>
    %176 = arith.addf %173, %175 : vector<1x128xf32>
    %177 = math.rsqrt %176 : vector<1x128xf32>
    %178 = arith.mulf %174, %177 : vector<1x128xf32>
    %c0_141 = arith.constant 0 : index
    %c0_142 = arith.constant 0 : index
    %179 = vector.load %arg5[%c0_141, %c0_142] : memref<1x128xf32, #tpu.memory_space<vmem>>, vector<1x128xf32>
    %180 = arith.mulf %160, %178 : vector<1x128xf32>
    %181 = arith.subf %179, %180 : vector<1x128xf32>
    %182 = vector.broadcast %178 : vector<1x128xf32> to vector<18x128xf32>
    %183 = arith.mulf %77, %182 : vector<18x128xf32>
    %184 = vector.broadcast %181 : vector<1x128xf32> to vector<18x128xf32>
    %185 = arith.addf %183, %184 : vector<18x128xf32>
    %c0_143 = arith.constant 0 : index
    %c1_144 = arith.constant 1 : index
    %c0_145 = arith.constant 0 : index
    %186 = vector.load %arg7[%c0_143, %c1_144, %c0_145] : memref<2x20x128xf32, #tpu.memory_space<vmem>>, vector<1x18x128xf32>
    %187 = vector.shape_cast %186 : vector<1x18x128xf32> to vector<18x128xf32>
    %188 = vector.shape_cast %185 : vector<18x128xf32> to vector<1x18x128xf32>
    tpu.vector_store %arg7[%c0_143, %c1_144, %c0_145], %188 {strides = array<i32>} : memref<2x20x128xf32, #tpu.memory_space<vmem>>, vector<1x18x128xf32>,
    %189 = vector.broadcast %178 : vector<1x128xf32> to vector<18x128xf32>
    %190 = arith.mulf %155, %189 : vector<18x128xf32>
    %191 = vector.broadcast %181 : vector<1x128xf32> to vector<18x128xf32>
    %192 = arith.addf %190, %191 : vector<18x128xf32>
    %c1_146 = arith.constant 1 : index
    %c1_147 = arith.constant 1 : index
    %c0_148 = arith.constant 0 : index
    %193 = vector.load %arg7[%c1_146, %c1_147, %c0_148] : memref<2x20x128xf32, #tpu.memory_space<vmem>>, vector<1x18x128xf32>
    %194 = vector.shape_cast %193 : vector<1x18x128xf32> to vector<18x128xf32>
    %195 = vector.shape_cast %192 : vector<18x128xf32> to vector<1x18x128xf32>
    tpu.vector_store %arg7[%c1_146, %c1_147, %c0_148], %195 {strides = array<i32>} : memref<2x20x128xf32, #tpu.memory_space<vmem>>, vector<1x18x128xf32>,
    return
  }
  func.func @transform_0(%arg0: i32) -> (i32, i32, i32) {
    %c0_i32 = arith.constant 0 : i32
    %c0_i32_0 = arith.constant 0 : i32
    %c0_i32_1 = arith.constant 0 : i32
    %c0_i32_2 = arith.constant 0 : i32
    return %c0_i32, %c0_i32_0, %c0_i32_1 : i32, i32, i32
  }
  func.func @transform_1(%arg0: i32) -> (i32, i32, i32) {
    %c0_i32 = arith.constant 0 : i32
    %c0_i32_0 = arith.constant 0 : i32
    %c0_i32_1 = arith.constant 0 : i32
    %c0_i32_2 = arith.constant 0 : i32
    return %c0_i32, %c0_i32_0, %c0_i32_1 : i32, i32, i32
  }
  func.func @transform_2(%arg0: i32) -> (i32, i32) {
    %c0_i32 = arith.constant 0 : i32
    %c0_i32_0 = arith.constant 0 : i32
    %c0_i32_1 = arith.constant 0 : i32
    return %c0_i32, %c0_i32_0 : i32, i32
  }
  func.func @transform_3(%arg0: i32) -> (i32, i32) {
    %c0_i32 = arith.constant 0 : i32
    %c0_i32_0 = arith.constant 0 : i32
    %c0_i32_1 = arith.constant 0 : i32
    return %c0_i32, %c0_i32_0 : i32, i32
  }
  func.func @transform_4(%arg0: i32) -> (i32, i32) {
    %c0_i32 = arith.constant 0 : i32
    %c0_i32_0 = arith.constant 0 : i32
    %c0_i32_1 = arith.constant 0 : i32
    return %c0_i32, %c0_i32_0 : i32, i32
  }
  func.func @transform_5(%arg0: i32) -> (i32, i32) {
    %c0_i32 = arith.constant 0 : i32
    %c0_i32_0 = arith.constant 0 : i32
    %c0_i32_1 = arith.constant 0 : i32
    return %c0_i32, %c0_i32_0 : i32, i32
  }
  func.func @transform_6(%arg0: i32) -> (i32, i32, i32) {
    %c0_i32 = arith.constant 0 : i32
    %c0_i32_0 = arith.constant 0 : i32
    %c0_i32_1 = arith.constant 0 : i32
    %c0_i32_2 = arith.constant 0 : i32
    return %c0_i32, %c0_i32_0, %c0_i32_1 : i32, i32, i32
  }
}

module attributes {stable_mosaic.version = 11 : i64} {
  func.func @_conv_bn_avgpool_kernel(%arg0: i32, %arg1: memref<2x20x128xf32, #tpu.memory_space<vmem>>, %arg2: memref<9x128x256xbf16, #tpu.memory_space<vmem>>, %arg3: memref<1x256xf32, #tpu.memory_space<vmem>>, %arg4: memref<1x256xf32, #tpu.memory_space<vmem>>, %arg5: memref<1x256xf32, #tpu.memory_space<vmem>>, %arg6: memref<128x12xf32, #tpu.memory_space<vmem>>, %arg7: memref<2x128x256xf32, #tpu.memory_space<vmem>>) attributes {dimension_semantics = [#tpu.dimension_semantics<arbitrary>], iteration_bounds = array<i64: 1>, scalar_prefetch = 0 : i64, scratch_operands = 0 : i64, tpu.core_type = #tpu.core_type<tc>, window_params = [{pipeline_mode = #tpu.pipeline_mode<synchronous>, transform_indices = @transform_0, window_bounds = array<i64: 2, 20, 128>}, {pipeline_mode = #tpu.pipeline_mode<synchronous>, transform_indices = @transform_1, window_bounds = array<i64: 9, 128, 256>}, {pipeline_mode = #tpu.pipeline_mode<synchronous>, transform_indices = @transform_2, window_bounds = array<i64: 1, 256>}, {pipeline_mode = #tpu.pipeline_mode<synchronous>, transform_indices = @transform_3, window_bounds = array<i64: 1, 256>}, {pipeline_mode = #tpu.pipeline_mode<synchronous>, transform_indices = @transform_4, window_bounds = array<i64: 1, 256>}, {pipeline_mode = #tpu.pipeline_mode<synchronous>, transform_indices = @transform_5, window_bounds = array<i64: 128, 12>}, {pipeline_mode = #tpu.pipeline_mode<synchronous>, transform_indices = @transform_6, window_bounds = array<i64: 2, 128, 256>}]} {
    %c0 = arith.constant 0 : index
    %c0_0 = arith.constant 0 : index
    %c0_1 = arith.constant 0 : index
    %0 = vector.load %arg1[%c0, %c0_0, %c0_1] : memref<2x20x128xf32, #tpu.memory_space<vmem>>, vector<1x12x128xf32>
    %1 = vector.shape_cast %0 : vector<1x12x128xf32> to vector<12x128xf32>
    %2 = arith.truncf %1 : vector<12x128xf32> to vector<12x128xbf16>
    %c0_2 = arith.constant 0 : index
    %c0_3 = arith.constant 0 : index
    %c0_4 = arith.constant 0 : index
    %3 = vector.load %arg2[%c0_2, %c0_3, %c0_4] : memref<9x128x256xbf16, #tpu.memory_space<vmem>>, vector<1x128x256xbf16>
    %4 = vector.shape_cast %3 : vector<1x128x256xbf16> to vector<128x256xbf16>
    %cst = arith.constant dense<0.000000e+00> : vector<12x256xf32>
    %5 = tpu.matmul %2, %4, %cst {dimension_numbers = #tpu.dot_dimension_numbers<[1], [0], [0], [1], [0, 0, 1, 1], [], []>} : vector<12x128xbf16>, vector<128x256xbf16>, vector<12x256xf32> -> vector<12x256xf32>
    %c0_5 = arith.constant 0 : index
    %c1 = arith.constant 1 : index
    %c0_6 = arith.constant 0 : index
    %6 = vector.load %arg1[%c0_5, %c1, %c0_6] : memref<2x20x128xf32, #tpu.memory_space<vmem>>, vector<1x12x128xf32>
    %7 = vector.shape_cast %6 : vector<1x12x128xf32> to vector<12x128xf32>
    %8 = arith.truncf %7 : vector<12x128xf32> to vector<12x128xbf16>
    %c1_7 = arith.constant 1 : index
    %c0_8 = arith.constant 0 : index
    %c0_9 = arith.constant 0 : index
    %9 = vector.load %arg2[%c1_7, %c0_8, %c0_9] : memref<9x128x256xbf16, #tpu.memory_space<vmem>>, vector<1x128x256xbf16>
    %10 = vector.shape_cast %9 : vector<1x128x256xbf16> to vector<128x256xbf16>
    %cst_10 = arith.constant dense<0.000000e+00> : vector<12x256xf32>
    %11 = tpu.matmul %8, %10, %cst_10 {dimension_numbers = #tpu.dot_dimension_numbers<[1], [0], [0], [1], [0, 0, 1, 1], [], []>} : vector<12x128xbf16>, vector<128x256xbf16>, vector<12x256xf32> -> vector<12x256xf32>
    %12 = arith.addf %5, %11 : vector<12x256xf32>
    %c0_11 = arith.constant 0 : index
    %c2 = arith.constant 2 : index
    %c0_12 = arith.constant 0 : index
    %13 = vector.load %arg1[%c0_11, %c2, %c0_12] : memref<2x20x128xf32, #tpu.memory_space<vmem>>, vector<1x12x128xf32>
    %14 = vector.shape_cast %13 : vector<1x12x128xf32> to vector<12x128xf32>
    %15 = arith.truncf %14 : vector<12x128xf32> to vector<12x128xbf16>
    %c2_13 = arith.constant 2 : index
    %c0_14 = arith.constant 0 : index
    %c0_15 = arith.constant 0 : index
    %16 = vector.load %arg2[%c2_13, %c0_14, %c0_15] : memref<9x128x256xbf16, #tpu.memory_space<vmem>>, vector<1x128x256xbf16>
    %17 = vector.shape_cast %16 : vector<1x128x256xbf16> to vector<128x256xbf16>
    %cst_16 = arith.constant dense<0.000000e+00> : vector<12x256xf32>
    %18 = tpu.matmul %15, %17, %cst_16 {dimension_numbers = #tpu.dot_dimension_numbers<[1], [0], [0], [1], [0, 0, 1, 1], [], []>} : vector<12x128xbf16>, vector<128x256xbf16>, vector<12x256xf32> -> vector<12x256xf32>
    %19 = arith.addf %12, %18 : vector<12x256xf32>
    %c0_17 = arith.constant 0 : index
    %c3 = arith.constant 3 : index
    %c0_18 = arith.constant 0 : index
    %20 = vector.load %arg1[%c0_17, %c3, %c0_18] : memref<2x20x128xf32, #tpu.memory_space<vmem>>, vector<1x12x128xf32>
    %21 = vector.shape_cast %20 : vector<1x12x128xf32> to vector<12x128xf32>
    %22 = arith.truncf %21 : vector<12x128xf32> to vector<12x128xbf16>
    %c3_19 = arith.constant 3 : index
    %c0_20 = arith.constant 0 : index
    %c0_21 = arith.constant 0 : index
    %23 = vector.load %arg2[%c3_19, %c0_20, %c0_21] : memref<9x128x256xbf16, #tpu.memory_space<vmem>>, vector<1x128x256xbf16>
    %24 = vector.shape_cast %23 : vector<1x128x256xbf16> to vector<128x256xbf16>
    %cst_22 = arith.constant dense<0.000000e+00> : vector<12x256xf32>
    %25 = tpu.matmul %22, %24, %cst_22 {dimension_numbers = #tpu.dot_dimension_numbers<[1], [0], [0], [1], [0, 0, 1, 1], [], []>} : vector<12x128xbf16>, vector<128x256xbf16>, vector<12x256xf32> -> vector<12x256xf32>
    %26 = arith.addf %19, %25 : vector<12x256xf32>
    %c0_23 = arith.constant 0 : index
    %c4 = arith.constant 4 : index
    %c0_24 = arith.constant 0 : index
    %27 = vector.load %arg1[%c0_23, %c4, %c0_24] : memref<2x20x128xf32, #tpu.memory_space<vmem>>, vector<1x12x128xf32>
    %28 = vector.shape_cast %27 : vector<1x12x128xf32> to vector<12x128xf32>
    %29 = arith.truncf %28 : vector<12x128xf32> to vector<12x128xbf16>
    %c4_25 = arith.constant 4 : index
    %c0_26 = arith.constant 0 : index
    %c0_27 = arith.constant 0 : index
    %30 = vector.load %arg2[%c4_25, %c0_26, %c0_27] : memref<9x128x256xbf16, #tpu.memory_space<vmem>>, vector<1x128x256xbf16>
    %31 = vector.shape_cast %30 : vector<1x128x256xbf16> to vector<128x256xbf16>
    %cst_28 = arith.constant dense<0.000000e+00> : vector<12x256xf32>
    %32 = tpu.matmul %29, %31, %cst_28 {dimension_numbers = #tpu.dot_dimension_numbers<[1], [0], [0], [1], [0, 0, 1, 1], [], []>} : vector<12x128xbf16>, vector<128x256xbf16>, vector<12x256xf32> -> vector<12x256xf32>
    %33 = arith.addf %26, %32 : vector<12x256xf32>
    %c0_29 = arith.constant 0 : index
    %c5 = arith.constant 5 : index
    %c0_30 = arith.constant 0 : index
    %34 = vector.load %arg1[%c0_29, %c5, %c0_30] : memref<2x20x128xf32, #tpu.memory_space<vmem>>, vector<1x12x128xf32>
    %35 = vector.shape_cast %34 : vector<1x12x128xf32> to vector<12x128xf32>
    %36 = arith.truncf %35 : vector<12x128xf32> to vector<12x128xbf16>
    %c5_31 = arith.constant 5 : index
    %c0_32 = arith.constant 0 : index
    %c0_33 = arith.constant 0 : index
    %37 = vector.load %arg2[%c5_31, %c0_32, %c0_33] : memref<9x128x256xbf16, #tpu.memory_space<vmem>>, vector<1x128x256xbf16>
    %38 = vector.shape_cast %37 : vector<1x128x256xbf16> to vector<128x256xbf16>
    %cst_34 = arith.constant dense<0.000000e+00> : vector<12x256xf32>
    %39 = tpu.matmul %36, %38, %cst_34 {dimension_numbers = #tpu.dot_dimension_numbers<[1], [0], [0], [1], [0, 0, 1, 1], [], []>} : vector<12x128xbf16>, vector<128x256xbf16>, vector<12x256xf32> -> vector<12x256xf32>
    %40 = arith.addf %33, %39 : vector<12x256xf32>
    %c0_35 = arith.constant 0 : index
    %c6 = arith.constant 6 : index
    %c0_36 = arith.constant 0 : index
    %41 = vector.load %arg1[%c0_35, %c6, %c0_36] : memref<2x20x128xf32, #tpu.memory_space<vmem>>, vector<1x12x128xf32>
    %42 = vector.shape_cast %41 : vector<1x12x128xf32> to vector<12x128xf32>
    %43 = arith.truncf %42 : vector<12x128xf32> to vector<12x128xbf16>
    %c6_37 = arith.constant 6 : index
    %c0_38 = arith.constant 0 : index
    %c0_39 = arith.constant 0 : index
    %44 = vector.load %arg2[%c6_37, %c0_38, %c0_39] : memref<9x128x256xbf16, #tpu.memory_space<vmem>>, vector<1x128x256xbf16>
    %45 = vector.shape_cast %44 : vector<1x128x256xbf16> to vector<128x256xbf16>
    %cst_40 = arith.constant dense<0.000000e+00> : vector<12x256xf32>
    %46 = tpu.matmul %43, %45, %cst_40 {dimension_numbers = #tpu.dot_dimension_numbers<[1], [0], [0], [1], [0, 0, 1, 1], [], []>} : vector<12x128xbf16>, vector<128x256xbf16>, vector<12x256xf32> -> vector<12x256xf32>
    %47 = arith.addf %40, %46 : vector<12x256xf32>
    %c0_41 = arith.constant 0 : index
    %c7 = arith.constant 7 : index
    %c0_42 = arith.constant 0 : index
    %48 = vector.load %arg1[%c0_41, %c7, %c0_42] : memref<2x20x128xf32, #tpu.memory_space<vmem>>, vector<1x12x128xf32>
    %49 = vector.shape_cast %48 : vector<1x12x128xf32> to vector<12x128xf32>
    %50 = arith.truncf %49 : vector<12x128xf32> to vector<12x128xbf16>
    %c7_43 = arith.constant 7 : index
    %c0_44 = arith.constant 0 : index
    %c0_45 = arith.constant 0 : index
    %51 = vector.load %arg2[%c7_43, %c0_44, %c0_45] : memref<9x128x256xbf16, #tpu.memory_space<vmem>>, vector<1x128x256xbf16>
    %52 = vector.shape_cast %51 : vector<1x128x256xbf16> to vector<128x256xbf16>
    %cst_46 = arith.constant dense<0.000000e+00> : vector<12x256xf32>
    %53 = tpu.matmul %50, %52, %cst_46 {dimension_numbers = #tpu.dot_dimension_numbers<[1], [0], [0], [1], [0, 0, 1, 1], [], []>} : vector<12x128xbf16>, vector<128x256xbf16>, vector<12x256xf32> -> vector<12x256xf32>
    %54 = arith.addf %47, %53 : vector<12x256xf32>
    %c0_47 = arith.constant 0 : index
    %c8 = arith.constant 8 : index
    %c0_48 = arith.constant 0 : index
    %55 = vector.load %arg1[%c0_47, %c8, %c0_48] : memref<2x20x128xf32, #tpu.memory_space<vmem>>, vector<1x12x128xf32>
    %56 = vector.shape_cast %55 : vector<1x12x128xf32> to vector<12x128xf32>
    %57 = arith.truncf %56 : vector<12x128xf32> to vector<12x128xbf16>
    %c8_49 = arith.constant 8 : index
    %c0_50 = arith.constant 0 : index
    %c0_51 = arith.constant 0 : index
    %58 = vector.load %arg2[%c8_49, %c0_50, %c0_51] : memref<9x128x256xbf16, #tpu.memory_space<vmem>>, vector<1x128x256xbf16>
    %59 = vector.shape_cast %58 : vector<1x128x256xbf16> to vector<128x256xbf16>
    %cst_52 = arith.constant dense<0.000000e+00> : vector<12x256xf32>
    %60 = tpu.matmul %57, %59, %cst_52 {dimension_numbers = #tpu.dot_dimension_numbers<[1], [0], [0], [1], [0, 0, 1, 1], [], []>} : vector<12x128xbf16>, vector<128x256xbf16>, vector<12x256xf32> -> vector<12x256xf32>
    %61 = arith.addf %54, %60 : vector<12x256xf32>
    %c0_53 = arith.constant 0 : index
    %c0_54 = arith.constant 0 : index
    %62 = vector.load %arg3[%c0_53, %c0_54] : memref<1x256xf32, #tpu.memory_space<vmem>>, vector<1x256xf32>
    %63 = vector.broadcast %62 : vector<1x256xf32> to vector<12x256xf32>
    %64 = arith.addf %61, %63 : vector<12x256xf32>
    %cst_55 = arith.constant 0.000000e+00 : f32
    %65 = vector.broadcast %cst_55 : f32 to vector<12x256xf32>
    %66 = arith.maximumf %64, %65 : vector<12x256xf32>
    %cst_56 = arith.constant dense<0.000000e+00> : vector<256xf32>
    %67 = vector.multi_reduction <add>, %66, %cst_56 [0] : vector<12x256xf32> to vector<256xf32>
    %68 = vector.shape_cast %67 : vector<256xf32> to vector<1x256xf32>
    %c1_57 = arith.constant 1 : index
    %c0_58 = arith.constant 0 : index
    %c0_59 = arith.constant 0 : index
    %69 = vector.load %arg1[%c1_57, %c0_58, %c0_59] : memref<2x20x128xf32, #tpu.memory_space<vmem>>, vector<1x12x128xf32>
    %70 = vector.shape_cast %69 : vector<1x12x128xf32> to vector<12x128xf32>
    %71 = arith.truncf %70 : vector<12x128xf32> to vector<12x128xbf16>
    %c0_60 = arith.constant 0 : index
    %c0_61 = arith.constant 0 : index
    %c0_62 = arith.constant 0 : index
    %72 = vector.load %arg2[%c0_60, %c0_61, %c0_62] : memref<9x128x256xbf16, #tpu.memory_space<vmem>>, vector<1x128x256xbf16>
    %73 = vector.shape_cast %72 : vector<1x128x256xbf16> to vector<128x256xbf16>
    %cst_63 = arith.constant dense<0.000000e+00> : vector<12x256xf32>
    %74 = tpu.matmul %71, %73, %cst_63 {dimension_numbers = #tpu.dot_dimension_numbers<[1], [0], [0], [1], [0, 0, 1, 1], [], []>} : vector<12x128xbf16>, vector<128x256xbf16>, vector<12x256xf32> -> vector<12x256xf32>
    %c1_64 = arith.constant 1 : index
    %c1_65 = arith.constant 1 : index
    %c0_66 = arith.constant 0 : index
    %75 = vector.load %arg1[%c1_64, %c1_65, %c0_66] : memref<2x20x128xf32, #tpu.memory_space<vmem>>, vector<1x12x128xf32>
    %76 = vector.shape_cast %75 : vector<1x12x128xf32> to vector<12x128xf32>
    %77 = arith.truncf %76 : vector<12x128xf32> to vector<12x128xbf16>
    %c1_67 = arith.constant 1 : index
    %c0_68 = arith.constant 0 : index
    %c0_69 = arith.constant 0 : index
    %78 = vector.load %arg2[%c1_67, %c0_68, %c0_69] : memref<9x128x256xbf16, #tpu.memory_space<vmem>>, vector<1x128x256xbf16>
    %79 = vector.shape_cast %78 : vector<1x128x256xbf16> to vector<128x256xbf16>
    %cst_70 = arith.constant dense<0.000000e+00> : vector<12x256xf32>
    %80 = tpu.matmul %77, %79, %cst_70 {dimension_numbers = #tpu.dot_dimension_numbers<[1], [0], [0], [1], [0, 0, 1, 1], [], []>} : vector<12x128xbf16>, vector<128x256xbf16>, vector<12x256xf32> -> vector<12x256xf32>
    %81 = arith.addf %74, %80 : vector<12x256xf32>
    %c1_71 = arith.constant 1 : index
    %c2_72 = arith.constant 2 : index
    %c0_73 = arith.constant 0 : index
    %82 = vector.load %arg1[%c1_71, %c2_72, %c0_73] : memref<2x20x128xf32, #tpu.memory_space<vmem>>, vector<1x12x128xf32>
    %83 = vector.shape_cast %82 : vector<1x12x128xf32> to vector<12x128xf32>
    %84 = arith.truncf %83 : vector<12x128xf32> to vector<12x128xbf16>
    %c2_74 = arith.constant 2 : index
    %c0_75 = arith.constant 0 : index
    %c0_76 = arith.constant 0 : index
    %85 = vector.load %arg2[%c2_74, %c0_75, %c0_76] : memref<9x128x256xbf16, #tpu.memory_space<vmem>>, vector<1x128x256xbf16>
    %86 = vector.shape_cast %85 : vector<1x128x256xbf16> to vector<128x256xbf16>
    %cst_77 = arith.constant dense<0.000000e+00> : vector<12x256xf32>
    %87 = tpu.matmul %84, %86, %cst_77 {dimension_numbers = #tpu.dot_dimension_numbers<[1], [0], [0], [1], [0, 0, 1, 1], [], []>} : vector<12x128xbf16>, vector<128x256xbf16>, vector<12x256xf32> -> vector<12x256xf32>
    %88 = arith.addf %81, %87 : vector<12x256xf32>
    %c1_78 = arith.constant 1 : index
    %c3_79 = arith.constant 3 : index
    %c0_80 = arith.constant 0 : index
    %89 = vector.load %arg1[%c1_78, %c3_79, %c0_80] : memref<2x20x128xf32, #tpu.memory_space<vmem>>, vector<1x12x128xf32>
    %90 = vector.shape_cast %89 : vector<1x12x128xf32> to vector<12x128xf32>
    %91 = arith.truncf %90 : vector<12x128xf32> to vector<12x128xbf16>
    %c3_81 = arith.constant 3 : index
    %c0_82 = arith.constant 0 : index
    %c0_83 = arith.constant 0 : index
    %92 = vector.load %arg2[%c3_81, %c0_82, %c0_83] : memref<9x128x256xbf16, #tpu.memory_space<vmem>>, vector<1x128x256xbf16>
    %93 = vector.shape_cast %92 : vector<1x128x256xbf16> to vector<128x256xbf16>
    %cst_84 = arith.constant dense<0.000000e+00> : vector<12x256xf32>
    %94 = tpu.matmul %91, %93, %cst_84 {dimension_numbers = #tpu.dot_dimension_numbers<[1], [0], [0], [1], [0, 0, 1, 1], [], []>} : vector<12x128xbf16>, vector<128x256xbf16>, vector<12x256xf32> -> vector<12x256xf32>
    %95 = arith.addf %88, %94 : vector<12x256xf32>
    %c1_85 = arith.constant 1 : index
    %c4_86 = arith.constant 4 : index
    %c0_87 = arith.constant 0 : index
    %96 = vector.load %arg1[%c1_85, %c4_86, %c0_87] : memref<2x20x128xf32, #tpu.memory_space<vmem>>, vector<1x12x128xf32>
    %97 = vector.shape_cast %96 : vector<1x12x128xf32> to vector<12x128xf32>
    %98 = arith.truncf %97 : vector<12x128xf32> to vector<12x128xbf16>
    %c4_88 = arith.constant 4 : index
    %c0_89 = arith.constant 0 : index
    %c0_90 = arith.constant 0 : index
    %99 = vector.load %arg2[%c4_88, %c0_89, %c0_90] : memref<9x128x256xbf16, #tpu.memory_space<vmem>>, vector<1x128x256xbf16>
    %100 = vector.shape_cast %99 : vector<1x128x256xbf16> to vector<128x256xbf16>
    %cst_91 = arith.constant dense<0.000000e+00> : vector<12x256xf32>
    %101 = tpu.matmul %98, %100, %cst_91 {dimension_numbers = #tpu.dot_dimension_numbers<[1], [0], [0], [1], [0, 0, 1, 1], [], []>} : vector<12x128xbf16>, vector<128x256xbf16>, vector<12x256xf32> -> vector<12x256xf32>
    %102 = arith.addf %95, %101 : vector<12x256xf32>
    %c1_92 = arith.constant 1 : index
    %c5_93 = arith.constant 5 : index
    %c0_94 = arith.constant 0 : index
    %103 = vector.load %arg1[%c1_92, %c5_93, %c0_94] : memref<2x20x128xf32, #tpu.memory_space<vmem>>, vector<1x12x128xf32>
    %104 = vector.shape_cast %103 : vector<1x12x128xf32> to vector<12x128xf32>
    %105 = arith.truncf %104 : vector<12x128xf32> to vector<12x128xbf16>
    %c5_95 = arith.constant 5 : index
    %c0_96 = arith.constant 0 : index
    %c0_97 = arith.constant 0 : index
    %106 = vector.load %arg2[%c5_95, %c0_96, %c0_97] : memref<9x128x256xbf16, #tpu.memory_space<vmem>>, vector<1x128x256xbf16>
    %107 = vector.shape_cast %106 : vector<1x128x256xbf16> to vector<128x256xbf16>
    %cst_98 = arith.constant dense<0.000000e+00> : vector<12x256xf32>
    %108 = tpu.matmul %105, %107, %cst_98 {dimension_numbers = #tpu.dot_dimension_numbers<[1], [0], [0], [1], [0, 0, 1, 1], [], []>} : vector<12x128xbf16>, vector<128x256xbf16>, vector<12x256xf32> -> vector<12x256xf32>
    %109 = arith.addf %102, %108 : vector<12x256xf32>
    %c1_99 = arith.constant 1 : index
    %c6_100 = arith.constant 6 : index
    %c0_101 = arith.constant 0 : index
    %110 = vector.load %arg1[%c1_99, %c6_100, %c0_101] : memref<2x20x128xf32, #tpu.memory_space<vmem>>, vector<1x12x128xf32>
    %111 = vector.shape_cast %110 : vector<1x12x128xf32> to vector<12x128xf32>
    %112 = arith.truncf %111 : vector<12x128xf32> to vector<12x128xbf16>
    %c6_102 = arith.constant 6 : index
    %c0_103 = arith.constant 0 : index
    %c0_104 = arith.constant 0 : index
    %113 = vector.load %arg2[%c6_102, %c0_103, %c0_104] : memref<9x128x256xbf16, #tpu.memory_space<vmem>>, vector<1x128x256xbf16>
    %114 = vector.shape_cast %113 : vector<1x128x256xbf16> to vector<128x256xbf16>
    %cst_105 = arith.constant dense<0.000000e+00> : vector<12x256xf32>
    %115 = tpu.matmul %112, %114, %cst_105 {dimension_numbers = #tpu.dot_dimension_numbers<[1], [0], [0], [1], [0, 0, 1, 1], [], []>} : vector<12x128xbf16>, vector<128x256xbf16>, vector<12x256xf32> -> vector<12x256xf32>
    %116 = arith.addf %109, %115 : vector<12x256xf32>
    %c1_106 = arith.constant 1 : index
    %c7_107 = arith.constant 7 : index
    %c0_108 = arith.constant 0 : index
    %117 = vector.load %arg1[%c1_106, %c7_107, %c0_108] : memref<2x20x128xf32, #tpu.memory_space<vmem>>, vector<1x12x128xf32>
    %118 = vector.shape_cast %117 : vector<1x12x128xf32> to vector<12x128xf32>
    %119 = arith.truncf %118 : vector<12x128xf32> to vector<12x128xbf16>
    %c7_109 = arith.constant 7 : index
    %c0_110 = arith.constant 0 : index
    %c0_111 = arith.constant 0 : index
    %120 = vector.load %arg2[%c7_109, %c0_110, %c0_111] : memref<9x128x256xbf16, #tpu.memory_space<vmem>>, vector<1x128x256xbf16>
    %121 = vector.shape_cast %120 : vector<1x128x256xbf16> to vector<128x256xbf16>
    %cst_112 = arith.constant dense<0.000000e+00> : vector<12x256xf32>
    %122 = tpu.matmul %119, %121, %cst_112 {dimension_numbers = #tpu.dot_dimension_numbers<[1], [0], [0], [1], [0, 0, 1, 1], [], []>} : vector<12x128xbf16>, vector<128x256xbf16>, vector<12x256xf32> -> vector<12x256xf32>
    %123 = arith.addf %116, %122 : vector<12x256xf32>
    %c1_113 = arith.constant 1 : index
    %c8_114 = arith.constant 8 : index
    %c0_115 = arith.constant 0 : index
    %124 = vector.load %arg1[%c1_113, %c8_114, %c0_115] : memref<2x20x128xf32, #tpu.memory_space<vmem>>, vector<1x12x128xf32>
    %125 = vector.shape_cast %124 : vector<1x12x128xf32> to vector<12x128xf32>
    %126 = arith.truncf %125 : vector<12x128xf32> to vector<12x128xbf16>
    %c8_116 = arith.constant 8 : index
    %c0_117 = arith.constant 0 : index
    %c0_118 = arith.constant 0 : index
    %127 = vector.load %arg2[%c8_116, %c0_117, %c0_118] : memref<9x128x256xbf16, #tpu.memory_space<vmem>>, vector<1x128x256xbf16>
    %128 = vector.shape_cast %127 : vector<1x128x256xbf16> to vector<128x256xbf16>
    %cst_119 = arith.constant dense<0.000000e+00> : vector<12x256xf32>
    %129 = tpu.matmul %126, %128, %cst_119 {dimension_numbers = #tpu.dot_dimension_numbers<[1], [0], [0], [1], [0, 0, 1, 1], [], []>} : vector<12x128xbf16>, vector<128x256xbf16>, vector<12x256xf32> -> vector<12x256xf32>
    %130 = arith.addf %123, %129 : vector<12x256xf32>
    %c0_120 = arith.constant 0 : index
    %c0_121 = arith.constant 0 : index
    %131 = vector.load %arg3[%c0_120, %c0_121] : memref<1x256xf32, #tpu.memory_space<vmem>>, vector<1x256xf32>
    %132 = vector.broadcast %131 : vector<1x256xf32> to vector<12x256xf32>
    %133 = arith.addf %130, %132 : vector<12x256xf32>
    %cst_122 = arith.constant 0.000000e+00 : f32
    %134 = vector.broadcast %cst_122 : f32 to vector<12x256xf32>
    %135 = arith.maximumf %133, %134 : vector<12x256xf32>
    %cst_123 = arith.constant dense<0.000000e+00> : vector<256xf32>
    %136 = vector.multi_reduction <add>, %135, %cst_123 [0] : vector<12x256xf32> to vector<256xf32>
    %137 = vector.shape_cast %136 : vector<256xf32> to vector<1x256xf32>
    %138 = arith.addf %68, %137 : vector<1x256xf32>
    %cst_124 = arith.constant 0.0416666679 : f32
    %139 = vector.broadcast %cst_124 : f32 to vector<1x256xf32>
    %140 = arith.mulf %138, %139 : vector<1x256xf32>
    %141 = vector.broadcast %140 : vector<1x256xf32> to vector<12x256xf32>
    %142 = arith.subf %66, %141 : vector<12x256xf32>
    %143 = arith.mulf %142, %142 : vector<12x256xf32>
    %cst_125 = arith.constant dense<0.000000e+00> : vector<256xf32>
    %144 = vector.multi_reduction <add>, %143, %cst_125 [0] : vector<12x256xf32> to vector<256xf32>
    %145 = vector.shape_cast %144 : vector<256xf32> to vector<1x256xf32>
    %146 = vector.broadcast %140 : vector<1x256xf32> to vector<12x256xf32>
    %147 = arith.subf %135, %146 : vector<12x256xf32>
    %148 = arith.mulf %147, %147 : vector<12x256xf32>
    %cst_126 = arith.constant dense<0.000000e+00> : vector<256xf32>
    %149 = vector.multi_reduction <add>, %148, %cst_126 [0] : vector<12x256xf32> to vector<256xf32>
    %150 = vector.shape_cast %149 : vector<256xf32> to vector<1x256xf32>
    %151 = arith.addf %145, %150 : vector<1x256xf32>
    %cst_127 = arith.constant 0.0416666679 : f32
    %152 = vector.broadcast %cst_127 : f32 to vector<1x256xf32>
    %153 = arith.mulf %151, %152 : vector<1x256xf32>
    %c0_128 = arith.constant 0 : index
    %c0_129 = arith.constant 0 : index
    %154 = vector.load %arg4[%c0_128, %c0_129] : memref<1x256xf32, #tpu.memory_space<vmem>>, vector<1x256xf32>
    %cst_130 = arith.constant 9.99999974E-6 : f32
    %155 = vector.broadcast %cst_130 : f32 to vector<1x256xf32>
    %156 = arith.addf %153, %155 : vector<1x256xf32>
    %157 = math.rsqrt %156 : vector<1x256xf32>
    %158 = arith.mulf %154, %157 : vector<1x256xf32>
    %c0_131 = arith.constant 0 : index
    %c0_132 = arith.constant 0 : index
    %159 = vector.load %arg5[%c0_131, %c0_132] : memref<1x256xf32, #tpu.memory_space<vmem>>, vector<1x256xf32>
    %160 = arith.mulf %140, %158 : vector<1x256xf32>
    %161 = arith.subf %159, %160 : vector<1x256xf32>
    %162 = vector.broadcast %158 : vector<1x256xf32> to vector<12x256xf32>
    %163 = arith.mulf %66, %162 : vector<12x256xf32>
    %164 = vector.broadcast %161 : vector<1x256xf32> to vector<12x256xf32>
    %165 = arith.addf %163, %164 : vector<12x256xf32>
    %c0_133 = arith.constant 0 : index
    %c0_134 = arith.constant 0 : index
    %166 = vector.load %arg6[%c0_133, %c0_134] : memref<128x12xf32, #tpu.memory_space<vmem>>, vector<128x12xf32>
    %cst_135 = arith.constant dense<0.000000e+00> : vector<128x256xf32>
    %167 = tpu.matmul %166, %165, %cst_135 {dimension_numbers = #tpu.dot_dimension_numbers<[1], [0], [0], [1], [0, 0, 1, 1], [], []>} : vector<128x12xf32>, vector<12x256xf32>, vector<128x256xf32> -> vector<128x256xf32>
    %c0_136 = arith.constant 0 : index
    %c0_137 = arith.constant 0 : index
    %c0_138 = arith.constant 0 : index
    %168 = vector.load %arg7[%c0_136, %c0_137, %c0_138] : memref<2x128x256xf32, #tpu.memory_space<vmem>>, vector<1x128x256xf32>
    %169 = vector.shape_cast %168 : vector<1x128x256xf32> to vector<128x256xf32>
    %170 = vector.shape_cast %167 : vector<128x256xf32> to vector<1x128x256xf32>
    tpu.vector_store %arg7[%c0_136, %c0_137, %c0_138], %170 {strides = array<i32>} : memref<2x128x256xf32, #tpu.memory_space<vmem>>, vector<1x128x256xf32>,
    %171 = vector.broadcast %158 : vector<1x256xf32> to vector<12x256xf32>
    %172 = arith.mulf %135, %171 : vector<12x256xf32>
    %173 = vector.broadcast %161 : vector<1x256xf32> to vector<12x256xf32>
    %174 = arith.addf %172, %173 : vector<12x256xf32>
    %c0_139 = arith.constant 0 : index
    %c0_140 = arith.constant 0 : index
    %175 = vector.load %arg6[%c0_139, %c0_140] : memref<128x12xf32, #tpu.memory_space<vmem>>, vector<128x12xf32>
    %cst_141 = arith.constant dense<0.000000e+00> : vector<128x256xf32>
    %176 = tpu.matmul %175, %174, %cst_141 {dimension_numbers = #tpu.dot_dimension_numbers<[1], [0], [0], [1], [0, 0, 1, 1], [], []>} : vector<128x12xf32>, vector<12x256xf32>, vector<128x256xf32> -> vector<128x256xf32>
    %c1_142 = arith.constant 1 : index
    %c0_143 = arith.constant 0 : index
    %c0_144 = arith.constant 0 : index
    %177 = vector.load %arg7[%c1_142, %c0_143, %c0_144] : memref<2x128x256xf32, #tpu.memory_space<vmem>>, vector<1x128x256xf32>
    %178 = vector.shape_cast %177 : vector<1x128x256xf32> to vector<128x256xf32>
    %179 = vector.shape_cast %176 : vector<128x256xf32> to vector<1x128x256xf32>
    tpu.vector_store %arg7[%c1_142, %c0_143, %c0_144], %179 {strides = array<i32>} : memref<2x128x256xf32, #tpu.memory_space<vmem>>, vector<1x128x256xf32>,
    return
  }
  func.func @transform_0(%arg0: i32) -> (i32, i32, i32) {
    %c0_i32 = arith.constant 0 : i32
    %c0_i32_0 = arith.constant 0 : i32
    %c0_i32_1 = arith.constant 0 : i32
    %c0_i32_2 = arith.constant 0 : i32
    return %c0_i32, %c0_i32_0, %c0_i32_1 : i32, i32, i32
  }
  func.func @transform_1(%arg0: i32) -> (i32, i32, i32) {
    %c0_i32 = arith.constant 0 : i32
    %c0_i32_0 = arith.constant 0 : i32
    %c0_i32_1 = arith.constant 0 : i32
    %c0_i32_2 = arith.constant 0 : i32
    return %c0_i32, %c0_i32_0, %c0_i32_1 : i32, i32, i32
  }
  func.func @transform_2(%arg0: i32) -> (i32, i32) {
    %c0_i32 = arith.constant 0 : i32
    %c0_i32_0 = arith.constant 0 : i32
    %c0_i32_1 = arith.constant 0 : i32
    return %c0_i32, %c0_i32_0 : i32, i32
  }
  func.func @transform_3(%arg0: i32) -> (i32, i32) {
    %c0_i32 = arith.constant 0 : i32
    %c0_i32_0 = arith.constant 0 : i32
    %c0_i32_1 = arith.constant 0 : i32
    return %c0_i32, %c0_i32_0 : i32, i32
  }
  func.func @transform_4(%arg0: i32) -> (i32, i32) {
    %c0_i32 = arith.constant 0 : i32
    %c0_i32_0 = arith.constant 0 : i32
    %c0_i32_1 = arith.constant 0 : i32
    return %c0_i32, %c0_i32_0 : i32, i32
  }
  func.func @transform_5(%arg0: i32) -> (i32, i32) {
    %c0_i32 = arith.constant 0 : i32
    %c0_i32_0 = arith.constant 0 : i32
    %c0_i32_1 = arith.constant 0 : i32
    return %c0_i32, %c0_i32_0 : i32, i32
  }
  func.func @transform_6(%arg0: i32) -> (i32, i32, i32) {
    %c0_i32 = arith.constant 0 : i32
    %c0_i32_0 = arith.constant 0 : i32
    %c0_i32_1 = arith.constant 0 : i32
    %c0_i32_2 = arith.constant 0 : i32
    return %c0_i32, %c0_i32_0, %c0_i32_1 : i32, i32, i32
  }
}

</mosaic_0001>

<llo_original>
// kernel: cnn_feature_extractor.4
$region0: #{cnn_feature_extractor.4}
  #allocation0 [shape = 'u32[]', space=smem, size = 0x4, offset = 0x4, fixed_abs, tag = 'smem constant byte address 0x4 - core index']
  #allocation1 [shape = 'u32[144,128]{1,0:T(1,128)}', space=vmem, size = 0x12000, scoped, tag = 'internal scratch']
  %s0 = inlined_call_operand.vmem [shape: f32[2,46,128], index: 0, kind: input, shape index: {}]
  %s1 = inlined_call_operand.vmem [shape: bf16[9,128,128], index: 1, kind: input, shape index: {}]
  %s2 = inlined_call_operand.vmem [shape: f32[1,128], index: 2, kind: input, shape index: {}]
  %s3 = inlined_call_operand.vmem [shape: f32[1,128], index: 3, kind: input, shape index: {}]
  %s4 = inlined_call_operand.vmem [shape: f32[1,128], index: 4, kind: input, shape index: {}]
  %s5 = inlined_call_operand.vmem [shape: f32[18,35], index: 5, kind: input, shape index: {}]
  %s6 = inlined_call_operand.vmem [shape: f32[2,20,128], index: 6, kind: output, shape index: {}]
  %s7 = sld [smem:[#allocation0]]
  $region34: #{cnn_feature_extractor.4} parent=0
    _
  %s9 = ssub.s32 1, %s7
  %s10 = scalar_select 0, %s9, %s7
  // Predicated region
  $region2: #{cnn_feature_extractor.4} parent=0 // pred_check
    _
  $region3: #{cnn_feature_extractor.4} parent=0 // pred_check_branch
    %12 = sbr.rel (0) target = $region5
  $region4: #{cnn_feature_extractor.4} parent=0 // pred_region
    _
  $region5: #{cnn_feature_extractor.4} parent=0 // pred_fallthru
    _
  // Predicated region
  $region6: #{cnn_feature_extractor.4} parent=0 // pred_check
    _
  $region7: #{cnn_feature_extractor.4} parent=0 // pred_check_branch
    %14 = sbr.rel (0) target = $region9
  $region8: #{cnn_feature_extractor.4} parent=0 // pred_region
    _
  $region9: #{cnn_feature_extractor.4} parent=0 // pred_fallthru
    _
  // Predicated region
  $region10: #{cnn_feature_extractor.4} parent=0 // pred_check
    _
  $region11: #{cnn_feature_extractor.4} parent=0 // pred_check_branch
    %16 = sbr.rel (0) target = $region13
  $region12: #{cnn_feature_extractor.4} parent=0 // pred_region
    _
  $region13: #{cnn_feature_extractor.4} parent=0 // pred_fallthru
    _
  // Predicated region
  $region14: #{cnn_feature_extractor.4} parent=0 // pred_check
    _
  $region15: #{cnn_feature_extractor.4} parent=0 // pred_check_branch
    %18 = sbr.rel (0) target = $region17
  $region16: #{cnn_feature_extractor.4} parent=0 // pred_region
    _
  $region17: #{cnn_feature_extractor.4} parent=0 // pred_fallthru
    _
  // Predicated region
  $region18: #{cnn_feature_extractor.4} parent=0 // pred_check
    _
  $region19: #{cnn_feature_extractor.4} parent=0 // pred_check_branch
    %20 = sbr.rel (0) target = $region21
  $region20: #{cnn_feature_extractor.4} parent=0 // pred_region
    _
  $region21: #{cnn_feature_extractor.4} parent=0 // pred_fallthru
    _
  // Predicated region
  $region22: #{cnn_feature_extractor.4} parent=0 // pred_check
    _
  $region23: #{cnn_feature_extractor.4} parent=0 // pred_check_branch
    %22 = sbr.rel (0) target = $region25
  $region24: #{cnn_feature_extractor.4} parent=0 // pred_region
    _
  $region25: #{cnn_feature_extractor.4} parent=0 // pred_fallthru
    _
  %24 = vst [vmem:[%s6] sm:$0xff] 0.0
  %25 = vst [vmem:[%s6 + $0x8] sm:$0xff] 0.0
  %26 = vst [vmem:[%s6 + $0x10] sm:$0xf] 0.0
  %27 = vst [vmem:[%s6 + $0x18] sm:$0xff] 0.0
  %28 = vst [vmem:[%s6 + $0x20] sm:$0xff] 0.0
  %29 = vst [vmem:[%s6 + $0x28] sm:$0xf] 0.0
  %v30 = vld [vmem:[%s0] sm:$0xff]
  %v31 = vld [vmem:[%s0 + $0x8] sm:$0xff]
  %v32 = vld [vmem:[%s0 + $0x10] sm:$0xff]
  %v33 = vld [vmem:[%s0 + $0x18] sm:$0xff]
  %v34 = vld [vmem:[%s0 + $0x20] sm:$0x3f]
  %v35 = vpack.c.bf16 %v31, %v30
  %v36 = vpack.c.bf16 %v33, %v32
  %v37 = vpack.c.bf16 %v34, %v34
  %v38 = vld [vmem:[%s1] sm:$0xf]
  %v39 = vld [vmem:[%s1 + $0x4] sm:$0xf]
  %v40 = vld [vmem:[%s1 + $0x8] sm:$0xf]
  %v41 = vld [vmem:[%s1 + $0xc] sm:$0xf]
  %v42 = vld [vmem:[%s1 + $0x10] sm:$0xf]
  %v43 = vld [vmem:[%s1 + $0x14] sm:$0xf]
  %v44 = vld [vmem:[%s1 + $0x18] sm:$0xf]
  %v45 = vld [vmem:[%s1 + $0x1c] sm:$0xf]
  %v46 = vld [vmem:[%s1 + $0x20] sm:$0xf]
  %v47 = vld [vmem:[%s1 + $0x24] sm:$0xf]
  %v48 = vld [vmem:[%s1 + $0x28] sm:$0xf]
  %v49 = vld [vmem:[%s1 + $0x2c] sm:$0xf]
  %v50 = vld [vmem:[%s1 + $0x30] sm:$0xf]
  %v51 = vld [vmem:[%s1 + $0x34] sm:$0xf]
  %v52 = vld [vmem:[%s1 + $0x38] sm:$0xf]
  %v53 = vld [vmem:[%s1 + $0x3c] sm:$0xf]
  %v54 = vld [vmem:[%s0 + $0x1] sm:$0xff]
  %v55 = vld [vmem:[%s0 + $0x9] sm:$0xff]
  %v56 = vld [vmem:[%s0 + $0x11] sm:$0xff]
  %v57 = vld [vmem:[%s0 + $0x19] sm:$0xff]
  %v58 = vld [vmem:[%s0 + $0x21] sm:$0x3f]
  %v59 = vpack.c.bf16 %v55, %v54
  %v60 = vpack.c.bf16 %v57, %v56
  %v61 = vpack.c.bf16 %v58, %v58
  %s62 = scalar_lea.vmem %s1, 64
  %v63 = vld [vmem:[%s62] sm:$0xf]
  %v64 = vld [vmem:[%s62 + $0x4] sm:$0xf]
  %v65 = vld [vmem:[%s62 + $0x8] sm:$0xf]
  %v66 = vld [vmem:[%s62 + $0xc] sm:$0xf]
  %v67 = vld [vmem:[%s62 + $0x10] sm:$0xf]
  %v68 = vld [vmem:[%s62 + $0x14] sm:$0xf]
  %v69 = vld [vmem:[%s62 + $0x18] sm:$0xf]
  %v70 = vld [vmem:[%s62 + $0x1c] sm:$0xf]
  %v71 = vld [vmem:[%s62 + $0x20] sm:$0xf]
  %v72 = vld [vmem:[%s62 + $0x24] sm:$0xf]
  %v73 = vld [vmem:[%s62 + $0x28] sm:$0xf]
  %v74 = vld [vmem:[%s62 + $0x2c] sm:$0xf]
  %v75 = vld [vmem:[%s62 + $0x30] sm:$0xf]
  %v76 = vld [vmem:[%s62 + $0x34] sm:$0xf]
  %v77 = vld [vmem:[%s62 + $0x38] sm:$0xf]
  %v78 = vld [vmem:[%s62 + $0x3c] sm:$0xf]
  %v95 = vunpack.c.l.b16 %v63
  %v96 = vunpack.c.l.b16 %v64
  %v97 = vunpack.c.l.b16 %v65
  %v98 = vunpack.c.l.b16 %v66
  %v99 = vunpack.c.l.b16 %v67
  %v100 = vunpack.c.l.b16 %v68
  %v101 = vunpack.c.l.b16 %v69
  %v102 = vunpack.c.l.b16 %v70
  %v103 = vunpack.c.l.b16 %v71
  %v104 = vunpack.c.l.b16 %v72
  %v105 = vunpack.c.l.b16 %v73
  %v106 = vunpack.c.l.b16 %v74
  %v107 = vunpack.c.l.b16 %v75
  %v108 = vunpack.c.l.b16 %v76
  %v109 = vunpack.c.l.b16 %v77
  %v110 = vunpack.c.l.b16 %v78
  %v111 = vpack.c.b16 %v96, %v95
  %v112 = vpack.c.b16 %v98, %v97
  %v113 = vpack.c.b16 %v100, %v99
  %v114 = vpack.c.b16 %v102, %v101
  %v115 = vpack.c.b16 %v104, %v103
  %v116 = vpack.c.b16 %v106, %v105
  %v117 = vpack.c.b16 %v108, %v107
  %v118 = vpack.c.b16 %v110, %v109
  %127 = vmatprep.subr.bf16.mxu0 0
  %128 = vmatpush1.bf16.msra.mxu0 %v118
  %129 = vmatprep.subr.bf16.mxu0 0
  %130 = vmatpush1.bf16.msra.mxu0 %v117
  %131 = vmatprep.subr.bf16.mxu0 0
  %132 = vmatpush1.bf16.msra.mxu0 %v116
  %133 = vmatprep.subr.bf16.mxu0 0
  %134 = vmatpush1.bf16.msra.mxu0 %v115
  %135 = vmatprep.subr.bf16.mxu0 0
  %136 = vmatpush1.bf16.msra.mxu0 %v114
  %137 = vmatprep.subr.bf16.mxu0 0
  %138 = vmatpush1.bf16.msra.mxu0 %v113
  %139 = vmatprep.subr.bf16.mxu0 0
  %140 = vmatpush1.bf16.msra.mxu0 %v112
  %141 = vmatprep.subr.bf16.mxu0 0
  %142 = vmatpush1.bf16.msra.mxu0 %v111
  %143 = vmatprep.subr.bf16.mxu0 0
  %144 = vmatpush2.bf16.msra.mxu0 0
  %145 = vmatprep.subr.bf16.mxu0 0
  %146 = vmatpush2.bf16.msra.mxu0 0
  %147 = vmatprep.subr.bf16.mxu0 0
  %148 = vmatpush2.bf16.msra.mxu0 0
  %149 = vmatprep.subr.bf16.mxu0 0
  %150 = vmatpush2.bf16.msra.mxu0 0
  %151 = vmatprep.subr.bf16.mxu0 0
  %152 = vmatpush2.bf16.msra.mxu0 0
  %153 = vmatprep.subr.bf16.mxu0 0
  %154 = vmatpush2.bf16.msra.mxu0 0
  %155 = vmatprep.subr.bf16.mxu0 0
  %156 = vmatpush2.bf16.msra.mxu0 0
  %157 = vmatprep.subr.bf16.mxu0 0
  %158 = vmatpush2.bf16.msra.mxu0 0
  %159 = vmatprep.mubr.bf16.mxu0 0
  %160 = vmatmul.mubr.bf16.gmra.mxu0 %v59
  %v161 = vpop.f32.mrf.mxu0
  %v162 = vadd.f32 0.0, %v161
  %v163 = vpop.f32.mrf.mxu0
  %v164 = vpop.f32.mrf.mxu0
  %v165 = vadd.f32 0.0, %v164
  %v166 = vpop.f32.mrf.mxu0
  %167 = vmatprep.mubr.bf16.mxu0 0
  %168 = vmatmul.mubr.bf16.gmra.mxu0 %v60
  %v169 = vpop.f32.mrf.mxu0
  %v170 = vadd.f32 0.0, %v169
  %v171 = vpop.f32.mrf.mxu0
  %v172 = vpop.f32.mrf.mxu0
  %v173 = vadd.f32 0.0, %v172
  %v174 = vpop.f32.mrf.mxu0
  %175 = vmatprep.mubr.bf16.mxu0 0
  %176 = vmatmul.mubr.bf16.gmra.mxu0 %v61
  %v177 = vpop.f32.mrf.mxu0
  %v178 = vadd.f32 0.0, %v177
  %v179 = vpop.f32.mrf.mxu0
  %v180 = vpop.f32.mrf.mxu0
  %v181 = vpop.f32.mrf.mxu0
  %182 = vdwg.mxu0
  %v199 = vunpack.c.l.b16 %v38
  %v200 = vunpack.c.l.b16 %v39
  %v201 = vunpack.c.l.b16 %v40
  %v202 = vunpack.c.l.b16 %v41
  %v203 = vunpack.c.l.b16 %v42
  %v204 = vunpack.c.l.b16 %v43
  %v205 = vunpack.c.l.b16 %v44
  %v206 = vunpack.c.l.b16 %v45
  %v207 = vunpack.c.l.b16 %v46
  %v208 = vunpack.c.l.b16 %v47
  %v209 = vunpack.c.l.b16 %v48
  %v210 = vunpack.c.l.b16 %v49
  %v211 = vunpack.c.l.b16 %v50
  %v212 = vunpack.c.l.b16 %v51
  %v213 = vunpack.c.l.b16 %v52
  %v214 = vunpack.c.l.b16 %v53
  %v215 = vpack.c.b16 %v200, %v199
  %v216 = vpack.c.b16 %v202, %v201
  %v217 = vpack.c.b16 %v204, %v203
  %v218 = vpack.c.b16 %v206, %v205
  %v219 = vpack.c.b16 %v208, %v207
  %v220 = vpack.c.b16 %v210, %v209
  %v221 = vpack.c.b16 %v212, %v211
  %v222 = vpack.c.b16 %v214, %v213
  %231 = vmatprep.subr.bf16.mxu0 0
  %232 = vmatpush1.bf16.msra.mxu0 %v222
  %233 = vmatprep.subr.bf16.mxu0 0
  %234 = vmatpush1.bf16.msra.mxu0 %v221
  %235 = vmatprep.subr.bf16.mxu0 0
  %236 = vmatpush1.bf16.msra.mxu0 %v220
  %237 = vmatprep.subr.bf16.mxu0 0
  %238 = vmatpush1.bf16.msra.mxu0 %v219
  %239 = vmatprep.subr.bf16.mxu0 0
  %240 = vmatpush1.bf16.msra.mxu0 %v218
  %241 = vmatprep.subr.bf16.mxu0 0
  %242 = vmatpush1.bf16.msra.mxu0 %v217
  %243 = vmatprep.subr.bf16.mxu0 0
  %244 = vmatpush1.bf16.msra.mxu0 %v216
  %245 = vmatprep.subr.bf16.mxu0 0
  %246 = vmatpush1.bf16.msra.mxu0 %v215
  %247 = vmatprep.subr.bf16.mxu0 0
  %248 = vmatpush2.bf16.msra.mxu0 0
  %249 = vmatprep.subr.bf16.mxu0 0
  %250 = vmatpush2.bf16.msra.mxu0 0
  %251 = vmatprep.subr.bf16.mxu0 0
  %252 = vmatpush2.bf16.msra.mxu0 0
  %253 = vmatprep.subr.bf16.mxu0 0
  %254 = vmatpush2.bf16.msra.mxu0 0
  %255 = vmatprep.subr.bf16.mxu0 0
  %256 = vmatpush2.bf16.msra.mxu0 0
  %257 = vmatprep.subr.bf16.mxu0 0
  %258 = vmatpush2.bf16.msra.mxu0 0
  %259 = vmatprep.subr.bf16.mxu0 0
  %260 = vmatpush2.bf16.msra.mxu0 0
  %261 = vmatprep.subr.bf16.mxu0 0
  %262 = vmatpush2.bf16.msra.mxu0 0
  %263 = vmatprep.mubr.bf16.mxu0 0
  %264 = vmatmul.mubr.bf16.gmra.mxu0 %v35
  %v265 = vpop.f32.mrf.mxu0
  %v266 = vadd.f32 %v162, %v265
  %v267 = vpop.f32.mrf.mxu0
  %v268 = vpop.f32.mrf.mxu0
  %v269 = vadd.f32 %v165, %v268
  %v270 = vpop.f32.mrf.mxu0
  %271 = vmatprep.mubr.bf16.mxu0 0
  %272 = vmatmul.mubr.bf16.gmra.mxu0 %v36
  %v273 = vpop.f32.mrf.mxu0
  %v274 = vadd.f32 %v170, %v273
  %v275 = vpop.f32.mrf.mxu0
  %v276 = vpop.f32.mrf.mxu0
  %v277 = vadd.f32 %v173, %v276
  %v278 = vpop.f32.mrf.mxu0
  %279 = vmatprep.mubr.bf16.mxu0 0
  %280 = vmatmul.mubr.bf16.gmra.mxu0 %v37
  %v281 = vpop.f32.mrf.mxu0
  %v282 = vadd.f32 %v178, %v281
  %v283 = vpop.f32.mrf.mxu0
  %v284 = vpop.f32.mrf.mxu0
  %v285 = vpop.f32.mrf.mxu0
  %286 = vdwg.mxu0
  %v287 = vld [vmem:[%s0 + $0x2] sm:$0xff]
  %v288 = vld [vmem:[%s0 + $0xa] sm:$0xff]
  %v289 = vld [vmem:[%s0 + $0x12] sm:$0xff]
  %v290 = vld [vmem:[%s0 + $0x1a] sm:$0xff]
  %v291 = vld [vmem:[%s0 + $0x22] sm:$0x3f]
  %v292 = vpack.c.bf16 %v288, %v287
  %v293 = vpack.c.bf16 %v290, %v289
  %v294 = vpack.c.bf16 %v291, %v291
  %s295 = scalar_lea.vmem %s1, 128
  %v296 = vld [vmem:[%s295] sm:$0xf]
  %v297 = vld [vmem:[%s295 + $0x4] sm:$0xf]
  %v298 = vld [vmem:[%s295 + $0x8] sm:$0xf]
  %v299 = vld [vmem:[%s295 + $0xc] sm:$0xf]
  %v300 = vld [vmem:[%s295 + $0x10] sm:$0xf]
  %v301 = vld [vmem:[%s295 + $0x14] sm:$0xf]
  %v302 = vld [vmem:[%s295 + $0x18] sm:$0xf]
  %v303 = vld [vmem:[%s295 + $0x1c] sm:$0xf]
  %v304 = vld [vmem:[%s295 + $0x20] sm:$0xf]
  %v305 = vld [vmem:[%s295 + $0x24] sm:$0xf]
  %v306 = vld [vmem:[%s295 + $0x28] sm:$0xf]
  %v307 = vld [vmem:[%s295 + $0x2c] sm:$0xf]
  %v308 = vld [vmem:[%s295 + $0x30] sm:$0xf]
  %v309 = vld [vmem:[%s295 + $0x34] sm:$0xf]
  %v310 = vld [vmem:[%s295 + $0x38] sm:$0xf]
  %v311 = vld [vmem:[%s295 + $0x3c] sm:$0xf]
  %v328 = vunpack.c.l.b16 %v296
  %v329 = vunpack.c.l.b16 %v297
  %v330 = vunpack.c.l.b16 %v298
  %v331 = vunpack.c.l.b16 %v299
  %v332 = vunpack.c.l.b16 %v300
  %v333 = vunpack.c.l.b16 %v301
  %v334 = vunpack.c.l.b16 %v302
  %v335 = vunpack.c.l.b16 %v303
  %v336 = vunpack.c.l.b16 %v304
  %v337 = vunpack.c.l.b16 %v305
  %v338 = vunpack.c.l.b16 %v306
  %v339 = vunpack.c.l.b16 %v307
  %v340 = vunpack.c.l.b16 %v308
  %v341 = vunpack.c.l.b16 %v309
  %v342 = vunpack.c.l.b16 %v310
  %v343 = vunpack.c.l.b16 %v311
  %v344 = vpack.c.b16 %v329, %v328
  %v345 = vpack.c.b16 %v331, %v330
  %v346 = vpack.c.b16 %v333, %v332
  %v347 = vpack.c.b16 %v335, %v334
  %v348 = vpack.c.b16 %v337, %v336
  %v349 = vpack.c.b16 %v339, %v338
  %v350 = vpack.c.b16 %v341, %v340
  %v351 = vpack.c.b16 %v343, %v342
  %360 = vmatprep.subr.bf16.mxu0 0
  %361 = vmatpush1.bf16.msra.mxu0 %v351
  %362 = vmatprep.subr.bf16.mxu0 0
  %363 = vmatpush1.bf16.msra.mxu0 %v350
  %364 = vmatprep.subr.bf16.mxu0 0
  %365 = vmatpush1.bf16.msra.mxu0 %v349
  %366 = vmatprep.subr.bf16.mxu0 0
  %367 = vmatpush1.bf16.msra.mxu0 %v348
  %368 = vmatprep.subr.bf16.mxu0 0
  %369 = vmatpush1.bf16.msra.mxu0 %v347
  %370 = vmatprep.subr.bf16.mxu0 0
  %371 = vmatpush1.bf16.msra.mxu0 %v346
  %372 = vmatprep.subr.bf16.mxu0 0
  %373 = vmatpush1.bf16.msra.mxu0 %v345
  %374 = vmatprep.subr.bf16.mxu0 0
  %375 = vmatpush1.bf16.msra.mxu0 %v344
  %376 = vmatprep.subr.bf16.mxu0 0
  %377 = vmatpush2.bf16.msra.mxu0 0
  %378 = vmatprep.subr.bf16.mxu0 0
  %379 = vmatpush2.bf16.msra.mxu0 0
  %380 = vmatprep.subr.bf16.mxu0 0
  %381 = vmatpush2.bf16.msra.mxu0 0
  %382 = vmatprep.subr.bf16.mxu0 0
  %383 = vmatpush2.bf16.msra.mxu0 0
  %384 = vmatprep.subr.bf16.mxu0 0
  %385 = vmatpush2.bf16.msra.mxu0 0
  %386 = vmatprep.subr.bf16.mxu0 0
  %387 = vmatpush2.bf16.msra.mxu0 0
  %388 = vmatprep.subr.bf16.mxu0 0
  %389 = vmatpush2.bf16.msra.mxu0 0
  %390 = vmatprep.subr.bf16.mxu0 0
  %391 = vmatpush2.bf16.msra.mxu0 0
  %392 = vmatprep.mubr.bf16.mxu0 0
  %393 = vmatmul.mubr.bf16.gmra.mxu0 %v292
  %v394 = vpop.f32.mrf.mxu0
  %v395 = vadd.f32 0.0, %v394
  %v396 = vpop.f32.mrf.mxu0
  %v397 = vpop.f32.mrf.mxu0
  %v398 = vadd.f32 0.0, %v397
  %v399 = vpop.f32.mrf.mxu0
  %400 = vmatprep.mubr.bf16.mxu0 0
  %401 = vmatmul.mubr.bf16.gmra.mxu0 %v293
  %v402 = vpop.f32.mrf.mxu0
  %v403 = vadd.f32 0.0, %v402
  %v404 = vpop.f32.mrf.mxu0
  %v405 = vpop.f32.mrf.mxu0
  %v406 = vadd.f32 0.0, %v405
  %v407 = vpop.f32.mrf.mxu0
  %408 = vmatprep.mubr.bf16.mxu0 0
  %409 = vmatmul.mubr.bf16.gmra.mxu0 %v294
  %v410 = vpop.f32.mrf.mxu0
  %v411 = vadd.f32 0.0, %v410
  %v412 = vpop.f32.mrf.mxu0
  %v413 = vpop.f32.mrf.mxu0
  %v414 = vpop.f32.mrf.mxu0
  %415 = vdwg.mxu0
  %v416 = vadd.f32 %v266, %v395
  %v417 = vadd.f32 %v269, %v398
  %v418 = vadd.f32 %v274, %v403
  %v419 = vadd.f32 %v277, %v406
  %v420 = vadd.f32 %v282, %v411
  %v421 = vld [vmem:[%s0 + $0x3] sm:$0xff]
  %v422 = vld [vmem:[%s0 + $0xb] sm:$0xff]
  %v423 = vld [vmem:[%s0 + $0x13] sm:$0xff]
  %v424 = vld [vmem:[%s0 + $0x1b] sm:$0xff]
  %v425 = vld [vmem:[%s0 + $0x23] sm:$0x3f]
  %v426 = vpack.c.bf16 %v422, %v421
  %v427 = vpack.c.bf16 %v424, %v423
  %v428 = vpack.c.bf16 %v425, %v425
  %s429 = scalar_lea.vmem %s1, 192
  %v430 = vld [vmem:[%s429] sm:$0xf]
  %v431 = vld [vmem:[%s429 + $0x4] sm:$0xf]
  %v432 = vld [vmem:[%s429 + $0x8] sm:$0xf]
  %v433 = vld [vmem:[%s429 + $0xc] sm:$0xf]
  %v434 = vld [vmem:[%s429 + $0x10] sm:$0xf]
  %v435 = vld [vmem:[%s429 + $0x14] sm:$0xf]
  %v436 = vld [vmem:[%s429 + $0x18] sm:$0xf]
  %v437 = vld [vmem:[%s429 + $0x1c] sm:$0xf]
  %v438 = vld [vmem:[%s429 + $0x20] sm:$0xf]
  %v439 = vld [vmem:[%s429 + $0x24] sm:$0xf]
  %v440 = vld [vmem:[%s429 + $0x28] sm:$0xf]
  %v441 = vld [vmem:[%s429 + $0x2c] sm:$0xf]
  %v442 = vld [vmem:[%s429 + $0x30] sm:$0xf]
  %v443 = vld [vmem:[%s429 + $0x34] sm:$0xf]
  %v444 = vld [vmem:[%s429 + $0x38] sm:$0xf]
  %v445 = vld [vmem:[%s429 + $0x3c] sm:$0xf]
  %v462 = vunpack.c.l.b16 %v430
  %v463 = vunpack.c.l.b16 %v431
  %v464 = vunpack.c.l.b16 %v432
  %v465 = vunpack.c.l.b16 %v433
  %v466 = vunpack.c.l.b16 %v434
  %v467 = vunpack.c.l.b16 %v435
  %v468 = vunpack.c.l.b16 %v436
  %v469 = vunpack.c.l.b16 %v437
  %v470 = vunpack.c.l.b16 %v438
  %v471 = vunpack.c.l.b16 %v439
  %v472 = vunpack.c.l.b16 %v440
  %v473 = vunpack.c.l.b16 %v441
  %v474 = vunpack.c.l.b16 %v442
  %v475 = vunpack.c.l.b16 %v443
  %v476 = vunpack.c.l.b16 %v444
  %v477 = vunpack.c.l.b16 %v445
  %v478 = vpack.c.b16 %v463, %v462
  %v479 = vpack.c.b16 %v465, %v464
  %v480 = vpack.c.b16 %v467, %v466
  %v481 = vpack.c.b16 %v469, %v468
  %v482 = vpack.c.b16 %v471, %v470
  %v483 = vpack.c.b16 %v473, %v472
  %v484 = vpack.c.b16 %v475, %v474
  %v485 = vpack.c.b16 %v477, %v476
  %494 = vmatprep.subr.bf16.mxu0 0
  %495 = vmatpush1.bf16.msra.mxu0 %v485
  %496 = vmatprep.subr.bf16.mxu0 0
  %497 = vmatpush1.bf16.msra.mxu0 %v484
  %498 = vmatprep.subr.bf16.mxu0 0
  %499 = vmatpush1.bf16.msra.mxu0 %v483
  %500 = vmatprep.subr.bf16.mxu0 0
  %501 = vmatpush1.bf16.msra.mxu0 %v482
  %502 = vmatprep.subr.bf16.mxu0 0
  %503 = vmatpush1.bf16.msra.mxu0 %v481
  %504 = vmatprep.subr.bf16.mxu0 0
  %505 = vmatpush1.bf16.msra.mxu0 %v480
  %506 = vmatprep.subr.bf16.mxu0 0
  %507 = vmatpush1.bf16.msra.mxu0 %v479
  %508 = vmatprep.subr.bf16.mxu0 0
  %509 = vmatpush1.bf16.msra.mxu0 %v478
  %510 = vmatprep.subr.bf16.mxu0 0
  %511 = vmatpush2.bf16.msra.mxu0 0
  %512 = vmatprep.subr.bf16.mxu0 0
  %513 = vmatpush2.bf16.msra.mxu0 0
  %514 = vmatprep.subr.bf16.mxu0 0
  %515 = vmatpush2.bf16.msra.mxu0 0
  %516 = vmatprep.subr.bf16.mxu0 0
  %517 = vmatpush2.bf16.msra.mxu0 0
  %518 = vmatprep.subr.bf16.mxu0 0
  %519 = vmatpush2.bf16.msra.mxu0 0
  %520 = vmatprep.subr.bf16.mxu0 0
  %521 = vmatpush2.bf16.msra.mxu0 0
  %522 = vmatprep.subr.bf16.mxu0 0
  %523 = vmatpush2.bf16.msra.mxu0 0
  %524 = vmatprep.subr.bf16.mxu0 0
  %525 = vmatpush2.bf16.msra.mxu0 0
  %526 = vmatprep.mubr.bf16.mxu0 0
  %527 = vmatmul.mubr.bf16.gmra.mxu0 %v426
  %v528 = vpop.f32.mrf.mxu0
  %v529 = vadd.f32 0.0, %v528
  %v530 = vpop.f32.mrf.mxu0
  %v531 = vpop.f32.mrf.mxu0
  %v532 = vadd.f32 0.0, %v531
  %v533 = vpop.f32.mrf.mxu0
  %534 = vmatprep.mubr.bf16.mxu0 0
  %535 = vmatmul.mubr.bf16.gmra.mxu0 %v427
  %v536 = vpop.f32.mrf.mxu0
  %v537 = vadd.f32 0.0, %v536
  %v538 = vpop.f32.mrf.mxu0
  %v539 = vpop.f32.mrf.mxu0
  %v540 = vadd.f32 0.0, %v539
  %v541 = vpop.f32.mrf.mxu0
  %542 = vmatprep.mubr.bf16.mxu0 0
  %543 = vmatmul.mubr.bf16.gmra.mxu0 %v428
  %v544 = vpop.f32.mrf.mxu0
  %v545 = vadd.f32 0.0, %v544
  %v546 = vpop.f32.mrf.mxu0
  %v547 = vpop.f32.mrf.mxu0
  %v548 = vpop.f32.mrf.mxu0
  %549 = vdwg.mxu0
  %v550 = vadd.f32 %v416, %v529
  %v551 = vadd.f32 %v417, %v532
  %v552 = vadd.f32 %v418, %v537
  %v553 = vadd.f32 %v419, %v540
  %v554 = vadd.f32 %v420, %v545
  %v555 = vld [vmem:[%s0 + $0x4] sm:$0xff]
  %v556 = vld [vmem:[%s0 + $0xc] sm:$0xff]
  %v557 = vld [vmem:[%s0 + $0x14] sm:$0xff]
  %v558 = vld [vmem:[%s0 + $0x1c] sm:$0xff]
  %v559 = vld [vmem:[%s0 + $0x24] sm:$0x3f]
  %v560 = vpack.c.bf16 %v556, %v555
  %v561 = vpack.c.bf16 %v558, %v557
  %v562 = vpack.c.bf16 %v559, %v559
  %s563 = scalar_lea.vmem %s1, 256
  %v564 = vld [vmem:[%s563] sm:$0xf]
  %v565 = vld [vmem:[%s563 + $0x4] sm:$0xf]
  %v566 = vld [vmem:[%s563 + $0x8] sm:$0xf]
  %v567 = vld [vmem:[%s563 + $0xc] sm:$0xf]
  %v568 = vld [vmem:[%s563 + $0x10] sm:$0xf]
  %v569 = vld [vmem:[%s563 + $0x14] sm:$0xf]
  %v570 = vld [vmem:[%s563 + $0x18] sm:$0xf]
  %v571 = vld [vmem:[%s563 + $0x1c] sm:$0xf]
  %v572 = vld [vmem:[%s563 + $0x20] sm:$0xf]
  %v573 = vld [vmem:[%s563 + $0x24] sm:$0xf]
  %v574 = vld [vmem:[%s563 + $0x28] sm:$0xf]
  %v575 = vld [vmem:[%s563 + $0x2c] sm:$0xf]
  %v576 = vld [vmem:[%s563 + $0x30] sm:$0xf]
  %v577 = vld [vmem:[%s563 + $0x34] sm:$0xf]
  %v578 = vld [vmem:[%s563 + $0x38] sm:$0xf]
  %v579 = vld [vmem:[%s563 + $0x3c] sm:$0xf]
  %v596 = vunpack.c.l.b16 %v564
  %v597 = vunpack.c.l.b16 %v565
  %v598 = vunpack.c.l.b16 %v566
  %v599 = vunpack.c.l.b16 %v567
  %v600 = vunpack.c.l.b16 %v568
  %v601 = vunpack.c.l.b16 %v569
  %v602 = vunpack.c.l.b16 %v570
  %v603 = vunpack.c.l.b16 %v571
  %v604 = vunpack.c.l.b16 %v572
  %v605 = vunpack.c.l.b16 %v573
  %v606 = vunpack.c.l.b16 %v574
  %v607 = vunpack.c.l.b16 %v575
  %v608 = vunpack.c.l.b16 %v576
  %v609 = vunpack.c.l.b16 %v577
  %v610 = vunpack.c.l.b16 %v578
  %v611 = vunpack.c.l.b16 %v579
  %v612 = vpack.c.b16 %v597, %v596
  %v613 = vpack.c.b16 %v599, %v598
  %v614 = vpack.c.b16 %v601, %v600
  %v615 = vpack.c.b16 %v603, %v602
  %v616 = vpack.c.b16 %v605, %v604
  %v617 = vpack.c.b16 %v607, %v606
  %v618 = vpack.c.b16 %v609, %v608
  %v619 = vpack.c.b16 %v611, %v610
  %628 = vmatprep.subr.bf16.mxu0 0
  %629 = vmatpush1.bf16.msra.mxu0 %v619
  %630 = vmatprep.subr.bf16.mxu0 0
  %631 = vmatpush1.bf16.msra.mxu0 %v618
  %632 = vmatprep.subr.bf16.mxu0 0
  %633 = vmatpush1.bf16.msra.mxu0 %v617
  %634 = vmatprep.subr.bf16.mxu0 0
  %635 = vmatpush1.bf16.msra.mxu0 %v616
  %636 = vmatprep.subr.bf16.mxu0 0
  %637 = vmatpush1.bf16.msra.mxu0 %v615
  %638 = vmatprep.subr.bf16.mxu0 0
  %639 = vmatpush1.bf16.msra.mxu0 %v614
  %640 = vmatprep.subr.bf16.mxu0 0
  %641 = vmatpush1.bf16.msra.mxu0 %v613
  %642 = vmatprep.subr.bf16.mxu0 0
  %643 = vmatpush1.bf16.msra.mxu0 %v612
  %644 = vmatprep.subr.bf16.mxu0 0
  %645 = vmatpush2.bf16.msra.mxu0 0
  %646 = vmatprep.subr.bf16.mxu0 0
  %647 = vmatpush2.bf16.msra.mxu0 0
  %648 = vmatprep.subr.bf16.mxu0 0
  %649 = vmatpush2.bf16.msra.mxu0 0
  %650 = vmatprep.subr.bf16.mxu0 0
  %651 = vmatpush2.bf16.msra.mxu0 0
  %652 = vmatprep.subr.bf16.mxu0 0
  %653 = vmatpush2.bf16.msra.mxu0 0
  %654 = vmatprep.subr.bf16.mxu0 0
  %655 = vmatpush2.bf16.msra.mxu0 0
  %656 = vmatprep.subr.bf16.mxu0 0
  %657 = vmatpush2.bf16.msra.mxu0 0
  %658 = vmatprep.subr.bf16.mxu0 0
  %659 = vmatpush2.bf16.msra.mxu0 0
  %660 = vmatprep.mubr.bf16.mxu0 0
  %661 = vmatmul.mubr.bf16.gmra.mxu0 %v560
  %v662 = vpop.f32.mrf.mxu0
  %v663 = vadd.f32 0.0, %v662
  %v664 = vpop.f32.mrf.mxu0
  %v665 = vpop.f32.mrf.mxu0
  %v666 = vadd.f32 0.0, %v665
  %v667 = vpop.f32.mrf.mxu0
  %668 = vmatprep.mubr.bf16.mxu0 0
  %669 = vmatmul.mubr.bf16.gmra.mxu0 %v561
  %v670 = vpop.f32.mrf.mxu0
  %v671 = vadd.f32 0.0, %v670
  %v672 = vpop.f32.mrf.mxu0
  %v673 = vpop.f32.mrf.mxu0
  %v674 = vadd.f32 0.0, %v673
  %v675 = vpop.f32.mrf.mxu0
  %676 = vmatprep.mubr.bf16.mxu0 0
  %677 = vmatmul.mubr.bf16.gmra.mxu0 %v562
  %v678 = vpop.f32.mrf.mxu0
  %v679 = vadd.f32 0.0, %v678
  %v680 = vpop.f32.mrf.mxu0
  %v681 = vpop.f32.mrf.mxu0
  %v682 = vpop.f32.mrf.mxu0
  %683 = vdwg.mxu0
  %v684 = vadd.f32 %v550, %v663
  %v685 = vadd.f32 %v551, %v666
  %v686 = vadd.f32 %v552, %v671
  %v687 = vadd.f32 %v553, %v674
  %v688 = vadd.f32 %v554, %v679
  %v689 = vld [vmem:[%s0 + $0x5] sm:$0xff]
  %v690 = vld [vmem:[%s0 + $0xd] sm:$0xff]
  %v691 = vld [vmem:[%s0 + $0x15] sm:$0xff]
  %v692 = vld [vmem:[%s0 + $0x1d] sm:$0xff]
  %v693 = vld [vmem:[%s0 + $0x25] sm:$0x3f]
  %v694 = vpack.c.bf16 %v690, %v689
  %v695 = vpack.c.bf16 %v692, %v691
  %v696 = vpack.c.bf16 %v693, %v693
  %s697 = scalar_lea.vmem %s1, 320
  %v698 = vld [vmem:[%s697] sm:$0xf]
  %v699 = vld [vmem:[%s697 + $0x4] sm:$0xf]
  %v700 = vld [vmem:[%s697 + $0x8] sm:$0xf]
  %v701 = vld [vmem:[%s697 + $0xc] sm:$0xf]
  %v702 = vld [vmem:[%s697 + $0x10] sm:$0xf]
  %v703 = vld [vmem:[%s697 + $0x14] sm:$0xf]
  %v704 = vld [vmem:[%s697 + $0x18] sm:$0xf]
  %v705 = vld [vmem:[%s697 + $0x1c] sm:$0xf]
  %v706 = vld [vmem:[%s697 + $0x20] sm:$0xf]
  %v707 = vld [vmem:[%s697 + $0x24] sm:$0xf]
  %v708 = vld [vmem:[%s697 + $0x28] sm:$0xf]
  %v709 = vld [vmem:[%s697 + $0x2c] sm:$0xf]
  %v710 = vld [vmem:[%s697 + $0x30] sm:$0xf]
  %v711 = vld [vmem:[%s697 + $0x34] sm:$0xf]
  %v712 = vld [vmem:[%s697 + $0x38] sm:$0xf]
  %v713 = vld [vmem:[%s697 + $0x3c] sm:$0xf]
  %v730 = vunpack.c.l.b16 %v698
  %v731 = vunpack.c.l.b16 %v699
  %v732 = vunpack.c.l.b16 %v700
  %v733 = vunpack.c.l.b16 %v701
  %v734 = vunpack.c.l.b16 %v702
  %v735 = vunpack.c.l.b16 %v703
  %v736 = vunpack.c.l.b16 %v704
  %v737 = vunpack.c.l.b16 %v705
  %v738 = vunpack.c.l.b16 %v706
  %v739 = vunpack.c.l.b16 %v707
  %v740 = vunpack.c.l.b16 %v708
  %v741 = vunpack.c.l.b16 %v709
  %v742 = vunpack.c.l.b16 %v710
  %v743 = vunpack.c.l.b16 %v711
  %v744 = vunpack.c.l.b16 %v712
  %v745 = vunpack.c.l.b16 %v713
  %v746 = vpack.c.b16 %v731, %v730
  %v747 = vpack.c.b16 %v733, %v732
  %v748 = vpack.c.b16 %v735, %v734
  %v749 = vpack.c.b16 %v737, %v736
  %v750 = vpack.c.b16 %v739, %v738
  %v751 = vpack.c.b16 %v741, %v740
  %v752 = vpack.c.b16 %v743, %v742
  %v753 = vpack.c.b16 %v745, %v744
  %762 = vmatprep.subr.bf16.mxu0 0
  %763 = vmatpush1.bf16.msra.mxu0 %v753
  %764 = vmatprep.subr.bf16.mxu0 0
  %765 = vmatpush1.bf16.msra.mxu0 %v752
  %766 = vmatprep.subr.bf16.mxu0 0
  %767 = vmatpush1.bf16.msra.mxu0 %v751
  %768 = vmatprep.subr.bf16.mxu0 0
  %769 = vmatpush1.bf16.msra.mxu0 %v750
  %770 = vmatprep.subr.bf16.mxu0 0
  %771 = vmatpush1.bf16.msra.mxu0 %v749
  %772 = vmatprep.subr.bf16.mxu0 0
  %773 = vmatpush1.bf16.msra.mxu0 %v748
  %774 = vmatprep.subr.bf16.mxu0 0
  %775 = vmatpush1.bf16.msra.mxu0 %v747
  %776 = vmatprep.subr.bf16.mxu0 0
  %777 = vmatpush1.bf16.msra.mxu0 %v746
  %778 = vmatprep.subr.bf16.mxu0 0
  %779 = vmatpush2.bf16.msra.mxu0 0
  %780 = vmatprep.subr.bf16.mxu0 0
  %781 = vmatpush2.bf16.msra.mxu0 0
  %782 = vmatprep.subr.bf16.mxu0 0
  %783 = vmatpush2.bf16.msra.mxu0 0
  %784 = vmatprep.subr.bf16.mxu0 0
  %785 = vmatpush2.bf16.msra.mxu0 0
  %786 = vmatprep.subr.bf16.mxu0 0
  %787 = vmatpush2.bf16.msra.mxu0 0
  %788 = vmatprep.subr.bf16.mxu0 0
  %789 = vmatpush2.bf16.msra.mxu0 0
  %790 = vmatprep.subr.bf16.mxu0 0
  %791 = vmatpush2.bf16.msra.mxu0 0
  %792 = vmatprep.subr.bf16.mxu0 0
  %793 = vmatpush2.bf16.msra.mxu0 0
  %794 = vmatprep.mubr.bf16.mxu0 0
  %795 = vmatmul.mubr.bf16.gmra.mxu0 %v694
  %v796 = vpop.f32.mrf.mxu0
  %v797 = vadd.f32 0.0, %v796
  %v798 = vpop.f32.mrf.mxu0
  %v799 = vpop.f32.mrf.mxu0
  %v800 = vadd.f32 0.0, %v799
  %v801 = vpop.f32.mrf.mxu0
  %802 = vmatprep.mubr.bf16.mxu0 0
  %803 = vmatmul.mubr.bf16.gmra.mxu0 %v695
  %v804 = vpop.f32.mrf.mxu0
  %v805 = vadd.f32 0.0, %v804
  %v806 = vpop.f32.mrf.mxu0
  %v807 = vpop.f32.mrf.mxu0
  %v808 = vadd.f32 0.0, %v807
  %v809 = vpop.f32.mrf.mxu0
  %810 = vmatprep.mubr.bf16.mxu0 0
  %811 = vmatmul.mubr.bf16.gmra.mxu0 %v696
  %v812 = vpop.f32.mrf.mxu0
  %v813 = vadd.f32 0.0, %v812
  %v814 = vpop.f32.mrf.mxu0
  %v815 = vpop.f32.mrf.mxu0
  %v816 = vpop.f32.mrf.mxu0
  %817 = vdwg.mxu0
  %v818 = vadd.f32 %v684, %v797
  %v819 = vadd.f32 %v685, %v800
  %v820 = vadd.f32 %v686, %v805
  %v821 = vadd.f32 %v687, %v808
  %v822 = vadd.f32 %v688, %v813
  %v823 = vld [vmem:[%s0 + $0x6] sm:$0xff]
  %v824 = vld [vmem:[%s0 + $0xe] sm:$0xff]
  %v825 = vld [vmem:[%s0 + $0x16] sm:$0xff]
  %v826 = vld [vmem:[%s0 + $0x1e] sm:$0xff]
  %v827 = vld [vmem:[%s0 + $0x26] sm:$0x3f]
  %v828 = vpack.c.bf16 %v824, %v823
  %v829 = vpack.c.bf16 %v826, %v825
  %v830 = vpack.c.bf16 %v827, %v827
  %s831 = scalar_lea.vmem %s1, 384
  %v832 = vld [vmem:[%s831] sm:$0xf]
  %v833 = vld [vmem:[%s831 + $0x4] sm:$0xf]
  %v834 = vld [vmem:[%s831 + $0x8] sm:$0xf]
  %v835 = vld [vmem:[%s831 + $0xc] sm:$0xf]
  %v836 = vld [vmem:[%s831 + $0x10] sm:$0xf]
  %v837 = vld [vmem:[%s831 + $0x14] sm:$0xf]
  %v838 = vld [vmem:[%s831 + $0x18] sm:$0xf]
  %v839 = vld [vmem:[%s831 + $0x1c] sm:$0xf]
  %v840 = vld [vmem:[%s831 + $0x20] sm:$0xf]
  %v841 = vld [vmem:[%s831 + $0x24] sm:$0xf]
  %v842 = vld [vmem:[%s831 + $0x28] sm:$0xf]
  %v843 = vld [vmem:[%s831 + $0x2c] sm:$0xf]
  %v844 = vld [vmem:[%s831 + $0x30] sm:$0xf]
  %v845 = vld [vmem:[%s831 + $0x34] sm:$0xf]
  %v846 = vld [vmem:[%s831 + $0x38] sm:$0xf]
  %v847 = vld [vmem:[%s831 + $0x3c] sm:$0xf]
  %v864 = vunpack.c.l.b16 %v832
  %v865 = vunpack.c.l.b16 %v833
  %v866 = vunpack.c.l.b16 %v834
  %v867 = vunpack.c.l.b16 %v835
  %v868 = vunpack.c.l.b16 %v836
  %v869 = vunpack.c.l.b16 %v837
  %v870 = vunpack.c.l.b16 %v838
  %v871 = vunpack.c.l.b16 %v839
  %v872 = vunpack.c.l.b16 %v840
  %v873 = vunpack.c.l.b16 %v841
  %v874 = vunpack.c.l.b16 %v842
  %v875 = vunpack.c.l.b16 %v843
  %v876 = vunpack.c.l.b16 %v844
  %v877 = vunpack.c.l.b16 %v845
  %v878 = vunpack.c.l.b16 %v846
  %v879 = vunpack.c.l.b16 %v847
  %v880 = vpack.c.b16 %v865, %v864
  %v881 = vpack.c.b16 %v867, %v866
  %v882 = vpack.c.b16 %v869, %v868
  %v883 = vpack.c.b16 %v871, %v870
  %v884 = vpack.c.b16 %v873, %v872
  %v885 = vpack.c.b16 %v875, %v874
  %v886 = vpack.c.b16 %v877, %v876
  %v887 = vpack.c.b16 %v879, %v878
  %896 = vmatprep.subr.bf16.mxu0 0
  %897 = vmatpush1.bf16.msra.mxu0 %v887
  %898 = vmatprep.subr.bf16.mxu0 0
  %899 = vmatpush1.bf16.msra.mxu0 %v886
  %900 = vmatprep.subr.bf16.mxu0 0
  %901 = vmatpush1.bf16.msra.mxu0 %v885
  %902 = vmatprep.subr.bf16.mxu0 0
  %903 = vmatpush1.bf16.msra.mxu0 %v884
  %904 = vmatprep.subr.bf16.mxu0 0
  %905 = vmatpush1.bf16.msra.mxu0 %v883
  %906 = vmatprep.subr.bf16.mxu0 0
  %907 = vmatpush1.bf16.msra.mxu0 %v882
  %908 = vmatprep.subr.bf16.mxu0 0
  %909 = vmatpush1.bf16.msra.mxu0 %v881
  %910 = vmatprep.subr.bf16.mxu0 0
  %911 = vmatpush1.bf16.msra.mxu0 %v880
  %912 = vmatprep.subr.bf16.mxu0 0
  %913 = vmatpush2.bf16.msra.mxu0 0
  %914 = vmatprep.subr.bf16.mxu0 0
  %915 = vmatpush2.bf16.msra.mxu0 0
  %916 = vmatprep.subr.bf16.mxu0 0
  %917 = vmatpush2.bf16.msra.mxu0 0
  %918 = vmatprep.subr.bf16.mxu0 0
  %919 = vmatpush2.bf16.msra.mxu0 0
  %920 = vmatprep.subr.bf16.mxu0 0
  %921 = vmatpush2.bf16.msra.mxu0 0
  %922 = vmatprep.subr.bf16.mxu0 0
  %923 = vmatpush2.bf16.msra.mxu0 0
  %924 = vmatprep.subr.bf16.mxu0 0
  %925 = vmatpush2.bf16.msra.mxu0 0
  %926 = vmatprep.subr.bf16.mxu0 0
  %927 = vmatpush2.bf16.msra.mxu0 0
  %928 = vmatprep.mubr.bf16.mxu0 0
  %929 = vmatmul.mubr.bf16.gmra.mxu0 %v828
  %v930 = vpop.f32.mrf.mxu0
  %v931 = vadd.f32 0.0, %v930
  %v932 = vpop.f32.mrf.mxu0
  %v933 = vpop.f32.mrf.mxu0
  %v934 = vadd.f32 0.0, %v933
  %v935 = vpop.f32.mrf.mxu0
  %936 = vmatprep.mubr.bf16.mxu0 0
  %937 = vmatmul.mubr.bf16.gmra.mxu0 %v829
  %v938 = vpop.f32.mrf.mxu0
  %v939 = vadd.f32 0.0, %v938
  %v940 = vpop.f32.mrf.mxu0
  %v941 = vpop.f32.mrf.mxu0
  %v942 = vadd.f32 0.0, %v941
  %v943 = vpop.f32.mrf.mxu0
  %944 = vmatprep.mubr.bf16.mxu0 0
  %945 = vmatmul.mubr.bf16.gmra.mxu0 %v830
  %v946 = vpop.f32.mrf.mxu0
  %v947 = vadd.f32 0.0, %v946
  %v948 = vpop.f32.mrf.mxu0
  %v949 = vpop.f32.mrf.mxu0
  %v950 = vpop.f32.mrf.mxu0
  %951 = vdwg.mxu0
  %v952 = vadd.f32 %v818, %v931
  %v953 = vadd.f32 %v819, %v934
  %v954 = vadd.f32 %v820, %v939
  %v955 = vadd.f32 %v821, %v942
  %v956 = vadd.f32 %v822, %v947
  %v957 = vld [vmem:[%s0 + $0x7] sm:$0xff]
  %v958 = vld [vmem:[%s0 + $0xf] sm:$0xff]
  %v959 = vld [vmem:[%s0 + $0x17] sm:$0xff]
  %v960 = vld [vmem:[%s0 + $0x1f] sm:$0xff]
  %v961 = vld [vmem:[%s0 + $0x27] sm:$0x3f]
  %v962 = vpack.c.bf16 %v958, %v957
  %v963 = vpack.c.bf16 %v960, %v959
  %v964 = vpack.c.bf16 %v961, %v961
  %s965 = scalar_lea.vmem %s1, 448
  %v966 = vld [vmem:[%s965] sm:$0xf]
  %v967 = vld [vmem:[%s965 + $0x4] sm:$0xf]
  %v968 = vld [vmem:[%s965 + $0x8] sm:$0xf]
  %v969 = vld [vmem:[%s965 + $0xc] sm:$0xf]
  %v970 = vld [vmem:[%s965 + $0x10] sm:$0xf]
  %v971 = vld [vmem:[%s965 + $0x14] sm:$0xf]
  %v972 = vld [vmem:[%s965 + $0x18] sm:$0xf]
  %v973 = vld [vmem:[%s965 + $0x1c] sm:$0xf]
  %v974 = vld [vmem:[%s965 + $0x20] sm:$0xf]
  %v975 = vld [vmem:[%s965 + $0x24] sm:$0xf]
  %v976 = vld [vmem:[%s965 + $0x28] sm:$0xf]
  %v977 = vld [vmem:[%s965 + $0x2c] sm:$0xf]
  %v978 = vld [vmem:[%s965 + $0x30] sm:$0xf]
  %v979 = vld [vmem:[%s965 + $0x34] sm:$0xf]
  %v980 = vld [vmem:[%s965 + $0x38] sm:$0xf]
  %v981 = vld [vmem:[%s965 + $0x3c] sm:$0xf]
  %v998 = vunpack.c.l.b16 %v966
  %v999 = vunpack.c.l.b16 %v967
  %v1000 = vunpack.c.l.b16 %v968
  %v1001 = vunpack.c.l.b16 %v969
  %v1002 = vunpack.c.l.b16 %v970
  %v1003 = vunpack.c.l.b16 %v971
  %v1004 = vunpack.c.l.b16 %v972
  %v1005 = vunpack.c.l.b16 %v973
  %v1006 = vunpack.c.l.b16 %v974
  %v1007 = vunpack.c.l.b16 %v975
  %v1008 = vunpack.c.l.b16 %v976
  %v1009 = vunpack.c.l.b16 %v977
  %v1010 = vunpack.c.l.b16 %v978
  %v1011 = vunpack.c.l.b16 %v979
  %v1012 = vunpack.c.l.b16 %v980
  %v1013 = vunpack.c.l.b16 %v981
  %v1014 = vpack.c.b16 %v999, %v998
  %v1015 = vpack.c.b16 %v1001, %v1000
  %v1016 = vpack.c.b16 %v1003, %v1002
  %v1017 = vpack.c.b16 %v1005, %v1004
  %v1018 = vpack.c.b16 %v1007, %v1006
  %v1019 = vpack.c.b16 %v1009, %v1008
  %v1020 = vpack.c.b16 %v1011, %v1010
  %v1021 = vpack.c.b16 %v1013, %v1012
  %1030 = vmatprep.subr.bf16.mxu0 0
  %1031 = vmatpush1.bf16.msra.mxu0 %v1021
  %1032 = vmatprep.subr.bf16.mxu0 0
  %1033 = vmatpush1.bf16.msra.mxu0 %v1020
  %1034 = vmatprep.subr.bf16.mxu0 0
  %1035 = vmatpush1.bf16.msra.mxu0 %v1019
  %1036 = vmatprep.subr.bf16.mxu0 0
  %1037 = vmatpush1.bf16.msra.mxu0 %v1018
  %1038 = vmatprep.subr.bf16.mxu0 0
  %1039 = vmatpush1.bf16.msra.mxu0 %v1017
  %1040 = vmatprep.subr.bf16.mxu0 0
  %1041 = vmatpush1.bf16.msra.mxu0 %v1016
  %1042 = vmatprep.subr.bf16.mxu0 0
  %1043 = vmatpush1.bf16.msra.mxu0 %v1015
  %1044 = vmatprep.subr.bf16.mxu0 0
  %1045 = vmatpush1.bf16.msra.mxu0 %v1014
  %1046 = vmatprep.subr.bf16.mxu0 0
  %1047 = vmatpush2.bf16.msra.mxu0 0
  %1048 = vmatprep.subr.bf16.mxu0 0
  %1049 = vmatpush2.bf16.msra.mxu0 0
  %1050 = vmatprep.subr.bf16.mxu0 0
  %1051 = vmatpush2.bf16.msra.mxu0 0
  %1052 = vmatprep.subr.bf16.mxu0 0
  %1053 = vmatpush2.bf16.msra.mxu0 0
  %1054 = vmatprep.subr.bf16.mxu0 0
  %1055 = vmatpush2.bf16.msra.mxu0 0
  %1056 = vmatprep.subr.bf16.mxu0 0
  %1057 = vmatpush2.bf16.msra.mxu0 0
  %1058 = vmatprep.subr.bf16.mxu0 0
  %1059 = vmatpush2.bf16.msra.mxu0 0
  %1060 = vmatprep.subr.bf16.mxu0 0
  %1061 = vmatpush2.bf16.msra.mxu0 0
  %1062 = vmatprep.mubr.bf16.mxu0 0
  %1063 = vmatmul.mubr.bf16.gmra.mxu0 %v962
  %v1064 = vpop.f32.mrf.mxu0
  %v1065 = vadd.f32 0.0, %v1064
  %v1066 = vpop.f32.mrf.mxu0
  %v1067 = vpop.f32.mrf.mxu0
  %v1068 = vadd.f32 0.0, %v1067
  %v1069 = vpop.f32.mrf.mxu0
  %1070 = vmatprep.mubr.bf16.mxu0 0
  %1071 = vmatmul.mubr.bf16.gmra.mxu0 %v963
  %v1072 = vpop.f32.mrf.mxu0
  %v1073 = vadd.f32 0.0, %v1072
  %v1074 = vpop.f32.mrf.mxu0
  %v1075 = vpop.f32.mrf.mxu0
  %v1076 = vadd.f32 0.0, %v1075
  %v1077 = vpop.f32.mrf.mxu0
  %1078 = vmatprep.mubr.bf16.mxu0 0
  %1079 = vmatmul.mubr.bf16.gmra.mxu0 %v964
  %v1080 = vpop.f32.mrf.mxu0
  %v1081 = vadd.f32 0.0, %v1080
  %v1082 = vpop.f32.mrf.mxu0
  %v1083 = vpop.f32.mrf.mxu0
  %v1084 = vpop.f32.mrf.mxu0
  %1085 = vdwg.mxu0
  %v1086 = vadd.f32 %v952, %v1065
  %v1087 = vadd.f32 %v953, %v1068
  %v1088 = vadd.f32 %v954, %v1073
  %v1089 = vadd.f32 %v955, %v1076
  %v1090 = vadd.f32 %v956, %v1081
  %v1091 = vld [vmem:[%s0 + $0x8] sm:$0xff]
  %v1092 = vld [vmem:[%s0 + $0x10] sm:$0xff]
  %v1093 = vld [vmem:[%s0 + $0x18] sm:$0xff]
  %v1094 = vld [vmem:[%s0 + $0x20] sm:$0xff]
  %v1095 = vld [vmem:[%s0 + $0x28] sm:$0x3f]
  %v1096 = vpack.c.bf16 %v1092, %v1091
  %v1097 = vpack.c.bf16 %v1094, %v1093
  %v1098 = vpack.c.bf16 %v1095, %v1095
  %s1099 = scalar_lea.vmem %s1, 512
  %v1100 = vld [vmem:[%s1099] sm:$0xf]
  %v1101 = vld [vmem:[%s1099 + $0x4] sm:$0xf]
  %v1102 = vld [vmem:[%s1099 + $0x8] sm:$0xf]
  %v1103 = vld [vmem:[%s1099 + $0xc] sm:$0xf]
  %v1104 = vld [vmem:[%s1099 + $0x10] sm:$0xf]
  %v1105 = vld [vmem:[%s1099 + $0x14] sm:$0xf]
  %v1106 = vld [vmem:[%s1099 + $0x18] sm:$0xf]
  %v1107 = vld [vmem:[%s1099 + $0x1c] sm:$0xf]
  %v1108 = vld [vmem:[%s1099 + $0x20] sm:$0xf]
  %v1109 = vld [vmem:[%s1099 + $0x24] sm:$0xf]
  %v1110 = vld [vmem:[%s1099 + $0x28] sm:$0xf]
  %v1111 = vld [vmem:[%s1099 + $0x2c] sm:$0xf]
  %v1112 = vld [vmem:[%s1099 + $0x30] sm:$0xf]
  %v1113 = vld [vmem:[%s1099 + $0x34] sm:$0xf]
  %v1114 = vld [vmem:[%s1099 + $0x38] sm:$0xf]
  %v1115 = vld [vmem:[%s1099 + $0x3c] sm:$0xf]
  %v1132 = vunpack.c.l.b16 %v1100
  %v1133 = vunpack.c.l.b16 %v1101
  %v1134 = vunpack.c.l.b16 %v1102
  %v1135 = vunpack.c.l.b16 %v1103
  %v1136 = vunpack.c.l.b16 %v1104
  %v1137 = vunpack.c.l.b16 %v1105
  %v1138 = vunpack.c.l.b16 %v1106
  %v1139 = vunpack.c.l.b16 %v1107
  %v1140 = vunpack.c.l.b16 %v1108
  %v1141 = vunpack.c.l.b16 %v1109
  %v1142 = vunpack.c.l.b16 %v1110
  %v1143 = vunpack.c.l.b16 %v1111
  %v1144 = vunpack.c.l.b16 %v1112
  %v1145 = vunpack.c.l.b16 %v1113
  %v1146 = vunpack.c.l.b16 %v1114
  %v1147 = vunpack.c.l.b16 %v1115
  %v1148 = vpack.c.b16 %v1133, %v1132
  %v1149 = vpack.c.b16 %v1135, %v1134
  %v1150 = vpack.c.b16 %v1137, %v1136
  %v1151 = vpack.c.b16 %v1139, %v1138
  %v1152 = vpack.c.b16 %v1141, %v1140
  %v1153 = vpack.c.b16 %v1143, %v1142
  %v1154 = vpack.c.b16 %v1145, %v1144
  %v1155 = vpack.c.b16 %v1147, %v1146
  %1164 = vmatprep.subr.bf16.mxu0 0
  %1165 = vmatpush1.bf16.msra.mxu0 %v1155
  %1166 = vmatprep.subr.bf16.mxu0 0
  %1167 = vmatpush1.bf16.msra.mxu0 %v1154
  %1168 = vmatprep.subr.bf16.mxu0 0
  %1169 = vmatpush1.bf16.msra.mxu0 %v1153
  %1170 = vmatprep.subr.bf16.mxu0 0
  %1171 = vmatpush1.bf16.msra.mxu0 %v1152
  %1172 = vmatprep.subr.bf16.mxu0 0
  %1173 = vmatpush1.bf16.msra.mxu0 %v1151
  %1174 = vmatprep.subr.bf16.mxu0 0
  %1175 = vmatpush1.bf16.msra.mxu0 %v1150
  %1176 = vmatprep.subr.bf16.mxu0 0
  %1177 = vmatpush1.bf16.msra.mxu0 %v1149
  %1178 = vmatprep.subr.bf16.mxu0 0
  %1179 = vmatpush1.bf16.msra.mxu0 %v1148
  %1180 = vmatprep.subr.bf16.mxu0 0
  %1181 = vmatpush2.bf16.msra.mxu0 0
  %1182 = vmatprep.subr.bf16.mxu0 0
  %1183 = vmatpush2.bf16.msra.mxu0 0
  %1184 = vmatprep.subr.bf16.mxu0 0
  %1185 = vmatpush2.bf16.msra.mxu0 0
  %1186 = vmatprep.subr.bf16.mxu0 0
  %1187 = vmatpush2.bf16.msra.mxu0 0
  %1188 = vmatprep.subr.bf16.mxu0 0
  %1189 = vmatpush2.bf16.msra.mxu0 0
  %1190 = vmatprep.subr.bf16.mxu0 0
  %1191 = vmatpush2.bf16.msra.mxu0 0
  %1192 = vmatprep.subr.bf16.mxu0 0
  %1193 = vmatpush2.bf16.msra.mxu0 0
  %1194 = vmatprep.subr.bf16.mxu0 0
  %1195 = vmatpush2.bf16.msra.mxu0 0
  %1196 = vmatprep.mubr.bf16.mxu0 0
  %1197 = vmatmul.mubr.bf16.gmra.mxu0 %v1096
  %v1198 = vpop.f32.mrf.mxu0
  %v1199 = vadd.f32 0.0, %v1198
  %v1200 = vpop.f32.mrf.mxu0
  %v1201 = vpop.f32.mrf.mxu0
  %v1202 = vadd.f32 0.0, %v1201
  %v1203 = vpop.f32.mrf.mxu0
  %1204 = vmatprep.mubr.bf16.mxu0 0
  %1205 = vmatmul.mubr.bf16.gmra.mxu0 %v1097
  %v1206 = vpop.f32.mrf.mxu0
  %v1207 = vadd.f32 0.0, %v1206
  %v1208 = vpop.f32.mrf.mxu0
  %v1209 = vpop.f32.mrf.mxu0
  %v1210 = vadd.f32 0.0, %v1209
  %v1211 = vpop.f32.mrf.mxu0
  %1212 = vmatprep.mubr.bf16.mxu0 0
  %1213 = vmatmul.mubr.bf16.gmra.mxu0 %v1098
  %v1214 = vpop.f32.mrf.mxu0
  %v1215 = vadd.f32 0.0, %v1214
  %v1216 = vpop.f32.mrf.mxu0
  %v1217 = vpop.f32.mrf.mxu0
  %v1218 = vpop.f32.mrf.mxu0
  %1219 = vdwg.mxu0
  %v1220 = vadd.f32 %v1086, %v1199
  %v1221 = vadd.f32 %v1087, %v1202
  %v1222 = vadd.f32 %v1088, %v1207
  %v1223 = vadd.f32 %v1089, %v1210
  %v1224 = vadd.f32 %v1090, %v1215
  %v1225 = vld [vmem:[%s2] sm:$0x1]
  %v1227 = vlaneseq
  %v1228 = vshrl.u32 %v1227, 7
  %v1229 = vsub.s32 0, %v1228
  %v1230 = vrot.slane %v1225, %v1229
  %v1232 = vadd.f32 %v1220, %v1230
  %v1233 = vadd.f32 %v1221, %v1230
  %v1234 = vadd.f32 %v1222, %v1230
  %v1235 = vadd.f32 %v1223, %v1230
  %v1236 = vadd.f32 %v1224, %v1230
  %v1237 = vmax.f32 %v1232, 0.0
  %v1238 = vmax.f32 %v1233, 0.0
  %v1239 = vmax.f32 %v1234, 0.0
  %v1240 = vmax.f32 %v1235, 0.0
  %v1241 = vmax.f32 %v1236, 0.0
  %vm1247 = vcmask 1046528
  %v1248 = vrot.slane %v1237, 1
  %v1249 = vrot.slane %v1238, 1
  %v1250 = vsel %vm1247, %v1248, %v1249
  %v1251 = vrot.slane %v1239, 1
  %v1252 = vsel %vm1247, %v1249, %v1251
  %v1253 = vrot.slane %v1240, 1
  %v1254 = vsel %vm1247, %v1251, %v1253
  %v1255 = vrot.slane %v1241, 1
  %v1256 = vsel %vm1247, %v1253, %v1255
  %v1262 = vmax.f32 %v1237, %v1250
  %v1263 = vmax.f32 %v1238, %v1252
  %v1264 = vmax.f32 %v1239, %v1254
  %v1265 = vmax.f32 %v1240, %v1256
  %v1266 = vmax.f32 %v1241, %v1255
  %vm1272 = vcmask 1045504
  %v1273 = vrot.slane %v1262, 2
  %v1274 = vrot.slane %v1263, 2
  %v1275 = vsel %vm1272, %v1273, %v1274
  %v1276 = vrot.slane %v1264, 2
  %v1277 = vsel %vm1272, %v1274, %v1276
  %v1278 = vrot.slane %v1265, 2
  %v1279 = vsel %vm1272, %v1276, %v1278
  %v1280 = vrot.slane %v1266, 2
  %v1281 = vsel %vm1272, %v1278, %v1280
  %v1287 = vmax.f32 %v1262, %v1275
  %v1288 = vmax.f32 %v1263, %v1277
  %v1289 = vmax.f32 %v1264, %v1279
  %v1290 = vmax.f32 %v1265, %v1281
  %v1291 = vmax.f32 %v1266, %v1280
  %v1292 = vld [vmem:[%s5] sm:$0xff]
  %v1293 = vld [vmem:[%s5 + $0x8] sm:$0xff]
  %v1294 = vld [vmem:[%s5 + $0x10] sm:$0x3]
  %vm1295 = vcmask 285696
  %v1297 = vsel %vm1295, %v1292, 0
  %v1300 = vsel %vm1295, %v1293, 0
  %v1303 = vsel %vm1295, %v1294, 0
  %vm1305 = vcmask 1042432
  %v1307 = vsel %vm1305, %v1291, 0
  %1309 = vmatprep.subr.mxu0 0.0
  %1310 = vmatpush1.msra.mxu0 0.0
  %1311 = vmatprep.subr.mxu0 0.0
  %1312 = vmatpush1.msra.mxu0 0.0
  %1313 = vmatprep.subr.mxu0 0.0
  %1314 = vmatpush1.msra.mxu0 0.0
  %1315 = vmatprep.subr.mxu0 0.0
  %1316 = vmatpush1.msra.mxu0 0.0
  %1317 = vmatprep.subr.mxu0 0.0
  %1318 = vmatpush1.msra.mxu0 0.0
  %1319 = vmatprep.subr.mxu0 0.0
  %1320 = vmatpush1.msra.mxu0 0.0
  %1321 = vmatprep.subr.mxu0 0.0
  %1322 = vmatpush1.msra.mxu0 0.0
  %1323 = vmatprep.subr.mxu0 0.0
  %1324 = vmatpush1.msra.mxu0 0.0
  %1325 = vmatprep.subr.mxu0 0.0
  %1326 = vmatpush1.msra.mxu0 0.0
  %1327 = vmatprep.subr.mxu0 0.0
  %1328 = vmatpush1.msra.mxu0 0.0
  %1329 = vmatprep.subr.mxu0 0.0
  %1330 = vmatpush1.msra.mxu0 0.0
  %1331 = vmatprep.subr.mxu0 0.0
  %1332 = vmatpush1.msra.mxu0 %v1307
  %1333 = vmatprep.subr.mxu0 0.0
  %1334 = vmatpush1.msra.mxu0 %v1290
  %1335 = vmatprep.subr.mxu0 0.0
  %1336 = vmatpush1.msra.mxu0 %v1289
  %1337 = vmatprep.subr.mxu0 0.0
  %1338 = vmatpush1.msra.mxu0 %v1288
  %1339 = vmatprep.subr.mxu0 0.0
  %1340 = vmatpush1.msra.mxu0 %v1287
  %1341 = vmatprep.subr.mxu0 0.0
  %1342 = vmatpush2.msra.mxu0 0.0
  %1343 = vmatprep.subr.mxu0 0.0
  %1344 = vmatpush2.msra.mxu0 0.0
  %1345 = vmatprep.subr.mxu0 0.0
  %1346 = vmatpush2.msra.mxu0 0.0
  %1347 = vmatprep.subr.mxu0 0.0
  %1348 = vmatpush2.msra.mxu0 0.0
  %1349 = vmatprep.subr.mxu0 0.0
  %1350 = vmatpush2.msra.mxu0 0.0
  %1351 = vmatprep.subr.mxu0 0.0
  %1352 = vmatpush2.msra.mxu0 0.0
  %1353 = vmatprep.subr.mxu0 0.0
  %1354 = vmatpush2.msra.mxu0 0.0
  %1355 = vmatprep.subr.mxu0 0.0
  %1356 = vmatpush2.msra.mxu0 0.0
  %1357 = vmatprep.subr.mxu0 0.0
  %1358 = vmatpush2.msra.mxu0 0.0
  %1359 = vmatprep.subr.mxu0 0.0
  %1360 = vmatpush2.msra.mxu0 0.0
  %1361 = vmatprep.subr.mxu0 0.0
  %1362 = vmatpush2.msra.mxu0 0.0
  %1363 = vmatprep.subr.mxu0 0.0
  %1364 = vmatpush2.msra.mxu0 0.0
  %1365 = vmatprep.subr.mxu0 0.0
  %1366 = vmatpush2.msra.mxu0 0.0
  %1367 = vmatprep.subr.mxu0 0.0
  %1368 = vmatpush2.msra.mxu0 0.0
  %1369 = vmatprep.subr.mxu0 0.0
  %1370 = vmatpush2.msra.mxu0 0.0
  %1371 = vmatprep.subr.mxu0 0.0
  %1372 = vmatpush2.msra.mxu0 0.0
  %1373 = vmatprep.mubr.f32.mxu0 0.0
  %1374 = vmatmul.mubr.f32.gmra.mxu0 %v1297
  %v1375 = vpop.f32.mrf.mxu0
  %v1376 = vadd.f32 0.0, %v1375
  %v1377 = vpop.f32.mrf.mxu0
  %1378 = vmatprep.mubr.f32.mxu0 0.0
  %1379 = vmatmul.mubr.f32.gmra.mxu0 %v1300
  %v1380 = vpop.f32.mrf.mxu0
  %v1381 = vadd.f32 0.0, %v1380
  %v1382 = vpop.f32.mrf.mxu0
  %1383 = vmatprep.mubr.f32.mxu0 0.0
  %1384 = vmatmul.mubr.f32.gmra.mxu0 %v1303
  %v1385 = vpop.f32.mrf.mxu0
  %v1386 = vadd.f32 0.0, %v1385
  %v1387 = vpop.f32.mrf.mxu0
  %1388 = vdwg.mxu0
  %v1389 = vadd.f32 %v1376, %v1381
  %vm1390 = vcmask 1041408
  %v1391 = vsel %vm1390, %v1386, 0.0
  %v1392 = vadd.f32 %v1389, %v1391
  %v1393 = vrot.slane %v1392, 4
  %v1394 = vadd.f32 %v1392, %v1393
  %v1395 = vrot.slane %v1394, 2
  %v1396 = vadd.f32 %v1394, %v1395
  %v1397 = vrot.slane %v1396, 1
  %v1398 = vadd.f32 %v1396, %v1397
  %s1399 = scalar_lea.vmem %s0, 48
  %v1400 = vld [vmem:[%s1399] sm:$0xff]
  %v1401 = vld [vmem:[%s1399 + $0x8] sm:$0xff]
  %v1402 = vld [vmem:[%s1399 + $0x10] sm:$0xff]
  %v1403 = vld [vmem:[%s1399 + $0x18] sm:$0xff]
  %v1404 = vld [vmem:[%s1399 + $0x20] sm:$0x3f]
  %v1405 = vpack.c.bf16 %v1401, %v1400
  %v1406 = vpack.c.bf16 %v1403, %v1402
  %v1407 = vpack.c.bf16 %v1404, %v1404
  %v1408 = vld [vmem:[%s1399 + $0x1] sm:$0xff]
  %v1409 = vld [vmem:[%s1399 + $0x9] sm:$0xff]
  %v1410 = vld [vmem:[%s1399 + $0x11] sm:$0xff]
  %v1411 = vld [vmem:[%s1399 + $0x19] sm:$0xff]
  %v1412 = vld [vmem:[%s1399 + $0x21] sm:$0x3f]
  %v1413 = vpack.c.bf16 %v1409, %v1408
  %v1414 = vpack.c.bf16 %v1411, %v1410
  %v1415 = vpack.c.bf16 %v1412, %v1412
  %1416 = vmatprep.subr.bf16.mxu0 0
  %1417 = vmatpush1.bf16.msra.mxu0 %v118
  %1418 = vmatprep.subr.bf16.mxu0 0
  %1419 = vmatpush1.bf16.msra.mxu0 %v117
  %1420 = vmatprep.subr.bf16.mxu0 0
  %1421 = vmatpush1.bf16.msra.mxu0 %v116
  %1422 = vmatprep.subr.bf16.mxu0 0
  %1423 = vmatpush1.bf16.msra.mxu0 %v115
  %1424 = vmatprep.subr.bf16.mxu0 0
  %1425 = vmatpush1.bf16.msra.mxu0 %v114
  %1426 = vmatprep.subr.bf16.mxu0 0
  %1427 = vmatpush1.bf16.msra.mxu0 %v113
  %1428 = vmatprep.subr.bf16.mxu0 0
  %1429 = vmatpush1.bf16.msra.mxu0 %v112
  %1430 = vmatprep.subr.bf16.mxu0 0
  %1431 = vmatpush1.bf16.msra.mxu0 %v111
  %1432 = vmatprep.subr.bf16.mxu0 0
  %1433 = vmatpush2.bf16.msra.mxu0 0
  %1434 = vmatprep.subr.bf16.mxu0 0
  %1435 = vmatpush2.bf16.msra.mxu0 0
  %1436 = vmatprep.subr.bf16.mxu0 0
  %1437 = vmatpush2.bf16.msra.mxu0 0
  %1438 = vmatprep.subr.bf16.mxu0 0
  %1439 = vmatpush2.bf16.msra.mxu0 0
  %1440 = vmatprep.subr.bf16.mxu0 0
  %1441 = vmatpush2.bf16.msra.mxu0 0
  %1442 = vmatprep.subr.bf16.mxu0 0
  %1443 = vmatpush2.bf16.msra.mxu0 0
  %1444 = vmatprep.subr.bf16.mxu0 0
  %1445 = vmatpush2.bf16.msra.mxu0 0
  %1446 = vmatprep.subr.bf16.mxu0 0
  %1447 = vmatpush2.bf16.msra.mxu0 0
  %1448 = vmatprep.mubr.bf16.mxu0 0
  %1449 = vmatmul.mubr.bf16.gmra.mxu0 %v1413
  %v1450 = vpop.f32.mrf.mxu0
  %v1451 = vadd.f32 0.0, %v1450
  %v1452 = vpop.f32.mrf.mxu0
  %v1453 = vpop.f32.mrf.mxu0
  %v1454 = vadd.f32 0.0, %v1453
  %v1455 = vpop.f32.mrf.mxu0
  %1456 = vmatprep.mubr.bf16.mxu0 0
  %1457 = vmatmul.mubr.bf16.gmra.mxu0 %v1414
  %v1458 = vpop.f32.mrf.mxu0
  %v1459 = vadd.f32 0.0, %v1458
  %v1460 = vpop.f32.mrf.mxu0
  %v1461 = vpop.f32.mrf.mxu0
  %v1462 = vadd.f32 0.0, %v1461
  %v1463 = vpop.f32.mrf.mxu0
  %1464 = vmatprep.mubr.bf16.mxu0 0
  %1465 = vmatmul.mubr.bf16.gmra.mxu0 %v1415
  %v1466 = vpop.f32.mrf.mxu0
  %v1467 = vadd.f32 0.0, %v1466
  %v1468 = vpop.f32.mrf.mxu0
  %v1469 = vpop.f32.mrf.mxu0
  %v1470 = vpop.f32.mrf.mxu0
  %1471 = vdwg.mxu0
  %1472 = vmatprep.subr.bf16.mxu0 0
  %1473 = vmatpush1.bf16.msra.mxu0 %v222
  %1474 = vmatprep.subr.bf16.mxu0 0
  %1475 = vmatpush1.bf16.msra.mxu0 %v221
  %1476 = vmatprep.subr.bf16.mxu0 0
  %1477 = vmatpush1.bf16.msra.mxu0 %v220
  %1478 = vmatprep.subr.bf16.mxu0 0
  %1479 = vmatpush1.bf16.msra.mxu0 %v219
  %1480 = vmatprep.subr.bf16.mxu0 0
  %1481 = vmatpush1.bf16.msra.mxu0 %v218
  %1482 = vmatprep.subr.bf16.mxu0 0
  %1483 = vmatpush1.bf16.msra.mxu0 %v217
  %1484 = vmatprep.subr.bf16.mxu0 0
  %1485 = vmatpush1.bf16.msra.mxu0 %v216
  %1486 = vmatprep.subr.bf16.mxu0 0
  %1487 = vmatpush1.bf16.msra.mxu0 %v215
  %1488 = vmatprep.subr.bf16.mxu0 0
  %1489 = vmatpush2.bf16.msra.mxu0 0
  %1490 = vmatprep.subr.bf16.mxu0 0
  %1491 = vmatpush2.bf16.msra.mxu0 0
  %1492 = vmatprep.subr.bf16.mxu0 0
  %1493 = vmatpush2.bf16.msra.mxu0 0
  %1494 = vmatprep.subr.bf16.mxu0 0
  %1495 = vmatpush2.bf16.msra.mxu0 0
  %1496 = vmatprep.subr.bf16.mxu0 0
  %1497 = vmatpush2.bf16.msra.mxu0 0
  %1498 = vmatprep.subr.bf16.mxu0 0
  %1499 = vmatpush2.bf16.msra.mxu0 0
  %1500 = vmatprep.subr.bf16.mxu0 0
  %1501 = vmatpush2.bf16.msra.mxu0 0
  %1502 = vmatprep.subr.bf16.mxu0 0
  %1503 = vmatpush2.bf16.msra.mxu0 0
  %1504 = vmatprep.mubr.bf16.mxu0 0
  %1505 = vmatmul.mubr.bf16.gmra.mxu0 %v1405
  %v1506 = vpop.f32.mrf.mxu0
  %v1507 = vadd.f32 %v1451, %v1506
  %v1508 = vpop.f32.mrf.mxu0
  %v1509 = vpop.f32.mrf.mxu0
  %v1510 = vadd.f32 %v1454, %v1509
  %v1511 = vpop.f32.mrf.mxu0
  %1512 = vmatprep.mubr.bf16.mxu0 0
  %1513 = vmatmul.mubr.bf16.gmra.mxu0 %v1406
  %v1514 = vpop.f32.mrf.mxu0
  %v1515 = vadd.f32 %v1459, %v1514
  %v1516 = vpop.f32.mrf.mxu0
  %v1517 = vpop.f32.mrf.mxu0
  %v1518 = vadd.f32 %v1462, %v1517
  %v1519 = vpop.f32.mrf.mxu0
  %1520 = vmatprep.mubr.bf16.mxu0 0
  %1521 = vmatmul.mubr.bf16.gmra.mxu0 %v1407
  %v1522 = vpop.f32.mrf.mxu0
  %v1523 = vadd.f32 %v1467, %v1522
  %v1524 = vpop.f32.mrf.mxu0
  %v1525 = vpop.f32.mrf.mxu0
  %v1526 = vpop.f32.mrf.mxu0
  %1527 = vdwg.mxu0
  %v1528 = vld [vmem:[%s1399 + $0x2] sm:$0xff]
  %v1529 = vld [vmem:[%s1399 + $0xa] sm:$0xff]
  %v1530 = vld [vmem:[%s1399 + $0x12] sm:$0xff]
  %v1531 = vld [vmem:[%s1399 + $0x1a] sm:$0xff]
  %v1532 = vld [vmem:[%s1399 + $0x22] sm:$0x3f]
  %v1533 = vpack.c.bf16 %v1529, %v1528
  %v1534 = vpack.c.bf16 %v1531, %v1530
  %v1535 = vpack.c.bf16 %v1532, %v1532
  %1536 = vmatprep.subr.bf16.mxu0 0
  %1537 = vmatpush1.bf16.msra.mxu0 %v351
  %1538 = vmatprep.subr.bf16.mxu0 0
  %1539 = vmatpush1.bf16.msra.mxu0 %v350
  %1540 = vmatprep.subr.bf16.mxu0 0
  %1541 = vmatpush1.bf16.msra.mxu0 %v349
  %1542 = vmatprep.subr.bf16.mxu0 0
  %1543 = vmatpush1.bf16.msra.mxu0 %v348
  %1544 = vmatprep.subr.bf16.mxu0 0
  %1545 = vmatpush1.bf16.msra.mxu0 %v347
  %1546 = vmatprep.subr.bf16.mxu0 0
  %1547 = vmatpush1.bf16.msra.mxu0 %v346
  %1548 = vmatprep.subr.bf16.mxu0 0
  %1549 = vmatpush1.bf16.msra.mxu0 %v345
  %1550 = vmatprep.subr.bf16.mxu0 0
  %1551 = vmatpush1.bf16.msra.mxu0 %v344
  %1552 = vmatprep.subr.bf16.mxu0 0
  %1553 = vmatpush2.bf16.msra.mxu0 0
  %1554 = vmatprep.subr.bf16.mxu0 0
  %1555 = vmatpush2.bf16.msra.mxu0 0
  %1556 = vmatprep.subr.bf16.mxu0 0
  %1557 = vmatpush2.bf16.msra.mxu0 0
  %1558 = vmatprep.subr.bf16.mxu0 0
  %1559 = vmatpush2.bf16.msra.mxu0 0
  %1560 = vmatprep.subr.bf16.mxu0 0
  %1561 = vmatpush2.bf16.msra.mxu0 0
  %1562 = vmatprep.subr.bf16.mxu0 0
  %1563 = vmatpush2.bf16.msra.mxu0 0
  %1564 = vmatprep.subr.bf16.mxu0 0
  %1565 = vmatpush2.bf16.msra.mxu0 0
  %1566 = vmatprep.subr.bf16.mxu0 0
  %1567 = vmatpush2.bf16.msra.mxu0 0
  %1568 = vmatprep.mubr.bf16.mxu0 0
  %1569 = vmatmul.mubr.bf16.gmra.mxu0 %v1533
  %v1570 = vpop.f32.mrf.mxu0
  %v1571 = vadd.f32 0.0, %v1570
  %v1572 = vpop.f32.mrf.mxu0
  %v1573 = vpop.f32.mrf.mxu0
  %v1574 = vadd.f32 0.0, %v1573
  %v1575 = vpop.f32.mrf.mxu0
  %1576 = vmatprep.mubr.bf16.mxu0 0
  %1577 = vmatmul.mubr.bf16.gmra.mxu0 %v1534
  %v1578 = vpop.f32.mrf.mxu0
  %v1579 = vadd.f32 0.0, %v1578
  %v1580 = vpop.f32.mrf.mxu0
  %v1581 = vpop.f32.mrf.mxu0
  %v1582 = vadd.f32 0.0, %v1581
  %v1583 = vpop.f32.mrf.mxu0
  %1584 = vmatprep.mubr.bf16.mxu0 0
  %1585 = vmatmul.mubr.bf16.gmra.mxu0 %v1535
  %v1586 = vpop.f32.mrf.mxu0
  %v1587 = vadd.f32 0.0, %v1586
  %v1588 = vpop.f32.mrf.mxu0
  %v1589 = vpop.f32.mrf.mxu0
  %v1590 = vpop.f32.mrf.mxu0
  %1591 = vdwg.mxu0
  %v1592 = vadd.f32 %v1507, %v1571
  %v1593 = vadd.f32 %v1510, %v1574
  %v1594 = vadd.f32 %v1515, %v1579
  %v1595 = vadd.f32 %v1518, %v1582
  %v1596 = vadd.f32 %v1523, %v1587
  %v1597 = vld [vmem:[%s1399 + $0x3] sm:$0xff]
  %v1598 = vld [vmem:[%s1399 + $0xb] sm:$0xff]
  %v1599 = vld [vmem:[%s1399 + $0x13] sm:$0xff]
  %v1600 = vld [vmem:[%s1399 + $0x1b] sm:$0xff]
  %v1601 = vld [vmem:[%s1399 + $0x23] sm:$0x3f]
  %v1602 = vpack.c.bf16 %v1598, %v1597
  %v1603 = vpack.c.bf16 %v1600, %v1599
  %v1604 = vpack.c.bf16 %v1601, %v1601
  %1605 = vmatprep.subr.bf16.mxu0 0
  %1606 = vmatpush1.bf16.msra.mxu0 %v485
  %1607 = vmatprep.subr.bf16.mxu0 0
  %1608 = vmatpush1.bf16.msra.mxu0 %v484
  %1609 = vmatprep.subr.bf16.mxu0 0
  %1610 = vmatpush1.bf16.msra.mxu0 %v483
  %1611 = vmatprep.subr.bf16.mxu0 0
  %1612 = vmatpush1.bf16.msra.mxu0 %v482
  %1613 = vmatprep.subr.bf16.mxu0 0
  %1614 = vmatpush1.bf16.msra.mxu0 %v481
  %1615 = vmatprep.subr.bf16.mxu0 0
  %1616 = vmatpush1.bf16.msra.mxu0 %v480
  %1617 = vmatprep.subr.bf16.mxu0 0
  %1618 = vmatpush1.bf16.msra.mxu0 %v479
  %1619 = vmatprep.subr.bf16.mxu0 0
  %1620 = vmatpush1.bf16.msra.mxu0 %v478
  %1621 = vmatprep.subr.bf16.mxu0 0
  %1622 = vmatpush2.bf16.msra.mxu0 0
  %1623 = vmatprep.subr.bf16.mxu0 0
  %1624 = vmatpush2.bf16.msra.mxu0 0
  %1625 = vmatprep.subr.bf16.mxu0 0
  %1626 = vmatpush2.bf16.msra.mxu0 0
  %1627 = vmatprep.subr.bf16.mxu0 0
  %1628 = vmatpush2.bf16.msra.mxu0 0
  %1629 = vmatprep.subr.bf16.mxu0 0
  %1630 = vmatpush2.bf16.msra.mxu0 0
  %1631 = vmatprep.subr.bf16.mxu0 0
  %1632 = vmatpush2.bf16.msra.mxu0 0
  %1633 = vmatprep.subr.bf16.mxu0 0
  %1634 = vmatpush2.bf16.msra.mxu0 0
  %1635 = vmatprep.subr.bf16.mxu0 0
  %1636 = vmatpush2.bf16.msra.mxu0 0
  %1637 = vmatprep.mubr.bf16.mxu0 0
  %1638 = vmatmul.mubr.bf16.gmra.mxu0 %v1602
  %v1639 = vpop.f32.mrf.mxu0
  %v1640 = vadd.f32 0.0, %v1639
  %v1641 = vpop.f32.mrf.mxu0
  %v1642 = vpop.f32.mrf.mxu0
  %v1643 = vadd.f32 0.0, %v1642
  %v1644 = vpop.f32.mrf.mxu0
  %1645 = vmatprep.mubr.bf16.mxu0 0
  %1646 = vmatmul.mubr.bf16.gmra.mxu0 %v1603
  %v1647 = vpop.f32.mrf.mxu0
  %v1648 = vadd.f32 0.0, %v1647
  %v1649 = vpop.f32.mrf.mxu0
  %v1650 = vpop.f32.mrf.mxu0
  %v1651 = vadd.f32 0.0, %v1650
  %v1652 = vpop.f32.mrf.mxu0
  %1653 = vmatprep.mubr.bf16.mxu0 0
  %1654 = vmatmul.mubr.bf16.gmra.mxu0 %v1604
  %v1655 = vpop.f32.mrf.mxu0
  %v1656 = vadd.f32 0.0, %v1655
  %v1657 = vpop.f32.mrf.mxu0
  %v1658 = vpop.f32.mrf.mxu0
  %v1659 = vpop.f32.mrf.mxu0
  %1660 = vdwg.mxu0
  %v1661 = vadd.f32 %v1592, %v1640
  %v1662 = vadd.f32 %v1593, %v1643
  %v1663 = vadd.f32 %v1594, %v1648
  %v1664 = vadd.f32 %v1595, %v1651
  %v1665 = vadd.f32 %v1596, %v1656
  %v1666 = vld [vmem:[%s1399 + $0x4] sm:$0xff]
  %v1667 = vld [vmem:[%s1399 + $0xc] sm:$0xff]
  %v1668 = vld [vmem:[%s1399 + $0x14] sm:$0xff]
  %v1669 = vld [vmem:[%s1399 + $0x1c] sm:$0xff]
  %v1670 = vld [vmem:[%s1399 + $0x24] sm:$0x3f]
  %v1671 = vpack.c.bf16 %v1667, %v1666
  %v1672 = vpack.c.bf16 %v1669, %v1668
  %v1673 = vpack.c.bf16 %v1670, %v1670
  %1674 = vmatprep.subr.bf16.mxu0 0
  %1675 = vmatpush1.bf16.msra.mxu0 %v619
  %1676 = vmatprep.subr.bf16.mxu0 0
  %1677 = vmatpush1.bf16.msra.mxu0 %v618
  %1678 = vmatprep.subr.bf16.mxu0 0
  %1679 = vmatpush1.bf16.msra.mxu0 %v617
  %1680 = vmatprep.subr.bf16.mxu0 0
  %1681 = vmatpush1.bf16.msra.mxu0 %v616
  %1682 = vmatprep.subr.bf16.mxu0 0
  %1683 = vmatpush1.bf16.msra.mxu0 %v615
  %1684 = vmatprep.subr.bf16.mxu0 0
  %1685 = vmatpush1.bf16.msra.mxu0 %v614
  %1686 = vmatprep.subr.bf16.mxu0 0
  %1687 = vmatpush1.bf16.msra.mxu0 %v613
  %1688 = vmatprep.subr.bf16.mxu0 0
  %1689 = vmatpush1.bf16.msra.mxu0 %v612
  %1690 = vmatprep.subr.bf16.mxu0 0
  %1691 = vmatpush2.bf16.msra.mxu0 0
  %1692 = vmatprep.subr.bf16.mxu0 0
  %1693 = vmatpush2.bf16.msra.mxu0 0
  %1694 = vmatprep.subr.bf16.mxu0 0
  %1695 = vmatpush2.bf16.msra.mxu0 0
  %1696 = vmatprep.subr.bf16.mxu0 0
  %1697 = vmatpush2.bf16.msra.mxu0 0
  %1698 = vmatprep.subr.bf16.mxu0 0
  %1699 = vmatpush2.bf16.msra.mxu0 0
  %1700 = vmatprep.subr.bf16.mxu0 0
  %1701 = vmatpush2.bf16.msra.mxu0 0
  %1702 = vmatprep.subr.bf16.mxu0 0
  %1703 = vmatpush2.bf16.msra.mxu0 0
  %1704 = vmatprep.subr.bf16.mxu0 0
  %1705 = vmatpush2.bf16.msra.mxu0 0
  %1706 = vmatprep.mubr.bf16.mxu0 0
  %1707 = vmatmul.mubr.bf16.gmra.mxu0 %v1671
  %v1708 = vpop.f32.mrf.mxu0
  %v1709 = vadd.f32 0.0, %v1708
  %v1710 = vpop.f32.mrf.mxu0
  %v1711 = vpop.f32.mrf.mxu0
  %v1712 = vadd.f32 0.0, %v1711
  %v1713 = vpop.f32.mrf.mxu0
  %1714 = vmatprep.mubr.bf16.mxu0 0
  %1715 = vmatmul.mubr.bf16.gmra.mxu0 %v1672
  %v1716 = vpop.f32.mrf.mxu0
  %v1717 = vadd.f32 0.0, %v1716
  %v1718 = vpop.f32.mrf.mxu0
  %v1719 = vpop.f32.mrf.mxu0
  %v1720 = vadd.f32 0.0, %v1719
  %v1721 = vpop.f32.mrf.mxu0
  %1722 = vmatprep.mubr.bf16.mxu0 0
  %1723 = vmatmul.mubr.bf16.gmra.mxu0 %v1673
  %v1724 = vpop.f32.mrf.mxu0
  %v1725 = vadd.f32 0.0, %v1724
  %v1726 = vpop.f32.mrf.mxu0
  %v1727 = vpop.f32.mrf.mxu0
  %v1728 = vpop.f32.mrf.mxu0
  %1729 = vdwg.mxu0
  %v1730 = vadd.f32 %v1661, %v1709
  %v1731 = vadd.f32 %v1662, %v1712
  %v1732 = vadd.f32 %v1663, %v1717
  %v1733 = vadd.f32 %v1664, %v1720
  %v1734 = vadd.f32 %v1665, %v1725
  %v1735 = vld [vmem:[%s1399 + $0x5] sm:$0xff]
  %v1736 = vld [vmem:[%s1399 + $0xd] sm:$0xff]
  %v1737 = vld [vmem:[%s1399 + $0x15] sm:$0xff]
  %v1738 = vld [vmem:[%s1399 + $0x1d] sm:$0xff]
  %v1739 = vld [vmem:[%s1399 + $0x25] sm:$0x3f]
  %v1740 = vpack.c.bf16 %v1736, %v1735
  %v1741 = vpack.c.bf16 %v1738, %v1737
  %v1742 = vpack.c.bf16 %v1739, %v1739
  %1743 = vmatprep.subr.bf16.mxu0 0
  %1744 = vmatpush1.bf16.msra.mxu0 %v753
  %1745 = vmatprep.subr.bf16.mxu0 0
  %1746 = vmatpush1.bf16.msra.mxu0 %v752
  %1747 = vmatprep.subr.bf16.mxu0 0
  %1748 = vmatpush1.bf16.msra.mxu0 %v751
  %1749 = vmatprep.subr.bf16.mxu0 0
  %1750 = vmatpush1.bf16.msra.mxu0 %v750
  %1751 = vmatprep.subr.bf16.mxu0 0
  %1752 = vmatpush1.bf16.msra.mxu0 %v749
  %1753 = vmatprep.subr.bf16.mxu0 0
  %1754 = vmatpush1.bf16.msra.mxu0 %v748
  %1755 = vmatprep.subr.bf16.mxu0 0
  %1756 = vmatpush1.bf16.msra.mxu0 %v747
  %1757 = vmatprep.subr.bf16.mxu0 0
  %1758 = vmatpush1.bf16.msra.mxu0 %v746
  %1759 = vmatprep.subr.bf16.mxu0 0
  %1760 = vmatpush2.bf16.msra.mxu0 0
  %1761 = vmatprep.subr.bf16.mxu0 0
  %1762 = vmatpush2.bf16.msra.mxu0 0
  %1763 = vmatprep.subr.bf16.mxu0 0
  %1764 = vmatpush2.bf16.msra.mxu0 0
  %1765 = vmatprep.subr.bf16.mxu0 0
  %1766 = vmatpush2.bf16.msra.mxu0 0
  %1767 = vmatprep.subr.bf16.mxu0 0
  %1768 = vmatpush2.bf16.msra.mxu0 0
  %1769 = vmatprep.subr.bf16.mxu0 0
  %1770 = vmatpush2.bf16.msra.mxu0 0
  %1771 = vmatprep.subr.bf16.mxu0 0
  %1772 = vmatpush2.bf16.msra.mxu0 0
  %1773 = vmatprep.subr.bf16.mxu0 0
  %1774 = vmatpush2.bf16.msra.mxu0 0
  %1775 = vmatprep.mubr.bf16.mxu0 0
  %1776 = vmatmul.mubr.bf16.gmra.mxu0 %v1740
  %v1777 = vpop.f32.mrf.mxu0
  %v1778 = vadd.f32 0.0, %v1777
  %v1779 = vpop.f32.mrf.mxu0
  %v1780 = vpop.f32.mrf.mxu0
  %v1781 = vadd.f32 0.0, %v1780
  %v1782 = vpop.f32.mrf.mxu0
  %1783 = vmatprep.mubr.bf16.mxu0 0
  %1784 = vmatmul.mubr.bf16.gmra.mxu0 %v1741
  %v1785 = vpop.f32.mrf.mxu0
  %v1786 = vadd.f32 0.0, %v1785
  %v1787 = vpop.f32.mrf.mxu0
  %v1788 = vpop.f32.mrf.mxu0
  %v1789 = vadd.f32 0.0, %v1788
  %v1790 = vpop.f32.mrf.mxu0
  %1791 = vmatprep.mubr.bf16.mxu0 0
  %1792 = vmatmul.mubr.bf16.gmra.mxu0 %v1742
  %v1793 = vpop.f32.mrf.mxu0
  %v1794 = vadd.f32 0.0, %v1793
  %v1795 = vpop.f32.mrf.mxu0
  %v1796 = vpop.f32.mrf.mxu0
  %v1797 = vpop.f32.mrf.mxu0
  %1798 = vdwg.mxu0
  %v1799 = vadd.f32 %v1730, %v1778
  %v1800 = vadd.f32 %v1731, %v1781
  %v1801 = vadd.f32 %v1732, %v1786
  %v1802 = vadd.f32 %v1733, %v1789
  %v1803 = vadd.f32 %v1734, %v1794
  %v1804 = vld [vmem:[%s1399 + $0x6] sm:$0xff]
  %v1805 = vld [vmem:[%s1399 + $0xe] sm:$0xff]
  %v1806 = vld [vmem:[%s1399 + $0x16] sm:$0xff]
  %v1807 = vld [vmem:[%s1399 + $0x1e] sm:$0xff]
  %v1808 = vld [vmem:[%s1399 + $0x26] sm:$0x3f]
  %v1809 = vpack.c.bf16 %v1805, %v1804
  %v1810 = vpack.c.bf16 %v1807, %v1806
  %v1811 = vpack.c.bf16 %v1808, %v1808
  %1812 = vmatprep.subr.bf16.mxu0 0
  %1813 = vmatpush1.bf16.msra.mxu0 %v887
  %1814 = vmatprep.subr.bf16.mxu0 0
  %1815 = vmatpush1.bf16.msra.mxu0 %v886
  %1816 = vmatprep.subr.bf16.mxu0 0
  %1817 = vmatpush1.bf16.msra.mxu0 %v885
  %1818 = vmatprep.subr.bf16.mxu0 0
  %1819 = vmatpush1.bf16.msra.mxu0 %v884
  %1820 = vmatprep.subr.bf16.mxu0 0
  %1821 = vmatpush1.bf16.msra.mxu0 %v883
  %1822 = vmatprep.subr.bf16.mxu0 0
  %1823 = vmatpush1.bf16.msra.mxu0 %v882
  %1824 = vmatprep.subr.bf16.mxu0 0
  %1825 = vmatpush1.bf16.msra.mxu0 %v881
  %1826 = vmatprep.subr.bf16.mxu0 0
  %1827 = vmatpush1.bf16.msra.mxu0 %v880
  %1828 = vmatprep.subr.bf16.mxu0 0
  %1829 = vmatpush2.bf16.msra.mxu0 0
  %1830 = vmatprep.subr.bf16.mxu0 0
  %1831 = vmatpush2.bf16.msra.mxu0 0
  %1832 = vmatprep.subr.bf16.mxu0 0
  %1833 = vmatpush2.bf16.msra.mxu0 0
  %1834 = vmatprep.subr.bf16.mxu0 0
  %1835 = vmatpush2.bf16.msra.mxu0 0
  %1836 = vmatprep.subr.bf16.mxu0 0
  %1837 = vmatpush2.bf16.msra.mxu0 0
  %1838 = vmatprep.subr.bf16.mxu0 0
  %1839 = vmatpush2.bf16.msra.mxu0 0
  %1840 = vmatprep.subr.bf16.mxu0 0
  %1841 = vmatpush2.bf16.msra.mxu0 0
  %1842 = vmatprep.subr.bf16.mxu0 0
  %1843 = vmatpush2.bf16.msra.mxu0 0
  %1844 = vmatprep.mubr.bf16.mxu0 0
  %1845 = vmatmul.mubr.bf16.gmra.mxu0 %v1809
  %v1846 = vpop.f32.mrf.mxu0
  %v1847 = vadd.f32 0.0, %v1846
  %v1848 = vpop.f32.mrf.mxu0
  %v1849 = vpop.f32.mrf.mxu0
  %v1850 = vadd.f32 0.0, %v1849
  %v1851 = vpop.f32.mrf.mxu0
  %1852 = vmatprep.mubr.bf16.mxu0 0
  %1853 = vmatmul.mubr.bf16.gmra.mxu0 %v1810
  %v1854 = vpop.f32.mrf.mxu0
  %v1855 = vadd.f32 0.0, %v1854
  %v1856 = vpop.f32.mrf.mxu0
  %v1857 = vpop.f32.mrf.mxu0
  %v1858 = vadd.f32 0.0, %v1857
  %v1859 = vpop.f32.mrf.mxu0
  %1860 = vmatprep.mubr.bf16.mxu0 0
  %1861 = vmatmul.mubr.bf16.gmra.mxu0 %v1811
  %v1862 = vpop.f32.mrf.mxu0
  %v1863 = vadd.f32 0.0, %v1862
  %v1864 = vpop.f32.mrf.mxu0
  %v1865 = vpop.f32.mrf.mxu0
  %v1866 = vpop.f32.mrf.mxu0
  %1867 = vdwg.mxu0
  %v1868 = vadd.f32 %v1799, %v1847
  %v1869 = vadd.f32 %v1800, %v1850
  %v1870 = vadd.f32 %v1801, %v1855
  %v1871 = vadd.f32 %v1802, %v1858
  %v1872 = vadd.f32 %v1803, %v1863
  %v1873 = vld [vmem:[%s1399 + $0x7] sm:$0xff]
  %v1874 = vld [vmem:[%s1399 + $0xf] sm:$0xff]
  %v1875 = vld [vmem:[%s1399 + $0x17] sm:$0xff]
  %v1876 = vld [vmem:[%s1399 + $0x1f] sm:$0xff]
  %v1877 = vld [vmem:[%s1399 + $0x27] sm:$0x3f]
  %v1878 = vpack.c.bf16 %v1874, %v1873
  %v1879 = vpack.c.bf16 %v1876, %v1875
  %v1880 = vpack.c.bf16 %v1877, %v1877
  %1881 = vmatprep.subr.bf16.mxu0 0
  %1882 = vmatpush1.bf16.msra.mxu0 %v1021
  %1883 = vmatprep.subr.bf16.mxu0 0
  %1884 = vmatpush1.bf16.msra.mxu0 %v1020
  %1885 = vmatprep.subr.bf16.mxu0 0
  %1886 = vmatpush1.bf16.msra.mxu0 %v1019
  %1887 = vmatprep.subr.bf16.mxu0 0
  %1888 = vmatpush1.bf16.msra.mxu0 %v1018
  %1889 = vmatprep.subr.bf16.mxu0 0
  %1890 = vmatpush1.bf16.msra.mxu0 %v1017
  %1891 = vmatprep.subr.bf16.mxu0 0
  %1892 = vmatpush1.bf16.msra.mxu0 %v1016
  %1893 = vmatprep.subr.bf16.mxu0 0
  %1894 = vmatpush1.bf16.msra.mxu0 %v1015
  %1895 = vmatprep.subr.bf16.mxu0 0
  %1896 = vmatpush1.bf16.msra.mxu0 %v1014
  %1897 = vmatprep.subr.bf16.mxu0 0
  %1898 = vmatpush2.bf16.msra.mxu0 0
  %1899 = vmatprep.subr.bf16.mxu0 0
  %1900 = vmatpush2.bf16.msra.mxu0 0
  %1901 = vmatprep.subr.bf16.mxu0 0
  %1902 = vmatpush2.bf16.msra.mxu0 0
  %1903 = vmatprep.subr.bf16.mxu0 0
  %1904 = vmatpush2.bf16.msra.mxu0 0
  %1905 = vmatprep.subr.bf16.mxu0 0
  %1906 = vmatpush2.bf16.msra.mxu0 0
  %1907 = vmatprep.subr.bf16.mxu0 0
  %1908 = vmatpush2.bf16.msra.mxu0 0
  %1909 = vmatprep.subr.bf16.mxu0 0
  %1910 = vmatpush2.bf16.msra.mxu0 0
  %1911 = vmatprep.subr.bf16.mxu0 0
  %1912 = vmatpush2.bf16.msra.mxu0 0
  %1913 = vmatprep.mubr.bf16.mxu0 0
  %1914 = vmatmul.mubr.bf16.gmra.mxu0 %v1878
  %v1915 = vpop.f32.mrf.mxu0
  %v1916 = vadd.f32 0.0, %v1915
  %v1917 = vpop.f32.mrf.mxu0
  %v1918 = vpop.f32.mrf.mxu0
  %v1919 = vadd.f32 0.0, %v1918
  %v1920 = vpop.f32.mrf.mxu0
  %1921 = vmatprep.mubr.bf16.mxu0 0
  %1922 = vmatmul.mubr.bf16.gmra.mxu0 %v1879
  %v1923 = vpop.f32.mrf.mxu0
  %v1924 = vadd.f32 0.0, %v1923
  %v1925 = vpop.f32.mrf.mxu0
  %v1926 = vpop.f32.mrf.mxu0
  %v1927 = vadd.f32 0.0, %v1926
  %v1928 = vpop.f32.mrf.mxu0
  %1929 = vmatprep.mubr.bf16.mxu0 0
  %1930 = vmatmul.mubr.bf16.gmra.mxu0 %v1880
  %v1931 = vpop.f32.mrf.mxu0
  %v1932 = vadd.f32 0.0, %v1931
  %v1933 = vpop.f32.mrf.mxu0
  %v1934 = vpop.f32.mrf.mxu0
  %v1935 = vpop.f32.mrf.mxu0
  %1936 = vdwg.mxu0
  %v1937 = vadd.f32 %v1868, %v1916
  %v1938 = vadd.f32 %v1869, %v1919
  %v1939 = vadd.f32 %v1870, %v1924
  %v1940 = vadd.f32 %v1871, %v1927
  %v1941 = vadd.f32 %v1872, %v1932
  %v1942 = vld [vmem:[%s1399 + $0x8] sm:$0xff]
  %v1943 = vld [vmem:[%s1399 + $0x10] sm:$0xff]
  %v1944 = vld [vmem:[%s1399 + $0x18] sm:$0xff]
  %v1945 = vld [vmem:[%s1399 + $0x20] sm:$0xff]
  %v1946 = vld [vmem:[%s1399 + $0x28] sm:$0x3f]
  %v1947 = vpack.c.bf16 %v1943, %v1942
  %v1948 = vpack.c.bf16 %v1945, %v1944
  %v1949 = vpack.c.bf16 %v1946, %v1946
  %1950 = vmatprep.subr.bf16.mxu0 0
  %1951 = vmatpush1.bf16.msra.mxu0 %v1155
  %1952 = vmatprep.subr.bf16.mxu0 0
  %1953 = vmatpush1.bf16.msra.mxu0 %v1154
  %1954 = vmatprep.subr.bf16.mxu0 0
  %1955 = vmatpush1.bf16.msra.mxu0 %v1153
  %1956 = vmatprep.subr.bf16.mxu0 0
  %1957 = vmatpush1.bf16.msra.mxu0 %v1152
  %1958 = vmatprep.subr.bf16.mxu0 0
  %1959 = vmatpush1.bf16.msra.mxu0 %v1151
  %1960 = vmatprep.subr.bf16.mxu0 0
  %1961 = vmatpush1.bf16.msra.mxu0 %v1150
  %1962 = vmatprep.subr.bf16.mxu0 0
  %1963 = vmatpush1.bf16.msra.mxu0 %v1149
  %1964 = vmatprep.subr.bf16.mxu0 0
  %1965 = vmatpush1.bf16.msra.mxu0 %v1148
  %1966 = vmatprep.subr.bf16.mxu0 0
  %1967 = vmatpush2.bf16.msra.mxu0 0
  %1968 = vmatprep.subr.bf16.mxu0 0
  %1969 = vmatpush2.bf16.msra.mxu0 0
  %1970 = vmatprep.subr.bf16.mxu0 0
  %1971 = vmatpush2.bf16.msra.mxu0 0
  %1972 = vmatprep.subr.bf16.mxu0 0
  %1973 = vmatpush2.bf16.msra.mxu0 0
  %1974 = vmatprep.subr.bf16.mxu0 0
  %1975 = vmatpush2.bf16.msra.mxu0 0
  %1976 = vmatprep.subr.bf16.mxu0 0
  %1977 = vmatpush2.bf16.msra.mxu0 0
  %1978 = vmatprep.subr.bf16.mxu0 0
  %1979 = vmatpush2.bf16.msra.mxu0 0
  %1980 = vmatprep.subr.bf16.mxu0 0
  %1981 = vmatpush2.bf16.msra.mxu0 0
  %1982 = vmatprep.mubr.bf16.mxu0 0
  %1983 = vmatmul.mubr.bf16.gmra.mxu0 %v1947
  %v1984 = vpop.f32.mrf.mxu0
  %v1985 = vadd.f32 0.0, %v1984
  %v1986 = vpop.f32.mrf.mxu0
  %v1987 = vpop.f32.mrf.mxu0
  %v1988 = vadd.f32 0.0, %v1987
  %v1989 = vpop.f32.mrf.mxu0
  %1990 = vmatprep.mubr.bf16.mxu0 0
  %1991 = vmatmul.mubr.bf16.gmra.mxu0 %v1948
  %v1992 = vpop.f32.mrf.mxu0
  %v1993 = vadd.f32 0.0, %v1992
  %v1994 = vpop.f32.mrf.mxu0
  %v1995 = vpop.f32.mrf.mxu0
  %v1996 = vadd.f32 0.0, %v1995
  %v1997 = vpop.f32.mrf.mxu0
  %1998 = vmatprep.mubr.bf16.mxu0 0
  %1999 = vmatmul.mubr.bf16.gmra.mxu0 %v1949
  %v2000 = vpop.f32.mrf.mxu0
  %v2001 = vadd.f32 0.0, %v2000
  %v2002 = vpop.f32.mrf.mxu0
  %v2003 = vpop.f32.mrf.mxu0
  %v2004 = vpop.f32.mrf.mxu0
  %2005 = vdwg.mxu0
  %v2006 = vadd.f32 %v1937, %v1985
  %v2007 = vadd.f32 %v1938, %v1988
  %v2008 = vadd.f32 %v1939, %v1993
  %v2009 = vadd.f32 %v1940, %v1996
  %v2010 = vadd.f32 %v1941, %v2001
  %v2011 = vadd.f32 %v2006, %v1230
  %v2012 = vadd.f32 %v2007, %v1230
  %v2013 = vadd.f32 %v2008, %v1230
  %v2014 = vadd.f32 %v2009, %v1230
  %v2015 = vadd.f32 %v2010, %v1230
  %v2016 = vmax.f32 %v2011, 0.0
  %v2017 = vmax.f32 %v2012, 0.0
  %v2018 = vmax.f32 %v2013, 0.0
  %v2019 = vmax.f32 %v2014, 0.0
  %v2020 = vmax.f32 %v2015, 0.0
  %v2026 = vrot.slane %v2016, 1
  %v2027 = vrot.slane %v2017, 1
  %v2028 = vsel %vm1247, %v2026, %v2027
  %v2029 = vrot.slane %v2018, 1
  %v2030 = vsel %vm1247, %v2027, %v2029
  %v2031 = vrot.slane %v2019, 1
  %v2032 = vsel %vm1247, %v2029, %v2031
  %v2033 = vrot.slane %v2020, 1
  %v2034 = vsel %vm1247, %v2031, %v2033
  %v2040 = vmax.f32 %v2016, %v2028
  %v2041 = vmax.f32 %v2017, %v2030
  %v2042 = vmax.f32 %v2018, %v2032
  %v2043 = vmax.f32 %v2019, %v2034
  %v2044 = vmax.f32 %v2020, %v2033
  %v2050 = vrot.slane %v2040, 2
  %v2051 = vrot.slane %v2041, 2
  %v2052 = vsel %vm1272, %v2050, %v2051
  %v2053 = vrot.slane %v2042, 2
  %v2054 = vsel %vm1272, %v2051, %v2053
  %v2055 = vrot.slane %v2043, 2
  %v2056 = vsel %vm1272, %v2053, %v2055
  %v2057 = vrot.slane %v2044, 2
  %v2058 = vsel %vm1272, %v2055, %v2057
  %v2064 = vmax.f32 %v2040, %v2052
  %v2065 = vmax.f32 %v2041, %v2054
  %v2066 = vmax.f32 %v2042, %v2056
  %v2067 = vmax.f32 %v2043, %v2058
  %v2068 = vmax.f32 %v2044, %v2057
  %v2070 = vsel %vm1305, %v2068, 0
  %2072 = vmatprep.subr.mxu0 0.0
  %2073 = vmatpush1.msra.mxu0 0.0
  %2074 = vmatprep.subr.mxu0 0.0
  %2075 = vmatpush1.msra.mxu0 0.0
  %2076 = vmatprep.subr.mxu0 0.0
  %2077 = vmatpush1.msra.mxu0 0.0
  %2078 = vmatprep.subr.mxu0 0.0
  %2079 = vmatpush1.msra.mxu0 0.0
  %2080 = vmatprep.subr.mxu0 0.0
  %2081 = vmatpush1.msra.mxu0 0.0
  %2082 = vmatprep.subr.mxu0 0.0
  %2083 = vmatpush1.msra.mxu0 0.0
  %2084 = vmatprep.subr.mxu0 0.0
  %2085 = vmatpush1.msra.mxu0 0.0
  %2086 = vmatprep.subr.mxu0 0.0
  %2087 = vmatpush1.msra.mxu0 0.0
  %2088 = vmatprep.subr.mxu0 0.0
  %2089 = vmatpush1.msra.mxu0 0.0
  %2090 = vmatprep.subr.mxu0 0.0
  %2091 = vmatpush1.msra.mxu0 0.0
  %2092 = vmatprep.subr.mxu0 0.0
  %2093 = vmatpush1.msra.mxu0 0.0
  %2094 = vmatprep.subr.mxu0 0.0
  %2095 = vmatpush1.msra.mxu0 %v2070
  %2096 = vmatprep.subr.mxu0 0.0
  %2097 = vmatpush1.msra.mxu0 %v2067
  %2098 = vmatprep.subr.mxu0 0.0
  %2099 = vmatpush1.msra.mxu0 %v2066
  %2100 = vmatprep.subr.mxu0 0.0
  %2101 = vmatpush1.msra.mxu0 %v2065
  %2102 = vmatprep.subr.mxu0 0.0
  %2103 = vmatpush1.msra.mxu0 %v2064
  %2104 = vmatprep.subr.mxu0 0.0
  %2105 = vmatpush2.msra.mxu0 0.0
  %2106 = vmatprep.subr.mxu0 0.0
  %2107 = vmatpush2.msra.mxu0 0.0
  %2108 = vmatprep.subr.mxu0 0.0
  %2109 = vmatpush2.msra.mxu0 0.0
  %2110 = vmatprep.subr.mxu0 0.0
  %2111 = vmatpush2.msra.mxu0 0.0
  %2112 = vmatprep.subr.mxu0 0.0
  %2113 = vmatpush2.msra.mxu0 0.0
  %2114 = vmatprep.subr.mxu0 0.0
  %2115 = vmatpush2.msra.mxu0 0.0
  %2116 = vmatprep.subr.mxu0 0.0
  %2117 = vmatpush2.msra.mxu0 0.0
  %2118 = vmatprep.subr.mxu0 0.0
  %2119 = vmatpush2.msra.mxu0 0.0
  %2120 = vmatprep.subr.mxu0 0.0
  %2121 = vmatpush2.msra.mxu0 0.0
  %2122 = vmatprep.subr.mxu0 0.0
  %2123 = vmatpush2.msra.mxu0 0.0
  %2124 = vmatprep.subr.mxu0 0.0
  %2125 = vmatpush2.msra.mxu0 0.0
  %2126 = vmatprep.subr.mxu0 0.0
  %2127 = vmatpush2.msra.mxu0 0.0
  %2128 = vmatprep.subr.mxu0 0.0
  %2129 = vmatpush2.msra.mxu0 0.0
  %2130 = vmatprep.subr.mxu0 0.0
  %2131 = vmatpush2.msra.mxu0 0.0
  %2132 = vmatprep.subr.mxu0 0.0
  %2133 = vmatpush2.msra.mxu0 0.0
  %2134 = vmatprep.subr.mxu0 0.0
  %2135 = vmatpush2.msra.mxu0 0.0
  %2136 = vmatprep.mubr.f32.mxu0 0.0
  %2137 = vmatmul.mubr.f32.gmra.mxu0 %v1297
  %v2138 = vpop.f32.mrf.mxu0
  %v2139 = vadd.f32 0.0, %v2138
  %v2140 = vpop.f32.mrf.mxu0
  %2141 = vmatprep.mubr.f32.mxu0 0.0
  %2142 = vmatmul.mubr.f32.gmra.mxu0 %v1300
  %v2143 = vpop.f32.mrf.mxu0
  %v2144 = vadd.f32 0.0, %v2143
  %v2145 = vpop.f32.mrf.mxu0
  %2146 = vmatprep.mubr.f32.mxu0 0.0
  %2147 = vmatmul.mubr.f32.gmra.mxu0 %v1303
  %v2148 = vpop.f32.mrf.mxu0
  %v2149 = vadd.f32 0.0, %v2148
  %v2150 = vpop.f32.mrf.mxu0
  %2151 = vdwg.mxu0
  %v2152 = vadd.f32 %v2139, %v2144
  %v2153 = vsel %vm1390, %v2149, 0.0
  %v2154 = vadd.f32 %v2152, %v2153
  %v2155 = vrot.slane %v2154, 4
  %v2156 = vadd.f32 %v2154, %v2155
  %v2157 = vrot.slane %v2156, 2
  %v2158 = vadd.f32 %v2156, %v2157
  %v2159 = vrot.slane %v2158, 1
  %v2160 = vadd.f32 %v2158, %v2159
  %v2161 = vadd.f32 %v1398, %v2160
  %v2162 = vmul.f32 %v2161, 0.027777778
  %v2163 = vsub.f32 %v1376, %v2162
  %v2164 = vsub.f32 %v1381, %v2162
  %v2165 = vsub.f32 %v1386, %v2162
  %v2166 = vmul.f32 %v2163, %v2163
  %v2167 = vmul.f32 %v2164, %v2164
  %v2168 = vmul.f32 %v2165, %v2165
  %v2169 = vadd.f32 %v2166, %v2167
  %v2170 = vsel %vm1390, %v2168, 0.0
  %v2171 = vadd.f32 %v2169, %v2170
  %v2172 = vrot.slane %v2171, 4
  %v2173 = vadd.f32 %v2171, %v2172
  %v2174 = vrot.slane %v2173, 2
  %v2175 = vadd.f32 %v2173, %v2174
  %v2176 = vrot.slane %v2175, 1
  %v2177 = vadd.f32 %v2175, %v2176
  %v2178 = vsub.f32 %v2139, %v2162
  %v2179 = vsub.f32 %v2144, %v2162
  %v2180 = vsub.f32 %v2149, %v2162
  %v2181 = vmul.f32 %v2178, %v2178
  %v2182 = vmul.f32 %v2179, %v2179
  %v2183 = vmul.f32 %v2180, %v2180
  %v2184 = vadd.f32 %v2181, %v2182
  %v2185 = vsel %vm1390, %v2183, 0.0
  %v2186 = vadd.f32 %v2184, %v2185
  %v2187 = vrot.slane %v2186, 4
  %v2188 = vadd.f32 %v2186, %v2187
  %v2189 = vrot.slane %v2188, 2
  %v2190 = vadd.f32 %v2188, %v2189
  %v2191 = vrot.slane %v2190, 1
  %v2192 = vadd.f32 %v2190, %v2191
  %v2193 = vadd.f32 %v2177, %v2192
  %v2194 = vmul.f32 %v2193, 0.027777778
  %v2195 = vld [vmem:[%s3] sm:$0x1]
  %v2196 = vadd.f32 %v2194, 1e-05
  %v2197 = vrsqrt.pop %v2196
  %v2198 = vmul.f32 %v2195, %v2197
  %v2199 = vld [vmem:[%s4] sm:$0x1]
  %v2200 = vmul.f32 %v2162, %v2198
  %v2201 = vsub.f32 %v2199, %v2200
  %v2203 = vlaneseq
  %v2204 = vshrl.u32 %v2203, 7
  %v2205 = vsub.s32 0, %v2204
  %v2206 = vrot.slane %v2198, %v2205
  %v2208 = vmul.f32 %v1376, %v2206
  %v2209 = vmul.f32 %v1381, %v2206
  %v2210 = vmul.f32 %v1386, %v2206
  %v2212 = vlaneseq
  %v2213 = vshrl.u32 %v2212, 7
  %v2214 = vsub.s32 0, %v2213
  %v2215 = vrot.slane %v2201, %v2214
  %v2217 = vadd.f32 %v2208, %v2215
  %v2218 = vadd.f32 %v2209, %v2215
  %v2219 = vadd.f32 %v2210, %v2215
  %2220 = vst [vmem:[%s6 + $0x1] sm:$0xff] %v2217
  %2221 = vst [vmem:[%s6 + $0x9] sm:$0xff] %v2218
  %2222 = vst [vmem:[%s6 + $0x11] sm:$0x3] %v2219
  %v2223 = vmul.f32 %v2139, %v2206
  %v2224 = vmul.f32 %v2144, %v2206
  %v2225 = vmul.f32 %v2149, %v2206
  %v2226 = vadd.f32 %v2223, %v2215
  %v2227 = vadd.f32 %v2224, %v2215
  %v2228 = vadd.f32 %v2225, %v2215
  %s2229 = scalar_lea.vmem %s6, 24
  %2230 = vst [vmem:[%s2229 + $0x1] sm:$0xff] %v2226
  %2231 = vst [vmem:[%s2229 + $0x9] sm:$0xff] %v2227
  %2232 = vst [vmem:[%s2229 + $0x11] sm:$0x3] %v2228
  // Predicated region
  $region26: #{cnn_feature_extractor.4} parent=0 // pred_check
    _
  $region27: #{cnn_feature_extractor.4} parent=0 // pred_check_branch
    %2234 = sbr.rel (0) target = $region29
  $region28: #{cnn_feature_extractor.4} parent=0 // pred_region
    _
  $region29: #{cnn_feature_extractor.4} parent=0 // pred_fallthru
    _
  // Predicated region
  $region30: #{cnn_feature_extractor.4} parent=0 // pred_check
    _
  $region31: #{cnn_feature_extractor.4} parent=0 // pred_check_branch
    %2236 = sbr.rel (0) target = $region33
  $region32: #{cnn_feature_extractor.4} parent=0 // pred_region
    _
  $region33: #{cnn_feature_extractor.4} parent=0 // pred_fallthru
    _

// kernel: cnn_feature_extractor.5
$region0: #{cnn_feature_extractor.5}
  #allocation0 [shape = 'u32[]', space=smem, size = 0x4, offset = 0x4, fixed_abs, tag = 'smem constant byte address 0x4 - core index']
  #allocation1 [shape = 'u32[144,128]{1,0:T(1,128)}', space=vmem, size = 0x12000, scoped, tag = 'internal scratch']
  %s0 = inlined_call_operand.vmem [shape: f32[2,20,128], index: 0, kind: input, shape index: {}]
  %s1 = inlined_call_operand.vmem [shape: bf16[9,128,256], index: 1, kind: input, shape index: {}]
  %s2 = inlined_call_operand.vmem [shape: f32[1,256], index: 2, kind: input, shape index: {}]
  %s3 = inlined_call_operand.vmem [shape: f32[1,256], index: 3, kind: input, shape index: {}]
  %s4 = inlined_call_operand.vmem [shape: f32[1,256], index: 4, kind: input, shape index: {}]
  %s5 = inlined_call_operand.vmem [shape: f32[128,12], index: 5, kind: input, shape index: {}]
  %s6 = inlined_call_operand.vmem [shape: f32[2,128,256], index: 6, kind: output, shape index: {}]
  %s7 = sld [smem:[#allocation0]]
  $region34: #{cnn_feature_extractor.5} parent=0
    _
  %s9 = ssub.s32 1, %s7
  %s10 = scalar_select 0, %s9, %s7
  // Predicated region
  $region2: #{cnn_feature_extractor.5} parent=0 // pred_check
    _
  $region3: #{cnn_feature_extractor.5} parent=0 // pred_check_branch
    %12 = sbr.rel (0) target = $region5
  $region4: #{cnn_feature_extractor.5} parent=0 // pred_region
    _
  $region5: #{cnn_feature_extractor.5} parent=0 // pred_fallthru
    _
  // Predicated region
  $region6: #{cnn_feature_extractor.5} parent=0 // pred_check
    _
  $region7: #{cnn_feature_extractor.5} parent=0 // pred_check_branch
    %14 = sbr.rel (0) target = $region9
  $region8: #{cnn_feature_extractor.5} parent=0 // pred_region
    _
  $region9: #{cnn_feature_extractor.5} parent=0 // pred_fallthru
    _
  // Predicated region
  $region10: #{cnn_feature_extractor.5} parent=0 // pred_check
    _
  $region11: #{cnn_feature_extractor.5} parent=0 // pred_check_branch
    %16 = sbr.rel (0) target = $region13
  $region12: #{cnn_feature_extractor.5} parent=0 // pred_region
    _
  $region13: #{cnn_feature_extractor.5} parent=0 // pred_fallthru
    _
  // Predicated region
  $region14: #{cnn_feature_extractor.5} parent=0 // pred_check
    _
  $region15: #{cnn_feature_extractor.5} parent=0 // pred_check_branch
    %18 = sbr.rel (0) target = $region17
  $region16: #{cnn_feature_extractor.5} parent=0 // pred_region
    _
  $region17: #{cnn_feature_extractor.5} parent=0 // pred_fallthru
    _
  // Predicated region
  $region18: #{cnn_feature_extractor.5} parent=0 // pred_check
    _
  $region19: #{cnn_feature_extractor.5} parent=0 // pred_check_branch
    %20 = sbr.rel (0) target = $region21
  $region20: #{cnn_feature_extractor.5} parent=0 // pred_region
    _
  $region21: #{cnn_feature_extractor.5} parent=0 // pred_fallthru
    _
  // Predicated region
  $region22: #{cnn_feature_extractor.5} parent=0 // pred_check
    _
  $region23: #{cnn_feature_extractor.5} parent=0 // pred_check_branch
    %22 = sbr.rel (0) target = $region25
  $region24: #{cnn_feature_extractor.5} parent=0 // pred_region
    _
  $region25: #{cnn_feature_extractor.5} parent=0 // pred_fallthru
    _
  %v24 = vld [vmem:[%s0] sm:$0xff]
  %v25 = vld [vmem:[%s0 + $0x8] sm:$0xf]
  %v26 = vpack.c.bf16 %v25, %v24
  %v27 = vld [vmem:[%s1] sm:$0xff]
  %v28 = vld [vmem:[%s1 + $0x8] sm:$0xff]
  %v29 = vld [vmem:[%s1 + $0x10] sm:$0xff]
  %v30 = vld [vmem:[%s1 + $0x18] sm:$0xff]
  %v31 = vld [vmem:[%s1 + $0x20] sm:$0xff]
  %v32 = vld [vmem:[%s1 + $0x28] sm:$0xff]
  %v33 = vld [vmem:[%s1 + $0x30] sm:$0xff]
  %v34 = vld [vmem:[%s1 + $0x38] sm:$0xff]
  %v35 = vld [vmem:[%s1 + $0x40] sm:$0xff]
  %v36 = vld [vmem:[%s1 + $0x48] sm:$0xff]
  %v37 = vld [vmem:[%s1 + $0x50] sm:$0xff]
  %v38 = vld [vmem:[%s1 + $0x58] sm:$0xff]
  %v39 = vld [vmem:[%s1 + $0x60] sm:$0xff]
  %v40 = vld [vmem:[%s1 + $0x68] sm:$0xff]
  %v41 = vld [vmem:[%s1 + $0x70] sm:$0xff]
  %v42 = vld [vmem:[%s1 + $0x78] sm:$0xff]
  %v43 = vld [vmem:[%s0 + $0x1] sm:$0xff]
  %v44 = vld [vmem:[%s0 + $0x9] sm:$0xf]
  %v45 = vpack.c.bf16 %v44, %v43
  %s46 = scalar_lea.vmem %s1, 128
  %v47 = vld [vmem:[%s46] sm:$0xff]
  %v48 = vld [vmem:[%s46 + $0x8] sm:$0xff]
  %v49 = vld [vmem:[%s46 + $0x10] sm:$0xff]
  %v50 = vld [vmem:[%s46 + $0x18] sm:$0xff]
  %v51 = vld [vmem:[%s46 + $0x20] sm:$0xff]
  %v52 = vld [vmem:[%s46 + $0x28] sm:$0xff]
  %v53 = vld [vmem:[%s46 + $0x30] sm:$0xff]
  %v54 = vld [vmem:[%s46 + $0x38] sm:$0xff]
  %v55 = vld [vmem:[%s46 + $0x40] sm:$0xff]
  %v56 = vld [vmem:[%s46 + $0x48] sm:$0xff]
  %v57 = vld [vmem:[%s46 + $0x50] sm:$0xff]
  %v58 = vld [vmem:[%s46 + $0x58] sm:$0xff]
  %v59 = vld [vmem:[%s46 + $0x60] sm:$0xff]
  %v60 = vld [vmem:[%s46 + $0x68] sm:$0xff]
  %v61 = vld [vmem:[%s46 + $0x70] sm:$0xff]
  %v62 = vld [vmem:[%s46 + $0x78] sm:$0xff]
  %v79 = vunpack.c.l.b16 %v47
  %v80 = vunpack.c.h.b16 %v47
  %v81 = vunpack.c.l.b16 %v48
  %v82 = vunpack.c.h.b16 %v48
  %v83 = vunpack.c.l.b16 %v49
  %v84 = vunpack.c.h.b16 %v49
  %v85 = vunpack.c.l.b16 %v50
  %v86 = vunpack.c.h.b16 %v50
  %v87 = vunpack.c.l.b16 %v51
  %v88 = vunpack.c.h.b16 %v51
  %v89 = vunpack.c.l.b16 %v52
  %v90 = vunpack.c.h.b16 %v52
  %v91 = vunpack.c.l.b16 %v53
  %v92 = vunpack.c.h.b16 %v53
  %v93 = vunpack.c.l.b16 %v54
  %v94 = vunpack.c.h.b16 %v54
  %v95 = vunpack.c.l.b16 %v55
  %v96 = vunpack.c.h.b16 %v55
  %v97 = vunpack.c.l.b16 %v56
  %v98 = vunpack.c.h.b16 %v56
  %v99 = vunpack.c.l.b16 %v57
  %v100 = vunpack.c.h.b16 %v57
  %v101 = vunpack.c.l.b16 %v58
  %v102 = vunpack.c.h.b16 %v58
  %v103 = vunpack.c.l.b16 %v59
  %v104 = vunpack.c.h.b16 %v59
  %v105 = vunpack.c.l.b16 %v60
  %v106 = vunpack.c.h.b16 %v60
  %v107 = vunpack.c.l.b16 %v61
  %v108 = vunpack.c.h.b16 %v61
  %v109 = vunpack.c.l.b16 %v62
  %v110 = vunpack.c.h.b16 %v62
  %v111 = vpack.c.b16 %v81, %v79
  %v112 = vpack.c.b16 %v82, %v80
  %v113 = vpack.c.b16 %v85, %v83
  %v114 = vpack.c.b16 %v86, %v84
  %v115 = vpack.c.b16 %v89, %v87
  %v116 = vpack.c.b16 %v90, %v88
  %v117 = vpack.c.b16 %v93, %v91
  %v118 = vpack.c.b16 %v94, %v92
  %v119 = vpack.c.b16 %v97, %v95
  %v120 = vpack.c.b16 %v98, %v96
  %v121 = vpack.c.b16 %v101, %v99
  %v122 = vpack.c.b16 %v102, %v100
  %v123 = vpack.c.b16 %v105, %v103
  %v124 = vpack.c.b16 %v106, %v104
  %v125 = vpack.c.b16 %v109, %v107
  %v126 = vpack.c.b16 %v110, %v108
  %143 = vmatprep.subr.bf16.mxu0 %v126
  %144 = vmatpush1.bf16.msra.mxu0 %v125
  %145 = vmatprep.subr.bf16.mxu0 %v124
  %146 = vmatpush1.bf16.msra.mxu0 %v123
  %147 = vmatprep.subr.bf16.mxu0 %v122
  %148 = vmatpush1.bf16.msra.mxu0 %v121
  %149 = vmatprep.subr.bf16.mxu0 %v120
  %150 = vmatpush1.bf16.msra.mxu0 %v119
  %151 = vmatprep.subr.bf16.mxu0 %v118
  %152 = vmatpush1.bf16.msra.mxu0 %v117
  %153 = vmatprep.subr.bf16.mxu0 %v116
  %154 = vmatpush1.bf16.msra.mxu0 %v115
  %155 = vmatprep.subr.bf16.mxu0 %v114
  %156 = vmatpush1.bf16.msra.mxu0 %v113
  %157 = vmatprep.subr.bf16.mxu0 %v112
  %158 = vmatpush1.bf16.msra.mxu0 %v111
  %159 = vmatprep.subr.bf16.mxu0 0
  %160 = vmatpush2.bf16.msra.mxu0 0
  %161 = vmatprep.subr.bf16.mxu0 0
  %162 = vmatpush2.bf16.msra.mxu0 0
  %163 = vmatprep.subr.bf16.mxu0 0
  %164 = vmatpush2.bf16.msra.mxu0 0
  %165 = vmatprep.subr.bf16.mxu0 0
  %166 = vmatpush2.bf16.msra.mxu0 0
  %167 = vmatprep.subr.bf16.mxu0 0
  %168 = vmatpush2.bf16.msra.mxu0 0
  %169 = vmatprep.subr.bf16.mxu0 0
  %170 = vmatpush2.bf16.msra.mxu0 0
  %171 = vmatprep.subr.bf16.mxu0 0
  %172 = vmatpush2.bf16.msra.mxu0 0
  %173 = vmatprep.subr.bf16.mxu0 0
  %174 = vmatpush2.bf16.msra.mxu0 0
  %175 = vmatprep.mubr.bf16.mxu0 0
  %176 = vmatmul.mubr.bf16.gmra.mxu0 %v45
  %v177 = vpop.f32.mrf.mxu0
  %v178 = vadd.f32 0.0, %v177
  %v179 = vpop.f32.mrf.mxu0
  %v180 = vadd.f32 0.0, %v179
  %v181 = vpop.f32.mrf.mxu0
  %v182 = vadd.f32 0.0, %v181
  %v183 = vpop.f32.mrf.mxu0
  %v184 = vadd.f32 0.0, %v183
  %185 = vdwg.mxu0
  %v202 = vunpack.c.l.b16 %v27
  %v203 = vunpack.c.h.b16 %v27
  %v204 = vunpack.c.l.b16 %v28
  %v205 = vunpack.c.h.b16 %v28
  %v206 = vunpack.c.l.b16 %v29
  %v207 = vunpack.c.h.b16 %v29
  %v208 = vunpack.c.l.b16 %v30
  %v209 = vunpack.c.h.b16 %v30
  %v210 = vunpack.c.l.b16 %v31
  %v211 = vunpack.c.h.b16 %v31
  %v212 = vunpack.c.l.b16 %v32
  %v213 = vunpack.c.h.b16 %v32
  %v214 = vunpack.c.l.b16 %v33
  %v215 = vunpack.c.h.b16 %v33
  %v216 = vunpack.c.l.b16 %v34
  %v217 = vunpack.c.h.b16 %v34
  %v218 = vunpack.c.l.b16 %v35
  %v219 = vunpack.c.h.b16 %v35
  %v220 = vunpack.c.l.b16 %v36
  %v221 = vunpack.c.h.b16 %v36
  %v222 = vunpack.c.l.b16 %v37
  %v223 = vunpack.c.h.b16 %v37
  %v224 = vunpack.c.l.b16 %v38
  %v225 = vunpack.c.h.b16 %v38
  %v226 = vunpack.c.l.b16 %v39
  %v227 = vunpack.c.h.b16 %v39
  %v228 = vunpack.c.l.b16 %v40
  %v229 = vunpack.c.h.b16 %v40
  %v230 = vunpack.c.l.b16 %v41
  %v231 = vunpack.c.h.b16 %v41
  %v232 = vunpack.c.l.b16 %v42
  %v233 = vunpack.c.h.b16 %v42
  %v234 = vpack.c.b16 %v204, %v202
  %v235 = vpack.c.b16 %v205, %v203
  %v236 = vpack.c.b16 %v208, %v206
  %v237 = vpack.c.b16 %v209, %v207
  %v238 = vpack.c.b16 %v212, %v210
  %v239 = vpack.c.b16 %v213, %v211
  %v240 = vpack.c.b16 %v216, %v214
  %v241 = vpack.c.b16 %v217, %v215
  %v242 = vpack.c.b16 %v220, %v218
  %v243 = vpack.c.b16 %v221, %v219
  %v244 = vpack.c.b16 %v224, %v222
  %v245 = vpack.c.b16 %v225, %v223
  %v246 = vpack.c.b16 %v228, %v226
  %v247 = vpack.c.b16 %v229, %v227
  %v248 = vpack.c.b16 %v232, %v230
  %v249 = vpack.c.b16 %v233, %v231
  %266 = vmatprep.subr.bf16.mxu0 %v249
  %267 = vmatpush1.bf16.msra.mxu0 %v248
  %268 = vmatprep.subr.bf16.mxu0 %v247
  %269 = vmatpush1.bf16.msra.mxu0 %v246
  %270 = vmatprep.subr.bf16.mxu0 %v245
  %271 = vmatpush1.bf16.msra.mxu0 %v244
  %272 = vmatprep.subr.bf16.mxu0 %v243
  %273 = vmatpush1.bf16.msra.mxu0 %v242
  %274 = vmatprep.subr.bf16.mxu0 %v241
  %275 = vmatpush1.bf16.msra.mxu0 %v240
  %276 = vmatprep.subr.bf16.mxu0 %v239
  %277 = vmatpush1.bf16.msra.mxu0 %v238
  %278 = vmatprep.subr.bf16.mxu0 %v237
  %279 = vmatpush1.bf16.msra.mxu0 %v236
  %280 = vmatprep.subr.bf16.mxu0 %v235
  %281 = vmatpush1.bf16.msra.mxu0 %v234
  %282 = vmatprep.subr.bf16.mxu0 0
  %283 = vmatpush2.bf16.msra.mxu0 0
  %284 = vmatprep.subr.bf16.mxu0 0
  %285 = vmatpush2.bf16.msra.mxu0 0
  %286 = vmatprep.subr.bf16.mxu0 0
  %287 = vmatpush2.bf16.msra.mxu0 0
  %288 = vmatprep.subr.bf16.mxu0 0
  %289 = vmatpush2.bf16.msra.mxu0 0
  %290 = vmatprep.subr.bf16.mxu0 0
  %291 = vmatpush2.bf16.msra.mxu0 0
  %292 = vmatprep.subr.bf16.mxu0 0
  %293 = vmatpush2.bf16.msra.mxu0 0
  %294 = vmatprep.subr.bf16.mxu0 0
  %295 = vmatpush2.bf16.msra.mxu0 0
  %296 = vmatprep.subr.bf16.mxu0 0
  %297 = vmatpush2.bf16.msra.mxu0 0
  %298 = vmatprep.mubr.bf16.mxu0 0
  %299 = vmatmul.mubr.bf16.gmra.mxu0 %v26
  %v300 = vpop.f32.mrf.mxu0
  %v301 = vadd.f32 %v178, %v300
  %v302 = vpop.f32.mrf.mxu0
  %v303 = vadd.f32 %v180, %v302
  %v304 = vpop.f32.mrf.mxu0
  %v305 = vadd.f32 %v182, %v304
  %v306 = vpop.f32.mrf.mxu0
  %v307 = vadd.f32 %v184, %v306
  %308 = vdwg.mxu0
  %v309 = vld [vmem:[%s0 + $0x2] sm:$0xff]
  %v310 = vld [vmem:[%s0 + $0xa] sm:$0xf]
  %v311 = vpack.c.bf16 %v310, %v309
  %s312 = scalar_lea.vmem %s1, 256
  %v313 = vld [vmem:[%s312] sm:$0xff]
  %v314 = vld [vmem:[%s312 + $0x8] sm:$0xff]
  %v315 = vld [vmem:[%s312 + $0x10] sm:$0xff]
  %v316 = vld [vmem:[%s312 + $0x18] sm:$0xff]
  %v317 = vld [vmem:[%s312 + $0x20] sm:$0xff]
  %v318 = vld [vmem:[%s312 + $0x28] sm:$0xff]
  %v319 = vld [vmem:[%s312 + $0x30] sm:$0xff]
  %v320 = vld [vmem:[%s312 + $0x38] sm:$0xff]
  %v321 = vld [vmem:[%s312 + $0x40] sm:$0xff]
  %v322 = vld [vmem:[%s312 + $0x48] sm:$0xff]
  %v323 = vld [vmem:[%s312 + $0x50] sm:$0xff]
  %v324 = vld [vmem:[%s312 + $0x58] sm:$0xff]
  %v325 = vld [vmem:[%s312 + $0x60] sm:$0xff]
  %v326 = vld [vmem:[%s312 + $0x68] sm:$0xff]
  %v327 = vld [vmem:[%s312 + $0x70] sm:$0xff]
  %v328 = vld [vmem:[%s312 + $0x78] sm:$0xff]
  %v345 = vunpack.c.l.b16 %v313
  %v346 = vunpack.c.h.b16 %v313
  %v347 = vunpack.c.l.b16 %v314
  %v348 = vunpack.c.h.b16 %v314
  %v349 = vunpack.c.l.b16 %v315
  %v350 = vunpack.c.h.b16 %v315
  %v351 = vunpack.c.l.b16 %v316
  %v352 = vunpack.c.h.b16 %v316
  %v353 = vunpack.c.l.b16 %v317
  %v354 = vunpack.c.h.b16 %v317
  %v355 = vunpack.c.l.b16 %v318
  %v356 = vunpack.c.h.b16 %v318
  %v357 = vunpack.c.l.b16 %v319
  %v358 = vunpack.c.h.b16 %v319
  %v359 = vunpack.c.l.b16 %v320
  %v360 = vunpack.c.h.b16 %v320
  %v361 = vunpack.c.l.b16 %v321
  %v362 = vunpack.c.h.b16 %v321
  %v363 = vunpack.c.l.b16 %v322
  %v364 = vunpack.c.h.b16 %v322
  %v365 = vunpack.c.l.b16 %v323
  %v366 = vunpack.c.h.b16 %v323
  %v367 = vunpack.c.l.b16 %v324
  %v368 = vunpack.c.h.b16 %v324
  %v369 = vunpack.c.l.b16 %v325
  %v370 = vunpack.c.h.b16 %v325
  %v371 = vunpack.c.l.b16 %v326
  %v372 = vunpack.c.h.b16 %v326
  %v373 = vunpack.c.l.b16 %v327
  %v374 = vunpack.c.h.b16 %v327
  %v375 = vunpack.c.l.b16 %v328
  %v376 = vunpack.c.h.b16 %v328
  %v377 = vpack.c.b16 %v347, %v345
  %v378 = vpack.c.b16 %v348, %v346
  %v379 = vpack.c.b16 %v351, %v349
  %v380 = vpack.c.b16 %v352, %v350
  %v381 = vpack.c.b16 %v355, %v353
  %v382 = vpack.c.b16 %v356, %v354
  %v383 = vpack.c.b16 %v359, %v357
  %v384 = vpack.c.b16 %v360, %v358
  %v385 = vpack.c.b16 %v363, %v361
  %v386 = vpack.c.b16 %v364, %v362
  %v387 = vpack.c.b16 %v367, %v365
  %v388 = vpack.c.b16 %v368, %v366
  %v389 = vpack.c.b16 %v371, %v369
  %v390 = vpack.c.b16 %v372, %v370
  %v391 = vpack.c.b16 %v375, %v373
  %v392 = vpack.c.b16 %v376, %v374
  %409 = vmatprep.subr.bf16.mxu0 %v392
  %410 = vmatpush1.bf16.msra.mxu0 %v391
  %411 = vmatprep.subr.bf16.mxu0 %v390
  %412 = vmatpush1.bf16.msra.mxu0 %v389
  %413 = vmatprep.subr.bf16.mxu0 %v388
  %414 = vmatpush1.bf16.msra.mxu0 %v387
  %415 = vmatprep.subr.bf16.mxu0 %v386
  %416 = vmatpush1.bf16.msra.mxu0 %v385
  %417 = vmatprep.subr.bf16.mxu0 %v384
  %418 = vmatpush1.bf16.msra.mxu0 %v383
  %419 = vmatprep.subr.bf16.mxu0 %v382
  %420 = vmatpush1.bf16.msra.mxu0 %v381
  %421 = vmatprep.subr.bf16.mxu0 %v380
  %422 = vmatpush1.bf16.msra.mxu0 %v379
  %423 = vmatprep.subr.bf16.mxu0 %v378
  %424 = vmatpush1.bf16.msra.mxu0 %v377
  %425 = vmatprep.subr.bf16.mxu0 0
  %426 = vmatpush2.bf16.msra.mxu0 0
  %427 = vmatprep.subr.bf16.mxu0 0
  %428 = vmatpush2.bf16.msra.mxu0 0
  %429 = vmatprep.subr.bf16.mxu0 0
  %430 = vmatpush2.bf16.msra.mxu0 0
  %431 = vmatprep.subr.bf16.mxu0 0
  %432 = vmatpush2.bf16.msra.mxu0 0
  %433 = vmatprep.subr.bf16.mxu0 0
  %434 = vmatpush2.bf16.msra.mxu0 0
  %435 = vmatprep.subr.bf16.mxu0 0
  %436 = vmatpush2.bf16.msra.mxu0 0
  %437 = vmatprep.subr.bf16.mxu0 0
  %438 = vmatpush2.bf16.msra.mxu0 0
  %439 = vmatprep.subr.bf16.mxu0 0
  %440 = vmatpush2.bf16.msra.mxu0 0
  %441 = vmatprep.mubr.bf16.mxu0 0
  %442 = vmatmul.mubr.bf16.gmra.mxu0 %v311
  %v443 = vpop.f32.mrf.mxu0
  %v444 = vadd.f32 0.0, %v443
  %v445 = vpop.f32.mrf.mxu0
  %v446 = vadd.f32 0.0, %v445
  %v447 = vpop.f32.mrf.mxu0
  %v448 = vadd.f32 0.0, %v447
  %v449 = vpop.f32.mrf.mxu0
  %v450 = vadd.f32 0.0, %v449
  %451 = vdwg.mxu0
  %v452 = vadd.f32 %v301, %v444
  %v453 = vadd.f32 %v303, %v446
  %v454 = vadd.f32 %v305, %v448
  %v455 = vadd.f32 %v307, %v450
  %v456 = vld [vmem:[%s0 + $0x3] sm:$0xff]
  %v457 = vld [vmem:[%s0 + $0xb] sm:$0xf]
  %v458 = vpack.c.bf16 %v457, %v456
  %s459 = scalar_lea.vmem %s1, 384
  %v460 = vld [vmem:[%s459] sm:$0xff]
  %v461 = vld [vmem:[%s459 + $0x8] sm:$0xff]
  %v462 = vld [vmem:[%s459 + $0x10] sm:$0xff]
  %v463 = vld [vmem:[%s459 + $0x18] sm:$0xff]
  %v464 = vld [vmem:[%s459 + $0x20] sm:$0xff]
  %v465 = vld [vmem:[%s459 + $0x28] sm:$0xff]
  %v466 = vld [vmem:[%s459 + $0x30] sm:$0xff]
  %v467 = vld [vmem:[%s459 + $0x38] sm:$0xff]
  %v468 = vld [vmem:[%s459 + $0x40] sm:$0xff]
  %v469 = vld [vmem:[%s459 + $0x48] sm:$0xff]
  %v470 = vld [vmem:[%s459 + $0x50] sm:$0xff]
  %v471 = vld [vmem:[%s459 + $0x58] sm:$0xff]
  %v472 = vld [vmem:[%s459 + $0x60] sm:$0xff]
  %v473 = vld [vmem:[%s459 + $0x68] sm:$0xff]
  %v474 = vld [vmem:[%s459 + $0x70] sm:$0xff]
  %v475 = vld [vmem:[%s459 + $0x78] sm:$0xff]
  %v492 = vunpack.c.l.b16 %v460
  %v493 = vunpack.c.h.b16 %v460
  %v494 = vunpack.c.l.b16 %v461
  %v495 = vunpack.c.h.b16 %v461
  %v496 = vunpack.c.l.b16 %v462
  %v497 = vunpack.c.h.b16 %v462
  %v498 = vunpack.c.l.b16 %v463
  %v499 = vunpack.c.h.b16 %v463
  %v500 = vunpack.c.l.b16 %v464
  %v501 = vunpack.c.h.b16 %v464
  %v502 = vunpack.c.l.b16 %v465
  %v503 = vunpack.c.h.b16 %v465
  %v504 = vunpack.c.l.b16 %v466
  %v505 = vunpack.c.h.b16 %v466
  %v506 = vunpack.c.l.b16 %v467
  %v507 = vunpack.c.h.b16 %v467
  %v508 = vunpack.c.l.b16 %v468
  %v509 = vunpack.c.h.b16 %v468
  %v510 = vunpack.c.l.b16 %v469
  %v511 = vunpack.c.h.b16 %v469
  %v512 = vunpack.c.l.b16 %v470
  %v513 = vunpack.c.h.b16 %v470
  %v514 = vunpack.c.l.b16 %v471
  %v515 = vunpack.c.h.b16 %v471
  %v516 = vunpack.c.l.b16 %v472
  %v517 = vunpack.c.h.b16 %v472
  %v518 = vunpack.c.l.b16 %v473
  %v519 = vunpack.c.h.b16 %v473
  %v520 = vunpack.c.l.b16 %v474
  %v521 = vunpack.c.h.b16 %v474
  %v522 = vunpack.c.l.b16 %v475
  %v523 = vunpack.c.h.b16 %v475
  %v524 = vpack.c.b16 %v494, %v492
  %v525 = vpack.c.b16 %v495, %v493
  %v526 = vpack.c.b16 %v498, %v496
  %v527 = vpack.c.b16 %v499, %v497
  %v528 = vpack.c.b16 %v502, %v500
  %v529 = vpack.c.b16 %v503, %v501
  %v530 = vpack.c.b16 %v506, %v504
  %v531 = vpack.c.b16 %v507, %v505
  %v532 = vpack.c.b16 %v510, %v508
  %v533 = vpack.c.b16 %v511, %v509
  %v534 = vpack.c.b16 %v514, %v512
  %v535 = vpack.c.b16 %v515, %v513
  %v536 = vpack.c.b16 %v518, %v516
  %v537 = vpack.c.b16 %v519, %v517
  %v538 = vpack.c.b16 %v522, %v520
  %v539 = vpack.c.b16 %v523, %v521
  %556 = vmatprep.subr.bf16.mxu0 %v539
  %557 = vmatpush1.bf16.msra.mxu0 %v538
  %558 = vmatprep.subr.bf16.mxu0 %v537
  %559 = vmatpush1.bf16.msra.mxu0 %v536
  %560 = vmatprep.subr.bf16.mxu0 %v535
  %561 = vmatpush1.bf16.msra.mxu0 %v534
  %562 = vmatprep.subr.bf16.mxu0 %v533
  %563 = vmatpush1.bf16.msra.mxu0 %v532
  %564 = vmatprep.subr.bf16.mxu0 %v531
  %565 = vmatpush1.bf16.msra.mxu0 %v530
  %566 = vmatprep.subr.bf16.mxu0 %v529
  %567 = vmatpush1.bf16.msra.mxu0 %v528
  %568 = vmatprep.subr.bf16.mxu0 %v527
  %569 = vmatpush1.bf16.msra.mxu0 %v526
  %570 = vmatprep.subr.bf16.mxu0 %v525
  %571 = vmatpush1.bf16.msra.mxu0 %v524
  %572 = vmatprep.subr.bf16.mxu0 0
  %573 = vmatpush2.bf16.msra.mxu0 0
  %574 = vmatprep.subr.bf16.mxu0 0
  %575 = vmatpush2.bf16.msra.mxu0 0
  %576 = vmatprep.subr.bf16.mxu0 0
  %577 = vmatpush2.bf16.msra.mxu0 0
  %578 = vmatprep.subr.bf16.mxu0 0
  %579 = vmatpush2.bf16.msra.mxu0 0
  %580 = vmatprep.subr.bf16.mxu0 0
  %581 = vmatpush2.bf16.msra.mxu0 0
  %582 = vmatprep.subr.bf16.mxu0 0
  %583 = vmatpush2.bf16.msra.mxu0 0
  %584 = vmatprep.subr.bf16.mxu0 0
  %585 = vmatpush2.bf16.msra.mxu0 0
  %586 = vmatprep.subr.bf16.mxu0 0
  %587 = vmatpush2.bf16.msra.mxu0 0
  %588 = vmatprep.mubr.bf16.mxu0 0
  %589 = vmatmul.mubr.bf16.gmra.mxu0 %v458
  %v590 = vpop.f32.mrf.mxu0
  %v591 = vadd.f32 0.0, %v590
  %v592 = vpop.f32.mrf.mxu0
  %v593 = vadd.f32 0.0, %v592
  %v594 = vpop.f32.mrf.mxu0
  %v595 = vadd.f32 0.0, %v594
  %v596 = vpop.f32.mrf.mxu0
  %v597 = vadd.f32 0.0, %v596
  %598 = vdwg.mxu0
  %v599 = vadd.f32 %v452, %v591
  %v600 = vadd.f32 %v453, %v593
  %v601 = vadd.f32 %v454, %v595
  %v602 = vadd.f32 %v455, %v597
  %v603 = vld [vmem:[%s0 + $0x4] sm:$0xff]
  %v604 = vld [vmem:[%s0 + $0xc] sm:$0xf]
  %v605 = vpack.c.bf16 %v604, %v603
  %s606 = scalar_lea.vmem %s1, 512
  %v607 = vld [vmem:[%s606] sm:$0xff]
  %v608 = vld [vmem:[%s606 + $0x8] sm:$0xff]
  %v609 = vld [vmem:[%s606 + $0x10] sm:$0xff]
  %v610 = vld [vmem:[%s606 + $0x18] sm:$0xff]
  %v611 = vld [vmem:[%s606 + $0x20] sm:$0xff]
  %v612 = vld [vmem:[%s606 + $0x28] sm:$0xff]
  %v613 = vld [vmem:[%s606 + $0x30] sm:$0xff]
  %v614 = vld [vmem:[%s606 + $0x38] sm:$0xff]
  %v615 = vld [vmem:[%s606 + $0x40] sm:$0xff]
  %v616 = vld [vmem:[%s606 + $0x48] sm:$0xff]
  %v617 = vld [vmem:[%s606 + $0x50] sm:$0xff]
  %v618 = vld [vmem:[%s606 + $0x58] sm:$0xff]
  %v619 = vld [vmem:[%s606 + $0x60] sm:$0xff]
  %v620 = vld [vmem:[%s606 + $0x68] sm:$0xff]
  %v621 = vld [vmem:[%s606 + $0x70] sm:$0xff]
  %v622 = vld [vmem:[%s606 + $0x78] sm:$0xff]
  %v639 = vunpack.c.l.b16 %v607
  %v640 = vunpack.c.h.b16 %v607
  %v641 = vunpack.c.l.b16 %v608
  %v642 = vunpack.c.h.b16 %v608
  %v643 = vunpack.c.l.b16 %v609
  %v644 = vunpack.c.h.b16 %v609
  %v645 = vunpack.c.l.b16 %v610
  %v646 = vunpack.c.h.b16 %v610
  %v647 = vunpack.c.l.b16 %v611
  %v648 = vunpack.c.h.b16 %v611
  %v649 = vunpack.c.l.b16 %v612
  %v650 = vunpack.c.h.b16 %v612
  %v651 = vunpack.c.l.b16 %v613
  %v652 = vunpack.c.h.b16 %v613
  %v653 = vunpack.c.l.b16 %v614
  %v654 = vunpack.c.h.b16 %v614
  %v655 = vunpack.c.l.b16 %v615
  %v656 = vunpack.c.h.b16 %v615
  %v657 = vunpack.c.l.b16 %v616
  %v658 = vunpack.c.h.b16 %v616
  %v659 = vunpack.c.l.b16 %v617
  %v660 = vunpack.c.h.b16 %v617
  %v661 = vunpack.c.l.b16 %v618
  %v662 = vunpack.c.h.b16 %v618
  %v663 = vunpack.c.l.b16 %v619
  %v664 = vunpack.c.h.b16 %v619
  %v665 = vunpack.c.l.b16 %v620
  %v666 = vunpack.c.h.b16 %v620
  %v667 = vunpack.c.l.b16 %v621
  %v668 = vunpack.c.h.b16 %v621
  %v669 = vunpack.c.l.b16 %v622
  %v670 = vunpack.c.h.b16 %v622
  %v671 = vpack.c.b16 %v641, %v639
  %v672 = vpack.c.b16 %v642, %v640
  %v673 = vpack.c.b16 %v645, %v643
  %v674 = vpack.c.b16 %v646, %v644
  %v675 = vpack.c.b16 %v649, %v647
  %v676 = vpack.c.b16 %v650, %v648
  %v677 = vpack.c.b16 %v653, %v651
  %v678 = vpack.c.b16 %v654, %v652
  %v679 = vpack.c.b16 %v657, %v655
  %v680 = vpack.c.b16 %v658, %v656
  %v681 = vpack.c.b16 %v661, %v659
  %v682 = vpack.c.b16 %v662, %v660
  %v683 = vpack.c.b16 %v665, %v663
  %v684 = vpack.c.b16 %v666, %v664
  %v685 = vpack.c.b16 %v669, %v667
  %v686 = vpack.c.b16 %v670, %v668
  %703 = vmatprep.subr.bf16.mxu0 %v686
  %704 = vmatpush1.bf16.msra.mxu0 %v685
  %705 = vmatprep.subr.bf16.mxu0 %v684
  %706 = vmatpush1.bf16.msra.mxu0 %v683
  %707 = vmatprep.subr.bf16.mxu0 %v682
  %708 = vmatpush1.bf16.msra.mxu0 %v681
  %709 = vmatprep.subr.bf16.mxu0 %v680
  %710 = vmatpush1.bf16.msra.mxu0 %v679
  %711 = vmatprep.subr.bf16.mxu0 %v678
  %712 = vmatpush1.bf16.msra.mxu0 %v677
  %713 = vmatprep.subr.bf16.mxu0 %v676
  %714 = vmatpush1.bf16.msra.mxu0 %v675
  %715 = vmatprep.subr.bf16.mxu0 %v674
  %716 = vmatpush1.bf16.msra.mxu0 %v673
  %717 = vmatprep.subr.bf16.mxu0 %v672
  %718 = vmatpush1.bf16.msra.mxu0 %v671
  %719 = vmatprep.subr.bf16.mxu0 0
  %720 = vmatpush2.bf16.msra.mxu0 0
  %721 = vmatprep.subr.bf16.mxu0 0
  %722 = vmatpush2.bf16.msra.mxu0 0
  %723 = vmatprep.subr.bf16.mxu0 0
  %724 = vmatpush2.bf16.msra.mxu0 0
  %725 = vmatprep.subr.bf16.mxu0 0
  %726 = vmatpush2.bf16.msra.mxu0 0
  %727 = vmatprep.subr.bf16.mxu0 0
  %728 = vmatpush2.bf16.msra.mxu0 0
  %729 = vmatprep.subr.bf16.mxu0 0
  %730 = vmatpush2.bf16.msra.mxu0 0
  %731 = vmatprep.subr.bf16.mxu0 0
  %732 = vmatpush2.bf16.msra.mxu0 0
  %733 = vmatprep.subr.bf16.mxu0 0
  %734 = vmatpush2.bf16.msra.mxu0 0
  %735 = vmatprep.mubr.bf16.mxu0 0
  %736 = vmatmul.mubr.bf16.gmra.mxu0 %v605
  %v737 = vpop.f32.mrf.mxu0
  %v738 = vadd.f32 0.0, %v737
  %v739 = vpop.f32.mrf.mxu0
  %v740 = vadd.f32 0.0, %v739
  %v741 = vpop.f32.mrf.mxu0
  %v742 = vadd.f32 0.0, %v741
  %v743 = vpop.f32.mrf.mxu0
  %v744 = vadd.f32 0.0, %v743
  %745 = vdwg.mxu0
  %v746 = vadd.f32 %v599, %v738
  %v747 = vadd.f32 %v600, %v740
  %v748 = vadd.f32 %v601, %v742
  %v749 = vadd.f32 %v602, %v744
  %v750 = vld [vmem:[%s0 + $0x5] sm:$0xff]
  %v751 = vld [vmem:[%s0 + $0xd] sm:$0xf]
  %v752 = vpack.c.bf16 %v751, %v750
  %s753 = scalar_lea.vmem %s1, 640
  %v754 = vld [vmem:[%s753] sm:$0xff]
  %v755 = vld [vmem:[%s753 + $0x8] sm:$0xff]
  %v756 = vld [vmem:[%s753 + $0x10] sm:$0xff]
  %v757 = vld [vmem:[%s753 + $0x18] sm:$0xff]
  %v758 = vld [vmem:[%s753 + $0x20] sm:$0xff]
  %v759 = vld [vmem:[%s753 + $0x28] sm:$0xff]
  %v760 = vld [vmem:[%s753 + $0x30] sm:$0xff]
  %v761 = vld [vmem:[%s753 + $0x38] sm:$0xff]
  %v762 = vld [vmem:[%s753 + $0x40] sm:$0xff]
  %v763 = vld [vmem:[%s753 + $0x48] sm:$0xff]
  %v764 = vld [vmem:[%s753 + $0x50] sm:$0xff]
  %v765 = vld [vmem:[%s753 + $0x58] sm:$0xff]
  %v766 = vld [vmem:[%s753 + $0x60] sm:$0xff]
  %v767 = vld [vmem:[%s753 + $0x68] sm:$0xff]
  %v768 = vld [vmem:[%s753 + $0x70] sm:$0xff]
  %v769 = vld [vmem:[%s753 + $0x78] sm:$0xff]
  %v786 = vunpack.c.l.b16 %v754
  %v787 = vunpack.c.h.b16 %v754
  %v788 = vunpack.c.l.b16 %v755
  %v789 = vunpack.c.h.b16 %v755
  %v790 = vunpack.c.l.b16 %v756
  %v791 = vunpack.c.h.b16 %v756
  %v792 = vunpack.c.l.b16 %v757
  %v793 = vunpack.c.h.b16 %v757
  %v794 = vunpack.c.l.b16 %v758
  %v795 = vunpack.c.h.b16 %v758
  %v796 = vunpack.c.l.b16 %v759
  %v797 = vunpack.c.h.b16 %v759
  %v798 = vunpack.c.l.b16 %v760
  %v799 = vunpack.c.h.b16 %v760
  %v800 = vunpack.c.l.b16 %v761
  %v801 = vunpack.c.h.b16 %v761
  %v802 = vunpack.c.l.b16 %v762
  %v803 = vunpack.c.h.b16 %v762
  %v804 = vunpack.c.l.b16 %v763
  %v805 = vunpack.c.h.b16 %v763
  %v806 = vunpack.c.l.b16 %v764
  %v807 = vunpack.c.h.b16 %v764
  %v808 = vunpack.c.l.b16 %v765
  %v809 = vunpack.c.h.b16 %v765
  %v810 = vunpack.c.l.b16 %v766
  %v811 = vunpack.c.h.b16 %v766
  %v812 = vunpack.c.l.b16 %v767
  %v813 = vunpack.c.h.b16 %v767
  %v814 = vunpack.c.l.b16 %v768
  %v815 = vunpack.c.h.b16 %v768
  %v816 = vunpack.c.l.b16 %v769
  %v817 = vunpack.c.h.b16 %v769
  %v818 = vpack.c.b16 %v788, %v786
  %v819 = vpack.c.b16 %v789, %v787
  %v820 = vpack.c.b16 %v792, %v790
  %v821 = vpack.c.b16 %v793, %v791
  %v822 = vpack.c.b16 %v796, %v794
  %v823 = vpack.c.b16 %v797, %v795
  %v824 = vpack.c.b16 %v800, %v798
  %v825 = vpack.c.b16 %v801, %v799
  %v826 = vpack.c.b16 %v804, %v802
  %v827 = vpack.c.b16 %v805, %v803
  %v828 = vpack.c.b16 %v808, %v806
  %v829 = vpack.c.b16 %v809, %v807
  %v830 = vpack.c.b16 %v812, %v810
  %v831 = vpack.c.b16 %v813, %v811
  %v832 = vpack.c.b16 %v816, %v814
  %v833 = vpack.c.b16 %v817, %v815
  %850 = vmatprep.subr.bf16.mxu0 %v833
  %851 = vmatpush1.bf16.msra.mxu0 %v832
  %852 = vmatprep.subr.bf16.mxu0 %v831
  %853 = vmatpush1.bf16.msra.mxu0 %v830
  %854 = vmatprep.subr.bf16.mxu0 %v829
  %855 = vmatpush1.bf16.msra.mxu0 %v828
  %856 = vmatprep.subr.bf16.mxu0 %v827
  %857 = vmatpush1.bf16.msra.mxu0 %v826
  %858 = vmatprep.subr.bf16.mxu0 %v825
  %859 = vmatpush1.bf16.msra.mxu0 %v824
  %860 = vmatprep.subr.bf16.mxu0 %v823
  %861 = vmatpush1.bf16.msra.mxu0 %v822
  %862 = vmatprep.subr.bf16.mxu0 %v821
  %863 = vmatpush1.bf16.msra.mxu0 %v820
  %864 = vmatprep.subr.bf16.mxu0 %v819
  %865 = vmatpush1.bf16.msra.mxu0 %v818
  %866 = vmatprep.subr.bf16.mxu0 0
  %867 = vmatpush2.bf16.msra.mxu0 0
  %868 = vmatprep.subr.bf16.mxu0 0
  %869 = vmatpush2.bf16.msra.mxu0 0
  %870 = vmatprep.subr.bf16.mxu0 0
  %871 = vmatpush2.bf16.msra.mxu0 0
  %872 = vmatprep.subr.bf16.mxu0 0
  %873 = vmatpush2.bf16.msra.mxu0 0
  %874 = vmatprep.subr.bf16.mxu0 0
  %875 = vmatpush2.bf16.msra.mxu0 0
  %876 = vmatprep.subr.bf16.mxu0 0
  %877 = vmatpush2.bf16.msra.mxu0 0
  %878 = vmatprep.subr.bf16.mxu0 0
  %879 = vmatpush2.bf16.msra.mxu0 0
  %880 = vmatprep.subr.bf16.mxu0 0
  %881 = vmatpush2.bf16.msra.mxu0 0
  %882 = vmatprep.mubr.bf16.mxu0 0
  %883 = vmatmul.mubr.bf16.gmra.mxu0 %v752
  %v884 = vpop.f32.mrf.mxu0
  %v885 = vadd.f32 0.0, %v884
  %v886 = vpop.f32.mrf.mxu0
  %v887 = vadd.f32 0.0, %v886
  %v888 = vpop.f32.mrf.mxu0
  %v889 = vadd.f32 0.0, %v888
  %v890 = vpop.f32.mrf.mxu0
  %v891 = vadd.f32 0.0, %v890
  %892 = vdwg.mxu0
  %v893 = vadd.f32 %v746, %v885
  %v894 = vadd.f32 %v747, %v887
  %v895 = vadd.f32 %v748, %v889
  %v896 = vadd.f32 %v749, %v891
  %v897 = vld [vmem:[%s0 + $0x6] sm:$0xff]
  %v898 = vld [vmem:[%s0 + $0xe] sm:$0xf]
  %v899 = vpack.c.bf16 %v898, %v897
  %s900 = scalar_lea.vmem %s1, 768
  %v901 = vld [vmem:[%s900] sm:$0xff]
  %v902 = vld [vmem:[%s900 + $0x8] sm:$0xff]
  %v903 = vld [vmem:[%s900 + $0x10] sm:$0xff]
  %v904 = vld [vmem:[%s900 + $0x18] sm:$0xff]
  %v905 = vld [vmem:[%s900 + $0x20] sm:$0xff]
  %v906 = vld [vmem:[%s900 + $0x28] sm:$0xff]
  %v907 = vld [vmem:[%s900 + $0x30] sm:$0xff]
  %v908 = vld [vmem:[%s900 + $0x38] sm:$0xff]
  %v909 = vld [vmem:[%s900 + $0x40] sm:$0xff]
  %v910 = vld [vmem:[%s900 + $0x48] sm:$0xff]
  %v911 = vld [vmem:[%s900 + $0x50] sm:$0xff]
  %v912 = vld [vmem:[%s900 + $0x58] sm:$0xff]
  %v913 = vld [vmem:[%s900 + $0x60] sm:$0xff]
  %v914 = vld [vmem:[%s900 + $0x68] sm:$0xff]
  %v915 = vld [vmem:[%s900 + $0x70] sm:$0xff]
  %v916 = vld [vmem:[%s900 + $0x78] sm:$0xff]
  %v933 = vunpack.c.l.b16 %v901
  %v934 = vunpack.c.h.b16 %v901
  %v935 = vunpack.c.l.b16 %v902
  %v936 = vunpack.c.h.b16 %v902
  %v937 = vunpack.c.l.b16 %v903
  %v938 = vunpack.c.h.b16 %v903
  %v939 = vunpack.c.l.b16 %v904
  %v940 = vunpack.c.h.b16 %v904
  %v941 = vunpack.c.l.b16 %v905
  %v942 = vunpack.c.h.b16 %v905
  %v943 = vunpack.c.l.b16 %v906
  %v944 = vunpack.c.h.b16 %v906
  %v945 = vunpack.c.l.b16 %v907
  %v946 = vunpack.c.h.b16 %v907
  %v947 = vunpack.c.l.b16 %v908
  %v948 = vunpack.c.h.b16 %v908
  %v949 = vunpack.c.l.b16 %v909
  %v950 = vunpack.c.h.b16 %v909
  %v951 = vunpack.c.l.b16 %v910
  %v952 = vunpack.c.h.b16 %v910
  %v953 = vunpack.c.l.b16 %v911
  %v954 = vunpack.c.h.b16 %v911
  %v955 = vunpack.c.l.b16 %v912
  %v956 = vunpack.c.h.b16 %v912
  %v957 = vunpack.c.l.b16 %v913
  %v958 = vunpack.c.h.b16 %v913
  %v959 = vunpack.c.l.b16 %v914
  %v960 = vunpack.c.h.b16 %v914
  %v961 = vunpack.c.l.b16 %v915
  %v962 = vunpack.c.h.b16 %v915
  %v963 = vunpack.c.l.b16 %v916
  %v964 = vunpack.c.h.b16 %v916
  %v965 = vpack.c.b16 %v935, %v933
  %v966 = vpack.c.b16 %v936, %v934
  %v967 = vpack.c.b16 %v939, %v937
  %v968 = vpack.c.b16 %v940, %v938
  %v969 = vpack.c.b16 %v943, %v941
  %v970 = vpack.c.b16 %v944, %v942
  %v971 = vpack.c.b16 %v947, %v945
  %v972 = vpack.c.b16 %v948, %v946
  %v973 = vpack.c.b16 %v951, %v949
  %v974 = vpack.c.b16 %v952, %v950
  %v975 = vpack.c.b16 %v955, %v953
  %v976 = vpack.c.b16 %v956, %v954
  %v977 = vpack.c.b16 %v959, %v957
  %v978 = vpack.c.b16 %v960, %v958
  %v979 = vpack.c.b16 %v963, %v961
  %v980 = vpack.c.b16 %v964, %v962
  %997 = vmatprep.subr.bf16.mxu0 %v980
  %998 = vmatpush1.bf16.msra.mxu0 %v979
  %999 = vmatprep.subr.bf16.mxu0 %v978
  %1000 = vmatpush1.bf16.msra.mxu0 %v977
  %1001 = vmatprep.subr.bf16.mxu0 %v976
  %1002 = vmatpush1.bf16.msra.mxu0 %v975
  %1003 = vmatprep.subr.bf16.mxu0 %v974
  %1004 = vmatpush1.bf16.msra.mxu0 %v973
  %1005 = vmatprep.subr.bf16.mxu0 %v972
  %1006 = vmatpush1.bf16.msra.mxu0 %v971
  %1007 = vmatprep.subr.bf16.mxu0 %v970
  %1008 = vmatpush1.bf16.msra.mxu0 %v969
  %1009 = vmatprep.subr.bf16.mxu0 %v968
  %1010 = vmatpush1.bf16.msra.mxu0 %v967
  %1011 = vmatprep.subr.bf16.mxu0 %v966
  %1012 = vmatpush1.bf16.msra.mxu0 %v965
  %1013 = vmatprep.subr.bf16.mxu0 0
  %1014 = vmatpush2.bf16.msra.mxu0 0
  %1015 = vmatprep.subr.bf16.mxu0 0
  %1016 = vmatpush2.bf16.msra.mxu0 0
  %1017 = vmatprep.subr.bf16.mxu0 0
  %1018 = vmatpush2.bf16.msra.mxu0 0
  %1019 = vmatprep.subr.bf16.mxu0 0
  %1020 = vmatpush2.bf16.msra.mxu0 0
  %1021 = vmatprep.subr.bf16.mxu0 0
  %1022 = vmatpush2.bf16.msra.mxu0 0
  %1023 = vmatprep.subr.bf16.mxu0 0
  %1024 = vmatpush2.bf16.msra.mxu0 0
  %1025 = vmatprep.subr.bf16.mxu0 0
  %1026 = vmatpush2.bf16.msra.mxu0 0
  %1027 = vmatprep.subr.bf16.mxu0 0
  %1028 = vmatpush2.bf16.msra.mxu0 0
  %1029 = vmatprep.mubr.bf16.mxu0 0
  %1030 = vmatmul.mubr.bf16.gmra.mxu0 %v899
  %v1031 = vpop.f32.mrf.mxu0
  %v1032 = vadd.f32 0.0, %v1031
  %v1033 = vpop.f32.mrf.mxu0
  %v1034 = vadd.f32 0.0, %v1033
  %v1035 = vpop.f32.mrf.mxu0
  %v1036 = vadd.f32 0.0, %v1035
  %v1037 = vpop.f32.mrf.mxu0
  %v1038 = vadd.f32 0.0, %v1037
  %1039 = vdwg.mxu0
  %v1040 = vadd.f32 %v893, %v1032
  %v1041 = vadd.f32 %v894, %v1034
  %v1042 = vadd.f32 %v895, %v1036
  %v1043 = vadd.f32 %v896, %v1038
  %v1044 = vld [vmem:[%s0 + $0x7] sm:$0xff]
  %v1045 = vld [vmem:[%s0 + $0xf] sm:$0xf]
  %v1046 = vpack.c.bf16 %v1045, %v1044
  %s1047 = scalar_lea.vmem %s1, 896
  %v1048 = vld [vmem:[%s1047] sm:$0xff]
  %v1049 = vld [vmem:[%s1047 + $0x8] sm:$0xff]
  %v1050 = vld [vmem:[%s1047 + $0x10] sm:$0xff]
  %v1051 = vld [vmem:[%s1047 + $0x18] sm:$0xff]
  %v1052 = vld [vmem:[%s1047 + $0x20] sm:$0xff]
  %v1053 = vld [vmem:[%s1047 + $0x28] sm:$0xff]
  %v1054 = vld [vmem:[%s1047 + $0x30] sm:$0xff]
  %v1055 = vld [vmem:[%s1047 + $0x38] sm:$0xff]
  %v1056 = vld [vmem:[%s1047 + $0x40] sm:$0xff]
  %v1057 = vld [vmem:[%s1047 + $0x48] sm:$0xff]
  %v1058 = vld [vmem:[%s1047 + $0x50] sm:$0xff]
  %v1059 = vld [vmem:[%s1047 + $0x58] sm:$0xff]
  %v1060 = vld [vmem:[%s1047 + $0x60] sm:$0xff]
  %v1061 = vld [vmem:[%s1047 + $0x68] sm:$0xff]
  %v1062 = vld [vmem:[%s1047 + $0x70] sm:$0xff]
  %v1063 = vld [vmem:[%s1047 + $0x78] sm:$0xff]
  %v1080 = vunpack.c.l.b16 %v1048
  %v1081 = vunpack.c.h.b16 %v1048
  %v1082 = vunpack.c.l.b16 %v1049
  %v1083 = vunpack.c.h.b16 %v1049
  %v1084 = vunpack.c.l.b16 %v1050
  %v1085 = vunpack.c.h.b16 %v1050
  %v1086 = vunpack.c.l.b16 %v1051
  %v1087 = vunpack.c.h.b16 %v1051
  %v1088 = vunpack.c.l.b16 %v1052
  %v1089 = vunpack.c.h.b16 %v1052
  %v1090 = vunpack.c.l.b16 %v1053
  %v1091 = vunpack.c.h.b16 %v1053
  %v1092 = vunpack.c.l.b16 %v1054
  %v1093 = vunpack.c.h.b16 %v1054
  %v1094 = vunpack.c.l.b16 %v1055
  %v1095 = vunpack.c.h.b16 %v1055
  %v1096 = vunpack.c.l.b16 %v1056
  %v1097 = vunpack.c.h.b16 %v1056
  %v1098 = vunpack.c.l.b16 %v1057
  %v1099 = vunpack.c.h.b16 %v1057
  %v1100 = vunpack.c.l.b16 %v1058
  %v1101 = vunpack.c.h.b16 %v1058
  %v1102 = vunpack.c.l.b16 %v1059
  %v1103 = vunpack.c.h.b16 %v1059
  %v1104 = vunpack.c.l.b16 %v1060
  %v1105 = vunpack.c.h.b16 %v1060
  %v1106 = vunpack.c.l.b16 %v1061
  %v1107 = vunpack.c.h.b16 %v1061
  %v1108 = vunpack.c.l.b16 %v1062
  %v1109 = vunpack.c.h.b16 %v1062
  %v1110 = vunpack.c.l.b16 %v1063
  %v1111 = vunpack.c.h.b16 %v1063
  %v1112 = vpack.c.b16 %v1082, %v1080
  %v1113 = vpack.c.b16 %v1083, %v1081
  %v1114 = vpack.c.b16 %v1086, %v1084
  %v1115 = vpack.c.b16 %v1087, %v1085
  %v1116 = vpack.c.b16 %v1090, %v1088
  %v1117 = vpack.c.b16 %v1091, %v1089
  %v1118 = vpack.c.b16 %v1094, %v1092
  %v1119 = vpack.c.b16 %v1095, %v1093
  %v1120 = vpack.c.b16 %v1098, %v1096
  %v1121 = vpack.c.b16 %v1099, %v1097
  %v1122 = vpack.c.b16 %v1102, %v1100
  %v1123 = vpack.c.b16 %v1103, %v1101
  %v1124 = vpack.c.b16 %v1106, %v1104
  %v1125 = vpack.c.b16 %v1107, %v1105
  %v1126 = vpack.c.b16 %v1110, %v1108
  %v1127 = vpack.c.b16 %v1111, %v1109
  %1144 = vmatprep.subr.bf16.mxu0 %v1127
  %1145 = vmatpush1.bf16.msra.mxu0 %v1126
  %1146 = vmatprep.subr.bf16.mxu0 %v1125
  %1147 = vmatpush1.bf16.msra.mxu0 %v1124
  %1148 = vmatprep.subr.bf16.mxu0 %v1123
  %1149 = vmatpush1.bf16.msra.mxu0 %v1122
  %1150 = vmatprep.subr.bf16.mxu0 %v1121
  %1151 = vmatpush1.bf16.msra.mxu0 %v1120
  %1152 = vmatprep.subr.bf16.mxu0 %v1119
  %1153 = vmatpush1.bf16.msra.mxu0 %v1118
  %1154 = vmatprep.subr.bf16.mxu0 %v1117
  %1155 = vmatpush1.bf16.msra.mxu0 %v1116
  %1156 = vmatprep.subr.bf16.mxu0 %v1115
  %1157 = vmatpush1.bf16.msra.mxu0 %v1114
  %1158 = vmatprep.subr.bf16.mxu0 %v1113
  %1159 = vmatpush1.bf16.msra.mxu0 %v1112
  %1160 = vmatprep.subr.bf16.mxu0 0
  %1161 = vmatpush2.bf16.msra.mxu0 0
  %1162 = vmatprep.subr.bf16.mxu0 0
  %1163 = vmatpush2.bf16.msra.mxu0 0
  %1164 = vmatprep.subr.bf16.mxu0 0
  %1165 = vmatpush2.bf16.msra.mxu0 0
  %1166 = vmatprep.subr.bf16.mxu0 0
  %1167 = vmatpush2.bf16.msra.mxu0 0
  %1168 = vmatprep.subr.bf16.mxu0 0
  %1169 = vmatpush2.bf16.msra.mxu0 0
  %1170 = vmatprep.subr.bf16.mxu0 0
  %1171 = vmatpush2.bf16.msra.mxu0 0
  %1172 = vmatprep.subr.bf16.mxu0 0
  %1173 = vmatpush2.bf16.msra.mxu0 0
  %1174 = vmatprep.subr.bf16.mxu0 0
  %1175 = vmatpush2.bf16.msra.mxu0 0
  %1176 = vmatprep.mubr.bf16.mxu0 0
  %1177 = vmatmul.mubr.bf16.gmra.mxu0 %v1046
  %v1178 = vpop.f32.mrf.mxu0
  %v1179 = vadd.f32 0.0, %v1178
  %v1180 = vpop.f32.mrf.mxu0
  %v1181 = vadd.f32 0.0, %v1180
  %v1182 = vpop.f32.mrf.mxu0
  %v1183 = vadd.f32 0.0, %v1182
  %v1184 = vpop.f32.mrf.mxu0
  %v1185 = vadd.f32 0.0, %v1184
  %1186 = vdwg.mxu0
  %v1187 = vadd.f32 %v1040, %v1179
  %v1188 = vadd.f32 %v1041, %v1181
  %v1189 = vadd.f32 %v1042, %v1183
  %v1190 = vadd.f32 %v1043, %v1185
  %v1191 = vld [vmem:[%s0 + $0x8] sm:$0xff]
  %v1192 = vld [vmem:[%s0 + $0x10] sm:$0xf]
  %v1193 = vpack.c.bf16 %v1192, %v1191
  %s1194 = scalar_lea.vmem %s1, 1024
  %v1195 = vld [vmem:[%s1194] sm:$0xff]
  %v1196 = vld [vmem:[%s1194 + $0x8] sm:$0xff]
  %v1197 = vld [vmem:[%s1194 + $0x10] sm:$0xff]
  %v1198 = vld [vmem:[%s1194 + $0x18] sm:$0xff]
  %v1199 = vld [vmem:[%s1194 + $0x20] sm:$0xff]
  %v1200 = vld [vmem:[%s1194 + $0x28] sm:$0xff]
  %v1201 = vld [vmem:[%s1194 + $0x30] sm:$0xff]
  %v1202 = vld [vmem:[%s1194 + $0x38] sm:$0xff]
  %v1203 = vld [vmem:[%s1194 + $0x40] sm:$0xff]
  %v1204 = vld [vmem:[%s1194 + $0x48] sm:$0xff]
  %v1205 = vld [vmem:[%s1194 + $0x50] sm:$0xff]
  %v1206 = vld [vmem:[%s1194 + $0x58] sm:$0xff]
  %v1207 = vld [vmem:[%s1194 + $0x60] sm:$0xff]
  %v1208 = vld [vmem:[%s1194 + $0x68] sm:$0xff]
  %v1209 = vld [vmem:[%s1194 + $0x70] sm:$0xff]
  %v1210 = vld [vmem:[%s1194 + $0x78] sm:$0xff]
  %v1227 = vunpack.c.l.b16 %v1195
  %v1228 = vunpack.c.h.b16 %v1195
  %v1229 = vunpack.c.l.b16 %v1196
  %v1230 = vunpack.c.h.b16 %v1196
  %v1231 = vunpack.c.l.b16 %v1197
  %v1232 = vunpack.c.h.b16 %v1197
  %v1233 = vunpack.c.l.b16 %v1198
  %v1234 = vunpack.c.h.b16 %v1198
  %v1235 = vunpack.c.l.b16 %v1199
  %v1236 = vunpack.c.h.b16 %v1199
  %v1237 = vunpack.c.l.b16 %v1200
  %v1238 = vunpack.c.h.b16 %v1200
  %v1239 = vunpack.c.l.b16 %v1201
  %v1240 = vunpack.c.h.b16 %v1201
  %v1241 = vunpack.c.l.b16 %v1202
  %v1242 = vunpack.c.h.b16 %v1202
  %v1243 = vunpack.c.l.b16 %v1203
  %v1244 = vunpack.c.h.b16 %v1203
  %v1245 = vunpack.c.l.b16 %v1204
  %v1246 = vunpack.c.h.b16 %v1204
  %v1247 = vunpack.c.l.b16 %v1205
  %v1248 = vunpack.c.h.b16 %v1205
  %v1249 = vunpack.c.l.b16 %v1206
  %v1250 = vunpack.c.h.b16 %v1206
  %v1251 = vunpack.c.l.b16 %v1207
  %v1252 = vunpack.c.h.b16 %v1207
  %v1253 = vunpack.c.l.b16 %v1208
  %v1254 = vunpack.c.h.b16 %v1208
  %v1255 = vunpack.c.l.b16 %v1209
  %v1256 = vunpack.c.h.b16 %v1209
  %v1257 = vunpack.c.l.b16 %v1210
  %v1258 = vunpack.c.h.b16 %v1210
  %v1259 = vpack.c.b16 %v1229, %v1227
  %v1260 = vpack.c.b16 %v1230, %v1228
  %v1261 = vpack.c.b16 %v1233, %v1231
  %v1262 = vpack.c.b16 %v1234, %v1232
  %v1263 = vpack.c.b16 %v1237, %v1235
  %v1264 = vpack.c.b16 %v1238, %v1236
  %v1265 = vpack.c.b16 %v1241, %v1239
  %v1266 = vpack.c.b16 %v1242, %v1240
  %v1267 = vpack.c.b16 %v1245, %v1243
  %v1268 = vpack.c.b16 %v1246, %v1244
  %v1269 = vpack.c.b16 %v1249, %v1247
  %v1270 = vpack.c.b16 %v1250, %v1248
  %v1271 = vpack.c.b16 %v1253, %v1251
  %v1272 = vpack.c.b16 %v1254, %v1252
  %v1273 = vpack.c.b16 %v1257, %v1255
  %v1274 = vpack.c.b16 %v1258, %v1256
  %1291 = vmatprep.subr.bf16.mxu0 %v1274
  %1292 = vmatpush1.bf16.msra.mxu0 %v1273
  %1293 = vmatprep.subr.bf16.mxu0 %v1272
  %1294 = vmatpush1.bf16.msra.mxu0 %v1271
  %1295 = vmatprep.subr.bf16.mxu0 %v1270
  %1296 = vmatpush1.bf16.msra.mxu0 %v1269
  %1297 = vmatprep.subr.bf16.mxu0 %v1268
  %1298 = vmatpush1.bf16.msra.mxu0 %v1267
  %1299 = vmatprep.subr.bf16.mxu0 %v1266
  %1300 = vmatpush1.bf16.msra.mxu0 %v1265
  %1301 = vmatprep.subr.bf16.mxu0 %v1264
  %1302 = vmatpush1.bf16.msra.mxu0 %v1263
  %1303 = vmatprep.subr.bf16.mxu0 %v1262
  %1304 = vmatpush1.bf16.msra.mxu0 %v1261
  %1305 = vmatprep.subr.bf16.mxu0 %v1260
  %1306 = vmatpush1.bf16.msra.mxu0 %v1259
  %1307 = vmatprep.subr.bf16.mxu0 0
  %1308 = vmatpush2.bf16.msra.mxu0 0
  %1309 = vmatprep.subr.bf16.mxu0 0
  %1310 = vmatpush2.bf16.msra.mxu0 0
  %1311 = vmatprep.subr.bf16.mxu0 0
  %1312 = vmatpush2.bf16.msra.mxu0 0
  %1313 = vmatprep.subr.bf16.mxu0 0
  %1314 = vmatpush2.bf16.msra.mxu0 0
  %1315 = vmatprep.subr.bf16.mxu0 0
  %1316 = vmatpush2.bf16.msra.mxu0 0
  %1317 = vmatprep.subr.bf16.mxu0 0
  %1318 = vmatpush2.bf16.msra.mxu0 0
  %1319 = vmatprep.subr.bf16.mxu0 0
  %1320 = vmatpush2.bf16.msra.mxu0 0
  %1321 = vmatprep.subr.bf16.mxu0 0
  %1322 = vmatpush2.bf16.msra.mxu0 0
  %1323 = vmatprep.mubr.bf16.mxu0 0
  %1324 = vmatmul.mubr.bf16.gmra.mxu0 %v1193
  %v1325 = vpop.f32.mrf.mxu0
  %v1326 = vadd.f32 0.0, %v1325
  %v1327 = vpop.f32.mrf.mxu0
  %v1328 = vadd.f32 0.0, %v1327
  %v1329 = vpop.f32.mrf.mxu0
  %v1330 = vadd.f32 0.0, %v1329
  %v1331 = vpop.f32.mrf.mxu0
  %v1332 = vadd.f32 0.0, %v1331
  %1333 = vdwg.mxu0
  %v1334 = vadd.f32 %v1187, %v1326
  %v1335 = vadd.f32 %v1188, %v1328
  %v1336 = vadd.f32 %v1189, %v1330
  %v1337 = vadd.f32 %v1190, %v1332
  %v1338 = vld [vmem:[%s2] sm:$0x3]
  %v1340 = vlaneseq
  %v1341 = vshrl.u32 %v1340, 7
  %v1342 = vsub.s32 0, %v1341
  %v1343 = vrot.slane %v1338, %v1342
  %v1344 = vlaneseq
  %v1345 = vshrl.u32 %v1344, 7
  %v1346 = vsub.s32 1, %v1345
  %v1347 = vrot.slane %v1338, %v1346
  %v1350 = vadd.f32 %v1334, %v1343
  %v1351 = vadd.f32 %v1335, %v1347
  %v1352 = vadd.f32 %v1336, %v1343
  %v1353 = vadd.f32 %v1337, %v1347
  %v1354 = vmax.f32 %v1350, 0.0
  %v1355 = vmax.f32 %v1351, 0.0
  %v1356 = vmax.f32 %v1352, 0.0
  %v1357 = vmax.f32 %v1353, 0.0
  %vm1358 = vcmask 1043456
  %v1359 = vsel %vm1358, %v1356, 0.0
  %v1360 = vadd.f32 %v1354, %v1359
  %v1361 = vrot.slane %v1360, 4
  %v1362 = vadd.f32 %v1360, %v1361
  %v1363 = vrot.slane %v1362, 2
  %v1364 = vadd.f32 %v1362, %v1363
  %v1365 = vrot.slane %v1364, 1
  %v1366 = vadd.f32 %v1364, %v1365
  %v1367 = vsel %vm1358, %v1357, 0.0
  %v1368 = vadd.f32 %v1355, %v1367
  %v1369 = vrot.slane %v1368, 4
  %v1370 = vadd.f32 %v1368, %v1369
  %v1371 = vrot.slane %v1370, 2
  %v1372 = vadd.f32 %v1370, %v1371
  %v1373 = vrot.slane %v1372, 1
  %v1374 = vadd.f32 %v1372, %v1373
  %s1375 = scalar_lea.vmem %s0, 24
  %v1376 = vld [vmem:[%s1375] sm:$0xff]
  %v1377 = vld [vmem:[%s1375 + $0x8] sm:$0xf]
  %v1378 = vpack.c.bf16 %v1377, %v1376
  %v1379 = vld [vmem:[%s1375 + $0x1] sm:$0xff]
  %v1380 = vld [vmem:[%s1375 + $0x9] sm:$0xf]
  %v1381 = vpack.c.bf16 %v1380, %v1379
  %1382 = vmatprep.subr.bf16.mxu0 %v126
  %1383 = vmatpush1.bf16.msra.mxu0 %v125
  %1384 = vmatprep.subr.bf16.mxu0 %v124
  %1385 = vmatpush1.bf16.msra.mxu0 %v123
  %1386 = vmatprep.subr.bf16.mxu0 %v122
  %1387 = vmatpush1.bf16.msra.mxu0 %v121
  %1388 = vmatprep.subr.bf16.mxu0 %v120
  %1389 = vmatpush1.bf16.msra.mxu0 %v119
  %1390 = vmatprep.subr.bf16.mxu0 %v118
  %1391 = vmatpush1.bf16.msra.mxu0 %v117
  %1392 = vmatprep.subr.bf16.mxu0 %v116
  %1393 = vmatpush1.bf16.msra.mxu0 %v115
  %1394 = vmatprep.subr.bf16.mxu0 %v114
  %1395 = vmatpush1.bf16.msra.mxu0 %v113
  %1396 = vmatprep.subr.bf16.mxu0 %v112
  %1397 = vmatpush1.bf16.msra.mxu0 %v111
  %1398 = vmatprep.subr.bf16.mxu0 0
  %1399 = vmatpush2.bf16.msra.mxu0 0
  %1400 = vmatprep.subr.bf16.mxu0 0
  %1401 = vmatpush2.bf16.msra.mxu0 0
  %1402 = vmatprep.subr.bf16.mxu0 0
  %1403 = vmatpush2.bf16.msra.mxu0 0
  %1404 = vmatprep.subr.bf16.mxu0 0
  %1405 = vmatpush2.bf16.msra.mxu0 0
  %1406 = vmatprep.subr.bf16.mxu0 0
  %1407 = vmatpush2.bf16.msra.mxu0 0
  %1408 = vmatprep.subr.bf16.mxu0 0
  %1409 = vmatpush2.bf16.msra.mxu0 0
  %1410 = vmatprep.subr.bf16.mxu0 0
  %1411 = vmatpush2.bf16.msra.mxu0 0
  %1412 = vmatprep.subr.bf16.mxu0 0
  %1413 = vmatpush2.bf16.msra.mxu0 0
  %1414 = vmatprep.mubr.bf16.mxu0 0
  %1415 = vmatmul.mubr.bf16.gmra.mxu0 %v1381
  %v1416 = vpop.f32.mrf.mxu0
  %v1417 = vadd.f32 0.0, %v1416
  %v1418 = vpop.f32.mrf.mxu0
  %v1419 = vadd.f32 0.0, %v1418
  %v1420 = vpop.f32.mrf.mxu0
  %v1421 = vadd.f32 0.0, %v1420
  %v1422 = vpop.f32.mrf.mxu0
  %v1423 = vadd.f32 0.0, %v1422
  %1424 = vdwg.mxu0
  %1425 = vmatprep.subr.bf16.mxu0 %v249
  %1426 = vmatpush1.bf16.msra.mxu0 %v248
  %1427 = vmatprep.subr.bf16.mxu0 %v247
  %1428 = vmatpush1.bf16.msra.mxu0 %v246
  %1429 = vmatprep.subr.bf16.mxu0 %v245
  %1430 = vmatpush1.bf16.msra.mxu0 %v244
  %1431 = vmatprep.subr.bf16.mxu0 %v243
  %1432 = vmatpush1.bf16.msra.mxu0 %v242
  %1433 = vmatprep.subr.bf16.mxu0 %v241
  %1434 = vmatpush1.bf16.msra.mxu0 %v240
  %1435 = vmatprep.subr.bf16.mxu0 %v239
  %1436 = vmatpush1.bf16.msra.mxu0 %v238
  %1437 = vmatprep.subr.bf16.mxu0 %v237
  %1438 = vmatpush1.bf16.msra.mxu0 %v236
  %1439 = vmatprep.subr.bf16.mxu0 %v235
  %1440 = vmatpush1.bf16.msra.mxu0 %v234
  %1441 = vmatprep.subr.bf16.mxu0 0
  %1442 = vmatpush2.bf16.msra.mxu0 0
  %1443 = vmatprep.subr.bf16.mxu0 0
  %1444 = vmatpush2.bf16.msra.mxu0 0
  %1445 = vmatprep.subr.bf16.mxu0 0
  %1446 = vmatpush2.bf16.msra.mxu0 0
  %1447 = vmatprep.subr.bf16.mxu0 0
  %1448 = vmatpush2.bf16.msra.mxu0 0
  %1449 = vmatprep.subr.bf16.mxu0 0
  %1450 = vmatpush2.bf16.msra.mxu0 0
  %1451 = vmatprep.subr.bf16.mxu0 0
  %1452 = vmatpush2.bf16.msra.mxu0 0
  %1453 = vmatprep.subr.bf16.mxu0 0
  %1454 = vmatpush2.bf16.msra.mxu0 0
  %1455 = vmatprep.subr.bf16.mxu0 0
  %1456 = vmatpush2.bf16.msra.mxu0 0
  %1457 = vmatprep.mubr.bf16.mxu0 0
  %1458 = vmatmul.mubr.bf16.gmra.mxu0 %v1378
  %v1459 = vpop.f32.mrf.mxu0
  %v1460 = vadd.f32 %v1417, %v1459
  %v1461 = vpop.f32.mrf.mxu0
  %v1462 = vadd.f32 %v1419, %v1461
  %v1463 = vpop.f32.mrf.mxu0
  %v1464 = vadd.f32 %v1421, %v1463
  %v1465 = vpop.f32.mrf.mxu0
  %v1466 = vadd.f32 %v1423, %v1465
  %1467 = vdwg.mxu0
  %v1468 = vld [vmem:[%s1375 + $0x2] sm:$0xff]
  %v1469 = vld [vmem:[%s1375 + $0xa] sm:$0xf]
  %v1470 = vpack.c.bf16 %v1469, %v1468
  %1471 = vmatprep.subr.bf16.mxu0 %v392
  %1472 = vmatpush1.bf16.msra.mxu0 %v391
  %1473 = vmatprep.subr.bf16.mxu0 %v390
  %1474 = vmatpush1.bf16.msra.mxu0 %v389
  %1475 = vmatprep.subr.bf16.mxu0 %v388
  %1476 = vmatpush1.bf16.msra.mxu0 %v387
  %1477 = vmatprep.subr.bf16.mxu0 %v386
  %1478 = vmatpush1.bf16.msra.mxu0 %v385
  %1479 = vmatprep.subr.bf16.mxu0 %v384
  %1480 = vmatpush1.bf16.msra.mxu0 %v383
  %1481 = vmatprep.subr.bf16.mxu0 %v382
  %1482 = vmatpush1.bf16.msra.mxu0 %v381
  %1483 = vmatprep.subr.bf16.mxu0 %v380
  %1484 = vmatpush1.bf16.msra.mxu0 %v379
  %1485 = vmatprep.subr.bf16.mxu0 %v378
  %1486 = vmatpush1.bf16.msra.mxu0 %v377
  %1487 = vmatprep.subr.bf16.mxu0 0
  %1488 = vmatpush2.bf16.msra.mxu0 0
  %1489 = vmatprep.subr.bf16.mxu0 0
  %1490 = vmatpush2.bf16.msra.mxu0 0
  %1491 = vmatprep.subr.bf16.mxu0 0
  %1492 = vmatpush2.bf16.msra.mxu0 0
  %1493 = vmatprep.subr.bf16.mxu0 0
  %1494 = vmatpush2.bf16.msra.mxu0 0
  %1495 = vmatprep.subr.bf16.mxu0 0
  %1496 = vmatpush2.bf16.msra.mxu0 0
  %1497 = vmatprep.subr.bf16.mxu0 0
  %1498 = vmatpush2.bf16.msra.mxu0 0
  %1499 = vmatprep.subr.bf16.mxu0 0
  %1500 = vmatpush2.bf16.msra.mxu0 0
  %1501 = vmatprep.subr.bf16.mxu0 0
  %1502 = vmatpush2.bf16.msra.mxu0 0
  %1503 = vmatprep.mubr.bf16.mxu0 0
  %1504 = vmatmul.mubr.bf16.gmra.mxu0 %v1470
  %v1505 = vpop.f32.mrf.mxu0
  %v1506 = vadd.f32 0.0, %v1505
  %v1507 = vpop.f32.mrf.mxu0
  %v1508 = vadd.f32 0.0, %v1507
  %v1509 = vpop.f32.mrf.mxu0
  %v1510 = vadd.f32 0.0, %v1509
  %v1511 = vpop.f32.mrf.mxu0
  %v1512 = vadd.f32 0.0, %v1511
  %1513 = vdwg.mxu0
  %v1514 = vadd.f32 %v1460, %v1506
  %v1515 = vadd.f32 %v1462, %v1508
  %v1516 = vadd.f32 %v1464, %v1510
  %v1517 = vadd.f32 %v1466, %v1512
  %v1518 = vld [vmem:[%s1375 + $0x3] sm:$0xff]
  %v1519 = vld [vmem:[%s1375 + $0xb] sm:$0xf]
  %v1520 = vpack.c.bf16 %v1519, %v1518
  %1521 = vmatprep.subr.bf16.mxu0 %v539
  %1522 = vmatpush1.bf16.msra.mxu0 %v538
  %1523 = vmatprep.subr.bf16.mxu0 %v537
  %1524 = vmatpush1.bf16.msra.mxu0 %v536
  %1525 = vmatprep.subr.bf16.mxu0 %v535
  %1526 = vmatpush1.bf16.msra.mxu0 %v534
  %1527 = vmatprep.subr.bf16.mxu0 %v533
  %1528 = vmatpush1.bf16.msra.mxu0 %v532
  %1529 = vmatprep.subr.bf16.mxu0 %v531
  %1530 = vmatpush1.bf16.msra.mxu0 %v530
  %1531 = vmatprep.subr.bf16.mxu0 %v529
  %1532 = vmatpush1.bf16.msra.mxu0 %v528
  %1533 = vmatprep.subr.bf16.mxu0 %v527
  %1534 = vmatpush1.bf16.msra.mxu0 %v526
  %1535 = vmatprep.subr.bf16.mxu0 %v525
  %1536 = vmatpush1.bf16.msra.mxu0 %v524
  %1537 = vmatprep.subr.bf16.mxu0 0
  %1538 = vmatpush2.bf16.msra.mxu0 0
  %1539 = vmatprep.subr.bf16.mxu0 0
  %1540 = vmatpush2.bf16.msra.mxu0 0
  %1541 = vmatprep.subr.bf16.mxu0 0
  %1542 = vmatpush2.bf16.msra.mxu0 0
  %1543 = vmatprep.subr.bf16.mxu0 0
  %1544 = vmatpush2.bf16.msra.mxu0 0
  %1545 = vmatprep.subr.bf16.mxu0 0
  %1546 = vmatpush2.bf16.msra.mxu0 0
  %1547 = vmatprep.subr.bf16.mxu0 0
  %1548 = vmatpush2.bf16.msra.mxu0 0
  %1549 = vmatprep.subr.bf16.mxu0 0
  %1550 = vmatpush2.bf16.msra.mxu0 0
  %1551 = vmatprep.subr.bf16.mxu0 0
  %1552 = vmatpush2.bf16.msra.mxu0 0
  %1553 = vmatprep.mubr.bf16.mxu0 0
  %1554 = vmatmul.mubr.bf16.gmra.mxu0 %v1520
  %v1555 = vpop.f32.mrf.mxu0
  %v1556 = vadd.f32 0.0, %v1555
  %v1557 = vpop.f32.mrf.mxu0
  %v1558 = vadd.f32 0.0, %v1557
  %v1559 = vpop.f32.mrf.mxu0
  %v1560 = vadd.f32 0.0, %v1559
  %v1561 = vpop.f32.mrf.mxu0
  %v1562 = vadd.f32 0.0, %v1561
  %1563 = vdwg.mxu0
  %v1564 = vadd.f32 %v1514, %v1556
  %v1565 = vadd.f32 %v1515, %v1558
  %v1566 = vadd.f32 %v1516, %v1560
  %v1567 = vadd.f32 %v1517, %v1562
  %v1568 = vld [vmem:[%s1375 + $0x4] sm:$0xff]
  %v1569 = vld [vmem:[%s1375 + $0xc] sm:$0xf]
  %v1570 = vpack.c.bf16 %v1569, %v1568
  %1571 = vmatprep.subr.bf16.mxu0 %v686
  %1572 = vmatpush1.bf16.msra.mxu0 %v685
  %1573 = vmatprep.subr.bf16.mxu0 %v684
  %1574 = vmatpush1.bf16.msra.mxu0 %v683
  %1575 = vmatprep.subr.bf16.mxu0 %v682
  %1576 = vmatpush1.bf16.msra.mxu0 %v681
  %1577 = vmatprep.subr.bf16.mxu0 %v680
  %1578 = vmatpush1.bf16.msra.mxu0 %v679
  %1579 = vmatprep.subr.bf16.mxu0 %v678
  %1580 = vmatpush1.bf16.msra.mxu0 %v677
  %1581 = vmatprep.subr.bf16.mxu0 %v676
  %1582 = vmatpush1.bf16.msra.mxu0 %v675
  %1583 = vmatprep.subr.bf16.mxu0 %v674
  %1584 = vmatpush1.bf16.msra.mxu0 %v673
  %1585 = vmatprep.subr.bf16.mxu0 %v672
  %1586 = vmatpush1.bf16.msra.mxu0 %v671
  %1587 = vmatprep.subr.bf16.mxu0 0
  %1588 = vmatpush2.bf16.msra.mxu0 0
  %1589 = vmatprep.subr.bf16.mxu0 0
  %1590 = vmatpush2.bf16.msra.mxu0 0
  %1591 = vmatprep.subr.bf16.mxu0 0
  %1592 = vmatpush2.bf16.msra.mxu0 0
  %1593 = vmatprep.subr.bf16.mxu0 0
  %1594 = vmatpush2.bf16.msra.mxu0 0
  %1595 = vmatprep.subr.bf16.mxu0 0
  %1596 = vmatpush2.bf16.msra.mxu0 0
  %1597 = vmatprep.subr.bf16.mxu0 0
  %1598 = vmatpush2.bf16.msra.mxu0 0
  %1599 = vmatprep.subr.bf16.mxu0 0
  %1600 = vmatpush2.bf16.msra.mxu0 0
  %1601 = vmatprep.subr.bf16.mxu0 0
  %1602 = vmatpush2.bf16.msra.mxu0 0
  %1603 = vmatprep.mubr.bf16.mxu0 0
  %1604 = vmatmul.mubr.bf16.gmra.mxu0 %v1570
  %v1605 = vpop.f32.mrf.mxu0
  %v1606 = vadd.f32 0.0, %v1605
  %v1607 = vpop.f32.mrf.mxu0
  %v1608 = vadd.f32 0.0, %v1607
  %v1609 = vpop.f32.mrf.mxu0
  %v1610 = vadd.f32 0.0, %v1609
  %v1611 = vpop.f32.mrf.mxu0
  %v1612 = vadd.f32 0.0, %v1611
  %1613 = vdwg.mxu0
  %v1614 = vadd.f32 %v1564, %v1606
  %v1615 = vadd.f32 %v1565, %v1608
  %v1616 = vadd.f32 %v1566, %v1610
  %v1617 = vadd.f32 %v1567, %v1612
  %v1618 = vld [vmem:[%s1375 + $0x5] sm:$0xff]
  %v1619 = vld [vmem:[%s1375 + $0xd] sm:$0xf]
  %v1620 = vpack.c.bf16 %v1619, %v1618
  %1621 = vmatprep.subr.bf16.mxu0 %v833
  %1622 = vmatpush1.bf16.msra.mxu0 %v832
  %1623 = vmatprep.subr.bf16.mxu0 %v831
  %1624 = vmatpush1.bf16.msra.mxu0 %v830
  %1625 = vmatprep.subr.bf16.mxu0 %v829
  %1626 = vmatpush1.bf16.msra.mxu0 %v828
  %1627 = vmatprep.subr.bf16.mxu0 %v827
  %1628 = vmatpush1.bf16.msra.mxu0 %v826
  %1629 = vmatprep.subr.bf16.mxu0 %v825
  %1630 = vmatpush1.bf16.msra.mxu0 %v824
  %1631 = vmatprep.subr.bf16.mxu0 %v823
  %1632 = vmatpush1.bf16.msra.mxu0 %v822
  %1633 = vmatprep.subr.bf16.mxu0 %v821
  %1634 = vmatpush1.bf16.msra.mxu0 %v820
  %1635 = vmatprep.subr.bf16.mxu0 %v819
  %1636 = vmatpush1.bf16.msra.mxu0 %v818
  %1637 = vmatprep.subr.bf16.mxu0 0
  %1638 = vmatpush2.bf16.msra.mxu0 0
  %1639 = vmatprep.subr.bf16.mxu0 0
  %1640 = vmatpush2.bf16.msra.mxu0 0
  %1641 = vmatprep.subr.bf16.mxu0 0
  %1642 = vmatpush2.bf16.msra.mxu0 0
  %1643 = vmatprep.subr.bf16.mxu0 0
  %1644 = vmatpush2.bf16.msra.mxu0 0
  %1645 = vmatprep.subr.bf16.mxu0 0
  %1646 = vmatpush2.bf16.msra.mxu0 0
  %1647 = vmatprep.subr.bf16.mxu0 0
  %1648 = vmatpush2.bf16.msra.mxu0 0
  %1649 = vmatprep.subr.bf16.mxu0 0
  %1650 = vmatpush2.bf16.msra.mxu0 0
  %1651 = vmatprep.subr.bf16.mxu0 0
  %1652 = vmatpush2.bf16.msra.mxu0 0
  %1653 = vmatprep.mubr.bf16.mxu0 0
  %1654 = vmatmul.mubr.bf16.gmra.mxu0 %v1620
  %v1655 = vpop.f32.mrf.mxu0
  %v1656 = vadd.f32 0.0, %v1655
  %v1657 = vpop.f32.mrf.mxu0
  %v1658 = vadd.f32 0.0, %v1657
  %v1659 = vpop.f32.mrf.mxu0
  %v1660 = vadd.f32 0.0, %v1659
  %v1661 = vpop.f32.mrf.mxu0
  %v1662 = vadd.f32 0.0, %v1661
  %1663 = vdwg.mxu0
  %v1664 = vadd.f32 %v1614, %v1656
  %v1665 = vadd.f32 %v1615, %v1658
  %v1666 = vadd.f32 %v1616, %v1660
  %v1667 = vadd.f32 %v1617, %v1662
  %v1668 = vld [vmem:[%s1375 + $0x6] sm:$0xff]
  %v1669 = vld [vmem:[%s1375 + $0xe] sm:$0xf]
  %v1670 = vpack.c.bf16 %v1669, %v1668
  %1671 = vmatprep.subr.bf16.mxu0 %v980
  %1672 = vmatpush1.bf16.msra.mxu0 %v979
  %1673 = vmatprep.subr.bf16.mxu0 %v978
  %1674 = vmatpush1.bf16.msra.mxu0 %v977
  %1675 = vmatprep.subr.bf16.mxu0 %v976
  %1676 = vmatpush1.bf16.msra.mxu0 %v975
  %1677 = vmatprep.subr.bf16.mxu0 %v974
  %1678 = vmatpush1.bf16.msra.mxu0 %v973
  %1679 = vmatprep.subr.bf16.mxu0 %v972
  %1680 = vmatpush1.bf16.msra.mxu0 %v971
  %1681 = vmatprep.subr.bf16.mxu0 %v970
  %1682 = vmatpush1.bf16.msra.mxu0 %v969
  %1683 = vmatprep.subr.bf16.mxu0 %v968
  %1684 = vmatpush1.bf16.msra.mxu0 %v967
  %1685 = vmatprep.subr.bf16.mxu0 %v966
  %1686 = vmatpush1.bf16.msra.mxu0 %v965
  %1687 = vmatprep.subr.bf16.mxu0 0
  %1688 = vmatpush2.bf16.msra.mxu0 0
  %1689 = vmatprep.subr.bf16.mxu0 0
  %1690 = vmatpush2.bf16.msra.mxu0 0
  %1691 = vmatprep.subr.bf16.mxu0 0
  %1692 = vmatpush2.bf16.msra.mxu0 0
  %1693 = vmatprep.subr.bf16.mxu0 0
  %1694 = vmatpush2.bf16.msra.mxu0 0
  %1695 = vmatprep.subr.bf16.mxu0 0
  %1696 = vmatpush2.bf16.msra.mxu0 0
  %1697 = vmatprep.subr.bf16.mxu0 0
  %1698 = vmatpush2.bf16.msra.mxu0 0
  %1699 = vmatprep.subr.bf16.mxu0 0
  %1700 = vmatpush2.bf16.msra.mxu0 0
  %1701 = vmatprep.subr.bf16.mxu0 0
  %1702 = vmatpush2.bf16.msra.mxu0 0
  %1703 = vmatprep.mubr.bf16.mxu0 0
  %1704 = vmatmul.mubr.bf16.gmra.mxu0 %v1670
  %v1705 = vpop.f32.mrf.mxu0
  %v1706 = vadd.f32 0.0, %v1705
  %v1707 = vpop.f32.mrf.mxu0
  %v1708 = vadd.f32 0.0, %v1707
  %v1709 = vpop.f32.mrf.mxu0
  %v1710 = vadd.f32 0.0, %v1709
  %v1711 = vpop.f32.mrf.mxu0
  %v1712 = vadd.f32 0.0, %v1711
  %1713 = vdwg.mxu0
  %v1714 = vadd.f32 %v1664, %v1706
  %v1715 = vadd.f32 %v1665, %v1708
  %v1716 = vadd.f32 %v1666, %v1710
  %v1717 = vadd.f32 %v1667, %v1712
  %v1718 = vld [vmem:[%s1375 + $0x7] sm:$0xff]
  %v1719 = vld [vmem:[%s1375 + $0xf] sm:$0xf]
  %v1720 = vpack.c.bf16 %v1719, %v1718
  %1721 = vmatprep.subr.bf16.mxu0 %v1127
  %1722 = vmatpush1.bf16.msra.mxu0 %v1126
  %1723 = vmatprep.subr.bf16.mxu0 %v1125
  %1724 = vmatpush1.bf16.msra.mxu0 %v1124
  %1725 = vmatprep.subr.bf16.mxu0 %v1123
  %1726 = vmatpush1.bf16.msra.mxu0 %v1122
  %1727 = vmatprep.subr.bf16.mxu0 %v1121
  %1728 = vmatpush1.bf16.msra.mxu0 %v1120
  %1729 = vmatprep.subr.bf16.mxu0 %v1119
  %1730 = vmatpush1.bf16.msra.mxu0 %v1118
  %1731 = vmatprep.subr.bf16.mxu0 %v1117
  %1732 = vmatpush1.bf16.msra.mxu0 %v1116
  %1733 = vmatprep.subr.bf16.mxu0 %v1115
  %1734 = vmatpush1.bf16.msra.mxu0 %v1114
  %1735 = vmatprep.subr.bf16.mxu0 %v1113
  %1736 = vmatpush1.bf16.msra.mxu0 %v1112
  %1737 = vmatprep.subr.bf16.mxu0 0
  %1738 = vmatpush2.bf16.msra.mxu0 0
  %1739 = vmatprep.subr.bf16.mxu0 0
  %1740 = vmatpush2.bf16.msra.mxu0 0
  %1741 = vmatprep.subr.bf16.mxu0 0
  %1742 = vmatpush2.bf16.msra.mxu0 0
  %1743 = vmatprep.subr.bf16.mxu0 0
  %1744 = vmatpush2.bf16.msra.mxu0 0
  %1745 = vmatprep.subr.bf16.mxu0 0
  %1746 = vmatpush2.bf16.msra.mxu0 0
  %1747 = vmatprep.subr.bf16.mxu0 0
  %1748 = vmatpush2.bf16.msra.mxu0 0
  %1749 = vmatprep.subr.bf16.mxu0 0
  %1750 = vmatpush2.bf16.msra.mxu0 0
  %1751 = vmatprep.subr.bf16.mxu0 0
  %1752 = vmatpush2.bf16.msra.mxu0 0
  %1753 = vmatprep.mubr.bf16.mxu0 0
  %1754 = vmatmul.mubr.bf16.gmra.mxu0 %v1720
  %v1755 = vpop.f32.mrf.mxu0
  %v1756 = vadd.f32 0.0, %v1755
  %v1757 = vpop.f32.mrf.mxu0
  %v1758 = vadd.f32 0.0, %v1757
  %v1759 = vpop.f32.mrf.mxu0
  %v1760 = vadd.f32 0.0, %v1759
  %v1761 = vpop.f32.mrf.mxu0
  %v1762 = vadd.f32 0.0, %v1761
  %1763 = vdwg.mxu0
  %v1764 = vadd.f32 %v1714, %v1756
  %v1765 = vadd.f32 %v1715, %v1758
  %v1766 = vadd.f32 %v1716, %v1760
  %v1767 = vadd.f32 %v1717, %v1762
  %v1768 = vld [vmem:[%s1375 + $0x8] sm:$0xff]
  %v1769 = vld [vmem:[%s1375 + $0x10] sm:$0xf]
  %v1770 = vpack.c.bf16 %v1769, %v1768
  %1771 = vmatprep.subr.bf16.mxu0 %v1274
  %1772 = vmatpush1.bf16.msra.mxu0 %v1273
  %1773 = vmatprep.subr.bf16.mxu0 %v1272
  %1774 = vmatpush1.bf16.msra.mxu0 %v1271
  %1775 = vmatprep.subr.bf16.mxu0 %v1270
  %1776 = vmatpush1.bf16.msra.mxu0 %v1269
  %1777 = vmatprep.subr.bf16.mxu0 %v1268
  %1778 = vmatpush1.bf16.msra.mxu0 %v1267
  %1779 = vmatprep.subr.bf16.mxu0 %v1266
  %1780 = vmatpush1.bf16.msra.mxu0 %v1265
  %1781 = vmatprep.subr.bf16.mxu0 %v1264
  %1782 = vmatpush1.bf16.msra.mxu0 %v1263
  %1783 = vmatprep.subr.bf16.mxu0 %v1262
  %1784 = vmatpush1.bf16.msra.mxu0 %v1261
  %1785 = vmatprep.subr.bf16.mxu0 %v1260
  %1786 = vmatpush1.bf16.msra.mxu0 %v1259
  %1787 = vmatprep.subr.bf16.mxu0 0
  %1788 = vmatpush2.bf16.msra.mxu0 0
  %1789 = vmatprep.subr.bf16.mxu0 0
  %1790 = vmatpush2.bf16.msra.mxu0 0
  %1791 = vmatprep.subr.bf16.mxu0 0
  %1792 = vmatpush2.bf16.msra.mxu0 0
  %1793 = vmatprep.subr.bf16.mxu0 0
  %1794 = vmatpush2.bf16.msra.mxu0 0
  %1795 = vmatprep.subr.bf16.mxu0 0
  %1796 = vmatpush2.bf16.msra.mxu0 0
  %1797 = vmatprep.subr.bf16.mxu0 0
  %1798 = vmatpush2.bf16.msra.mxu0 0
  %1799 = vmatprep.subr.bf16.mxu0 0
  %1800 = vmatpush2.bf16.msra.mxu0 0
  %1801 = vmatprep.subr.bf16.mxu0 0
  %1802 = vmatpush2.bf16.msra.mxu0 0
  %1803 = vmatprep.mubr.bf16.mxu0 0
  %1804 = vmatmul.mubr.bf16.gmra.mxu0 %v1770
  %v1805 = vpop.f32.mrf.mxu0
  %v1806 = vadd.f32 0.0, %v1805
  %v1807 = vpop.f32.mrf.mxu0
  %v1808 = vadd.f32 0.0, %v1807
  %v1809 = vpop.f32.mrf.mxu0
  %v1810 = vadd.f32 0.0, %v1809
  %v1811 = vpop.f32.mrf.mxu0
  %v1812 = vadd.f32 0.0, %v1811
  %1813 = vdwg.mxu0
  %v1814 = vadd.f32 %v1764, %v1806
  %v1815 = vadd.f32 %v1765, %v1808
  %v1816 = vadd.f32 %v1766, %v1810
  %v1817 = vadd.f32 %v1767, %v1812
  %v1818 = vadd.f32 %v1814, %v1343
  %v1819 = vadd.f32 %v1815, %v1347
  %v1820 = vadd.f32 %v1816, %v1343
  %v1821 = vadd.f32 %v1817, %v1347
  %v1822 = vmax.f32 %v1818, 0.0
  %v1823 = vmax.f32 %v1819, 0.0
  %v1824 = vmax.f32 %v1820, 0.0
  %v1825 = vmax.f32 %v1821, 0.0
  %v1826 = vsel %vm1358, %v1824, 0.0
  %v1827 = vadd.f32 %v1822, %v1826
  %v1828 = vrot.slane %v1827, 4
  %v1829 = vadd.f32 %v1827, %v1828
  %v1830 = vrot.slane %v1829, 2
  %v1831 = vadd.f32 %v1829, %v1830
  %v1832 = vrot.slane %v1831, 1
  %v1833 = vadd.f32 %v1831, %v1832
  %v1834 = vsel %vm1358, %v1825, 0.0
  %v1835 = vadd.f32 %v1823, %v1834
  %v1836 = vrot.slane %v1835, 4
  %v1837 = vadd.f32 %v1835, %v1836
  %v1838 = vrot.slane %v1837, 2
  %v1839 = vadd.f32 %v1837, %v1838
  %v1840 = vrot.slane %v1839, 1
  %v1841 = vadd.f32 %v1839, %v1840
  %v1842 = vadd.f32 %v1366, %v1833
  %v1843 = vadd.f32 %v1374, %v1841
  %v1844 = vmul.f32 %v1842, 0.041666668
  %v1845 = vmul.f32 %v1843, 0.041666668
  %v1846 = vsub.f32 %v1354, %v1844
  %v1847 = vsub.f32 %v1355, %v1845
  %v1848 = vsub.f32 %v1356, %v1844
  %v1849 = vsub.f32 %v1357, %v1845
  %v1850 = vmul.f32 %v1846, %v1846
  %v1851 = vmul.f32 %v1847, %v1847
  %v1852 = vmul.f32 %v1848, %v1848
  %v1853 = vmul.f32 %v1849, %v1849
  %v1854 = vsel %vm1358, %v1852, 0.0
  %v1855 = vadd.f32 %v1850, %v1854
  %v1856 = vrot.slane %v1855, 4
  %v1857 = vadd.f32 %v1855, %v1856
  %v1858 = vrot.slane %v1857, 2
  %v1859 = vadd.f32 %v1857, %v1858
  %v1860 = vrot.slane %v1859, 1
  %v1861 = vadd.f32 %v1859, %v1860
  %v1862 = vsel %vm1358, %v1853, 0.0
  %v1863 = vadd.f32 %v1851, %v1862
  %v1864 = vrot.slane %v1863, 4
  %v1865 = vadd.f32 %v1863, %v1864
  %v1866 = vrot.slane %v1865, 2
  %v1867 = vadd.f32 %v1865, %v1866
  %v1868 = vrot.slane %v1867, 1
  %v1869 = vadd.f32 %v1867, %v1868
  %v1870 = vsub.f32 %v1822, %v1844
  %v1871 = vsub.f32 %v1823, %v1845
  %v1872 = vsub.f32 %v1824, %v1844
  %v1873 = vsub.f32 %v1825, %v1845
  %v1874 = vmul.f32 %v1870, %v1870
  %v1875 = vmul.f32 %v1871, %v1871
  %v1876 = vmul.f32 %v1872, %v1872
  %v1877 = vmul.f32 %v1873, %v1873
  %v1878 = vsel %vm1358, %v1876, 0.0
  %v1879 = vadd.f32 %v1874, %v1878
  %v1880 = vrot.slane %v1879, 4
  %v1881 = vadd.f32 %v1879, %v1880
  %v1882 = vrot.slane %v1881, 2
  %v1883 = vadd.f32 %v1881, %v1882
  %v1884 = vrot.slane %v1883, 1
  %v1885 = vadd.f32 %v1883, %v1884
  %v1886 = vsel %vm1358, %v1877, 0.0
  %v1887 = vadd.f32 %v1875, %v1886
  %v1888 = vrot.slane %v1887, 4
  %v1889 = vadd.f32 %v1887, %v1888
  %v1890 = vrot.slane %v1889, 2
  %v1891 = vadd.f32 %v1889, %v1890
  %v1892 = vrot.slane %v1891, 1
  %v1893 = vadd.f32 %v1891, %v1892
  %v1894 = vadd.f32 %v1861, %v1885
  %v1895 = vadd.f32 %v1869, %v1893
  %v1896 = vmul.f32 %v1894, 0.041666668
  %v1897 = vmul.f32 %v1895, 0.041666668
  %v1898 = vld [vmem:[%s3] sm:$0x3]
  %v1899 = vadd.f32 %v1896, 1e-05
  %v1900 = vadd.f32 %v1897, 1e-05
  %v1901 = vrsqrt.pop %v1899
  %v1902 = vrsqrt.pop %v1900
  %v1905 = vcombine.low %v1901, %v1902
  %v1907 = vunpack.c.l.s4 1966171168
  %v1908 = vunpack.c.0.s8 %v1907
  %v1909 = vlaneseq
  %v1910 = vshrl.u32 %v1909, 7
  %v1911 = vsub.s32 %v1908, %v1910
  %v1912 = vrot.slane %v1905, %v1911
  %v1914 = vunpack.c.l.s4 1966171168
  %v1915 = vunpack.c.0.s8 %v1914
  %v1916 = vlaneseq
  %v1917 = vshrl.u32 %v1916, 7
  %v1918 = vsub.s32 %v1915, %v1917
  %v1919 = vrot.slane %v1912, %v1918
  %v1921 = vmul.f32 %v1898, %v1919
  %v1922 = vld [vmem:[%s4] sm:$0x3]
  %v1924 = vlaneseq
  %v1925 = vshrl.u32 %v1924, 7
  %v1926 = vsub.s32 0, %v1925
  %v1927 = vrot.slane %v1921, %v1926
  %v1928 = vlaneseq
  %v1929 = vshrl.u32 %v1928, 7
  %v1930 = vsub.s32 1, %v1929
  %v1931 = vrot.slane %v1921, %v1930
  %v1934 = vmul.f32 %v1844, %v1927
  %v1935 = vmul.f32 %v1845, %v1931
  %v1938 = vcombine.low %v1934, %v1935
  %v1940 = vunpack.c.l.s4 1966171168
  %v1941 = vunpack.c.0.s8 %v1940
  %v1942 = vlaneseq
  %v1943 = vshrl.u32 %v1942, 7
  %v1944 = vsub.s32 %v1941, %v1943
  %v1945 = vrot.slane %v1938, %v1944
  %v1947 = vunpack.c.l.s4 1966171168
  %v1948 = vunpack.c.0.s8 %v1947
  %v1949 = vlaneseq
  %v1950 = vshrl.u32 %v1949, 7
  %v1951 = vsub.s32 %v1948, %v1950
  %v1952 = vrot.slane %v1945, %v1951
  %v1954 = vsub.f32 %v1922, %v1952
  %v1955 = vmul.f32 %v1354, %v1927
  %v1956 = vmul.f32 %v1355, %v1931
  %v1957 = vmul.f32 %v1356, %v1927
  %v1958 = vmul.f32 %v1357, %v1931
  %v1960 = vlaneseq
  %v1961 = vshrl.u32 %v1960, 7
  %v1962 = vsub.s32 0, %v1961
  %v1963 = vrot.slane %v1954, %v1962
  %v1964 = vlaneseq
  %v1965 = vshrl.u32 %v1964, 7
  %v1966 = vsub.s32 1, %v1965
  %v1967 = vrot.slane %v1954, %v1966
  %v1970 = vadd.f32 %v1955, %v1963
  %v1971 = vadd.f32 %v1956, %v1967
  %v1972 = vadd.f32 %v1957, %v1963
  %v1973 = vadd.f32 %v1958, %v1967
  %v1974 = vld [vmem:[%s5] sm:$0xff]
  %v1975 = vld [vmem:[%s5 + $0x8] sm:$0xff]
  %v1976 = vld [vmem:[%s5 + $0x10] sm:$0xff]
  %v1977 = vld [vmem:[%s5 + $0x18] sm:$0xff]
  %v1978 = vld [vmem:[%s5 + $0x20] sm:$0xff]
  %v1979 = vld [vmem:[%s5 + $0x28] sm:$0xff]
  %v1980 = vld [vmem:[%s5 + $0x30] sm:$0xff]
  %v1981 = vld [vmem:[%s5 + $0x38] sm:$0xff]
  %v1982 = vld [vmem:[%s5 + $0x40] sm:$0xff]
  %v1983 = vld [vmem:[%s5 + $0x48] sm:$0xff]
  %v1984 = vld [vmem:[%s5 + $0x50] sm:$0xff]
  %v1985 = vld [vmem:[%s5 + $0x58] sm:$0xff]
  %v1986 = vld [vmem:[%s5 + $0x60] sm:$0xff]
  %v1987 = vld [vmem:[%s5 + $0x68] sm:$0xff]
  %v1988 = vld [vmem:[%s5 + $0x70] sm:$0xff]
  %v1989 = vld [vmem:[%s5 + $0x78] sm:$0xff]
  %vm1990 = vcmask 97280
  %v1992 = vsel %vm1990, %v1974, 0
  %v1995 = vsel %vm1990, %v1975, 0
  %v1998 = vsel %vm1990, %v1976, 0
  %v2001 = vsel %vm1990, %v1977, 0
  %v2004 = vsel %vm1990, %v1978, 0
  %v2007 = vsel %vm1990, %v1979, 0
  %v2010 = vsel %vm1990, %v1980, 0
  %v2013 = vsel %vm1990, %v1981, 0
  %v2016 = vsel %vm1990, %v1982, 0
  %v2019 = vsel %vm1990, %v1983, 0
  %v2022 = vsel %vm1990, %v1984, 0
  %v2025 = vsel %vm1990, %v1985, 0
  %v2028 = vsel %vm1990, %v1986, 0
  %v2031 = vsel %vm1990, %v1987, 0
  %v2034 = vsel %vm1990, %v1988, 0
  %v2037 = vsel %vm1990, %v1989, 0
  %v2040 = vsel %vm1358, %v1972, 0
  %v2043 = vsel %vm1358, %v1973, 0
  %2045 = vmatprep.subr.mxu0 0.0
  %2046 = vmatpush1.msra.mxu0 0.0
  %2047 = vmatprep.subr.mxu0 0.0
  %2048 = vmatpush1.msra.mxu0 0.0
  %2049 = vmatprep.subr.mxu0 0.0
  %2050 = vmatpush1.msra.mxu0 0.0
  %2051 = vmatprep.subr.mxu0 0.0
  %2052 = vmatpush1.msra.mxu0 0.0
  %2053 = vmatprep.subr.mxu0 0.0
  %2054 = vmatpush1.msra.mxu0 0.0
  %2055 = vmatprep.subr.mxu0 0.0
  %2056 = vmatpush1.msra.mxu0 0.0
  %2057 = vmatprep.subr.mxu0 0.0
  %2058 = vmatpush1.msra.mxu0 0.0
  %2059 = vmatprep.subr.mxu0 0.0
  %2060 = vmatpush1.msra.mxu0 0.0
  %2061 = vmatprep.subr.mxu0 0.0
  %2062 = vmatpush1.msra.mxu0 0.0
  %2063 = vmatprep.subr.mxu0 0.0
  %2064 = vmatpush1.msra.mxu0 0.0
  %2065 = vmatprep.subr.mxu0 0.0
  %2066 = vmatpush1.msra.mxu0 0.0
  %2067 = vmatprep.subr.mxu0 0.0
  %2068 = vmatpush1.msra.mxu0 0.0
  %2069 = vmatprep.subr.mxu0 0.0
  %2070 = vmatpush1.msra.mxu0 0.0
  %2071 = vmatprep.subr.mxu0 0.0
  %2072 = vmatpush1.msra.mxu0 0.0
  %2073 = vmatprep.subr.mxu0 %v2043
  %2074 = vmatpush1.msra.mxu0 %v2040
  %2075 = vmatprep.subr.mxu0 %v1971
  %2076 = vmatpush1.msra.mxu0 %v1970
  %2077 = vmatprep.subr.mxu0 0.0
  %2078 = vmatpush2.msra.mxu0 0.0
  %2079 = vmatprep.subr.mxu0 0.0
  %2080 = vmatpush2.msra.mxu0 0.0
  %2081 = vmatprep.subr.mxu0 0.0
  %2082 = vmatpush2.msra.mxu0 0.0
  %2083 = vmatprep.subr.mxu0 0.0
  %2084 = vmatpush2.msra.mxu0 0.0
  %2085 = vmatprep.subr.mxu0 0.0
  %2086 = vmatpush2.msra.mxu0 0.0
  %2087 = vmatprep.subr.mxu0 0.0
  %2088 = vmatpush2.msra.mxu0 0.0
  %2089 = vmatprep.subr.mxu0 0.0
  %2090 = vmatpush2.msra.mxu0 0.0
  %2091 = vmatprep.subr.mxu0 0.0
  %2092 = vmatpush2.msra.mxu0 0.0
  %2093 = vmatprep.subr.mxu0 0.0
  %2094 = vmatpush2.msra.mxu0 0.0
  %2095 = vmatprep.subr.mxu0 0.0
  %2096 = vmatpush2.msra.mxu0 0.0
  %2097 = vmatprep.subr.mxu0 0.0
  %2098 = vmatpush2.msra.mxu0 0.0
  %2099 = vmatprep.subr.mxu0 0.0
  %2100 = vmatpush2.msra.mxu0 0.0
  %2101 = vmatprep.subr.mxu0 0.0
  %2102 = vmatpush2.msra.mxu0 0.0
  %2103 = vmatprep.subr.mxu0 0.0
  %2104 = vmatpush2.msra.mxu0 0.0
  %2105 = vmatprep.subr.mxu0 0.0
  %2106 = vmatpush2.msra.mxu0 0.0
  %2107 = vmatprep.subr.mxu0 0.0
  %2108 = vmatpush2.msra.mxu0 0.0
  %2109 = vmatprep.mubr.f32.mxu0 0.0
  %2110 = vmatmul.mubr.f32.gmra.mxu0 %v1992
  %v2111 = vpop.f32.mrf.mxu0
  %v2112 = vadd.f32 0.0, %v2111
  %v2113 = vpop.f32.mrf.mxu0
  %v2114 = vadd.f32 0.0, %v2113
  %2115 = vmatprep.mubr.f32.mxu0 0.0
  %2116 = vmatmul.mubr.f32.gmra.mxu0 %v1995
  %v2117 = vpop.f32.mrf.mxu0
  %v2118 = vadd.f32 0.0, %v2117
  %v2119 = vpop.f32.mrf.mxu0
  %v2120 = vadd.f32 0.0, %v2119
  %2121 = vmatprep.mubr.f32.mxu0 0.0
  %2122 = vmatmul.mubr.f32.gmra.mxu0 %v1998
  %v2123 = vpop.f32.mrf.mxu0
  %v2124 = vadd.f32 0.0, %v2123
  %v2125 = vpop.f32.mrf.mxu0
  %v2126 = vadd.f32 0.0, %v2125
  %2127 = vmatprep.mubr.f32.mxu0 0.0
  %2128 = vmatmul.mubr.f32.gmra.mxu0 %v2001
  %v2129 = vpop.f32.mrf.mxu0
  %v2130 = vadd.f32 0.0, %v2129
  %v2131 = vpop.f32.mrf.mxu0
  %v2132 = vadd.f32 0.0, %v2131
  %2133 = vmatprep.mubr.f32.mxu0 0.0
  %2134 = vmatmul.mubr.f32.gmra.mxu0 %v2004
  %v2135 = vpop.f32.mrf.mxu0
  %v2136 = vadd.f32 0.0, %v2135
  %v2137 = vpop.f32.mrf.mxu0
  %v2138 = vadd.f32 0.0, %v2137
  %2139 = vmatprep.mubr.f32.mxu0 0.0
  %2140 = vmatmul.mubr.f32.gmra.mxu0 %v2007
  %v2141 = vpop.f32.mrf.mxu0
  %v2142 = vadd.f32 0.0, %v2141
  %v2143 = vpop.f32.mrf.mxu0
  %v2144 = vadd.f32 0.0, %v2143
  %2145 = vmatprep.mubr.f32.mxu0 0.0
  %2146 = vmatmul.mubr.f32.gmra.mxu0 %v2010
  %v2147 = vpop.f32.mrf.mxu0
  %v2148 = vadd.f32 0.0, %v2147
  %v2149 = vpop.f32.mrf.mxu0
  %v2150 = vadd.f32 0.0, %v2149
  %2151 = vmatprep.mubr.f32.mxu0 0.0
  %2152 = vmatmul.mubr.f32.gmra.mxu0 %v2013
  %v2153 = vpop.f32.mrf.mxu0
  %v2154 = vadd.f32 0.0, %v2153
  %v2155 = vpop.f32.mrf.mxu0
  %v2156 = vadd.f32 0.0, %v2155
  %2157 = vmatprep.mubr.f32.mxu0 0.0
  %2158 = vmatmul.mubr.f32.gmra.mxu0 %v2016
  %v2159 = vpop.f32.mrf.mxu0
  %v2160 = vadd.f32 0.0, %v2159
  %v2161 = vpop.f32.mrf.mxu0
  %v2162 = vadd.f32 0.0, %v2161
  %2163 = vmatprep.mubr.f32.mxu0 0.0
  %2164 = vmatmul.mubr.f32.gmra.mxu0 %v2019
  %v2165 = vpop.f32.mrf.mxu0
  %v2166 = vadd.f32 0.0, %v2165
  %v2167 = vpop.f32.mrf.mxu0
  %v2168 = vadd.f32 0.0, %v2167
  %2169 = vmatprep.mubr.f32.mxu0 0.0
  %2170 = vmatmul.mubr.f32.gmra.mxu0 %v2022
  %v2171 = vpop.f32.mrf.mxu0
  %v2172 = vadd.f32 0.0, %v2171
  %v2173 = vpop.f32.mrf.mxu0
  %v2174 = vadd.f32 0.0, %v2173
  %2175 = vmatprep.mubr.f32.mxu0 0.0
  %2176 = vmatmul.mubr.f32.gmra.mxu0 %v2025
  %v2177 = vpop.f32.mrf.mxu0
  %v2178 = vadd.f32 0.0, %v2177
  %v2179 = vpop.f32.mrf.mxu0
  %v2180 = vadd.f32 0.0, %v2179
  %2181 = vmatprep.mubr.f32.mxu0 0.0
  %2182 = vmatmul.mubr.f32.gmra.mxu0 %v2028
  %v2183 = vpop.f32.mrf.mxu0
  %v2184 = vadd.f32 0.0, %v2183
  %v2185 = vpop.f32.mrf.mxu0
  %v2186 = vadd.f32 0.0, %v2185
  %2187 = vmatprep.mubr.f32.mxu0 0.0
  %2188 = vmatmul.mubr.f32.gmra.mxu0 %v2031
  %v2189 = vpop.f32.mrf.mxu0
  %v2190 = vadd.f32 0.0, %v2189
  %v2191 = vpop.f32.mrf.mxu0
  %v2192 = vadd.f32 0.0, %v2191
  %2193 = vmatprep.mubr.f32.mxu0 0.0
  %2194 = vmatmul.mubr.f32.gmra.mxu0 %v2034
  %v2195 = vpop.f32.mrf.mxu0
  %v2196 = vadd.f32 0.0, %v2195
  %v2197 = vpop.f32.mrf.mxu0
  %v2198 = vadd.f32 0.0, %v2197
  %2199 = vmatprep.mubr.f32.mxu0 0.0
  %2200 = vmatmul.mubr.f32.gmra.mxu0 %v2037
  %v2201 = vpop.f32.mrf.mxu0
  %v2202 = vadd.f32 0.0, %v2201
  %v2203 = vpop.f32.mrf.mxu0
  %v2204 = vadd.f32 0.0, %v2203
  %2205 = vdwg.mxu0
  %2206 = vst [vmem:[%s6] sm:$0xff] %v2112
  %2207 = vst [vmem:[%s6 + $0x8] sm:$0xff] %v2114
  %2208 = vst [vmem:[%s6 + $0x10] sm:$0xff] %v2118
  %2209 = vst [vmem:[%s6 + $0x18] sm:$0xff] %v2120
  %2210 = vst [vmem:[%s6 + $0x20] sm:$0xff] %v2124
  %2211 = vst [vmem:[%s6 + $0x28] sm:$0xff] %v2126
  %2212 = vst [vmem:[%s6 + $0x30] sm:$0xff] %v2130
  %2213 = vst [vmem:[%s6 + $0x38] sm:$0xff] %v2132
  %2214 = vst [vmem:[%s6 + $0x40] sm:$0xff] %v2136
  %2215 = vst [vmem:[%s6 + $0x48] sm:$0xff] %v2138
  %2216 = vst [vmem:[%s6 + $0x50] sm:$0xff] %v2142
  %2217 = vst [vmem:[%s6 + $0x58] sm:$0xff] %v2144
  %2218 = vst [vmem:[%s6 + $0x60] sm:$0xff] %v2148
  %2219 = vst [vmem:[%s6 + $0x68] sm:$0xff] %v2150
  %2220 = vst [vmem:[%s6 + $0x70] sm:$0xff] %v2154
  %2221 = vst [vmem:[%s6 + $0x78] sm:$0xff] %v2156
  %2222 = vst [vmem:[%s6 + $0x80] sm:$0xff] %v2160
  %2223 = vst [vmem:[%s6 + $0x88] sm:$0xff] %v2162
  %2224 = vst [vmem:[%s6 + $0x90] sm:$0xff] %v2166
  %2225 = vst [vmem:[%s6 + $0x98] sm:$0xff] %v2168
  %2226 = vst [vmem:[%s6 + $0xa0] sm:$0xff] %v2172
  %2227 = vst [vmem:[%s6 + $0xa8] sm:$0xff] %v2174
  %2228 = vst [vmem:[%s6 + $0xb0] sm:$0xff] %v2178
  %2229 = vst [vmem:[%s6 + $0xb8] sm:$0xff] %v2180
  %2230 = vst [vmem:[%s6 + $0xc0] sm:$0xff] %v2184
  %2231 = vst [vmem:[%s6 + $0xc8] sm:$0xff] %v2186
  %2232 = vst [vmem:[%s6 + $0xd0] sm:$0xff] %v2190
  %2233 = vst [vmem:[%s6 + $0xd8] sm:$0xff] %v2192
  %2234 = vst [vmem:[%s6 + $0xe0] sm:$0xff] %v2196
  %2235 = vst [vmem:[%s6 + $0xe8] sm:$0xff] %v2198
  %2236 = vst [vmem:[%s6 + $0xf0] sm:$0xff] %v2202
  %2237 = vst [vmem:[%s6 + $0xf8] sm:$0xff] %v2204
  %v2238 = vmul.f32 %v1822, %v1927
  %v2239 = vmul.f32 %v1823, %v1931
  %v2240 = vmul.f32 %v1824, %v1927
  %v2241 = vmul.f32 %v1825, %v1931
  %v2242 = vadd.f32 %v2238, %v1963
  %v2243 = vadd.f32 %v2239, %v1967
  %v2244 = vadd.f32 %v2240, %v1963
  %v2245 = vadd.f32 %v2241, %v1967
  %v2246 = vld [vmem:[%s5] sm:$0xff]
  %v2247 = vld [vmem:[%s5 + $0x8] sm:$0xff]
  %v2248 = vld [vmem:[%s5 + $0x10] sm:$0xff]
  %v2249 = vld [vmem:[%s5 + $0x18] sm:$0xff]
  %v2250 = vld [vmem:[%s5 + $0x20] sm:$0xff]
  %v2251 = vld [vmem:[%s5 + $0x28] sm:$0xff]
  %v2252 = vld [vmem:[%s5 + $0x30] sm:$0xff]
  %v2253 = vld [vmem:[%s5 + $0x38] sm:$0xff]
  %v2254 = vld [vmem:[%s5 + $0x40] sm:$0xff]
  %v2255 = vld [vmem:[%s5 + $0x48] sm:$0xff]
  %v2256 = vld [vmem:[%s5 + $0x50] sm:$0xff]
  %v2257 = vld [vmem:[%s5 + $0x58] sm:$0xff]
  %v2258 = vld [vmem:[%s5 + $0x60] sm:$0xff]
  %v2259 = vld [vmem:[%s5 + $0x68] sm:$0xff]
  %v2260 = vld [vmem:[%s5 + $0x70] sm:$0xff]
  %v2261 = vld [vmem:[%s5 + $0x78] sm:$0xff]
  %v2263 = vsel %vm1990, %v2246, 0
  %v2266 = vsel %vm1990, %v2247, 0
  %v2269 = vsel %vm1990, %v2248, 0
  %v2272 = vsel %vm1990, %v2249, 0
  %v2275 = vsel %vm1990, %v2250, 0
  %v2278 = vsel %vm1990, %v2251, 0
  %v2281 = vsel %vm1990, %v2252, 0
  %v2284 = vsel %vm1990, %v2253, 0
  %v2287 = vsel %vm1990, %v2254, 0
  %v2290 = vsel %vm1990, %v2255, 0
  %v2293 = vsel %vm1990, %v2256, 0
  %v2296 = vsel %vm1990, %v2257, 0
  %v2299 = vsel %vm1990, %v2258, 0
  %v2302 = vsel %vm1990, %v2259, 0
  %v2305 = vsel %vm1990, %v2260, 0
  %v2308 = vsel %vm1990, %v2261, 0
  %v2311 = vsel %vm1358, %v2244, 0
  %v2314 = vsel %vm1358, %v2245, 0
  %2316 = vmatprep.subr.mxu0 0.0
  %2317 = vmatpush1.msra.mxu0 0.0
  %2318 = vmatprep.subr.mxu0 0.0
  %2319 = vmatpush1.msra.mxu0 0.0
  %2320 = vmatprep.subr.mxu0 0.0
  %2321 = vmatpush1.msra.mxu0 0.0
  %2322 = vmatprep.subr.mxu0 0.0
  %2323 = vmatpush1.msra.mxu0 0.0
  %2324 = vmatprep.subr.mxu0 0.0
  %2325 = vmatpush1.msra.mxu0 0.0
  %2326 = vmatprep.subr.mxu0 0.0
  %2327 = vmatpush1.msra.mxu0 0.0
  %2328 = vmatprep.subr.mxu0 0.0
  %2329 = vmatpush1.msra.mxu0 0.0
  %2330 = vmatprep.subr.mxu0 0.0
  %2331 = vmatpush1.msra.mxu0 0.0
  %2332 = vmatprep.subr.mxu0 0.0
  %2333 = vmatpush1.msra.mxu0 0.0
  %2334 = vmatprep.subr.mxu0 0.0
  %2335 = vmatpush1.msra.mxu0 0.0
  %2336 = vmatprep.subr.mxu0 0.0
  %2337 = vmatpush1.msra.mxu0 0.0
  %2338 = vmatprep.subr.mxu0 0.0
  %2339 = vmatpush1.msra.mxu0 0.0
  %2340 = vmatprep.subr.mxu0 0.0
  %2341 = vmatpush1.msra.mxu0 0.0
  %2342 = vmatprep.subr.mxu0 0.0
  %2343 = vmatpush1.msra.mxu0 0.0
  %2344 = vmatprep.subr.mxu0 %v2314
  %2345 = vmatpush1.msra.mxu0 %v2311
  %2346 = vmatprep.subr.mxu0 %v2243
  %2347 = vmatpush1.msra.mxu0 %v2242
  %2348 = vmatprep.subr.mxu0 0.0
  %2349 = vmatpush2.msra.mxu0 0.0
  %2350 = vmatprep.subr.mxu0 0.0
  %2351 = vmatpush2.msra.mxu0 0.0
  %2352 = vmatprep.subr.mxu0 0.0
  %2353 = vmatpush2.msra.mxu0 0.0
  %2354 = vmatprep.subr.mxu0 0.0
  %2355 = vmatpush2.msra.mxu0 0.0
  %2356 = vmatprep.subr.mxu0 0.0
  %2357 = vmatpush2.msra.mxu0 0.0
  %2358 = vmatprep.subr.mxu0 0.0
  %2359 = vmatpush2.msra.mxu0 0.0
  %2360 = vmatprep.subr.mxu0 0.0
  %2361 = vmatpush2.msra.mxu0 0.0
  %2362 = vmatprep.subr.mxu0 0.0
  %2363 = vmatpush2.msra.mxu0 0.0
  %2364 = vmatprep.subr.mxu0 0.0
  %2365 = vmatpush2.msra.mxu0 0.0
  %2366 = vmatprep.subr.mxu0 0.0
  %2367 = vmatpush2.msra.mxu0 0.0
  %2368 = vmatprep.subr.mxu0 0.0
  %2369 = vmatpush2.msra.mxu0 0.0
  %2370 = vmatprep.subr.mxu0 0.0
  %2371 = vmatpush2.msra.mxu0 0.0
  %2372 = vmatprep.subr.mxu0 0.0
  %2373 = vmatpush2.msra.mxu0 0.0
  %2374 = vmatprep.subr.mxu0 0.0
  %2375 = vmatpush2.msra.mxu0 0.0
  %2376 = vmatprep.subr.mxu0 0.0
  %2377 = vmatpush2.msra.mxu0 0.0
  %2378 = vmatprep.subr.mxu0 0.0
  %2379 = vmatpush2.msra.mxu0 0.0
  %2380 = vmatprep.mubr.f32.mxu0 0.0
  %2381 = vmatmul.mubr.f32.gmra.mxu0 %v2263
  %v2382 = vpop.f32.mrf.mxu0
  %v2383 = vadd.f32 0.0, %v2382
  %v2384 = vpop.f32.mrf.mxu0
  %v2385 = vadd.f32 0.0, %v2384
  %2386 = vmatprep.mubr.f32.mxu0 0.0
  %2387 = vmatmul.mubr.f32.gmra.mxu0 %v2266
  %v2388 = vpop.f32.mrf.mxu0
  %v2389 = vadd.f32 0.0, %v2388
  %v2390 = vpop.f32.mrf.mxu0
  %v2391 = vadd.f32 0.0, %v2390
  %2392 = vmatprep.mubr.f32.mxu0 0.0
  %2393 = vmatmul.mubr.f32.gmra.mxu0 %v2269
  %v2394 = vpop.f32.mrf.mxu0
  %v2395 = vadd.f32 0.0, %v2394
  %v2396 = vpop.f32.mrf.mxu0
  %v2397 = vadd.f32 0.0, %v2396
  %2398 = vmatprep.mubr.f32.mxu0 0.0
  %2399 = vmatmul.mubr.f32.gmra.mxu0 %v2272
  %v2400 = vpop.f32.mrf.mxu0
  %v2401 = vadd.f32 0.0, %v2400
  %v2402 = vpop.f32.mrf.mxu0
  %v2403 = vadd.f32 0.0, %v2402
  %2404 = vmatprep.mubr.f32.mxu0 0.0
  %2405 = vmatmul.mubr.f32.gmra.mxu0 %v2275
  %v2406 = vpop.f32.mrf.mxu0
  %v2407 = vadd.f32 0.0, %v2406
  %v2408 = vpop.f32.mrf.mxu0
  %v2409 = vadd.f32 0.0, %v2408
  %2410 = vmatprep.mubr.f32.mxu0 0.0
  %2411 = vmatmul.mubr.f32.gmra.mxu0 %v2278
  %v2412 = vpop.f32.mrf.mxu0
  %v2413 = vadd.f32 0.0, %v2412
  %v2414 = vpop.f32.mrf.mxu0
  %v2415 = vadd.f32 0.0, %v2414
  %2416 = vmatprep.mubr.f32.mxu0 0.0
  %2417 = vmatmul.mubr.f32.gmra.mxu0 %v2281
  %v2418 = vpop.f32.mrf.mxu0
  %v2419 = vadd.f32 0.0, %v2418
  %v2420 = vpop.f32.mrf.mxu0
  %v2421 = vadd.f32 0.0, %v2420
  %2422 = vmatprep.mubr.f32.mxu0 0.0
  %2423 = vmatmul.mubr.f32.gmra.mxu0 %v2284
  %v2424 = vpop.f32.mrf.mxu0
  %v2425 = vadd.f32 0.0, %v2424
  %v2426 = vpop.f32.mrf.mxu0
  %v2427 = vadd.f32 0.0, %v2426
  %2428 = vmatprep.mubr.f32.mxu0 0.0
  %2429 = vmatmul.mubr.f32.gmra.mxu0 %v2287
  %v2430 = vpop.f32.mrf.mxu0
  %v2431 = vadd.f32 0.0, %v2430
  %v2432 = vpop.f32.mrf.mxu0
  %v2433 = vadd.f32 0.0, %v2432
  %2434 = vmatprep.mubr.f32.mxu0 0.0
  %2435 = vmatmul.mubr.f32.gmra.mxu0 %v2290
  %v2436 = vpop.f32.mrf.mxu0
  %v2437 = vadd.f32 0.0, %v2436
  %v2438 = vpop.f32.mrf.mxu0
  %v2439 = vadd.f32 0.0, %v2438
  %2440 = vmatprep.mubr.f32.mxu0 0.0
  %2441 = vmatmul.mubr.f32.gmra.mxu0 %v2293
  %v2442 = vpop.f32.mrf.mxu0
  %v2443 = vadd.f32 0.0, %v2442
  %v2444 = vpop.f32.mrf.mxu0
  %v2445 = vadd.f32 0.0, %v2444
  %2446 = vmatprep.mubr.f32.mxu0 0.0
  %2447 = vmatmul.mubr.f32.gmra.mxu0 %v2296
  %v2448 = vpop.f32.mrf.mxu0
  %v2449 = vadd.f32 0.0, %v2448
  %v2450 = vpop.f32.mrf.mxu0
  %v2451 = vadd.f32 0.0, %v2450
  %2452 = vmatprep.mubr.f32.mxu0 0.0
  %2453 = vmatmul.mubr.f32.gmra.mxu0 %v2299
  %v2454 = vpop.f32.mrf.mxu0
  %v2455 = vadd.f32 0.0, %v2454
  %v2456 = vpop.f32.mrf.mxu0
  %v2457 = vadd.f32 0.0, %v2456
  %2458 = vmatprep.mubr.f32.mxu0 0.0
  %2459 = vmatmul.mubr.f32.gmra.mxu0 %v2302
  %v2460 = vpop.f32.mrf.mxu0
  %v2461 = vadd.f32 0.0, %v2460
  %v2462 = vpop.f32.mrf.mxu0
  %v2463 = vadd.f32 0.0, %v2462
  %2464 = vmatprep.mubr.f32.mxu0 0.0
  %2465 = vmatmul.mubr.f32.gmra.mxu0 %v2305
  %v2466 = vpop.f32.mrf.mxu0
  %v2467 = vadd.f32 0.0, %v2466
  %v2468 = vpop.f32.mrf.mxu0
  %v2469 = vadd.f32 0.0, %v2468
  %2470 = vmatprep.mubr.f32.mxu0 0.0
  %2471 = vmatmul.mubr.f32.gmra.mxu0 %v2308
  %v2472 = vpop.f32.mrf.mxu0
  %v2473 = vadd.f32 0.0, %v2472
  %v2474 = vpop.f32.mrf.mxu0
  %v2475 = vadd.f32 0.0, %v2474
  %2476 = vdwg.mxu0
  %s2477 = scalar_lea.vmem %s6, 256
  %2478 = vst [vmem:[%s2477] sm:$0xff] %v2383
  %2479 = vst [vmem:[%s2477 + $0x8] sm:$0xff] %v2385
  %2480 = vst [vmem:[%s2477 + $0x10] sm:$0xff] %v2389
  %2481 = vst [vmem:[%s2477 + $0x18] sm:$0xff] %v2391
  %2482 = vst [vmem:[%s2477 + $0x20] sm:$0xff] %v2395
  %2483 = vst [vmem:[%s2477 + $0x28] sm:$0xff] %v2397
  %2484 = vst [vmem:[%s2477 + $0x30] sm:$0xff] %v2401
  %2485 = vst [vmem:[%s2477 + $0x38] sm:$0xff] %v2403
  %2486 = vst [vmem:[%s2477 + $0x40] sm:$0xff] %v2407
  %2487 = vst [vmem:[%s2477 + $0x48] sm:$0xff] %v2409
  %2488 = vst [vmem:[%s2477 + $0x50] sm:$0xff] %v2413
  %2489 = vst [vmem:[%s2477 + $0x58] sm:$0xff] %v2415
  %2490 = vst [vmem:[%s2477 + $0x60] sm:$0xff] %v2419
  %2491 = vst [vmem:[%s2477 + $0x68] sm:$0xff] %v2421
  %2492 = vst [vmem:[%s2477 + $0x70] sm:$0xff] %v2425
  %2493 = vst [vmem:[%s2477 + $0x78] sm:$0xff] %v2427
  %2494 = vst [vmem:[%s2477 + $0x80] sm:$0xff] %v2431
  %2495 = vst [vmem:[%s2477 + $0x88] sm:$0xff] %v2433
  %2496 = vst [vmem:[%s2477 + $0x90] sm:$0xff] %v2437
  %2497 = vst [vmem:[%s2477 + $0x98] sm:$0xff] %v2439
  %2498 = vst [vmem:[%s2477 + $0xa0] sm:$0xff] %v2443
  %2499 = vst [vmem:[%s2477 + $0xa8] sm:$0xff] %v2445
  %2500 = vst [vmem:[%s2477 + $0xb0] sm:$0xff] %v2449
  %2501 = vst [vmem:[%s2477 + $0xb8] sm:$0xff] %v2451
  %2502 = vst [vmem:[%s2477 + $0xc0] sm:$0xff] %v2455
  %2503 = vst [vmem:[%s2477 + $0xc8] sm:$0xff] %v2457
  %2504 = vst [vmem:[%s2477 + $0xd0] sm:$0xff] %v2461
  %2505 = vst [vmem:[%s2477 + $0xd8] sm:$0xff] %v2463
  %2506 = vst [vmem:[%s2477 + $0xe0] sm:$0xff] %v2467
  %2507 = vst [vmem:[%s2477 + $0xe8] sm:$0xff] %v2469
  %2508 = vst [vmem:[%s2477 + $0xf0] sm:$0xff] %v2473
  %2509 = vst [vmem:[%s2477 + $0xf8] sm:$0xff] %v2475
  // Predicated region
  $region26: #{cnn_feature_extractor.5} parent=0 // pred_check
    _
  $region27: #{cnn_feature_extractor.5} parent=0 // pred_check_branch
    %2511 = sbr.rel (0) target = $region29
  $region28: #{cnn_feature_extractor.5} parent=0 // pred_region
    _
  $region29: #{cnn_feature_extractor.5} parent=0 // pred_fallthru
    _
  // Predicated region
  $region30: #{cnn_feature_extractor.5} parent=0 // pred_check
    _
  $region31: #{cnn_feature_extractor.5} parent=0 // pred_check_branch
    %2513 = sbr.rel (0) target = $region33
  $region32: #{cnn_feature_extractor.5} parent=0 // pred_region
    _
  $region33: #{cnn_feature_extractor.5} parent=0 // pred_fallthru
    _

// kernel: cnn_feature_extractor.3
$region0: #{cnn_feature_extractor.3}
  #allocation0 [shape = 'u32[]', space=smem, size = 0x4, offset = 0x4, fixed_abs, tag = 'smem constant byte address 0x4 - core index']
  #allocation1 [shape = 'u32[144,128]{1,0:T(1,128)}', space=vmem, size = 0x12000, scoped, tag = 'internal scratch']
  %s0 = inlined_call_operand.vmem [shape: f32[2,98,128], index: 0, kind: input, shape index: {}]
  %s1 = inlined_call_operand.vmem [shape: bf16[9,128,128], index: 1, kind: input, shape index: {}]
  %s2 = inlined_call_operand.vmem [shape: f32[1,128], index: 2, kind: input, shape index: {}]
  %s3 = inlined_call_operand.vmem [shape: f32[1,128], index: 3, kind: input, shape index: {}]
  %s4 = inlined_call_operand.vmem [shape: f32[1,128], index: 4, kind: input, shape index: {}]
  %s5 = inlined_call_operand.vmem [shape: f32[44,87], index: 5, kind: input, shape index: {}]
  %s6 = inlined_call_operand.vmem [shape: f32[2,46,128], index: 6, kind: output, shape index: {}]
  %s7 = sld [smem:[#allocation0]]
  $region34: #{cnn_feature_extractor.3} parent=0
    _
  %s9 = ssub.s32 1, %s7
  %s10 = scalar_select 0, %s9, %s7
  // Predicated region
  $region2: #{cnn_feature_extractor.3} parent=0 // pred_check
    _
  $region3: #{cnn_feature_extractor.3} parent=0 // pred_check_branch
    %12 = sbr.rel (0) target = $region5
  $region4: #{cnn_feature_extractor.3} parent=0 // pred_region
    _
  $region5: #{cnn_feature_extractor.3} parent=0 // pred_fallthru
    _
  // Predicated region
  $region6: #{cnn_feature_extractor.3} parent=0 // pred_check
    _
  $region7: #{cnn_feature_extractor.3} parent=0 // pred_check_branch
    %14 = sbr.rel (0) target = $region9
  $region8: #{cnn_feature_extractor.3} parent=0 // pred_region
    _
  $region9: #{cnn_feature_extractor.3} parent=0 // pred_fallthru
    _
  // Predicated region
  $region10: #{cnn_feature_extractor.3} parent=0 // pred_check
    _
  $region11: #{cnn_feature_extractor.3} parent=0 // pred_check_branch
    %16 = sbr.rel (0) target = $region13
  $region12: #{cnn_feature_extractor.3} parent=0 // pred_region
    _
  $region13: #{cnn_feature_extractor.3} parent=0 // pred_fallthru
    _
  // Predicated region
  $region14: #{cnn_feature_extractor.3} parent=0 // pred_check
    _
  $region15: #{cnn_feature_extractor.3} parent=0 // pred_check_branch
    %18 = sbr.rel (0) target = $region17
  $region16: #{cnn_feature_extractor.3} parent=0 // pred_region
    _
  $region17: #{cnn_feature_extractor.3} parent=0 // pred_fallthru
    _
  // Predicated region
  $region18: #{cnn_feature_extractor.3} parent=0 // pred_check
    _
  $region19: #{cnn_feature_extractor.3} parent=0 // pred_check_branch
    %20 = sbr.rel (0) target = $region21
  $region20: #{cnn_feature_extractor.3} parent=0 // pred_region
    _
  $region21: #{cnn_feature_extractor.3} parent=0 // pred_fallthru
    _
  // Predicated region
  $region22: #{cnn_feature_extractor.3} parent=0 // pred_check
    _
  $region23: #{cnn_feature_extractor.3} parent=0 // pred_check_branch
    %22 = sbr.rel (0) target = $region25
  $region24: #{cnn_feature_extractor.3} parent=0 // pred_region
    _
  $region25: #{cnn_feature_extractor.3} parent=0 // pred_fallthru
    _
  %24 = vst [vmem:[%s6] sm:$0xff] 0.0
  %25 = vst [vmem:[%s6 + $0x8] sm:$0xff] 0.0
  %26 = vst [vmem:[%s6 + $0x10] sm:$0xff] 0.0
  %27 = vst [vmem:[%s6 + $0x18] sm:$0xff] 0.0
  %28 = vst [vmem:[%s6 + $0x20] sm:$0xff] 0.0
  %29 = vst [vmem:[%s6 + $0x28] sm:$0x3f] 0.0
  %30 = vst [vmem:[%s6 + $0x30] sm:$0xff] 0.0
  %31 = vst [vmem:[%s6 + $0x38] sm:$0xff] 0.0
  %32 = vst [vmem:[%s6 + $0x40] sm:$0xff] 0.0
  %33 = vst [vmem:[%s6 + $0x48] sm:$0xff] 0.0
  %34 = vst [vmem:[%s6 + $0x50] sm:$0xff] 0.0
  %35 = vst [vmem:[%s6 + $0x58] sm:$0x3f] 0.0
  %v36 = vld [vmem:[%s0] sm:$0xff]
  %v37 = vld [vmem:[%s0 + $0x8] sm:$0xff]
  %v38 = vld [vmem:[%s0 + $0x10] sm:$0xff]
  %v39 = vld [vmem:[%s0 + $0x18] sm:$0xff]
  %v40 = vld [vmem:[%s0 + $0x20] sm:$0xff]
  %v41 = vld [vmem:[%s0 + $0x28] sm:$0xff]
  %v42 = vld [vmem:[%s0 + $0x30] sm:$0xff]
  %v43 = vld [vmem:[%s0 + $0x38] sm:$0xff]
  %v44 = vld [vmem:[%s0 + $0x40] sm:$0xff]
  %v45 = vld [vmem:[%s0 + $0x48] sm:$0xff]
  %v46 = vld [vmem:[%s0 + $0x50] sm:$0xff]
  %v47 = vld [vmem:[%s0 + $0x58] sm:$0x3]
  %v48 = vpack.c.bf16 %v37, %v36
  %v49 = vpack.c.bf16 %v39, %v38
  %v50 = vpack.c.bf16 %v41, %v40
  %v51 = vpack.c.bf16 %v43, %v42
  %v52 = vpack.c.bf16 %v45, %v44
  %v53 = vpack.c.bf16 %v47, %v46
  %v54 = vld [vmem:[%s1] sm:$0xf]
  %v55 = vld [vmem:[%s1 + $0x4] sm:$0xf]
  %v56 = vld [vmem:[%s1 + $0x8] sm:$0xf]
  %v57 = vld [vmem:[%s1 + $0xc] sm:$0xf]
  %v58 = vld [vmem:[%s1 + $0x10] sm:$0xf]
  %v59 = vld [vmem:[%s1 + $0x14] sm:$0xf]
  %v60 = vld [vmem:[%s1 + $0x18] sm:$0xf]
  %v61 = vld [vmem:[%s1 + $0x1c] sm:$0xf]
  %v62 = vld [vmem:[%s1 + $0x20] sm:$0xf]
  %v63 = vld [vmem:[%s1 + $0x24] sm:$0xf]
  %v64 = vld [vmem:[%s1 + $0x28] sm:$0xf]
  %v65 = vld [vmem:[%s1 + $0x2c] sm:$0xf]
  %v66 = vld [vmem:[%s1 + $0x30] sm:$0xf]
  %v67 = vld [vmem:[%s1 + $0x34] sm:$0xf]
  %v68 = vld [vmem:[%s1 + $0x38] sm:$0xf]
  %v69 = vld [vmem:[%s1 + $0x3c] sm:$0xf]
  %v70 = vld [vmem:[%s0 + $0x1] sm:$0xff]
  %v71 = vld [vmem:[%s0 + $0x9] sm:$0xff]
  %v72 = vld [vmem:[%s0 + $0x11] sm:$0xff]
  %v73 = vld [vmem:[%s0 + $0x19] sm:$0xff]
  %v74 = vld [vmem:[%s0 + $0x21] sm:$0xff]
  %v75 = vld [vmem:[%s0 + $0x29] sm:$0xff]
  %v76 = vld [vmem:[%s0 + $0x31] sm:$0xff]
  %v77 = vld [vmem:[%s0 + $0x39] sm:$0xff]
  %v78 = vld [vmem:[%s0 + $0x41] sm:$0xff]
  %v79 = vld [vmem:[%s0 + $0x49] sm:$0xff]
  %v80 = vld [vmem:[%s0 + $0x51] sm:$0xff]
  %v81 = vld [vmem:[%s0 + $0x59] sm:$0x3]
  %v82 = vpack.c.bf16 %v71, %v70
  %v83 = vpack.c.bf16 %v73, %v72
  %v84 = vpack.c.bf16 %v75, %v74
  %v85 = vpack.c.bf16 %v77, %v76
  %v86 = vpack.c.bf16 %v79, %v78
  %v87 = vpack.c.bf16 %v81, %v80
  %s88 = scalar_lea.vmem %s1, 64
  %v89 = vld [vmem:[%s88] sm:$0xf]
  %v90 = vld [vmem:[%s88 + $0x4] sm:$0xf]
  %v91 = vld [vmem:[%s88 + $0x8] sm:$0xf]
  %v92 = vld [vmem:[%s88 + $0xc] sm:$0xf]
  %v93 = vld [vmem:[%s88 + $0x10] sm:$0xf]
  %v94 = vld [vmem:[%s88 + $0x14] sm:$0xf]
  %v95 = vld [vmem:[%s88 + $0x18] sm:$0xf]
  %v96 = vld [vmem:[%s88 + $0x1c] sm:$0xf]
  %v97 = vld [vmem:[%s88 + $0x20] sm:$0xf]
  %v98 = vld [vmem:[%s88 + $0x24] sm:$0xf]
  %v99 = vld [vmem:[%s88 + $0x28] sm:$0xf]
  %v100 = vld [vmem:[%s88 + $0x2c] sm:$0xf]
  %v101 = vld [vmem:[%s88 + $0x30] sm:$0xf]
  %v102 = vld [vmem:[%s88 + $0x34] sm:$0xf]
  %v103 = vld [vmem:[%s88 + $0x38] sm:$0xf]
  %v104 = vld [vmem:[%s88 + $0x3c] sm:$0xf]
  %v121 = vunpack.c.l.b16 %v89
  %v122 = vunpack.c.l.b16 %v90
  %v123 = vunpack.c.l.b16 %v91
  %v124 = vunpack.c.l.b16 %v92
  %v125 = vunpack.c.l.b16 %v93
  %v126 = vunpack.c.l.b16 %v94
  %v127 = vunpack.c.l.b16 %v95
  %v128 = vunpack.c.l.b16 %v96
  %v129 = vunpack.c.l.b16 %v97
  %v130 = vunpack.c.l.b16 %v98
  %v131 = vunpack.c.l.b16 %v99
  %v132 = vunpack.c.l.b16 %v100
  %v133 = vunpack.c.l.b16 %v101
  %v134 = vunpack.c.l.b16 %v102
  %v135 = vunpack.c.l.b16 %v103
  %v136 = vunpack.c.l.b16 %v104
  %v137 = vpack.c.b16 %v122, %v121
  %v138 = vpack.c.b16 %v124, %v123
  %v139 = vpack.c.b16 %v126, %v125
  %v140 = vpack.c.b16 %v128, %v127
  %v141 = vpack.c.b16 %v130, %v129
  %v142 = vpack.c.b16 %v132, %v131
  %v143 = vpack.c.b16 %v134, %v133
  %v144 = vpack.c.b16 %v136, %v135
  %153 = vmatprep.subr.bf16.mxu0 0
  %154 = vmatpush1.bf16.msra.mxu0 %v144
  %155 = vmatprep.subr.bf16.mxu0 0
  %156 = vmatpush1.bf16.msra.mxu0 %v143
  %157 = vmatprep.subr.bf16.mxu0 0
  %158 = vmatpush1.bf16.msra.mxu0 %v142
  %159 = vmatprep.subr.bf16.mxu0 0
  %160 = vmatpush1.bf16.msra.mxu0 %v141
  %161 = vmatprep.subr.bf16.mxu0 0
  %162 = vmatpush1.bf16.msra.mxu0 %v140
  %163 = vmatprep.subr.bf16.mxu0 0
  %164 = vmatpush1.bf16.msra.mxu0 %v139
  %165 = vmatprep.subr.bf16.mxu0 0
  %166 = vmatpush1.bf16.msra.mxu0 %v138
  %167 = vmatprep.subr.bf16.mxu0 0
  %168 = vmatpush1.bf16.msra.mxu0 %v137
  %169 = vmatprep.subr.bf16.mxu0 0
  %170 = vmatpush2.bf16.msra.mxu0 0
  %171 = vmatprep.subr.bf16.mxu0 0
  %172 = vmatpush2.bf16.msra.mxu0 0
  %173 = vmatprep.subr.bf16.mxu0 0
  %174 = vmatpush2.bf16.msra.mxu0 0
  %175 = vmatprep.subr.bf16.mxu0 0
  %176 = vmatpush2.bf16.msra.mxu0 0
  %177 = vmatprep.subr.bf16.mxu0 0
  %178 = vmatpush2.bf16.msra.mxu0 0
  %179 = vmatprep.subr.bf16.mxu0 0
  %180 = vmatpush2.bf16.msra.mxu0 0
  %181 = vmatprep.subr.bf16.mxu0 0
  %182 = vmatpush2.bf16.msra.mxu0 0
  %183 = vmatprep.subr.bf16.mxu0 0
  %184 = vmatpush2.bf16.msra.mxu0 0
  %185 = vmatprep.mubr.bf16.mxu0 0
  %186 = vmatmul.mubr.bf16.gmra.mxu0 %v82
  %v187 = vpop.f32.mrf.mxu0
  %v188 = vadd.f32 0.0, %v187
  %v189 = vpop.f32.mrf.mxu0
  %v190 = vpop.f32.mrf.mxu0
  %v191 = vadd.f32 0.0, %v190
  %v192 = vpop.f32.mrf.mxu0
  %193 = vmatprep.mubr.bf16.mxu0 0
  %194 = vmatmul.mubr.bf16.gmra.mxu0 %v83
  %v195 = vpop.f32.mrf.mxu0
  %v196 = vadd.f32 0.0, %v195
  %v197 = vpop.f32.mrf.mxu0
  %v198 = vpop.f32.mrf.mxu0
  %v199 = vadd.f32 0.0, %v198
  %v200 = vpop.f32.mrf.mxu0
  %201 = vmatprep.mubr.bf16.mxu0 0
  %202 = vmatmul.mubr.bf16.gmra.mxu0 %v84
  %v203 = vpop.f32.mrf.mxu0
  %v204 = vadd.f32 0.0, %v203
  %v205 = vpop.f32.mrf.mxu0
  %v206 = vpop.f32.mrf.mxu0
  %v207 = vadd.f32 0.0, %v206
  %v208 = vpop.f32.mrf.mxu0
  %209 = vmatprep.mubr.bf16.mxu0 0
  %210 = vmatmul.mubr.bf16.gmra.mxu0 %v85
  %v211 = vpop.f32.mrf.mxu0
  %v212 = vadd.f32 0.0, %v211
  %v213 = vpop.f32.mrf.mxu0
  %v214 = vpop.f32.mrf.mxu0
  %v215 = vadd.f32 0.0, %v214
  %v216 = vpop.f32.mrf.mxu0
  %217 = vmatprep.mubr.bf16.mxu0 0
  %218 = vmatmul.mubr.bf16.gmra.mxu0 %v86
  %v219 = vpop.f32.mrf.mxu0
  %v220 = vadd.f32 0.0, %v219
  %v221 = vpop.f32.mrf.mxu0
  %v222 = vpop.f32.mrf.mxu0
  %v223 = vadd.f32 0.0, %v222
  %v224 = vpop.f32.mrf.mxu0
  %225 = vmatprep.mubr.bf16.mxu0 0
  %226 = vmatmul.mubr.bf16.gmra.mxu0 %v87
  %v227 = vpop.f32.mrf.mxu0
  %v228 = vadd.f32 0.0, %v227
  %v229 = vpop.f32.mrf.mxu0
  %v230 = vpop.f32.mrf.mxu0
  %v231 = vadd.f32 0.0, %v230
  %v232 = vpop.f32.mrf.mxu0
  %233 = vdwg.mxu0
  %v250 = vunpack.c.l.b16 %v54
  %v251 = vunpack.c.l.b16 %v55
  %v252 = vunpack.c.l.b16 %v56
  %v253 = vunpack.c.l.b16 %v57
  %v254 = vunpack.c.l.b16 %v58
  %v255 = vunpack.c.l.b16 %v59
  %v256 = vunpack.c.l.b16 %v60
  %v257 = vunpack.c.l.b16 %v61
  %v258 = vunpack.c.l.b16 %v62
  %v259 = vunpack.c.l.b16 %v63
  %v260 = vunpack.c.l.b16 %v64
  %v261 = vunpack.c.l.b16 %v65
  %v262 = vunpack.c.l.b16 %v66
  %v263 = vunpack.c.l.b16 %v67
  %v264 = vunpack.c.l.b16 %v68
  %v265 = vunpack.c.l.b16 %v69
  %v266 = vpack.c.b16 %v251, %v250
  %v267 = vpack.c.b16 %v253, %v252
  %v268 = vpack.c.b16 %v255, %v254
  %v269 = vpack.c.b16 %v257, %v256
  %v270 = vpack.c.b16 %v259, %v258
  %v271 = vpack.c.b16 %v261, %v260
  %v272 = vpack.c.b16 %v263, %v262
  %v273 = vpack.c.b16 %v265, %v264
  %282 = vmatprep.subr.bf16.mxu0 0
  %283 = vmatpush1.bf16.msra.mxu0 %v273
  %284 = vmatprep.subr.bf16.mxu0 0
  %285 = vmatpush1.bf16.msra.mxu0 %v272
  %286 = vmatprep.subr.bf16.mxu0 0
  %287 = vmatpush1.bf16.msra.mxu0 %v271
  %288 = vmatprep.subr.bf16.mxu0 0
  %289 = vmatpush1.bf16.msra.mxu0 %v270
  %290 = vmatprep.subr.bf16.mxu0 0
  %291 = vmatpush1.bf16.msra.mxu0 %v269
  %292 = vmatprep.subr.bf16.mxu0 0
  %293 = vmatpush1.bf16.msra.mxu0 %v268
  %294 = vmatprep.subr.bf16.mxu0 0
  %295 = vmatpush1.bf16.msra.mxu0 %v267
  %296 = vmatprep.subr.bf16.mxu0 0
  %297 = vmatpush1.bf16.msra.mxu0 %v266
  %298 = vmatprep.subr.bf16.mxu0 0
  %299 = vmatpush2.bf16.msra.mxu0 0
  %300 = vmatprep.subr.bf16.mxu0 0
  %301 = vmatpush2.bf16.msra.mxu0 0
  %302 = vmatprep.subr.bf16.mxu0 0
  %303 = vmatpush2.bf16.msra.mxu0 0
  %304 = vmatprep.subr.bf16.mxu0 0
  %305 = vmatpush2.bf16.msra.mxu0 0
  %306 = vmatprep.subr.bf16.mxu0 0
  %307 = vmatpush2.bf16.msra.mxu0 0
  %308 = vmatprep.subr.bf16.mxu0 0
  %309 = vmatpush2.bf16.msra.mxu0 0
  %310 = vmatprep.subr.bf16.mxu0 0
  %311 = vmatpush2.bf16.msra.mxu0 0
  %312 = vmatprep.subr.bf16.mxu0 0
  %313 = vmatpush2.bf16.msra.mxu0 0
  %314 = vmatprep.mubr.bf16.mxu0 0
  %315 = vmatmul.mubr.bf16.gmra.mxu0 %v48
  %v316 = vpop.f32.mrf.mxu0
  %v317 = vadd.f32 %v188, %v316
  %v318 = vpop.f32.mrf.mxu0
  %v319 = vpop.f32.mrf.mxu0
  %v320 = vadd.f32 %v191, %v319
  %v321 = vpop.f32.mrf.mxu0
  %322 = vmatprep.mubr.bf16.mxu0 0
  %323 = vmatmul.mubr.bf16.gmra.mxu0 %v49
  %v324 = vpop.f32.mrf.mxu0
  %v325 = vadd.f32 %v196, %v324
  %v326 = vpop.f32.mrf.mxu0
  %v327 = vpop.f32.mrf.mxu0
  %v328 = vadd.f32 %v199, %v327
  %v329 = vpop.f32.mrf.mxu0
  %330 = vmatprep.mubr.bf16.mxu0 0
  %331 = vmatmul.mubr.bf16.gmra.mxu0 %v50
  %v332 = vpop.f32.mrf.mxu0
  %v333 = vadd.f32 %v204, %v332
  %v334 = vpop.f32.mrf.mxu0
  %v335 = vpop.f32.mrf.mxu0
  %v336 = vadd.f32 %v207, %v335
  %v337 = vpop.f32.mrf.mxu0
  %338 = vmatprep.mubr.bf16.mxu0 0
  %339 = vmatmul.mubr.bf16.gmra.mxu0 %v51
  %v340 = vpop.f32.mrf.mxu0
  %v341 = vadd.f32 %v212, %v340
  %v342 = vpop.f32.mrf.mxu0
  %v343 = vpop.f32.mrf.mxu0
  %v344 = vadd.f32 %v215, %v343
  %v345 = vpop.f32.mrf.mxu0
  %346 = vmatprep.mubr.bf16.mxu0 0
  %347 = vmatmul.mubr.bf16.gmra.mxu0 %v52
  %v348 = vpop.f32.mrf.mxu0
  %v349 = vadd.f32 %v220, %v348
  %v350 = vpop.f32.mrf.mxu0
  %v351 = vpop.f32.mrf.mxu0
  %v352 = vadd.f32 %v223, %v351
  %v353 = vpop.f32.mrf.mxu0
  %354 = vmatprep.mubr.bf16.mxu0 0
  %355 = vmatmul.mubr.bf16.gmra.mxu0 %v53
  %v356 = vpop.f32.mrf.mxu0
  %v357 = vadd.f32 %v228, %v356
  %v358 = vpop.f32.mrf.mxu0
  %v359 = vpop.f32.mrf.mxu0
  %v360 = vadd.f32 %v231, %v359
  %v361 = vpop.f32.mrf.mxu0
  %362 = vdwg.mxu0
  %v363 = vld [vmem:[%s0 + $0x2] sm:$0xff]
  %v364 = vld [vmem:[%s0 + $0xa] sm:$0xff]
  %v365 = vld [vmem:[%s0 + $0x12] sm:$0xff]
  %v366 = vld [vmem:[%s0 + $0x1a] sm:$0xff]
  %v367 = vld [vmem:[%s0 + $0x22] sm:$0xff]
  %v368 = vld [vmem:[%s0 + $0x2a] sm:$0xff]
  %v369 = vld [vmem:[%s0 + $0x32] sm:$0xff]
  %v370 = vld [vmem:[%s0 + $0x3a] sm:$0xff]
  %v371 = vld [vmem:[%s0 + $0x42] sm:$0xff]
  %v372 = vld [vmem:[%s0 + $0x4a] sm:$0xff]
  %v373 = vld [vmem:[%s0 + $0x52] sm:$0xff]
  %v374 = vld [vmem:[%s0 + $0x5a] sm:$0x3]
  %v375 = vpack.c.bf16 %v364, %v363
  %v376 = vpack.c.bf16 %v366, %v365
  %v377 = vpack.c.bf16 %v368, %v367
  %v378 = vpack.c.bf16 %v370, %v369
  %v379 = vpack.c.bf16 %v372, %v371
  %v380 = vpack.c.bf16 %v374, %v373
  %s381 = scalar_lea.vmem %s1, 128
  %v382 = vld [vmem:[%s381] sm:$0xf]
  %v383 = vld [vmem:[%s381 + $0x4] sm:$0xf]
  %v384 = vld [vmem:[%s381 + $0x8] sm:$0xf]
  %v385 = vld [vmem:[%s381 + $0xc] sm:$0xf]
  %v386 = vld [vmem:[%s381 + $0x10] sm:$0xf]
  %v387 = vld [vmem:[%s381 + $0x14] sm:$0xf]
  %v388 = vld [vmem:[%s381 + $0x18] sm:$0xf]
  %v389 = vld [vmem:[%s381 + $0x1c] sm:$0xf]
  %v390 = vld [vmem:[%s381 + $0x20] sm:$0xf]
  %v391 = vld [vmem:[%s381 + $0x24] sm:$0xf]
  %v392 = vld [vmem:[%s381 + $0x28] sm:$0xf]
  %v393 = vld [vmem:[%s381 + $0x2c] sm:$0xf]
  %v394 = vld [vmem:[%s381 + $0x30] sm:$0xf]
  %v395 = vld [vmem:[%s381 + $0x34] sm:$0xf]
  %v396 = vld [vmem:[%s381 + $0x38] sm:$0xf]
  %v397 = vld [vmem:[%s381 + $0x3c] sm:$0xf]
  %v414 = vunpack.c.l.b16 %v382
  %v415 = vunpack.c.l.b16 %v383
  %v416 = vunpack.c.l.b16 %v384
  %v417 = vunpack.c.l.b16 %v385
  %v418 = vunpack.c.l.b16 %v386
  %v419 = vunpack.c.l.b16 %v387
  %v420 = vunpack.c.l.b16 %v388
  %v421 = vunpack.c.l.b16 %v389
  %v422 = vunpack.c.l.b16 %v390
  %v423 = vunpack.c.l.b16 %v391
  %v424 = vunpack.c.l.b16 %v392
  %v425 = vunpack.c.l.b16 %v393
  %v426 = vunpack.c.l.b16 %v394
  %v427 = vunpack.c.l.b16 %v395
  %v428 = vunpack.c.l.b16 %v396
  %v429 = vunpack.c.l.b16 %v397
  %v430 = vpack.c.b16 %v415, %v414
  %v431 = vpack.c.b16 %v417, %v416
  %v432 = vpack.c.b16 %v419, %v418
  %v433 = vpack.c.b16 %v421, %v420
  %v434 = vpack.c.b16 %v423, %v422
  %v435 = vpack.c.b16 %v425, %v424
  %v436 = vpack.c.b16 %v427, %v426
  %v437 = vpack.c.b16 %v429, %v428
  %446 = vmatprep.subr.bf16.mxu0 0
  %447 = vmatpush1.bf16.msra.mxu0 %v437
  %448 = vmatprep.subr.bf16.mxu0 0
  %449 = vmatpush1.bf16.msra.mxu0 %v436
  %450 = vmatprep.subr.bf16.mxu0 0
  %451 = vmatpush1.bf16.msra.mxu0 %v435
  %452 = vmatprep.subr.bf16.mxu0 0
  %453 = vmatpush1.bf16.msra.mxu0 %v434
  %454 = vmatprep.subr.bf16.mxu0 0
  %455 = vmatpush1.bf16.msra.mxu0 %v433
  %456 = vmatprep.subr.bf16.mxu0 0
  %457 = vmatpush1.bf16.msra.mxu0 %v432
  %458 = vmatprep.subr.bf16.mxu0 0
  %459 = vmatpush1.bf16.msra.mxu0 %v431
  %460 = vmatprep.subr.bf16.mxu0 0
  %461 = vmatpush1.bf16.msra.mxu0 %v430
  %462 = vmatprep.subr.bf16.mxu0 0
  %463 = vmatpush2.bf16.msra.mxu0 0
  %464 = vmatprep.subr.bf16.mxu0 0
  %465 = vmatpush2.bf16.msra.mxu0 0
  %466 = vmatprep.subr.bf16.mxu0 0
  %467 = vmatpush2.bf16.msra.mxu0 0
  %468 = vmatprep.subr.bf16.mxu0 0
  %469 = vmatpush2.bf16.msra.mxu0 0
  %470 = vmatprep.subr.bf16.mxu0 0
  %471 = vmatpush2.bf16.msra.mxu0 0
  %472 = vmatprep.subr.bf16.mxu0 0
  %473 = vmatpush2.bf16.msra.mxu0 0
  %474 = vmatprep.subr.bf16.mxu0 0
  %475 = vmatpush2.bf16.msra.mxu0 0
  %476 = vmatprep.subr.bf16.mxu0 0
  %477 = vmatpush2.bf16.msra.mxu0 0
  %478 = vmatprep.mubr.bf16.mxu0 0
  %479 = vmatmul.mubr.bf16.gmra.mxu0 %v375
  %v480 = vpop.f32.mrf.mxu0
  %v481 = vadd.f32 0.0, %v480
  %v482 = vpop.f32.mrf.mxu0
  %v483 = vpop.f32.mrf.mxu0
  %v484 = vadd.f32 0.0, %v483
  %v485 = vpop.f32.mrf.mxu0
  %486 = vmatprep.mubr.bf16.mxu0 0
  %487 = vmatmul.mubr.bf16.gmra.mxu0 %v376
  %v488 = vpop.f32.mrf.mxu0
  %v489 = vadd.f32 0.0, %v488
  %v490 = vpop.f32.mrf.mxu0
  %v491 = vpop.f32.mrf.mxu0
  %v492 = vadd.f32 0.0, %v491
  %v493 = vpop.f32.mrf.mxu0
  %494 = vmatprep.mubr.bf16.mxu0 0
  %495 = vmatmul.mubr.bf16.gmra.mxu0 %v377
  %v496 = vpop.f32.mrf.mxu0
  %v497 = vadd.f32 0.0, %v496
  %v498 = vpop.f32.mrf.mxu0
  %v499 = vpop.f32.mrf.mxu0
  %v500 = vadd.f32 0.0, %v499
  %v501 = vpop.f32.mrf.mxu0
  %502 = vmatprep.mubr.bf16.mxu0 0
  %503 = vmatmul.mubr.bf16.gmra.mxu0 %v378
  %v504 = vpop.f32.mrf.mxu0
  %v505 = vadd.f32 0.0, %v504
  %v506 = vpop.f32.mrf.mxu0
  %v507 = vpop.f32.mrf.mxu0
  %v508 = vadd.f32 0.0, %v507
  %v509 = vpop.f32.mrf.mxu0
  %510 = vmatprep.mubr.bf16.mxu0 0
  %511 = vmatmul.mubr.bf16.gmra.mxu0 %v379
  %v512 = vpop.f32.mrf.mxu0
  %v513 = vadd.f32 0.0, %v512
  %v514 = vpop.f32.mrf.mxu0
  %v515 = vpop.f32.mrf.mxu0
  %v516 = vadd.f32 0.0, %v515
  %v517 = vpop.f32.mrf.mxu0
  %518 = vmatprep.mubr.bf16.mxu0 0
  %519 = vmatmul.mubr.bf16.gmra.mxu0 %v380
  %v520 = vpop.f32.mrf.mxu0
  %v521 = vadd.f32 0.0, %v520
  %v522 = vpop.f32.mrf.mxu0
  %v523 = vpop.f32.mrf.mxu0
  %v524 = vadd.f32 0.0, %v523
  %v525 = vpop.f32.mrf.mxu0
  %526 = vdwg.mxu0
  %v527 = vadd.f32 %v317, %v481
  %v528 = vadd.f32 %v320, %v484
  %v529 = vadd.f32 %v325, %v489
  %v530 = vadd.f32 %v328, %v492
  %v531 = vadd.f32 %v333, %v497
  %v532 = vadd.f32 %v336, %v500
  %v533 = vadd.f32 %v341, %v505
  %v534 = vadd.f32 %v344, %v508
  %v535 = vadd.f32 %v349, %v513
  %v536 = vadd.f32 %v352, %v516
  %v537 = vadd.f32 %v357, %v521
  %v538 = vadd.f32 %v360, %v524
  %v539 = vld [vmem:[%s0 + $0x3] sm:$0xff]
  %v540 = vld [vmem:[%s0 + $0xb] sm:$0xff]
  %v541 = vld [vmem:[%s0 + $0x13] sm:$0xff]
  %v542 = vld [vmem:[%s0 + $0x1b] sm:$0xff]
  %v543 = vld [vmem:[%s0 + $0x23] sm:$0xff]
  %v544 = vld [vmem:[%s0 + $0x2b] sm:$0xff]
  %v545 = vld [vmem:[%s0 + $0x33] sm:$0xff]
  %v546 = vld [vmem:[%s0 + $0x3b] sm:$0xff]
  %v547 = vld [vmem:[%s0 + $0x43] sm:$0xff]
  %v548 = vld [vmem:[%s0 + $0x4b] sm:$0xff]
  %v549 = vld [vmem:[%s0 + $0x53] sm:$0xff]
  %v550 = vld [vmem:[%s0 + $0x5b] sm:$0x3]
  %v551 = vpack.c.bf16 %v540, %v539
  %v552 = vpack.c.bf16 %v542, %v541
  %v553 = vpack.c.bf16 %v544, %v543
  %v554 = vpack.c.bf16 %v546, %v545
  %v555 = vpack.c.bf16 %v548, %v547
  %v556 = vpack.c.bf16 %v550, %v549
  %s557 = scalar_lea.vmem %s1, 192
  %v558 = vld [vmem:[%s557] sm:$0xf]
  %v559 = vld [vmem:[%s557 + $0x4] sm:$0xf]
  %v560 = vld [vmem:[%s557 + $0x8] sm:$0xf]
  %v561 = vld [vmem:[%s557 + $0xc] sm:$0xf]
  %v562 = vld [vmem:[%s557 + $0x10] sm:$0xf]
  %v563 = vld [vmem:[%s557 + $0x14] sm:$0xf]
  %v564 = vld [vmem:[%s557 + $0x18] sm:$0xf]
  %v565 = vld [vmem:[%s557 + $0x1c] sm:$0xf]
  %v566 = vld [vmem:[%s557 + $0x20] sm:$0xf]
  %v567 = vld [vmem:[%s557 + $0x24] sm:$0xf]
  %v568 = vld [vmem:[%s557 + $0x28] sm:$0xf]
  %v569 = vld [vmem:[%s557 + $0x2c] sm:$0xf]
  %v570 = vld [vmem:[%s557 + $0x30] sm:$0xf]
  %v571 = vld [vmem:[%s557 + $0x34] sm:$0xf]
  %v572 = vld [vmem:[%s557 + $0x38] sm:$0xf]
  %v573 = vld [vmem:[%s557 + $0x3c] sm:$0xf]
  %v590 = vunpack.c.l.b16 %v558
  %v591 = vunpack.c.l.b16 %v559
  %v592 = vunpack.c.l.b16 %v560
  %v593 = vunpack.c.l.b16 %v561
  %v594 = vunpack.c.l.b16 %v562
  %v595 = vunpack.c.l.b16 %v563
  %v596 = vunpack.c.l.b16 %v564
  %v597 = vunpack.c.l.b16 %v565
  %v598 = vunpack.c.l.b16 %v566
  %v599 = vunpack.c.l.b16 %v567
  %v600 = vunpack.c.l.b16 %v568
  %v601 = vunpack.c.l.b16 %v569
  %v602 = vunpack.c.l.b16 %v570
  %v603 = vunpack.c.l.b16 %v571
  %v604 = vunpack.c.l.b16 %v572
  %v605 = vunpack.c.l.b16 %v573
  %v606 = vpack.c.b16 %v591, %v590
  %v607 = vpack.c.b16 %v593, %v592
  %v608 = vpack.c.b16 %v595, %v594
  %v609 = vpack.c.b16 %v597, %v596
  %v610 = vpack.c.b16 %v599, %v598
  %v611 = vpack.c.b16 %v601, %v600
  %v612 = vpack.c.b16 %v603, %v602
  %v613 = vpack.c.b16 %v605, %v604
  %622 = vmatprep.subr.bf16.mxu0 0
  %623 = vmatpush1.bf16.msra.mxu0 %v613
  %624 = vmatprep.subr.bf16.mxu0 0
  %625 = vmatpush1.bf16.msra.mxu0 %v612
  %626 = vmatprep.subr.bf16.mxu0 0
  %627 = vmatpush1.bf16.msra.mxu0 %v611
  %628 = vmatprep.subr.bf16.mxu0 0
  %629 = vmatpush1.bf16.msra.mxu0 %v610
  %630 = vmatprep.subr.bf16.mxu0 0
  %631 = vmatpush1.bf16.msra.mxu0 %v609
  %632 = vmatprep.subr.bf16.mxu0 0
  %633 = vmatpush1.bf16.msra.mxu0 %v608
  %634 = vmatprep.subr.bf16.mxu0 0
  %635 = vmatpush1.bf16.msra.mxu0 %v607
  %636 = vmatprep.subr.bf16.mxu0 0
  %637 = vmatpush1.bf16.msra.mxu0 %v606
  %638 = vmatprep.subr.bf16.mxu0 0
  %639 = vmatpush2.bf16.msra.mxu0 0
  %640 = vmatprep.subr.bf16.mxu0 0
  %641 = vmatpush2.bf16.msra.mxu0 0
  %642 = vmatprep.subr.bf16.mxu0 0
  %643 = vmatpush2.bf16.msra.mxu0 0
  %644 = vmatprep.subr.bf16.mxu0 0
  %645 = vmatpush2.bf16.msra.mxu0 0
  %646 = vmatprep.subr.bf16.mxu0 0
  %647 = vmatpush2.bf16.msra.mxu0 0
  %648 = vmatprep.subr.bf16.mxu0 0
  %649 = vmatpush2.bf16.msra.mxu0 0
  %650 = vmatprep.subr.bf16.mxu0 0
  %651 = vmatpush2.bf16.msra.mxu0 0
  %652 = vmatprep.subr.bf16.mxu0 0
  %653 = vmatpush2.bf16.msra.mxu0 0
  %654 = vmatprep.mubr.bf16.mxu0 0
  %655 = vmatmul.mubr.bf16.gmra.mxu0 %v551
  %v656 = vpop.f32.mrf.mxu0
  %v657 = vadd.f32 0.0, %v656
  %v658 = vpop.f32.mrf.mxu0
  %v659 = vpop.f32.mrf.mxu0
  %v660 = vadd.f32 0.0, %v659
  %v661 = vpop.f32.mrf.mxu0
  %662 = vmatprep.mubr.bf16.mxu0 0
  %663 = vmatmul.mubr.bf16.gmra.mxu0 %v552
  %v664 = vpop.f32.mrf.mxu0
  %v665 = vadd.f32 0.0, %v664
  %v666 = vpop.f32.mrf.mxu0
  %v667 = vpop.f32.mrf.mxu0
  %v668 = vadd.f32 0.0, %v667
  %v669 = vpop.f32.mrf.mxu0
  %670 = vmatprep.mubr.bf16.mxu0 0
  %671 = vmatmul.mubr.bf16.gmra.mxu0 %v553
  %v672 = vpop.f32.mrf.mxu0
  %v673 = vadd.f32 0.0, %v672
  %v674 = vpop.f32.mrf.mxu0
  %v675 = vpop.f32.mrf.mxu0
  %v676 = vadd.f32 0.0, %v675
  %v677 = vpop.f32.mrf.mxu0
  %678 = vmatprep.mubr.bf16.mxu0 0
  %679 = vmatmul.mubr.bf16.gmra.mxu0 %v554
  %v680 = vpop.f32.mrf.mxu0
  %v681 = vadd.f32 0.0, %v680
  %v682 = vpop.f32.mrf.mxu0
  %v683 = vpop.f32.mrf.mxu0
  %v684 = vadd.f32 0.0, %v683
  %v685 = vpop.f32.mrf.mxu0
  %686 = vmatprep.mubr.bf16.mxu0 0
  %687 = vmatmul.mubr.bf16.gmra.mxu0 %v555
  %v688 = vpop.f32.mrf.mxu0
  %v689 = vadd.f32 0.0, %v688
  %v690 = vpop.f32.mrf.mxu0
  %v691 = vpop.f32.mrf.mxu0
  %v692 = vadd.f32 0.0, %v691
  %v693 = vpop.f32.mrf.mxu0
  %694 = vmatprep.mubr.bf16.mxu0 0
  %695 = vmatmul.mubr.bf16.gmra.mxu0 %v556
  %v696 = vpop.f32.mrf.mxu0
  %v697 = vadd.f32 0.0, %v696
  %v698 = vpop.f32.mrf.mxu0
  %v699 = vpop.f32.mrf.mxu0
  %v700 = vadd.f32 0.0, %v699
  %v701 = vpop.f32.mrf.mxu0
  %702 = vdwg.mxu0
  %v703 = vadd.f32 %v527, %v657
  %v704 = vadd.f32 %v528, %v660
  %v705 = vadd.f32 %v529, %v665
  %v706 = vadd.f32 %v530, %v668
  %v707 = vadd.f32 %v531, %v673
  %v708 = vadd.f32 %v532, %v676
  %v709 = vadd.f32 %v533, %v681
  %v710 = vadd.f32 %v534, %v684
  %v711 = vadd.f32 %v535, %v689
  %v712 = vadd.f32 %v536, %v692
  %v713 = vadd.f32 %v537, %v697
  %v714 = vadd.f32 %v538, %v700
  %v715 = vld [vmem:[%s0 + $0x4] sm:$0xff]
  %v716 = vld [vmem:[%s0 + $0xc] sm:$0xff]
  %v717 = vld [vmem:[%s0 + $0x14] sm:$0xff]
  %v718 = vld [vmem:[%s0 + $0x1c] sm:$0xff]
  %v719 = vld [vmem:[%s0 + $0x24] sm:$0xff]
  %v720 = vld [vmem:[%s0 + $0x2c] sm:$0xff]
  %v721 = vld [vmem:[%s0 + $0x34] sm:$0xff]
  %v722 = vld [vmem:[%s0 + $0x3c] sm:$0xff]
  %v723 = vld [vmem:[%s0 + $0x44] sm:$0xff]
  %v724 = vld [vmem:[%s0 + $0x4c] sm:$0xff]
  %v725 = vld [vmem:[%s0 + $0x54] sm:$0xff]
  %v726 = vld [vmem:[%s0 + $0x5c] sm:$0x3]
  %v727 = vpack.c.bf16 %v716, %v715
  %v728 = vpack.c.bf16 %v718, %v717
  %v729 = vpack.c.bf16 %v720, %v719
  %v730 = vpack.c.bf16 %v722, %v721
  %v731 = vpack.c.bf16 %v724, %v723
  %v732 = vpack.c.bf16 %v726, %v725
  %s733 = scalar_lea.vmem %s1, 256
  %v734 = vld [vmem:[%s733] sm:$0xf]
  %v735 = vld [vmem:[%s733 + $0x4] sm:$0xf]
  %v736 = vld [vmem:[%s733 + $0x8] sm:$0xf]
  %v737 = vld [vmem:[%s733 + $0xc] sm:$0xf]
  %v738 = vld [vmem:[%s733 + $0x10] sm:$0xf]
  %v739 = vld [vmem:[%s733 + $0x14] sm:$0xf]
  %v740 = vld [vmem:[%s733 + $0x18] sm:$0xf]
  %v741 = vld [vmem:[%s733 + $0x1c] sm:$0xf]
  %v742 = vld [vmem:[%s733 + $0x20] sm:$0xf]
  %v743 = vld [vmem:[%s733 + $0x24] sm:$0xf]
  %v744 = vld [vmem:[%s733 + $0x28] sm:$0xf]
  %v745 = vld [vmem:[%s733 + $0x2c] sm:$0xf]
  %v746 = vld [vmem:[%s733 + $0x30] sm:$0xf]
  %v747 = vld [vmem:[%s733 + $0x34] sm:$0xf]
  %v748 = vld [vmem:[%s733 + $0x38] sm:$0xf]
  %v749 = vld [vmem:[%s733 + $0x3c] sm:$0xf]
  %v766 = vunpack.c.l.b16 %v734
  %v767 = vunpack.c.l.b16 %v735
  %v768 = vunpack.c.l.b16 %v736
  %v769 = vunpack.c.l.b16 %v737
  %v770 = vunpack.c.l.b16 %v738
  %v771 = vunpack.c.l.b16 %v739
  %v772 = vunpack.c.l.b16 %v740
  %v773 = vunpack.c.l.b16 %v741
  %v774 = vunpack.c.l.b16 %v742
  %v775 = vunpack.c.l.b16 %v743
  %v776 = vunpack.c.l.b16 %v744
  %v777 = vunpack.c.l.b16 %v745
  %v778 = vunpack.c.l.b16 %v746
  %v779 = vunpack.c.l.b16 %v747
  %v780 = vunpack.c.l.b16 %v748
  %v781 = vunpack.c.l.b16 %v749
  %v782 = vpack.c.b16 %v767, %v766
  %v783 = vpack.c.b16 %v769, %v768
  %v784 = vpack.c.b16 %v771, %v770
  %v785 = vpack.c.b16 %v773, %v772
  %v786 = vpack.c.b16 %v775, %v774
  %v787 = vpack.c.b16 %v777, %v776
  %v788 = vpack.c.b16 %v779, %v778
  %v789 = vpack.c.b16 %v781, %v780
  %798 = vmatprep.subr.bf16.mxu0 0
  %799 = vmatpush1.bf16.msra.mxu0 %v789
  %800 = vmatprep.subr.bf16.mxu0 0
  %801 = vmatpush1.bf16.msra.mxu0 %v788
  %802 = vmatprep.subr.bf16.mxu0 0
  %803 = vmatpush1.bf16.msra.mxu0 %v787
  %804 = vmatprep.subr.bf16.mxu0 0
  %805 = vmatpush1.bf16.msra.mxu0 %v786
  %806 = vmatprep.subr.bf16.mxu0 0
  %807 = vmatpush1.bf16.msra.mxu0 %v785
  %808 = vmatprep.subr.bf16.mxu0 0
  %809 = vmatpush1.bf16.msra.mxu0 %v784
  %810 = vmatprep.subr.bf16.mxu0 0
  %811 = vmatpush1.bf16.msra.mxu0 %v783
  %812 = vmatprep.subr.bf16.mxu0 0
  %813 = vmatpush1.bf16.msra.mxu0 %v782
  %814 = vmatprep.subr.bf16.mxu0 0
  %815 = vmatpush2.bf16.msra.mxu0 0
  %816 = vmatprep.subr.bf16.mxu0 0
  %817 = vmatpush2.bf16.msra.mxu0 0
  %818 = vmatprep.subr.bf16.mxu0 0
  %819 = vmatpush2.bf16.msra.mxu0 0
  %820 = vmatprep.subr.bf16.mxu0 0
  %821 = vmatpush2.bf16.msra.mxu0 0
  %822 = vmatprep.subr.bf16.mxu0 0
  %823 = vmatpush2.bf16.msra.mxu0 0
  %824 = vmatprep.subr.bf16.mxu0 0
  %825 = vmatpush2.bf16.msra.mxu0 0
  %826 = vmatprep.subr.bf16.mxu0 0
  %827 = vmatpush2.bf16.msra.mxu0 0
  %828 = vmatprep.subr.bf16.mxu0 0
  %829 = vmatpush2.bf16.msra.mxu0 0
  %830 = vmatprep.mubr.bf16.mxu0 0
  %831 = vmatmul.mubr.bf16.gmra.mxu0 %v727
  %v832 = vpop.f32.mrf.mxu0
  %v833 = vadd.f32 0.0, %v832
  %v834 = vpop.f32.mrf.mxu0
  %v835 = vpop.f32.mrf.mxu0
  %v836 = vadd.f32 0.0, %v835
  %v837 = vpop.f32.mrf.mxu0
  %838 = vmatprep.mubr.bf16.mxu0 0
  %839 = vmatmul.mubr.bf16.gmra.mxu0 %v728
  %v840 = vpop.f32.mrf.mxu0
  %v841 = vadd.f32 0.0, %v840
  %v842 = vpop.f32.mrf.mxu0
  %v843 = vpop.f32.mrf.mxu0
  %v844 = vadd.f32 0.0, %v843
  %v845 = vpop.f32.mrf.mxu0
  %846 = vmatprep.mubr.bf16.mxu0 0
  %847 = vmatmul.mubr.bf16.gmra.mxu0 %v729
  %v848 = vpop.f32.mrf.mxu0
  %v849 = vadd.f32 0.0, %v848
  %v850 = vpop.f32.mrf.mxu0
  %v851 = vpop.f32.mrf.mxu0
  %v852 = vadd.f32 0.0, %v851
  %v853 = vpop.f32.mrf.mxu0
  %854 = vmatprep.mubr.bf16.mxu0 0
  %855 = vmatmul.mubr.bf16.gmra.mxu0 %v730
  %v856 = vpop.f32.mrf.mxu0
  %v857 = vadd.f32 0.0, %v856
  %v858 = vpop.f32.mrf.mxu0
  %v859 = vpop.f32.mrf.mxu0
  %v860 = vadd.f32 0.0, %v859
  %v861 = vpop.f32.mrf.mxu0
  %862 = vmatprep.mubr.bf16.mxu0 0
  %863 = vmatmul.mubr.bf16.gmra.mxu0 %v731
  %v864 = vpop.f32.mrf.mxu0
  %v865 = vadd.f32 0.0, %v864
  %v866 = vpop.f32.mrf.mxu0
  %v867 = vpop.f32.mrf.mxu0
  %v868 = vadd.f32 0.0, %v867
  %v869 = vpop.f32.mrf.mxu0
  %870 = vmatprep.mubr.bf16.mxu0 0
  %871 = vmatmul.mubr.bf16.gmra.mxu0 %v732
  %v872 = vpop.f32.mrf.mxu0
  %v873 = vadd.f32 0.0, %v872
  %v874 = vpop.f32.mrf.mxu0
  %v875 = vpop.f32.mrf.mxu0
  %v876 = vadd.f32 0.0, %v875
  %v877 = vpop.f32.mrf.mxu0
  %878 = vdwg.mxu0
  %v879 = vadd.f32 %v703, %v833
  %v880 = vadd.f32 %v704, %v836
  %v881 = vadd.f32 %v705, %v841
  %v882 = vadd.f32 %v706, %v844
  %v883 = vadd.f32 %v707, %v849
  %v884 = vadd.f32 %v708, %v852
  %v885 = vadd.f32 %v709, %v857
  %v886 = vadd.f32 %v710, %v860
  %v887 = vadd.f32 %v711, %v865
  %v888 = vadd.f32 %v712, %v868
  %v889 = vadd.f32 %v713, %v873
  %v890 = vadd.f32 %v714, %v876
  %v891 = vld [vmem:[%s0 + $0x5] sm:$0xff]
  %v892 = vld [vmem:[%s0 + $0xd] sm:$0xff]
  %v893 = vld [vmem:[%s0 + $0x15] sm:$0xff]
  %v894 = vld [vmem:[%s0 + $0x1d] sm:$0xff]
  %v895 = vld [vmem:[%s0 + $0x25] sm:$0xff]
  %v896 = vld [vmem:[%s0 + $0x2d] sm:$0xff]
  %v897 = vld [vmem:[%s0 + $0x35] sm:$0xff]
  %v898 = vld [vmem:[%s0 + $0x3d] sm:$0xff]
  %v899 = vld [vmem:[%s0 + $0x45] sm:$0xff]
  %v900 = vld [vmem:[%s0 + $0x4d] sm:$0xff]
  %v901 = vld [vmem:[%s0 + $0x55] sm:$0xff]
  %v902 = vld [vmem:[%s0 + $0x5d] sm:$0x3]
  %v903 = vpack.c.bf16 %v892, %v891
  %v904 = vpack.c.bf16 %v894, %v893
  %v905 = vpack.c.bf16 %v896, %v895
  %v906 = vpack.c.bf16 %v898, %v897
  %v907 = vpack.c.bf16 %v900, %v899
  %v908 = vpack.c.bf16 %v902, %v901
  %s909 = scalar_lea.vmem %s1, 320
  %v910 = vld [vmem:[%s909] sm:$0xf]
  %v911 = vld [vmem:[%s909 + $0x4] sm:$0xf]
  %v912 = vld [vmem:[%s909 + $0x8] sm:$0xf]
  %v913 = vld [vmem:[%s909 + $0xc] sm:$0xf]
  %v914 = vld [vmem:[%s909 + $0x10] sm:$0xf]
  %v915 = vld [vmem:[%s909 + $0x14] sm:$0xf]
  %v916 = vld [vmem:[%s909 + $0x18] sm:$0xf]
  %v917 = vld [vmem:[%s909 + $0x1c] sm:$0xf]
  %v918 = vld [vmem:[%s909 + $0x20] sm:$0xf]
  %v919 = vld [vmem:[%s909 + $0x24] sm:$0xf]
  %v920 = vld [vmem:[%s909 + $0x28] sm:$0xf]
  %v921 = vld [vmem:[%s909 + $0x2c] sm:$0xf]
  %v922 = vld [vmem:[%s909 + $0x30] sm:$0xf]
  %v923 = vld [vmem:[%s909 + $0x34] sm:$0xf]
  %v924 = vld [vmem:[%s909 + $0x38] sm:$0xf]
  %v925 = vld [vmem:[%s909 + $0x3c] sm:$0xf]
  %v942 = vunpack.c.l.b16 %v910
  %v943 = vunpack.c.l.b16 %v911
  %v944 = vunpack.c.l.b16 %v912
  %v945 = vunpack.c.l.b16 %v913
  %v946 = vunpack.c.l.b16 %v914
  %v947 = vunpack.c.l.b16 %v915
  %v948 = vunpack.c.l.b16 %v916
  %v949 = vunpack.c.l.b16 %v917
  %v950 = vunpack.c.l.b16 %v918
  %v951 = vunpack.c.l.b16 %v919
  %v952 = vunpack.c.l.b16 %v920
  %v953 = vunpack.c.l.b16 %v921
  %v954 = vunpack.c.l.b16 %v922
  %v955 = vunpack.c.l.b16 %v923
  %v956 = vunpack.c.l.b16 %v924
  %v957 = vunpack.c.l.b16 %v925
  %v958 = vpack.c.b16 %v943, %v942
  %v959 = vpack.c.b16 %v945, %v944
  %v960 = vpack.c.b16 %v947, %v946
  %v961 = vpack.c.b16 %v949, %v948
  %v962 = vpack.c.b16 %v951, %v950
  %v963 = vpack.c.b16 %v953, %v952
  %v964 = vpack.c.b16 %v955, %v954
  %v965 = vpack.c.b16 %v957, %v956
  %974 = vmatprep.subr.bf16.mxu0 0
  %975 = vmatpush1.bf16.msra.mxu0 %v965
  %976 = vmatprep.subr.bf16.mxu0 0
  %977 = vmatpush1.bf16.msra.mxu0 %v964
  %978 = vmatprep.subr.bf16.mxu0 0
  %979 = vmatpush1.bf16.msra.mxu0 %v963
  %980 = vmatprep.subr.bf16.mxu0 0
  %981 = vmatpush1.bf16.msra.mxu0 %v962
  %982 = vmatprep.subr.bf16.mxu0 0
  %983 = vmatpush1.bf16.msra.mxu0 %v961
  %984 = vmatprep.subr.bf16.mxu0 0
  %985 = vmatpush1.bf16.msra.mxu0 %v960
  %986 = vmatprep.subr.bf16.mxu0 0
  %987 = vmatpush1.bf16.msra.mxu0 %v959
  %988 = vmatprep.subr.bf16.mxu0 0
  %989 = vmatpush1.bf16.msra.mxu0 %v958
  %990 = vmatprep.subr.bf16.mxu0 0
  %991 = vmatpush2.bf16.msra.mxu0 0
  %992 = vmatprep.subr.bf16.mxu0 0
  %993 = vmatpush2.bf16.msra.mxu0 0
  %994 = vmatprep.subr.bf16.mxu0 0
  %995 = vmatpush2.bf16.msra.mxu0 0
  %996 = vmatprep.subr.bf16.mxu0 0
  %997 = vmatpush2.bf16.msra.mxu0 0
  %998 = vmatprep.subr.bf16.mxu0 0
  %999 = vmatpush2.bf16.msra.mxu0 0
  %1000 = vmatprep.subr.bf16.mxu0 0
  %1001 = vmatpush2.bf16.msra.mxu0 0
  %1002 = vmatprep.subr.bf16.mxu0 0
  %1003 = vmatpush2.bf16.msra.mxu0 0
  %1004 = vmatprep.subr.bf16.mxu0 0
  %1005 = vmatpush2.bf16.msra.mxu0 0
  %1006 = vmatprep.mubr.bf16.mxu0 0
  %1007 = vmatmul.mubr.bf16.gmra.mxu0 %v903
  %v1008 = vpop.f32.mrf.mxu0
  %v1009 = vadd.f32 0.0, %v1008
  %v1010 = vpop.f32.mrf.mxu0
  %v1011 = vpop.f32.mrf.mxu0
  %v1012 = vadd.f32 0.0, %v1011
  %v1013 = vpop.f32.mrf.mxu0
  %1014 = vmatprep.mubr.bf16.mxu0 0
  %1015 = vmatmul.mubr.bf16.gmra.mxu0 %v904
  %v1016 = vpop.f32.mrf.mxu0
  %v1017 = vadd.f32 0.0, %v1016
  %v1018 = vpop.f32.mrf.mxu0
  %v1019 = vpop.f32.mrf.mxu0
  %v1020 = vadd.f32 0.0, %v1019
  %v1021 = vpop.f32.mrf.mxu0
  %1022 = vmatprep.mubr.bf16.mxu0 0
  %1023 = vmatmul.mubr.bf16.gmra.mxu0 %v905
  %v1024 = vpop.f32.mrf.mxu0
  %v1025 = vadd.f32 0.0, %v1024
  %v1026 = vpop.f32.mrf.mxu0
  %v1027 = vpop.f32.mrf.mxu0
  %v1028 = vadd.f32 0.0, %v1027
  %v1029 = vpop.f32.mrf.mxu0
  %1030 = vmatprep.mubr.bf16.mxu0 0
  %1031 = vmatmul.mubr.bf16.gmra.mxu0 %v906
  %v1032 = vpop.f32.mrf.mxu0
  %v1033 = vadd.f32 0.0, %v1032
  %v1034 = vpop.f32.mrf.mxu0
  %v1035 = vpop.f32.mrf.mxu0
  %v1036 = vadd.f32 0.0, %v1035
  %v1037 = vpop.f32.mrf.mxu0
  %1038 = vmatprep.mubr.bf16.mxu0 0
  %1039 = vmatmul.mubr.bf16.gmra.mxu0 %v907
  %v1040 = vpop.f32.mrf.mxu0
  %v1041 = vadd.f32 0.0, %v1040
  %v1042 = vpop.f32.mrf.mxu0
  %v1043 = vpop.f32.mrf.mxu0
  %v1044 = vadd.f32 0.0, %v1043
  %v1045 = vpop.f32.mrf.mxu0
  %1046 = vmatprep.mubr.bf16.mxu0 0
  %1047 = vmatmul.mubr.bf16.gmra.mxu0 %v908
  %v1048 = vpop.f32.mrf.mxu0
  %v1049 = vadd.f32 0.0, %v1048
  %v1050 = vpop.f32.mrf.mxu0
  %v1051 = vpop.f32.mrf.mxu0
  %v1052 = vadd.f32 0.0, %v1051
  %v1053 = vpop.f32.mrf.mxu0
  %1054 = vdwg.mxu0
  %v1055 = vadd.f32 %v879, %v1009
  %v1056 = vadd.f32 %v880, %v1012
  %v1057 = vadd.f32 %v881, %v1017
  %v1058 = vadd.f32 %v882, %v1020
  %v1059 = vadd.f32 %v883, %v1025
  %v1060 = vadd.f32 %v884, %v1028
  %v1061 = vadd.f32 %v885, %v1033
  %v1062 = vadd.f32 %v886, %v1036
  %v1063 = vadd.f32 %v887, %v1041
  %v1064 = vadd.f32 %v888, %v1044
  %v1065 = vadd.f32 %v889, %v1049
  %v1066 = vadd.f32 %v890, %v1052
  %v1067 = vld [vmem:[%s0 + $0x6] sm:$0xff]
  %v1068 = vld [vmem:[%s0 + $0xe] sm:$0xff]
  %v1069 = vld [vmem:[%s0 + $0x16] sm:$0xff]
  %v1070 = vld [vmem:[%s0 + $0x1e] sm:$0xff]
  %v1071 = vld [vmem:[%s0 + $0x26] sm:$0xff]
  %v1072 = vld [vmem:[%s0 + $0x2e] sm:$0xff]
  %v1073 = vld [vmem:[%s0 + $0x36] sm:$0xff]
  %v1074 = vld [vmem:[%s0 + $0x3e] sm:$0xff]
  %v1075 = vld [vmem:[%s0 + $0x46] sm:$0xff]
  %v1076 = vld [vmem:[%s0 + $0x4e] sm:$0xff]
  %v1077 = vld [vmem:[%s0 + $0x56] sm:$0xff]
  %v1078 = vld [vmem:[%s0 + $0x5e] sm:$0x3]
  %v1079 = vpack.c.bf16 %v1068, %v1067
  %v1080 = vpack.c.bf16 %v1070, %v1069
  %v1081 = vpack.c.bf16 %v1072, %v1071
  %v1082 = vpack.c.bf16 %v1074, %v1073
  %v1083 = vpack.c.bf16 %v1076, %v1075
  %v1084 = vpack.c.bf16 %v1078, %v1077
  %s1085 = scalar_lea.vmem %s1, 384
  %v1086 = vld [vmem:[%s1085] sm:$0xf]
  %v1087 = vld [vmem:[%s1085 + $0x4] sm:$0xf]
  %v1088 = vld [vmem:[%s1085 + $0x8] sm:$0xf]
  %v1089 = vld [vmem:[%s1085 + $0xc] sm:$0xf]
  %v1090 = vld [vmem:[%s1085 + $0x10] sm:$0xf]
  %v1091 = vld [vmem:[%s1085 + $0x14] sm:$0xf]
  %v1092 = vld [vmem:[%s1085 + $0x18] sm:$0xf]
  %v1093 = vld [vmem:[%s1085 + $0x1c] sm:$0xf]
  %v1094 = vld [vmem:[%s1085 + $0x20] sm:$0xf]
  %v1095 = vld [vmem:[%s1085 + $0x24] sm:$0xf]
  %v1096 = vld [vmem:[%s1085 + $0x28] sm:$0xf]
  %v1097 = vld [vmem:[%s1085 + $0x2c] sm:$0xf]
  %v1098 = vld [vmem:[%s1085 + $0x30] sm:$0xf]
  %v1099 = vld [vmem:[%s1085 + $0x34] sm:$0xf]
  %v1100 = vld [vmem:[%s1085 + $0x38] sm:$0xf]
  %v1101 = vld [vmem:[%s1085 + $0x3c] sm:$0xf]
  %v1118 = vunpack.c.l.b16 %v1086
  %v1119 = vunpack.c.l.b16 %v1087
  %v1120 = vunpack.c.l.b16 %v1088
  %v1121 = vunpack.c.l.b16 %v1089
  %v1122 = vunpack.c.l.b16 %v1090
  %v1123 = vunpack.c.l.b16 %v1091
  %v1124 = vunpack.c.l.b16 %v1092
  %v1125 = vunpack.c.l.b16 %v1093
  %v1126 = vunpack.c.l.b16 %v1094
  %v1127 = vunpack.c.l.b16 %v1095
  %v1128 = vunpack.c.l.b16 %v1096
  %v1129 = vunpack.c.l.b16 %v1097
  %v1130 = vunpack.c.l.b16 %v1098
  %v1131 = vunpack.c.l.b16 %v1099
  %v1132 = vunpack.c.l.b16 %v1100
  %v1133 = vunpack.c.l.b16 %v1101
  %v1134 = vpack.c.b16 %v1119, %v1118
  %v1135 = vpack.c.b16 %v1121, %v1120
  %v1136 = vpack.c.b16 %v1123, %v1122
  %v1137 = vpack.c.b16 %v1125, %v1124
  %v1138 = vpack.c.b16 %v1127, %v1126
  %v1139 = vpack.c.b16 %v1129, %v1128
  %v1140 = vpack.c.b16 %v1131, %v1130
  %v1141 = vpack.c.b16 %v1133, %v1132
  %1150 = vmatprep.subr.bf16.mxu0 0
  %1151 = vmatpush1.bf16.msra.mxu0 %v1141
  %1152 = vmatprep.subr.bf16.mxu0 0
  %1153 = vmatpush1.bf16.msra.mxu0 %v1140
  %1154 = vmatprep.subr.bf16.mxu0 0
  %1155 = vmatpush1.bf16.msra.mxu0 %v1139
  %1156 = vmatprep.subr.bf16.mxu0 0
  %1157 = vmatpush1.bf16.msra.mxu0 %v1138
  %1158 = vmatprep.subr.bf16.mxu0 0
  %1159 = vmatpush1.bf16.msra.mxu0 %v1137
  %1160 = vmatprep.subr.bf16.mxu0 0
  %1161 = vmatpush1.bf16.msra.mxu0 %v1136
  %1162 = vmatprep.subr.bf16.mxu0 0
  %1163 = vmatpush1.bf16.msra.mxu0 %v1135
  %1164 = vmatprep.subr.bf16.mxu0 0
  %1165 = vmatpush1.bf16.msra.mxu0 %v1134
  %1166 = vmatprep.subr.bf16.mxu0 0
  %1167 = vmatpush2.bf16.msra.mxu0 0
  %1168 = vmatprep.subr.bf16.mxu0 0
  %1169 = vmatpush2.bf16.msra.mxu0 0
  %1170 = vmatprep.subr.bf16.mxu0 0
  %1171 = vmatpush2.bf16.msra.mxu0 0
  %1172 = vmatprep.subr.bf16.mxu0 0
  %1173 = vmatpush2.bf16.msra.mxu0 0
  %1174 = vmatprep.subr.bf16.mxu0 0
  %1175 = vmatpush2.bf16.msra.mxu0 0
  %1176 = vmatprep.subr.bf16.mxu0 0
  %1177 = vmatpush2.bf16.msra.mxu0 0
  %1178 = vmatprep.subr.bf16.mxu0 0
  %1179 = vmatpush2.bf16.msra.mxu0 0
  %1180 = vmatprep.subr.bf16.mxu0 0
  %1181 = vmatpush2.bf16.msra.mxu0 0
  %1182 = vmatprep.mubr.bf16.mxu0 0
  %1183 = vmatmul.mubr.bf16.gmra.mxu0 %v1079
  %v1184 = vpop.f32.mrf.mxu0
  %v1185 = vadd.f32 0.0, %v1184
  %v1186 = vpop.f32.mrf.mxu0
  %v1187 = vpop.f32.mrf.mxu0
  %v1188 = vadd.f32 0.0, %v1187
  %v1189 = vpop.f32.mrf.mxu0
  %1190 = vmatprep.mubr.bf16.mxu0 0
  %1191 = vmatmul.mubr.bf16.gmra.mxu0 %v1080
  %v1192 = vpop.f32.mrf.mxu0
  %v1193 = vadd.f32 0.0, %v1192
  %v1194 = vpop.f32.mrf.mxu0
  %v1195 = vpop.f32.mrf.mxu0
  %v1196 = vadd.f32 0.0, %v1195
  %v1197 = vpop.f32.mrf.mxu0
  %1198 = vmatprep.mubr.bf16.mxu0 0
  %1199 = vmatmul.mubr.bf16.gmra.mxu0 %v1081
  %v1200 = vpop.f32.mrf.mxu0
  %v1201 = vadd.f32 0.0, %v1200
  %v1202 = vpop.f32.mrf.mxu0
  %v1203 = vpop.f32.mrf.mxu0
  %v1204 = vadd.f32 0.0, %v1203
  %v1205 = vpop.f32.mrf.mxu0
  %1206 = vmatprep.mubr.bf16.mxu0 0
  %1207 = vmatmul.mubr.bf16.gmra.mxu0 %v1082
  %v1208 = vpop.f32.mrf.mxu0
  %v1209 = vadd.f32 0.0, %v1208
  %v1210 = vpop.f32.mrf.mxu0
  %v1211 = vpop.f32.mrf.mxu0
  %v1212 = vadd.f32 0.0, %v1211
  %v1213 = vpop.f32.mrf.mxu0
  %1214 = vmatprep.mubr.bf16.mxu0 0
  %1215 = vmatmul.mubr.bf16.gmra.mxu0 %v1083
  %v1216 = vpop.f32.mrf.mxu0
  %v1217 = vadd.f32 0.0, %v1216
  %v1218 = vpop.f32.mrf.mxu0
  %v1219 = vpop.f32.mrf.mxu0
  %v1220 = vadd.f32 0.0, %v1219
  %v1221 = vpop.f32.mrf.mxu0
  %1222 = vmatprep.mubr.bf16.mxu0 0
  %1223 = vmatmul.mubr.bf16.gmra.mxu0 %v1084
  %v1224 = vpop.f32.mrf.mxu0
  %v1225 = vadd.f32 0.0, %v1224
  %v1226 = vpop.f32.mrf.mxu0
  %v1227 = vpop.f32.mrf.mxu0
  %v1228 = vadd.f32 0.0, %v1227
  %v1229 = vpop.f32.mrf.mxu0
  %1230 = vdwg.mxu0
  %v1231 = vadd.f32 %v1055, %v1185
  %v1232 = vadd.f32 %v1056, %v1188
  %v1233 = vadd.f32 %v1057, %v1193
  %v1234 = vadd.f32 %v1058, %v1196
  %v1235 = vadd.f32 %v1059, %v1201
  %v1236 = vadd.f32 %v1060, %v1204
  %v1237 = vadd.f32 %v1061, %v1209
  %v1238 = vadd.f32 %v1062, %v1212
  %v1239 = vadd.f32 %v1063, %v1217
  %v1240 = vadd.f32 %v1064, %v1220
  %v1241 = vadd.f32 %v1065, %v1225
  %v1242 = vadd.f32 %v1066, %v1228
  %v1243 = vld [vmem:[%s0 + $0x7] sm:$0xff]
  %v1244 = vld [vmem:[%s0 + $0xf] sm:$0xff]
  %v1245 = vld [vmem:[%s0 + $0x17] sm:$0xff]
  %v1246 = vld [vmem:[%s0 + $0x1f] sm:$0xff]
  %v1247 = vld [vmem:[%s0 + $0x27] sm:$0xff]
  %v1248 = vld [vmem:[%s0 + $0x2f] sm:$0xff]
  %v1249 = vld [vmem:[%s0 + $0x37] sm:$0xff]
  %v1250 = vld [vmem:[%s0 + $0x3f] sm:$0xff]
  %v1251 = vld [vmem:[%s0 + $0x47] sm:$0xff]
  %v1252 = vld [vmem:[%s0 + $0x4f] sm:$0xff]
  %v1253 = vld [vmem:[%s0 + $0x57] sm:$0xff]
  %v1254 = vld [vmem:[%s0 + $0x5f] sm:$0x3]
  %v1255 = vpack.c.bf16 %v1244, %v1243
  %v1256 = vpack.c.bf16 %v1246, %v1245
  %v1257 = vpack.c.bf16 %v1248, %v1247
  %v1258 = vpack.c.bf16 %v1250, %v1249
  %v1259 = vpack.c.bf16 %v1252, %v1251
  %v1260 = vpack.c.bf16 %v1254, %v1253
  %s1261 = scalar_lea.vmem %s1, 448
  %v1262 = vld [vmem:[%s1261] sm:$0xf]
  %v1263 = vld [vmem:[%s1261 + $0x4] sm:$0xf]
  %v1264 = vld [vmem:[%s1261 + $0x8] sm:$0xf]
  %v1265 = vld [vmem:[%s1261 + $0xc] sm:$0xf]
  %v1266 = vld [vmem:[%s1261 + $0x10] sm:$0xf]
  %v1267 = vld [vmem:[%s1261 + $0x14] sm:$0xf]
  %v1268 = vld [vmem:[%s1261 + $0x18] sm:$0xf]
  %v1269 = vld [vmem:[%s1261 + $0x1c] sm:$0xf]
  %v1270 = vld [vmem:[%s1261 + $0x20] sm:$0xf]
  %v1271 = vld [vmem:[%s1261 + $0x24] sm:$0xf]
  %v1272 = vld [vmem:[%s1261 + $0x28] sm:$0xf]
  %v1273 = vld [vmem:[%s1261 + $0x2c] sm:$0xf]
  %v1274 = vld [vmem:[%s1261 + $0x30] sm:$0xf]
  %v1275 = vld [vmem:[%s1261 + $0x34] sm:$0xf]
  %v1276 = vld [vmem:[%s1261 + $0x38] sm:$0xf]
  %v1277 = vld [vmem:[%s1261 + $0x3c] sm:$0xf]
  %v1294 = vunpack.c.l.b16 %v1262
  %v1295 = vunpack.c.l.b16 %v1263
  %v1296 = vunpack.c.l.b16 %v1264
  %v1297 = vunpack.c.l.b16 %v1265
  %v1298 = vunpack.c.l.b16 %v1266
  %v1299 = vunpack.c.l.b16 %v1267
  %v1300 = vunpack.c.l.b16 %v1268
  %v1301 = vunpack.c.l.b16 %v1269
  %v1302 = vunpack.c.l.b16 %v1270
  %v1303 = vunpack.c.l.b16 %v1271
  %v1304 = vunpack.c.l.b16 %v1272
  %v1305 = vunpack.c.l.b16 %v1273
  %v1306 = vunpack.c.l.b16 %v1274
  %v1307 = vunpack.c.l.b16 %v1275
  %v1308 = vunpack.c.l.b16 %v1276
  %v1309 = vunpack.c.l.b16 %v1277
  %v1310 = vpack.c.b16 %v1295, %v1294
  %v1311 = vpack.c.b16 %v1297, %v1296
  %v1312 = vpack.c.b16 %v1299, %v1298
  %v1313 = vpack.c.b16 %v1301, %v1300
  %v1314 = vpack.c.b16 %v1303, %v1302
  %v1315 = vpack.c.b16 %v1305, %v1304
  %v1316 = vpack.c.b16 %v1307, %v1306
  %v1317 = vpack.c.b16 %v1309, %v1308
  %1326 = vmatprep.subr.bf16.mxu0 0
  %1327 = vmatpush1.bf16.msra.mxu0 %v1317
  %1328 = vmatprep.subr.bf16.mxu0 0
  %1329 = vmatpush1.bf16.msra.mxu0 %v1316
  %1330 = vmatprep.subr.bf16.mxu0 0
  %1331 = vmatpush1.bf16.msra.mxu0 %v1315
  %1332 = vmatprep.subr.bf16.mxu0 0
  %1333 = vmatpush1.bf16.msra.mxu0 %v1314
  %1334 = vmatprep.subr.bf16.mxu0 0
  %1335 = vmatpush1.bf16.msra.mxu0 %v1313
  %1336 = vmatprep.subr.bf16.mxu0 0
  %1337 = vmatpush1.bf16.msra.mxu0 %v1312
  %1338 = vmatprep.subr.bf16.mxu0 0
  %1339 = vmatpush1.bf16.msra.mxu0 %v1311
  %1340 = vmatprep.subr.bf16.mxu0 0
  %1341 = vmatpush1.bf16.msra.mxu0 %v1310
  %1342 = vmatprep.subr.bf16.mxu0 0
  %1343 = vmatpush2.bf16.msra.mxu0 0
  %1344 = vmatprep.subr.bf16.mxu0 0
  %1345 = vmatpush2.bf16.msra.mxu0 0
  %1346 = vmatprep.subr.bf16.mxu0 0
  %1347 = vmatpush2.bf16.msra.mxu0 0
  %1348 = vmatprep.subr.bf16.mxu0 0
  %1349 = vmatpush2.bf16.msra.mxu0 0
  %1350 = vmatprep.subr.bf16.mxu0 0
  %1351 = vmatpush2.bf16.msra.mxu0 0
  %1352 = vmatprep.subr.bf16.mxu0 0
  %1353 = vmatpush2.bf16.msra.mxu0 0
  %1354 = vmatprep.subr.bf16.mxu0 0
  %1355 = vmatpush2.bf16.msra.mxu0 0
  %1356 = vmatprep.subr.bf16.mxu0 0
  %1357 = vmatpush2.bf16.msra.mxu0 0
  %1358 = vmatprep.mubr.bf16.mxu0 0
  %1359 = vmatmul.mubr.bf16.gmra.mxu0 %v1255
  %v1360 = vpop.f32.mrf.mxu0
  %v1361 = vadd.f32 0.0, %v1360
  %v1362 = vpop.f32.mrf.mxu0
  %v1363 = vpop.f32.mrf.mxu0
  %v1364 = vadd.f32 0.0, %v1363
  %v1365 = vpop.f32.mrf.mxu0
  %1366 = vmatprep.mubr.bf16.mxu0 0
  %1367 = vmatmul.mubr.bf16.gmra.mxu0 %v1256
  %v1368 = vpop.f32.mrf.mxu0
  %v1369 = vadd.f32 0.0, %v1368
  %v1370 = vpop.f32.mrf.mxu0
  %v1371 = vpop.f32.mrf.mxu0
  %v1372 = vadd.f32 0.0, %v1371
  %v1373 = vpop.f32.mrf.mxu0
  %1374 = vmatprep.mubr.bf16.mxu0 0
  %1375 = vmatmul.mubr.bf16.gmra.mxu0 %v1257
  %v1376 = vpop.f32.mrf.mxu0
  %v1377 = vadd.f32 0.0, %v1376
  %v1378 = vpop.f32.mrf.mxu0
  %v1379 = vpop.f32.mrf.mxu0
  %v1380 = vadd.f32 0.0, %v1379
  %v1381 = vpop.f32.mrf.mxu0
  %1382 = vmatprep.mubr.bf16.mxu0 0
  %1383 = vmatmul.mubr.bf16.gmra.mxu0 %v1258
  %v1384 = vpop.f32.mrf.mxu0
  %v1385 = vadd.f32 0.0, %v1384
  %v1386 = vpop.f32.mrf.mxu0
  %v1387 = vpop.f32.mrf.mxu0
  %v1388 = vadd.f32 0.0, %v1387
  %v1389 = vpop.f32.mrf.mxu0
  %1390 = vmatprep.mubr.bf16.mxu0 0
  %1391 = vmatmul.mubr.bf16.gmra.mxu0 %v1259
  %v1392 = vpop.f32.mrf.mxu0
  %v1393 = vadd.f32 0.0, %v1392
  %v1394 = vpop.f32.mrf.mxu0
  %v1395 = vpop.f32.mrf.mxu0
  %v1396 = vadd.f32 0.0, %v1395
  %v1397 = vpop.f32.mrf.mxu0
  %1398 = vmatprep.mubr.bf16.mxu0 0
  %1399 = vmatmul.mubr.bf16.gmra.mxu0 %v1260
  %v1400 = vpop.f32.mrf.mxu0
  %v1401 = vadd.f32 0.0, %v1400
  %v1402 = vpop.f32.mrf.mxu0
  %v1403 = vpop.f32.mrf.mxu0
  %v1404 = vadd.f32 0.0, %v1403
  %v1405 = vpop.f32.mrf.mxu0
  %1406 = vdwg.mxu0
  %v1407 = vadd.f32 %v1231, %v1361
  %v1408 = vadd.f32 %v1232, %v1364
  %v1409 = vadd.f32 %v1233, %v1369
  %v1410 = vadd.f32 %v1234, %v1372
  %v1411 = vadd.f32 %v1235, %v1377
  %v1412 = vadd.f32 %v1236, %v1380
  %v1413 = vadd.f32 %v1237, %v1385
  %v1414 = vadd.f32 %v1238, %v1388
  %v1415 = vadd.f32 %v1239, %v1393
  %v1416 = vadd.f32 %v1240, %v1396
  %v1417 = vadd.f32 %v1241, %v1401
  %v1418 = vadd.f32 %v1242, %v1404
  %v1419 = vld [vmem:[%s0 + $0x8] sm:$0xff]
  %v1420 = vld [vmem:[%s0 + $0x10] sm:$0xff]
  %v1421 = vld [vmem:[%s0 + $0x18] sm:$0xff]
  %v1422 = vld [vmem:[%s0 + $0x20] sm:$0xff]
  %v1423 = vld [vmem:[%s0 + $0x28] sm:$0xff]
  %v1424 = vld [vmem:[%s0 + $0x30] sm:$0xff]
  %v1425 = vld [vmem:[%s0 + $0x38] sm:$0xff]
  %v1426 = vld [vmem:[%s0 + $0x40] sm:$0xff]
  %v1427 = vld [vmem:[%s0 + $0x48] sm:$0xff]
  %v1428 = vld [vmem:[%s0 + $0x50] sm:$0xff]
  %v1429 = vld [vmem:[%s0 + $0x58] sm:$0xff]
  %v1430 = vld [vmem:[%s0 + $0x60] sm:$0x3]
  %v1431 = vpack.c.bf16 %v1420, %v1419
  %v1432 = vpack.c.bf16 %v1422, %v1421
  %v1433 = vpack.c.bf16 %v1424, %v1423
  %v1434 = vpack.c.bf16 %v1426, %v1425
  %v1435 = vpack.c.bf16 %v1428, %v1427
  %v1436 = vpack.c.bf16 %v1430, %v1429
  %s1437 = scalar_lea.vmem %s1, 512
  %v1438 = vld [vmem:[%s1437] sm:$0xf]
  %v1439 = vld [vmem:[%s1437 + $0x4] sm:$0xf]
  %v1440 = vld [vmem:[%s1437 + $0x8] sm:$0xf]
  %v1441 = vld [vmem:[%s1437 + $0xc] sm:$0xf]
  %v1442 = vld [vmem:[%s1437 + $0x10] sm:$0xf]
  %v1443 = vld [vmem:[%s1437 + $0x14] sm:$0xf]
  %v1444 = vld [vmem:[%s1437 + $0x18] sm:$0xf]
  %v1445 = vld [vmem:[%s1437 + $0x1c] sm:$0xf]
  %v1446 = vld [vmem:[%s1437 + $0x20] sm:$0xf]
  %v1447 = vld [vmem:[%s1437 + $0x24] sm:$0xf]
  %v1448 = vld [vmem:[%s1437 + $0x28] sm:$0xf]
  %v1449 = vld [vmem:[%s1437 + $0x2c] sm:$0xf]
  %v1450 = vld [vmem:[%s1437 + $0x30] sm:$0xf]
  %v1451 = vld [vmem:[%s1437 + $0x34] sm:$0xf]
  %v1452 = vld [vmem:[%s1437 + $0x38] sm:$0xf]
  %v1453 = vld [vmem:[%s1437 + $0x3c] sm:$0xf]
  %v1470 = vunpack.c.l.b16 %v1438
  %v1471 = vunpack.c.l.b16 %v1439
  %v1472 = vunpack.c.l.b16 %v1440
  %v1473 = vunpack.c.l.b16 %v1441
  %v1474 = vunpack.c.l.b16 %v1442
  %v1475 = vunpack.c.l.b16 %v1443
  %v1476 = vunpack.c.l.b16 %v1444
  %v1477 = vunpack.c.l.b16 %v1445
  %v1478 = vunpack.c.l.b16 %v1446
  %v1479 = vunpack.c.l.b16 %v1447
  %v1480 = vunpack.c.l.b16 %v1448
  %v1481 = vunpack.c.l.b16 %v1449
  %v1482 = vunpack.c.l.b16 %v1450
  %v1483 = vunpack.c.l.b16 %v1451
  %v1484 = vunpack.c.l.b16 %v1452
  %v1485 = vunpack.c.l.b16 %v1453
  %v1486 = vpack.c.b16 %v1471, %v1470
  %v1487 = vpack.c.b16 %v1473, %v1472
  %v1488 = vpack.c.b16 %v1475, %v1474
  %v1489 = vpack.c.b16 %v1477, %v1476
  %v1490 = vpack.c.b16 %v1479, %v1478
  %v1491 = vpack.c.b16 %v1481, %v1480
  %v1492 = vpack.c.b16 %v1483, %v1482
  %v1493 = vpack.c.b16 %v1485, %v1484
  %1502 = vmatprep.subr.bf16.mxu0 0
  %1503 = vmatpush1.bf16.msra.mxu0 %v1493
  %1504 = vmatprep.subr.bf16.mxu0 0
  %1505 = vmatpush1.bf16.msra.mxu0 %v1492
  %1506 = vmatprep.subr.bf16.mxu0 0
  %1507 = vmatpush1.bf16.msra.mxu0 %v1491
  %1508 = vmatprep.subr.bf16.mxu0 0
  %1509 = vmatpush1.bf16.msra.mxu0 %v1490
  %1510 = vmatprep.subr.bf16.mxu0 0
  %1511 = vmatpush1.bf16.msra.mxu0 %v1489
  %1512 = vmatprep.subr.bf16.mxu0 0
  %1513 = vmatpush1.bf16.msra.mxu0 %v1488
  %1514 = vmatprep.subr.bf16.mxu0 0
  %1515 = vmatpush1.bf16.msra.mxu0 %v1487
  %1516 = vmatprep.subr.bf16.mxu0 0
  %1517 = vmatpush1.bf16.msra.mxu0 %v1486
  %1518 = vmatprep.subr.bf16.mxu0 0
  %1519 = vmatpush2.bf16.msra.mxu0 0
  %1520 = vmatprep.subr.bf16.mxu0 0
  %1521 = vmatpush2.bf16.msra.mxu0 0
  %1522 = vmatprep.subr.bf16.mxu0 0
  %1523 = vmatpush2.bf16.msra.mxu0 0
  %1524 = vmatprep.subr.bf16.mxu0 0
  %1525 = vmatpush2.bf16.msra.mxu0 0
  %1526 = vmatprep.subr.bf16.mxu0 0
  %1527 = vmatpush2.bf16.msra.mxu0 0
  %1528 = vmatprep.subr.bf16.mxu0 0
  %1529 = vmatpush2.bf16.msra.mxu0 0
  %1530 = vmatprep.subr.bf16.mxu0 0
  %1531 = vmatpush2.bf16.msra.mxu0 0
  %1532 = vmatprep.subr.bf16.mxu0 0
  %1533 = vmatpush2.bf16.msra.mxu0 0
  %1534 = vmatprep.mubr.bf16.mxu0 0
  %1535 = vmatmul.mubr.bf16.gmra.mxu0 %v1431
  %v1536 = vpop.f32.mrf.mxu0
  %v1537 = vadd.f32 0.0, %v1536
  %v1538 = vpop.f32.mrf.mxu0
  %v1539 = vpop.f32.mrf.mxu0
  %v1540 = vadd.f32 0.0, %v1539
  %v1541 = vpop.f32.mrf.mxu0
  %1542 = vmatprep.mubr.bf16.mxu0 0
  %1543 = vmatmul.mubr.bf16.gmra.mxu0 %v1432
  %v1544 = vpop.f32.mrf.mxu0
  %v1545 = vadd.f32 0.0, %v1544
  %v1546 = vpop.f32.mrf.mxu0
  %v1547 = vpop.f32.mrf.mxu0
  %v1548 = vadd.f32 0.0, %v1547
  %v1549 = vpop.f32.mrf.mxu0
  %1550 = vmatprep.mubr.bf16.mxu0 0
  %1551 = vmatmul.mubr.bf16.gmra.mxu0 %v1433
  %v1552 = vpop.f32.mrf.mxu0
  %v1553 = vadd.f32 0.0, %v1552
  %v1554 = vpop.f32.mrf.mxu0
  %v1555 = vpop.f32.mrf.mxu0
  %v1556 = vadd.f32 0.0, %v1555
  %v1557 = vpop.f32.mrf.mxu0
  %1558 = vmatprep.mubr.bf16.mxu0 0
  %1559 = vmatmul.mubr.bf16.gmra.mxu0 %v1434
  %v1560 = vpop.f32.mrf.mxu0
  %v1561 = vadd.f32 0.0, %v1560
  %v1562 = vpop.f32.mrf.mxu0
  %v1563 = vpop.f32.mrf.mxu0
  %v1564 = vadd.f32 0.0, %v1563
  %v1565 = vpop.f32.mrf.mxu0
  %1566 = vmatprep.mubr.bf16.mxu0 0
  %1567 = vmatmul.mubr.bf16.gmra.mxu0 %v1435
  %v1568 = vpop.f32.mrf.mxu0
  %v1569 = vadd.f32 0.0, %v1568
  %v1570 = vpop.f32.mrf.mxu0
  %v1571 = vpop.f32.mrf.mxu0
  %v1572 = vadd.f32 0.0, %v1571
  %v1573 = vpop.f32.mrf.mxu0
  %1574 = vmatprep.mubr.bf16.mxu0 0
  %1575 = vmatmul.mubr.bf16.gmra.mxu0 %v1436
  %v1576 = vpop.f32.mrf.mxu0
  %v1577 = vadd.f32 0.0, %v1576
  %v1578 = vpop.f32.mrf.mxu0
  %v1579 = vpop.f32.mrf.mxu0
  %v1580 = vadd.f32 0.0, %v1579
  %v1581 = vpop.f32.mrf.mxu0
  %1582 = vdwg.mxu0
  %v1583 = vadd.f32 %v1407, %v1537
  %v1584 = vadd.f32 %v1408, %v1540
  %v1585 = vadd.f32 %v1409, %v1545
  %v1586 = vadd.f32 %v1410, %v1548
  %v1587 = vadd.f32 %v1411, %v1553
  %v1588 = vadd.f32 %v1412, %v1556
  %v1589 = vadd.f32 %v1413, %v1561
  %v1590 = vadd.f32 %v1414, %v1564
  %v1591 = vadd.f32 %v1415, %v1569
  %v1592 = vadd.f32 %v1416, %v1572
  %v1593 = vadd.f32 %v1417, %v1577
  %v1594 = vadd.f32 %v1418, %v1580
  %v1595 = vld [vmem:[%s2] sm:$0x1]
  %v1597 = vlaneseq
  %v1598 = vshrl.u32 %v1597, 7
  %v1599 = vsub.s32 0, %v1598
  %v1600 = vrot.slane %v1595, %v1599
  %v1602 = vadd.f32 %v1583, %v1600
  %v1603 = vadd.f32 %v1584, %v1600
  %v1604 = vadd.f32 %v1585, %v1600
  %v1605 = vadd.f32 %v1586, %v1600
  %v1606 = vadd.f32 %v1587, %v1600
  %v1607 = vadd.f32 %v1588, %v1600
  %v1608 = vadd.f32 %v1589, %v1600
  %v1609 = vadd.f32 %v1590, %v1600
  %v1610 = vadd.f32 %v1591, %v1600
  %v1611 = vadd.f32 %v1592, %v1600
  %v1612 = vadd.f32 %v1593, %v1600
  %v1613 = vadd.f32 %v1594, %v1600
  %v1614 = vmax.f32 %v1602, 0.0
  %v1615 = vmax.f32 %v1603, 0.0
  %v1616 = vmax.f32 %v1604, 0.0
  %v1617 = vmax.f32 %v1605, 0.0
  %v1618 = vmax.f32 %v1606, 0.0
  %v1619 = vmax.f32 %v1607, 0.0
  %v1620 = vmax.f32 %v1608, 0.0
  %v1621 = vmax.f32 %v1609, 0.0
  %v1622 = vmax.f32 %v1610, 0.0
  %v1623 = vmax.f32 %v1611, 0.0
  %v1624 = vmax.f32 %v1612, 0.0
  %v1625 = vmax.f32 %v1613, 0.0
  %vm1637 = vcmask 1046528
  %v1638 = vrot.slane %v1614, 1
  %v1639 = vrot.slane %v1615, 1
  %v1640 = vsel %vm1637, %v1638, %v1639
  %v1641 = vrot.slane %v1616, 1
  %v1642 = vsel %vm1637, %v1639, %v1641
  %v1643 = vrot.slane %v1617, 1
  %v1644 = vsel %vm1637, %v1641, %v1643
  %v1645 = vrot.slane %v1618, 1
  %v1646 = vsel %vm1637, %v1643, %v1645
  %v1647 = vrot.slane %v1619, 1
  %v1648 = vsel %vm1637, %v1645, %v1647
  %v1649 = vrot.slane %v1620, 1
  %v1650 = vsel %vm1637, %v1647, %v1649
  %v1651 = vrot.slane %v1621, 1
  %v1652 = vsel %vm1637, %v1649, %v1651
  %v1653 = vrot.slane %v1622, 1
  %v1654 = vsel %vm1637, %v1651, %v1653
  %v1655 = vrot.slane %v1623, 1
  %v1656 = vsel %vm1637, %v1653, %v1655
  %v1657 = vrot.slane %v1624, 1
  %v1658 = vsel %vm1637, %v1655, %v1657
  %v1670 = vmax.f32 %v1614, %v1640
  %v1671 = vmax.f32 %v1615, %v1642
  %v1672 = vmax.f32 %v1616, %v1644
  %v1673 = vmax.f32 %v1617, %v1646
  %v1674 = vmax.f32 %v1618, %v1648
  %v1675 = vmax.f32 %v1619, %v1650
  %v1676 = vmax.f32 %v1620, %v1652
  %v1677 = vmax.f32 %v1621, %v1654
  %v1678 = vmax.f32 %v1622, %v1656
  %v1679 = vmax.f32 %v1623, %v1658
  %v1680 = vmax.f32 %v1624, %v1657
  %v1682 = vrot.slane %v1625, 1
  %v1683 = vsel %vm1637, %v1657, %v1682
  %v1686 = vmax.f32 %v1624, %v1683
  %v1687 = vmax.f32 %v1625, %v1682
  %vm1700 = vcmask 1045504
  %v1701 = vrot.slane %v1670, 2
  %v1702 = vrot.slane %v1671, 2
  %v1703 = vsel %vm1700, %v1701, %v1702
  %v1704 = vrot.slane %v1672, 2
  %v1705 = vsel %vm1700, %v1702, %v1704
  %v1706 = vrot.slane %v1673, 2
  %v1707 = vsel %vm1700, %v1704, %v1706
  %v1708 = vrot.slane %v1674, 2
  %v1709 = vsel %vm1700, %v1706, %v1708
  %v1710 = vrot.slane %v1675, 2
  %v1711 = vsel %vm1700, %v1708, %v1710
  %v1712 = vrot.slane %v1676, 2
  %v1713 = vsel %vm1700, %v1710, %v1712
  %v1714 = vrot.slane %v1677, 2
  %v1715 = vsel %vm1700, %v1712, %v1714
  %v1716 = vrot.slane %v1678, 2
  %v1717 = vsel %vm1700, %v1714, %v1716
  %v1718 = vrot.slane %v1679, 2
  %v1719 = vsel %vm1700, %v1716, %v1718
  %v1720 = vrot.slane %v1686, 2
  %v1721 = vsel %vm1700, %v1718, %v1720
  %v1722 = vrot.slane %v1687, 2
  %v1723 = vsel %vm1700, %v1720, %v1722
  %v1735 = vmax.f32 %v1670, %v1703
  %v1736 = vmax.f32 %v1671, %v1705
  %v1737 = vmax.f32 %v1672, %v1707
  %v1738 = vmax.f32 %v1673, %v1709
  %v1739 = vmax.f32 %v1674, %v1711
  %v1740 = vmax.f32 %v1675, %v1713
  %v1741 = vmax.f32 %v1676, %v1715
  %v1742 = vmax.f32 %v1677, %v1717
  %v1743 = vmax.f32 %v1678, %v1719
  %v1744 = vmax.f32 %v1679, %v1721
  %v1745 = vmax.f32 %v1680, %v1723
  %v1746 = vld [vmem:[%s5] sm:$0xff]
  %v1747 = vld [vmem:[%s5 + $0x8] sm:$0xff]
  %v1748 = vld [vmem:[%s5 + $0x10] sm:$0xff]
  %v1749 = vld [vmem:[%s5 + $0x18] sm:$0xff]
  %v1750 = vld [vmem:[%s5 + $0x20] sm:$0xff]
  %v1751 = vld [vmem:[%s5 + $0x28] sm:$0xf]
  %vm1752 = vcmask 711680
  %v1754 = vsel %vm1752, %v1746, 0
  %v1757 = vsel %vm1752, %v1747, 0
  %v1760 = vsel %vm1752, %v1748, 0
  %v1763 = vsel %vm1752, %v1749, 0
  %v1766 = vsel %vm1752, %v1750, 0
  %v1769 = vsel %vm1752, %v1751, 0
  %v1772 = vsel %vm1637, %v1745, 0
  %1774 = vmatprep.subr.mxu0 0.0
  %1775 = vmatpush1.msra.mxu0 0.0
  %1776 = vmatprep.subr.mxu0 0.0
  %1777 = vmatpush1.msra.mxu0 0.0
  %1778 = vmatprep.subr.mxu0 0.0
  %1779 = vmatpush1.msra.mxu0 0.0
  %1780 = vmatprep.subr.mxu0 0.0
  %1781 = vmatpush1.msra.mxu0 0.0
  %1782 = vmatprep.subr.mxu0 0.0
  %1783 = vmatpush1.msra.mxu0 0.0
  %1784 = vmatprep.subr.mxu0 0.0
  %1785 = vmatpush1.msra.mxu0 %v1772
  %1786 = vmatprep.subr.mxu0 0.0
  %1787 = vmatpush1.msra.mxu0 %v1744
  %1788 = vmatprep.subr.mxu0 0.0
  %1789 = vmatpush1.msra.mxu0 %v1743
  %1790 = vmatprep.subr.mxu0 0.0
  %1791 = vmatpush1.msra.mxu0 %v1742
  %1792 = vmatprep.subr.mxu0 0.0
  %1793 = vmatpush1.msra.mxu0 %v1741
  %1794 = vmatprep.subr.mxu0 0.0
  %1795 = vmatpush1.msra.mxu0 %v1740
  %1796 = vmatprep.subr.mxu0 0.0
  %1797 = vmatpush1.msra.mxu0 %v1739
  %1798 = vmatprep.subr.mxu0 0.0
  %1799 = vmatpush1.msra.mxu0 %v1738
  %1800 = vmatprep.subr.mxu0 0.0
  %1801 = vmatpush1.msra.mxu0 %v1737
  %1802 = vmatprep.subr.mxu0 0.0
  %1803 = vmatpush1.msra.mxu0 %v1736
  %1804 = vmatprep.subr.mxu0 0.0
  %1805 = vmatpush1.msra.mxu0 %v1735
  %1806 = vmatprep.subr.mxu0 0.0
  %1807 = vmatpush2.msra.mxu0 0.0
  %1808 = vmatprep.subr.mxu0 0.0
  %1809 = vmatpush2.msra.mxu0 0.0
  %1810 = vmatprep.subr.mxu0 0.0
  %1811 = vmatpush2.msra.mxu0 0.0
  %1812 = vmatprep.subr.mxu0 0.0
  %1813 = vmatpush2.msra.mxu0 0.0
  %1814 = vmatprep.subr.mxu0 0.0
  %1815 = vmatpush2.msra.mxu0 0.0
  %1816 = vmatprep.subr.mxu0 0.0
  %1817 = vmatpush2.msra.mxu0 0.0
  %1818 = vmatprep.subr.mxu0 0.0
  %1819 = vmatpush2.msra.mxu0 0.0
  %1820 = vmatprep.subr.mxu0 0.0
  %1821 = vmatpush2.msra.mxu0 0.0
  %1822 = vmatprep.subr.mxu0 0.0
  %1823 = vmatpush2.msra.mxu0 0.0
  %1824 = vmatprep.subr.mxu0 0.0
  %1825 = vmatpush2.msra.mxu0 0.0
  %1826 = vmatprep.subr.mxu0 0.0
  %1827 = vmatpush2.msra.mxu0 0.0
  %1828 = vmatprep.subr.mxu0 0.0
  %1829 = vmatpush2.msra.mxu0 0.0
  %1830 = vmatprep.subr.mxu0 0.0
  %1831 = vmatpush2.msra.mxu0 0.0
  %1832 = vmatprep.subr.mxu0 0.0
  %1833 = vmatpush2.msra.mxu0 0.0
  %1834 = vmatprep.subr.mxu0 0.0
  %1835 = vmatpush2.msra.mxu0 0.0
  %1836 = vmatprep.subr.mxu0 0.0
  %1837 = vmatpush2.msra.mxu0 0.0
  %1838 = vmatprep.mubr.f32.mxu0 0.0
  %1839 = vmatmul.mubr.f32.gmra.mxu0 %v1754
  %v1840 = vpop.f32.mrf.mxu0
  %v1841 = vadd.f32 0.0, %v1840
  %v1842 = vpop.f32.mrf.mxu0
  %1843 = vmatprep.mubr.f32.mxu0 0.0
  %1844 = vmatmul.mubr.f32.gmra.mxu0 %v1757
  %v1845 = vpop.f32.mrf.mxu0
  %v1846 = vadd.f32 0.0, %v1845
  %v1847 = vpop.f32.mrf.mxu0
  %1848 = vmatprep.mubr.f32.mxu0 0.0
  %1849 = vmatmul.mubr.f32.gmra.mxu0 %v1760
  %v1850 = vpop.f32.mrf.mxu0
  %v1851 = vadd.f32 0.0, %v1850
  %v1852 = vpop.f32.mrf.mxu0
  %1853 = vmatprep.mubr.f32.mxu0 0.0
  %1854 = vmatmul.mubr.f32.gmra.mxu0 %v1763
  %v1855 = vpop.f32.mrf.mxu0
  %v1856 = vadd.f32 0.0, %v1855
  %v1857 = vpop.f32.mrf.mxu0
  %1858 = vmatprep.mubr.f32.mxu0 0.0
  %1859 = vmatmul.mubr.f32.gmra.mxu0 %v1766
  %v1860 = vpop.f32.mrf.mxu0
  %v1861 = vadd.f32 0.0, %v1860
  %v1862 = vpop.f32.mrf.mxu0
  %1863 = vmatprep.mubr.f32.mxu0 0.0
  %1864 = vmatmul.mubr.f32.gmra.mxu0 %v1769
  %v1865 = vpop.f32.mrf.mxu0
  %v1866 = vadd.f32 0.0, %v1865
  %v1867 = vpop.f32.mrf.mxu0
  %1868 = vdwg.mxu0
  %v1869 = vadd.f32 %v1841, %v1846
  %v1870 = vadd.f32 %v1869, %v1851
  %v1871 = vadd.f32 %v1870, %v1856
  %v1872 = vadd.f32 %v1871, %v1861
  %vm1873 = vcmask 1043456
  %v1874 = vsel %vm1873, %v1866, 0.0
  %v1875 = vadd.f32 %v1872, %v1874
  %v1876 = vrot.slane %v1875, 4
  %v1877 = vadd.f32 %v1875, %v1876
  %v1878 = vrot.slane %v1877, 2
  %v1879 = vadd.f32 %v1877, %v1878
  %v1880 = vrot.slane %v1879, 1
  %v1881 = vadd.f32 %v1879, %v1880
  %s1882 = scalar_lea.vmem %s0, 104
  %v1883 = vld [vmem:[%s1882] sm:$0xff]
  %v1884 = vld [vmem:[%s1882 + $0x8] sm:$0xff]
  %v1885 = vld [vmem:[%s1882 + $0x10] sm:$0xff]
  %v1886 = vld [vmem:[%s1882 + $0x18] sm:$0xff]
  %v1887 = vld [vmem:[%s1882 + $0x20] sm:$0xff]
  %v1888 = vld [vmem:[%s1882 + $0x28] sm:$0xff]
  %v1889 = vld [vmem:[%s1882 + $0x30] sm:$0xff]
  %v1890 = vld [vmem:[%s1882 + $0x38] sm:$0xff]
  %v1891 = vld [vmem:[%s1882 + $0x40] sm:$0xff]
  %v1892 = vld [vmem:[%s1882 + $0x48] sm:$0xff]
  %v1893 = vld [vmem:[%s1882 + $0x50] sm:$0xff]
  %v1894 = vld [vmem:[%s1882 + $0x58] sm:$0x3]
  %v1895 = vpack.c.bf16 %v1884, %v1883
  %v1896 = vpack.c.bf16 %v1886, %v1885
  %v1897 = vpack.c.bf16 %v1888, %v1887
  %v1898 = vpack.c.bf16 %v1890, %v1889
  %v1899 = vpack.c.bf16 %v1892, %v1891
  %v1900 = vpack.c.bf16 %v1894, %v1893
  %v1901 = vld [vmem:[%s1882 + $0x1] sm:$0xff]
  %v1902 = vld [vmem:[%s1882 + $0x9] sm:$0xff]
  %v1903 = vld [vmem:[%s1882 + $0x11] sm:$0xff]
  %v1904 = vld [vmem:[%s1882 + $0x19] sm:$0xff]
  %v1905 = vld [vmem:[%s1882 + $0x21] sm:$0xff]
  %v1906 = vld [vmem:[%s1882 + $0x29] sm:$0xff]
  %v1907 = vld [vmem:[%s1882 + $0x31] sm:$0xff]
  %v1908 = vld [vmem:[%s1882 + $0x39] sm:$0xff]
  %v1909 = vld [vmem:[%s1882 + $0x41] sm:$0xff]
  %v1910 = vld [vmem:[%s1882 + $0x49] sm:$0xff]
  %v1911 = vld [vmem:[%s1882 + $0x51] sm:$0xff]
  %v1912 = vld [vmem:[%s1882 + $0x59] sm:$0x3]
  %v1913 = vpack.c.bf16 %v1902, %v1901
  %v1914 = vpack.c.bf16 %v1904, %v1903
  %v1915 = vpack.c.bf16 %v1906, %v1905
  %v1916 = vpack.c.bf16 %v1908, %v1907
  %v1917 = vpack.c.bf16 %v1910, %v1909
  %v1918 = vpack.c.bf16 %v1912, %v1911
  %1919 = vmatprep.subr.bf16.mxu0 0
  %1920 = vmatpush1.bf16.msra.mxu0 %v144
  %1921 = vmatprep.subr.bf16.mxu0 0
  %1922 = vmatpush1.bf16.msra.mxu0 %v143
  %1923 = vmatprep.subr.bf16.mxu0 0
  %1924 = vmatpush1.bf16.msra.mxu0 %v142
  %1925 = vmatprep.subr.bf16.mxu0 0
  %1926 = vmatpush1.bf16.msra.mxu0 %v141
  %1927 = vmatprep.subr.bf16.mxu0 0
  %1928 = vmatpush1.bf16.msra.mxu0 %v140
  %1929 = vmatprep.subr.bf16.mxu0 0
  %1930 = vmatpush1.bf16.msra.mxu0 %v139
  %1931 = vmatprep.subr.bf16.mxu0 0
  %1932 = vmatpush1.bf16.msra.mxu0 %v138
  %1933 = vmatprep.subr.bf16.mxu0 0
  %1934 = vmatpush1.bf16.msra.mxu0 %v137
  %1935 = vmatprep.subr.bf16.mxu0 0
  %1936 = vmatpush2.bf16.msra.mxu0 0
  %1937 = vmatprep.subr.bf16.mxu0 0
  %1938 = vmatpush2.bf16.msra.mxu0 0
  %1939 = vmatprep.subr.bf16.mxu0 0
  %1940 = vmatpush2.bf16.msra.mxu0 0
  %1941 = vmatprep.subr.bf16.mxu0 0
  %1942 = vmatpush2.bf16.msra.mxu0 0
  %1943 = vmatprep.subr.bf16.mxu0 0
  %1944 = vmatpush2.bf16.msra.mxu0 0
  %1945 = vmatprep.subr.bf16.mxu0 0
  %1946 = vmatpush2.bf16.msra.mxu0 0
  %1947 = vmatprep.subr.bf16.mxu0 0
  %1948 = vmatpush2.bf16.msra.mxu0 0
  %1949 = vmatprep.subr.bf16.mxu0 0
  %1950 = vmatpush2.bf16.msra.mxu0 0
  %1951 = vmatprep.mubr.bf16.mxu0 0
  %1952 = vmatmul.mubr.bf16.gmra.mxu0 %v1913
  %v1953 = vpop.f32.mrf.mxu0
  %v1954 = vadd.f32 0.0, %v1953
  %v1955 = vpop.f32.mrf.mxu0
  %v1956 = vpop.f32.mrf.mxu0
  %v1957 = vadd.f32 0.0, %v1956
  %v1958 = vpop.f32.mrf.mxu0
  %1959 = vmatprep.mubr.bf16.mxu0 0
  %1960 = vmatmul.mubr.bf16.gmra.mxu0 %v1914
  %v1961 = vpop.f32.mrf.mxu0
  %v1962 = vadd.f32 0.0, %v1961
  %v1963 = vpop.f32.mrf.mxu0
  %v1964 = vpop.f32.mrf.mxu0
  %v1965 = vadd.f32 0.0, %v1964
  %v1966 = vpop.f32.mrf.mxu0
  %1967 = vmatprep.mubr.bf16.mxu0 0
  %1968 = vmatmul.mubr.bf16.gmra.mxu0 %v1915
  %v1969 = vpop.f32.mrf.mxu0
  %v1970 = vadd.f32 0.0, %v1969
  %v1971 = vpop.f32.mrf.mxu0
  %v1972 = vpop.f32.mrf.mxu0
  %v1973 = vadd.f32 0.0, %v1972
  %v1974 = vpop.f32.mrf.mxu0
  %1975 = vmatprep.mubr.bf16.mxu0 0
  %1976 = vmatmul.mubr.bf16.gmra.mxu0 %v1916
  %v1977 = vpop.f32.mrf.mxu0
  %v1978 = vadd.f32 0.0, %v1977
  %v1979 = vpop.f32.mrf.mxu0
  %v1980 = vpop.f32.mrf.mxu0
  %v1981 = vadd.f32 0.0, %v1980
  %v1982 = vpop.f32.mrf.mxu0
  %1983 = vmatprep.mubr.bf16.mxu0 0
  %1984 = vmatmul.mubr.bf16.gmra.mxu0 %v1917
  %v1985 = vpop.f32.mrf.mxu0
  %v1986 = vadd.f32 0.0, %v1985
  %v1987 = vpop.f32.mrf.mxu0
  %v1988 = vpop.f32.mrf.mxu0
  %v1989 = vadd.f32 0.0, %v1988
  %v1990 = vpop.f32.mrf.mxu0
  %1991 = vmatprep.mubr.bf16.mxu0 0
  %1992 = vmatmul.mubr.bf16.gmra.mxu0 %v1918
  %v1993 = vpop.f32.mrf.mxu0
  %v1994 = vadd.f32 0.0, %v1993
  %v1995 = vpop.f32.mrf.mxu0
  %v1996 = vpop.f32.mrf.mxu0
  %v1997 = vadd.f32 0.0, %v1996
  %v1998 = vpop.f32.mrf.mxu0
  %1999 = vdwg.mxu0
  %2000 = vmatprep.subr.bf16.mxu0 0
  %2001 = vmatpush1.bf16.msra.mxu0 %v273
  %2002 = vmatprep.subr.bf16.mxu0 0
  %2003 = vmatpush1.bf16.msra.mxu0 %v272
  %2004 = vmatprep.subr.bf16.mxu0 0
  %2005 = vmatpush1.bf16.msra.mxu0 %v271
  %2006 = vmatprep.subr.bf16.mxu0 0
  %2007 = vmatpush1.bf16.msra.mxu0 %v270
  %2008 = vmatprep.subr.bf16.mxu0 0
  %2009 = vmatpush1.bf16.msra.mxu0 %v269
  %2010 = vmatprep.subr.bf16.mxu0 0
  %2011 = vmatpush1.bf16.msra.mxu0 %v268
  %2012 = vmatprep.subr.bf16.mxu0 0
  %2013 = vmatpush1.bf16.msra.mxu0 %v267
  %2014 = vmatprep.subr.bf16.mxu0 0
  %2015 = vmatpush1.bf16.msra.mxu0 %v266
  %2016 = vmatprep.subr.bf16.mxu0 0
  %2017 = vmatpush2.bf16.msra.mxu0 0
  %2018 = vmatprep.subr.bf16.mxu0 0
  %2019 = vmatpush2.bf16.msra.mxu0 0
  %2020 = vmatprep.subr.bf16.mxu0 0
  %2021 = vmatpush2.bf16.msra.mxu0 0
  %2022 = vmatprep.subr.bf16.mxu0 0
  %2023 = vmatpush2.bf16.msra.mxu0 0
  %2024 = vmatprep.subr.bf16.mxu0 0
  %2025 = vmatpush2.bf16.msra.mxu0 0
  %2026 = vmatprep.subr.bf16.mxu0 0
  %2027 = vmatpush2.bf16.msra.mxu0 0
  %2028 = vmatprep.subr.bf16.mxu0 0
  %2029 = vmatpush2.bf16.msra.mxu0 0
  %2030 = vmatprep.subr.bf16.mxu0 0
  %2031 = vmatpush2.bf16.msra.mxu0 0
  %2032 = vmatprep.mubr.bf16.mxu0 0
  %2033 = vmatmul.mubr.bf16.gmra.mxu0 %v1895
  %v2034 = vpop.f32.mrf.mxu0
  %v2035 = vadd.f32 %v1954, %v2034
  %v2036 = vpop.f32.mrf.mxu0
  %v2037 = vpop.f32.mrf.mxu0
  %v2038 = vadd.f32 %v1957, %v2037
  %v2039 = vpop.f32.mrf.mxu0
  %2040 = vmatprep.mubr.bf16.mxu0 0
  %2041 = vmatmul.mubr.bf16.gmra.mxu0 %v1896
  %v2042 = vpop.f32.mrf.mxu0
  %v2043 = vadd.f32 %v1962, %v2042
  %v2044 = vpop.f32.mrf.mxu0
  %v2045 = vpop.f32.mrf.mxu0
  %v2046 = vadd.f32 %v1965, %v2045
  %v2047 = vpop.f32.mrf.mxu0
  %2048 = vmatprep.mubr.bf16.mxu0 0
  %2049 = vmatmul.mubr.bf16.gmra.mxu0 %v1897
  %v2050 = vpop.f32.mrf.mxu0
  %v2051 = vadd.f32 %v1970, %v2050
  %v2052 = vpop.f32.mrf.mxu0
  %v2053 = vpop.f32.mrf.mxu0
  %v2054 = vadd.f32 %v1973, %v2053
  %v2055 = vpop.f32.mrf.mxu0
  %2056 = vmatprep.mubr.bf16.mxu0 0
  %2057 = vmatmul.mubr.bf16.gmra.mxu0 %v1898
  %v2058 = vpop.f32.mrf.mxu0
  %v2059 = vadd.f32 %v1978, %v2058
  %v2060 = vpop.f32.mrf.mxu0
  %v2061 = vpop.f32.mrf.mxu0
  %v2062 = vadd.f32 %v1981, %v2061
  %v2063 = vpop.f32.mrf.mxu0
  %2064 = vmatprep.mubr.bf16.mxu0 0
  %2065 = vmatmul.mubr.bf16.gmra.mxu0 %v1899
  %v2066 = vpop.f32.mrf.mxu0
  %v2067 = vadd.f32 %v1986, %v2066
  %v2068 = vpop.f32.mrf.mxu0
  %v2069 = vpop.f32.mrf.mxu0
  %v2070 = vadd.f32 %v1989, %v2069
  %v2071 = vpop.f32.mrf.mxu0
  %2072 = vmatprep.mubr.bf16.mxu0 0
  %2073 = vmatmul.mubr.bf16.gmra.mxu0 %v1900
  %v2074 = vpop.f32.mrf.mxu0
  %v2075 = vadd.f32 %v1994, %v2074
  %v2076 = vpop.f32.mrf.mxu0
  %v2077 = vpop.f32.mrf.mxu0
  %v2078 = vadd.f32 %v1997, %v2077
  %v2079 = vpop.f32.mrf.mxu0
  %2080 = vdwg.mxu0
  %v2081 = vld [vmem:[%s1882 + $0x2] sm:$0xff]
  %v2082 = vld [vmem:[%s1882 + $0xa] sm:$0xff]
  %v2083 = vld [vmem:[%s1882 + $0x12] sm:$0xff]
  %v2084 = vld [vmem:[%s1882 + $0x1a] sm:$0xff]
  %v2085 = vld [vmem:[%s1882 + $0x22] sm:$0xff]
  %v2086 = vld [vmem:[%s1882 + $0x2a] sm:$0xff]
  %v2087 = vld [vmem:[%s1882 + $0x32] sm:$0xff]
  %v2088 = vld [vmem:[%s1882 + $0x3a] sm:$0xff]
  %v2089 = vld [vmem:[%s1882 + $0x42] sm:$0xff]
  %v2090 = vld [vmem:[%s1882 + $0x4a] sm:$0xff]
  %v2091 = vld [vmem:[%s1882 + $0x52] sm:$0xff]
  %v2092 = vld [vmem:[%s1882 + $0x5a] sm:$0x3]
  %v2093 = vpack.c.bf16 %v2082, %v2081
  %v2094 = vpack.c.bf16 %v2084, %v2083
  %v2095 = vpack.c.bf16 %v2086, %v2085
  %v2096 = vpack.c.bf16 %v2088, %v2087
  %v2097 = vpack.c.bf16 %v2090, %v2089
  %v2098 = vpack.c.bf16 %v2092, %v2091
  %2099 = vmatprep.subr.bf16.mxu0 0
  %2100 = vmatpush1.bf16.msra.mxu0 %v437
  %2101 = vmatprep.subr.bf16.mxu0 0
  %2102 = vmatpush1.bf16.msra.mxu0 %v436
  %2103 = vmatprep.subr.bf16.mxu0 0
  %2104 = vmatpush1.bf16.msra.mxu0 %v435
  %2105 = vmatprep.subr.bf16.mxu0 0
  %2106 = vmatpush1.bf16.msra.mxu0 %v434
  %2107 = vmatprep.subr.bf16.mxu0 0
  %2108 = vmatpush1.bf16.msra.mxu0 %v433
  %2109 = vmatprep.subr.bf16.mxu0 0
  %2110 = vmatpush1.bf16.msra.mxu0 %v432
  %2111 = vmatprep.subr.bf16.mxu0 0
  %2112 = vmatpush1.bf16.msra.mxu0 %v431
  %2113 = vmatprep.subr.bf16.mxu0 0
  %2114 = vmatpush1.bf16.msra.mxu0 %v430
  %2115 = vmatprep.subr.bf16.mxu0 0
  %2116 = vmatpush2.bf16.msra.mxu0 0
  %2117 = vmatprep.subr.bf16.mxu0 0
  %2118 = vmatpush2.bf16.msra.mxu0 0
  %2119 = vmatprep.subr.bf16.mxu0 0
  %2120 = vmatpush2.bf16.msra.mxu0 0
  %2121 = vmatprep.subr.bf16.mxu0 0
  %2122 = vmatpush2.bf16.msra.mxu0 0
  %2123 = vmatprep.subr.bf16.mxu0 0
  %2124 = vmatpush2.bf16.msra.mxu0 0
  %2125 = vmatprep.subr.bf16.mxu0 0
  %2126 = vmatpush2.bf16.msra.mxu0 0
  %2127 = vmatprep.subr.bf16.mxu0 0
  %2128 = vmatpush2.bf16.msra.mxu0 0
  %2129 = vmatprep.subr.bf16.mxu0 0
  %2130 = vmatpush2.bf16.msra.mxu0 0
  %2131 = vmatprep.mubr.bf16.mxu0 0
  %2132 = vmatmul.mubr.bf16.gmra.mxu0 %v2093
  %v2133 = vpop.f32.mrf.mxu0
  %v2134 = vadd.f32 0.0, %v2133
  %v2135 = vpop.f32.mrf.mxu0
  %v2136 = vpop.f32.mrf.mxu0
  %v2137 = vadd.f32 0.0, %v2136
  %v2138 = vpop.f32.mrf.mxu0
  %2139 = vmatprep.mubr.bf16.mxu0 0
  %2140 = vmatmul.mubr.bf16.gmra.mxu0 %v2094
  %v2141 = vpop.f32.mrf.mxu0
  %v2142 = vadd.f32 0.0, %v2141
  %v2143 = vpop.f32.mrf.mxu0
  %v2144 = vpop.f32.mrf.mxu0
  %v2145 = vadd.f32 0.0, %v2144
  %v2146 = vpop.f32.mrf.mxu0
  %2147 = vmatprep.mubr.bf16.mxu0 0
  %2148 = vmatmul.mubr.bf16.gmra.mxu0 %v2095
  %v2149 = vpop.f32.mrf.mxu0
  %v2150 = vadd.f32 0.0, %v2149
  %v2151 = vpop.f32.mrf.mxu0
  %v2152 = vpop.f32.mrf.mxu0
  %v2153 = vadd.f32 0.0, %v2152
  %v2154 = vpop.f32.mrf.mxu0
  %2155 = vmatprep.mubr.bf16.mxu0 0
  %2156 = vmatmul.mubr.bf16.gmra.mxu0 %v2096
  %v2157 = vpop.f32.mrf.mxu0
  %v2158 = vadd.f32 0.0, %v2157
  %v2159 = vpop.f32.mrf.mxu0
  %v2160 = vpop.f32.mrf.mxu0
  %v2161 = vadd.f32 0.0, %v2160
  %v2162 = vpop.f32.mrf.mxu0
  %2163 = vmatprep.mubr.bf16.mxu0 0
  %2164 = vmatmul.mubr.bf16.gmra.mxu0 %v2097
  %v2165 = vpop.f32.mrf.mxu0
  %v2166 = vadd.f32 0.0, %v2165
  %v2167 = vpop.f32.mrf.mxu0
  %v2168 = vpop.f32.mrf.mxu0
  %v2169 = vadd.f32 0.0, %v2168
  %v2170 = vpop.f32.mrf.mxu0
  %2171 = vmatprep.mubr.bf16.mxu0 0
  %2172 = vmatmul.mubr.bf16.gmra.mxu0 %v2098
  %v2173 = vpop.f32.mrf.mxu0
  %v2174 = vadd.f32 0.0, %v2173
  %v2175 = vpop.f32.mrf.mxu0
  %v2176 = vpop.f32.mrf.mxu0
  %v2177 = vadd.f32 0.0, %v2176
  %v2178 = vpop.f32.mrf.mxu0
  %2179 = vdwg.mxu0
  %v2180 = vadd.f32 %v2035, %v2134
  %v2181 = vadd.f32 %v2038, %v2137
  %v2182 = vadd.f32 %v2043, %v2142
  %v2183 = vadd.f32 %v2046, %v2145
  %v2184 = vadd.f32 %v2051, %v2150
  %v2185 = vadd.f32 %v2054, %v2153
  %v2186 = vadd.f32 %v2059, %v2158
  %v2187 = vadd.f32 %v2062, %v2161
  %v2188 = vadd.f32 %v2067, %v2166
  %v2189 = vadd.f32 %v2070, %v2169
  %v2190 = vadd.f32 %v2075, %v2174
  %v2191 = vadd.f32 %v2078, %v2177
  %v2192 = vld [vmem:[%s1882 + $0x3] sm:$0xff]
  %v2193 = vld [vmem:[%s1882 + $0xb] sm:$0xff]
  %v2194 = vld [vmem:[%s1882 + $0x13] sm:$0xff]
  %v2195 = vld [vmem:[%s1882 + $0x1b] sm:$0xff]
  %v2196 = vld [vmem:[%s1882 + $0x23] sm:$0xff]
  %v2197 = vld [vmem:[%s1882 + $0x2b] sm:$0xff]
  %v2198 = vld [vmem:[%s1882 + $0x33] sm:$0xff]
  %v2199 = vld [vmem:[%s1882 + $0x3b] sm:$0xff]
  %v2200 = vld [vmem:[%s1882 + $0x43] sm:$0xff]
  %v2201 = vld [vmem:[%s1882 + $0x4b] sm:$0xff]
  %v2202 = vld [vmem:[%s1882 + $0x53] sm:$0xff]
  %v2203 = vld [vmem:[%s1882 + $0x5b] sm:$0x3]
  %v2204 = vpack.c.bf16 %v2193, %v2192
  %v2205 = vpack.c.bf16 %v2195, %v2194
  %v2206 = vpack.c.bf16 %v2197, %v2196
  %v2207 = vpack.c.bf16 %v2199, %v2198
  %v2208 = vpack.c.bf16 %v2201, %v2200
  %v2209 = vpack.c.bf16 %v2203, %v2202
  %2210 = vmatprep.subr.bf16.mxu0 0
  %2211 = vmatpush1.bf16.msra.mxu0 %v613
  %2212 = vmatprep.subr.bf16.mxu0 0
  %2213 = vmatpush1.bf16.msra.mxu0 %v612
  %2214 = vmatprep.subr.bf16.mxu0 0
  %2215 = vmatpush1.bf16.msra.mxu0 %v611
  %2216 = vmatprep.subr.bf16.mxu0 0
  %2217 = vmatpush1.bf16.msra.mxu0 %v610
  %2218 = vmatprep.subr.bf16.mxu0 0
  %2219 = vmatpush1.bf16.msra.mxu0 %v609
  %2220 = vmatprep.subr.bf16.mxu0 0
  %2221 = vmatpush1.bf16.msra.mxu0 %v608
  %2222 = vmatprep.subr.bf16.mxu0 0
  %2223 = vmatpush1.bf16.msra.mxu0 %v607
  %2224 = vmatprep.subr.bf16.mxu0 0
  %2225 = vmatpush1.bf16.msra.mxu0 %v606
  %2226 = vmatprep.subr.bf16.mxu0 0
  %2227 = vmatpush2.bf16.msra.mxu0 0
  %2228 = vmatprep.subr.bf16.mxu0 0
  %2229 = vmatpush2.bf16.msra.mxu0 0
  %2230 = vmatprep.subr.bf16.mxu0 0
  %2231 = vmatpush2.bf16.msra.mxu0 0
  %2232 = vmatprep.subr.bf16.mxu0 0
  %2233 = vmatpush2.bf16.msra.mxu0 0
  %2234 = vmatprep.subr.bf16.mxu0 0
  %2235 = vmatpush2.bf16.msra.mxu0 0
  %2236 = vmatprep.subr.bf16.mxu0 0
  %2237 = vmatpush2.bf16.msra.mxu0 0
  %2238 = vmatprep.subr.bf16.mxu0 0
  %2239 = vmatpush2.bf16.msra.mxu0 0
  %2240 = vmatprep.subr.bf16.mxu0 0
  %2241 = vmatpush2.bf16.msra.mxu0 0
  %2242 = vmatprep.mubr.bf16.mxu0 0
  %2243 = vmatmul.mubr.bf16.gmra.mxu0 %v2204
  %v2244 = vpop.f32.mrf.mxu0
  %v2245 = vadd.f32 0.0, %v2244
  %v2246 = vpop.f32.mrf.mxu0
  %v2247 = vpop.f32.mrf.mxu0
  %v2248 = vadd.f32 0.0, %v2247
  %v2249 = vpop.f32.mrf.mxu0
  %2250 = vmatprep.mubr.bf16.mxu0 0
  %2251 = vmatmul.mubr.bf16.gmra.mxu0 %v2205
  %v2252 = vpop.f32.mrf.mxu0
  %v2253 = vadd.f32 0.0, %v2252
  %v2254 = vpop.f32.mrf.mxu0
  %v2255 = vpop.f32.mrf.mxu0
  %v2256 = vadd.f32 0.0, %v2255
  %v2257 = vpop.f32.mrf.mxu0
  %2258 = vmatprep.mubr.bf16.mxu0 0
  %2259 = vmatmul.mubr.bf16.gmra.mxu0 %v2206
  %v2260 = vpop.f32.mrf.mxu0
  %v2261 = vadd.f32 0.0, %v2260
  %v2262 = vpop.f32.mrf.mxu0
  %v2263 = vpop.f32.mrf.mxu0
  %v2264 = vadd.f32 0.0, %v2263
  %v2265 = vpop.f32.mrf.mxu0
  %2266 = vmatprep.mubr.bf16.mxu0 0
  %2267 = vmatmul.mubr.bf16.gmra.mxu0 %v2207
  %v2268 = vpop.f32.mrf.mxu0
  %v2269 = vadd.f32 0.0, %v2268
  %v2270 = vpop.f32.mrf.mxu0
  %v2271 = vpop.f32.mrf.mxu0
  %v2272 = vadd.f32 0.0, %v2271
  %v2273 = vpop.f32.mrf.mxu0
  %2274 = vmatprep.mubr.bf16.mxu0 0
  %2275 = vmatmul.mubr.bf16.gmra.mxu0 %v2208
  %v2276 = vpop.f32.mrf.mxu0
  %v2277 = vadd.f32 0.0, %v2276
  %v2278 = vpop.f32.mrf.mxu0
  %v2279 = vpop.f32.mrf.mxu0
  %v2280 = vadd.f32 0.0, %v2279
  %v2281 = vpop.f32.mrf.mxu0
  %2282 = vmatprep.mubr.bf16.mxu0 0
  %2283 = vmatmul.mubr.bf16.gmra.mxu0 %v2209
  %v2284 = vpop.f32.mrf.mxu0
  %v2285 = vadd.f32 0.0, %v2284
  %v2286 = vpop.f32.mrf.mxu0
  %v2287 = vpop.f32.mrf.mxu0
  %v2288 = vadd.f32 0.0, %v2287
  %v2289 = vpop.f32.mrf.mxu0
  %2290 = vdwg.mxu0
  %v2291 = vadd.f32 %v2180, %v2245
  %v2292 = vadd.f32 %v2181, %v2248
  %v2293 = vadd.f32 %v2182, %v2253
  %v2294 = vadd.f32 %v2183, %v2256
  %v2295 = vadd.f32 %v2184, %v2261
  %v2296 = vadd.f32 %v2185, %v2264
  %v2297 = vadd.f32 %v2186, %v2269
  %v2298 = vadd.f32 %v2187, %v2272
  %v2299 = vadd.f32 %v2188, %v2277
  %v2300 = vadd.f32 %v2189, %v2280
  %v2301 = vadd.f32 %v2190, %v2285
  %v2302 = vadd.f32 %v2191, %v2288
  %v2303 = vld [vmem:[%s1882 + $0x4] sm:$0xff]
  %v2304 = vld [vmem:[%s1882 + $0xc] sm:$0xff]
  %v2305 = vld [vmem:[%s1882 + $0x14] sm:$0xff]
  %v2306 = vld [vmem:[%s1882 + $0x1c] sm:$0xff]
  %v2307 = vld [vmem:[%s1882 + $0x24] sm:$0xff]
  %v2308 = vld [vmem:[%s1882 + $0x2c] sm:$0xff]
  %v2309 = vld [vmem:[%s1882 + $0x34] sm:$0xff]
  %v2310 = vld [vmem:[%s1882 + $0x3c] sm:$0xff]
  %v2311 = vld [vmem:[%s1882 + $0x44] sm:$0xff]
  %v2312 = vld [vmem:[%s1882 + $0x4c] sm:$0xff]
  %v2313 = vld [vmem:[%s1882 + $0x54] sm:$0xff]
  %v2314 = vld [vmem:[%s1882 + $0x5c] sm:$0x3]
  %v2315 = vpack.c.bf16 %v2304, %v2303
  %v2316 = vpack.c.bf16 %v2306, %v2305
  %v2317 = vpack.c.bf16 %v2308, %v2307
  %v2318 = vpack.c.bf16 %v2310, %v2309
  %v2319 = vpack.c.bf16 %v2312, %v2311
  %v2320 = vpack.c.bf16 %v2314, %v2313
  %2321 = vmatprep.subr.bf16.mxu0 0
  %2322 = vmatpush1.bf16.msra.mxu0 %v789
  %2323 = vmatprep.subr.bf16.mxu0 0
  %2324 = vmatpush1.bf16.msra.mxu0 %v788
  %2325 = vmatprep.subr.bf16.mxu0 0
  %2326 = vmatpush1.bf16.msra.mxu0 %v787
  %2327 = vmatprep.subr.bf16.mxu0 0
  %2328 = vmatpush1.bf16.msra.mxu0 %v786
  %2329 = vmatprep.subr.bf16.mxu0 0
  %2330 = vmatpush1.bf16.msra.mxu0 %v785
  %2331 = vmatprep.subr.bf16.mxu0 0
  %2332 = vmatpush1.bf16.msra.mxu0 %v784
  %2333 = vmatprep.subr.bf16.mxu0 0
  %2334 = vmatpush1.bf16.msra.mxu0 %v783
  %2335 = vmatprep.subr.bf16.mxu0 0
  %2336 = vmatpush1.bf16.msra.mxu0 %v782
  %2337 = vmatprep.subr.bf16.mxu0 0
  %2338 = vmatpush2.bf16.msra.mxu0 0
  %2339 = vmatprep.subr.bf16.mxu0 0
  %2340 = vmatpush2.bf16.msra.mxu0 0
  %2341 = vmatprep.subr.bf16.mxu0 0
  %2342 = vmatpush2.bf16.msra.mxu0 0
  %2343 = vmatprep.subr.bf16.mxu0 0
  %2344 = vmatpush2.bf16.msra.mxu0 0
  %2345 = vmatprep.subr.bf16.mxu0 0
  %2346 = vmatpush2.bf16.msra.mxu0 0
  %2347 = vmatprep.subr.bf16.mxu0 0
  %2348 = vmatpush2.bf16.msra.mxu0 0
  %2349 = vmatprep.subr.bf16.mxu0 0
  %2350 = vmatpush2.bf16.msra.mxu0 0
  %2351 = vmatprep.subr.bf16.mxu0 0
  %2352 = vmatpush2.bf16.msra.mxu0 0
  %2353 = vmatprep.mubr.bf16.mxu0 0
  %2354 = vmatmul.mubr.bf16.gmra.mxu0 %v2315
  %v2355 = vpop.f32.mrf.mxu0
  %v2356 = vadd.f32 0.0, %v2355
  %v2357 = vpop.f32.mrf.mxu0
  %v2358 = vpop.f32.mrf.mxu0
  %v2359 = vadd.f32 0.0, %v2358
  %v2360 = vpop.f32.mrf.mxu0
  %2361 = vmatprep.mubr.bf16.mxu0 0
  %2362 = vmatmul.mubr.bf16.gmra.mxu0 %v2316
  %v2363 = vpop.f32.mrf.mxu0
  %v2364 = vadd.f32 0.0, %v2363
  %v2365 = vpop.f32.mrf.mxu0
  %v2366 = vpop.f32.mrf.mxu0
  %v2367 = vadd.f32 0.0, %v2366
  %v2368 = vpop.f32.mrf.mxu0
  %2369 = vmatprep.mubr.bf16.mxu0 0
  %2370 = vmatmul.mubr.bf16.gmra.mxu0 %v2317
  %v2371 = vpop.f32.mrf.mxu0
  %v2372 = vadd.f32 0.0, %v2371
  %v2373 = vpop.f32.mrf.mxu0
  %v2374 = vpop.f32.mrf.mxu0
  %v2375 = vadd.f32 0.0, %v2374
  %v2376 = vpop.f32.mrf.mxu0
  %2377 = vmatprep.mubr.bf16.mxu0 0
  %2378 = vmatmul.mubr.bf16.gmra.mxu0 %v2318
  %v2379 = vpop.f32.mrf.mxu0
  %v2380 = vadd.f32 0.0, %v2379
  %v2381 = vpop.f32.mrf.mxu0
  %v2382 = vpop.f32.mrf.mxu0
  %v2383 = vadd.f32 0.0, %v2382
  %v2384 = vpop.f32.mrf.mxu0
  %2385 = vmatprep.mubr.bf16.mxu0 0
  %2386 = vmatmul.mubr.bf16.gmra.mxu0 %v2319
  %v2387 = vpop.f32.mrf.mxu0
  %v2388 = vadd.f32 0.0, %v2387
  %v2389 = vpop.f32.mrf.mxu0
  %v2390 = vpop.f32.mrf.mxu0
  %v2391 = vadd.f32 0.0, %v2390
  %v2392 = vpop.f32.mrf.mxu0
  %2393 = vmatprep.mubr.bf16.mxu0 0
  %2394 = vmatmul.mubr.bf16.gmra.mxu0 %v2320
  %v2395 = vpop.f32.mrf.mxu0
  %v2396 = vadd.f32 0.0, %v2395
  %v2397 = vpop.f32.mrf.mxu0
  %v2398 = vpop.f32.mrf.mxu0
  %v2399 = vadd.f32 0.0, %v2398
  %v2400 = vpop.f32.mrf.mxu0
  %2401 = vdwg.mxu0
  %v2402 = vadd.f32 %v2291, %v2356
  %v2403 = vadd.f32 %v2292, %v2359
  %v2404 = vadd.f32 %v2293, %v2364
  %v2405 = vadd.f32 %v2294, %v2367
  %v2406 = vadd.f32 %v2295, %v2372
  %v2407 = vadd.f32 %v2296, %v2375
  %v2408 = vadd.f32 %v2297, %v2380
  %v2409 = vadd.f32 %v2298, %v2383
  %v2410 = vadd.f32 %v2299, %v2388
  %v2411 = vadd.f32 %v2300, %v2391
  %v2412 = vadd.f32 %v2301, %v2396
  %v2413 = vadd.f32 %v2302, %v2399
  %v2414 = vld [vmem:[%s1882 + $0x5] sm:$0xff]
  %v2415 = vld [vmem:[%s1882 + $0xd] sm:$0xff]
  %v2416 = vld [vmem:[%s1882 + $0x15] sm:$0xff]
  %v2417 = vld [vmem:[%s1882 + $0x1d] sm:$0xff]
  %v2418 = vld [vmem:[%s1882 + $0x25] sm:$0xff]
  %v2419 = vld [vmem:[%s1882 + $0x2d] sm:$0xff]
  %v2420 = vld [vmem:[%s1882 + $0x35] sm:$0xff]
  %v2421 = vld [vmem:[%s1882 + $0x3d] sm:$0xff]
  %v2422 = vld [vmem:[%s1882 + $0x45] sm:$0xff]
  %v2423 = vld [vmem:[%s1882 + $0x4d] sm:$0xff]
  %v2424 = vld [vmem:[%s1882 + $0x55] sm:$0xff]
  %v2425 = vld [vmem:[%s1882 + $0x5d] sm:$0x3]
  %v2426 = vpack.c.bf16 %v2415, %v2414
  %v2427 = vpack.c.bf16 %v2417, %v2416
  %v2428 = vpack.c.bf16 %v2419, %v2418
  %v2429 = vpack.c.bf16 %v2421, %v2420
  %v2430 = vpack.c.bf16 %v2423, %v2422
  %v2431 = vpack.c.bf16 %v2425, %v2424
  %2432 = vmatprep.subr.bf16.mxu0 0
  %2433 = vmatpush1.bf16.msra.mxu0 %v965
  %2434 = vmatprep.subr.bf16.mxu0 0
  %2435 = vmatpush1.bf16.msra.mxu0 %v964
  %2436 = vmatprep.subr.bf16.mxu0 0
  %2437 = vmatpush1.bf16.msra.mxu0 %v963
  %2438 = vmatprep.subr.bf16.mxu0 0
  %2439 = vmatpush1.bf16.msra.mxu0 %v962
  %2440 = vmatprep.subr.bf16.mxu0 0
  %2441 = vmatpush1.bf16.msra.mxu0 %v961
  %2442 = vmatprep.subr.bf16.mxu0 0
  %2443 = vmatpush1.bf16.msra.mxu0 %v960
  %2444 = vmatprep.subr.bf16.mxu0 0
  %2445 = vmatpush1.bf16.msra.mxu0 %v959
  %2446 = vmatprep.subr.bf16.mxu0 0
  %2447 = vmatpush1.bf16.msra.mxu0 %v958
  %2448 = vmatprep.subr.bf16.mxu0 0
  %2449 = vmatpush2.bf16.msra.mxu0 0
  %2450 = vmatprep.subr.bf16.mxu0 0
  %2451 = vmatpush2.bf16.msra.mxu0 0
  %2452 = vmatprep.subr.bf16.mxu0 0
  %2453 = vmatpush2.bf16.msra.mxu0 0
  %2454 = vmatprep.subr.bf16.mxu0 0
  %2455 = vmatpush2.bf16.msra.mxu0 0
  %2456 = vmatprep.subr.bf16.mxu0 0
  %2457 = vmatpush2.bf16.msra.mxu0 0
  %2458 = vmatprep.subr.bf16.mxu0 0
  %2459 = vmatpush2.bf16.msra.mxu0 0
  %2460 = vmatprep.subr.bf16.mxu0 0
  %2461 = vmatpush2.bf16.msra.mxu0 0
  %2462 = vmatprep.subr.bf16.mxu0 0
  %2463 = vmatpush2.bf16.msra.mxu0 0
  %2464 = vmatprep.mubr.bf16.mxu0 0
  %2465 = vmatmul.mubr.bf16.gmra.mxu0 %v2426
  %v2466 = vpop.f32.mrf.mxu0
  %v2467 = vadd.f32 0.0, %v2466
  %v2468 = vpop.f32.mrf.mxu0
  %v2469 = vpop.f32.mrf.mxu0
  %v2470 = vadd.f32 0.0, %v2469
  %v2471 = vpop.f32.mrf.mxu0
  %2472 = vmatprep.mubr.bf16.mxu0 0
  %2473 = vmatmul.mubr.bf16.gmra.mxu0 %v2427
  %v2474 = vpop.f32.mrf.mxu0
  %v2475 = vadd.f32 0.0, %v2474
  %v2476 = vpop.f32.mrf.mxu0
  %v2477 = vpop.f32.mrf.mxu0
  %v2478 = vadd.f32 0.0, %v2477
  %v2479 = vpop.f32.mrf.mxu0
  %2480 = vmatprep.mubr.bf16.mxu0 0
  %2481 = vmatmul.mubr.bf16.gmra.mxu0 %v2428
  %v2482 = vpop.f32.mrf.mxu0
  %v2483 = vadd.f32 0.0, %v2482
  %v2484 = vpop.f32.mrf.mxu0
  %v2485 = vpop.f32.mrf.mxu0
  %v2486 = vadd.f32 0.0, %v2485
  %v2487 = vpop.f32.mrf.mxu0
  %2488 = vmatprep.mubr.bf16.mxu0 0
  %2489 = vmatmul.mubr.bf16.gmra.mxu0 %v2429
  %v2490 = vpop.f32.mrf.mxu0
  %v2491 = vadd.f32 0.0, %v2490
  %v2492 = vpop.f32.mrf.mxu0
  %v2493 = vpop.f32.mrf.mxu0
  %v2494 = vadd.f32 0.0, %v2493
  %v2495 = vpop.f32.mrf.mxu0
  %2496 = vmatprep.mubr.bf16.mxu0 0
  %2497 = vmatmul.mubr.bf16.gmra.mxu0 %v2430
  %v2498 = vpop.f32.mrf.mxu0
  %v2499 = vadd.f32 0.0, %v2498
  %v2500 = vpop.f32.mrf.mxu0
  %v2501 = vpop.f32.mrf.mxu0
  %v2502 = vadd.f32 0.0, %v2501
  %v2503 = vpop.f32.mrf.mxu0
  %2504 = vmatprep.mubr.bf16.mxu0 0
  %2505 = vmatmul.mubr.bf16.gmra.mxu0 %v2431
  %v2506 = vpop.f32.mrf.mxu0
  %v2507 = vadd.f32 0.0, %v2506
  %v2508 = vpop.f32.mrf.mxu0
  %v2509 = vpop.f32.mrf.mxu0
  %v2510 = vadd.f32 0.0, %v2509
  %v2511 = vpop.f32.mrf.mxu0
  %2512 = vdwg.mxu0
  %v2513 = vadd.f32 %v2402, %v2467
  %v2514 = vadd.f32 %v2403, %v2470
  %v2515 = vadd.f32 %v2404, %v2475
  %v2516 = vadd.f32 %v2405, %v2478
  %v2517 = vadd.f32 %v2406, %v2483
  %v2518 = vadd.f32 %v2407, %v2486
  %v2519 = vadd.f32 %v2408, %v2491
  %v2520 = vadd.f32 %v2409, %v2494
  %v2521 = vadd.f32 %v2410, %v2499
  %v2522 = vadd.f32 %v2411, %v2502
  %v2523 = vadd.f32 %v2412, %v2507
  %v2524 = vadd.f32 %v2413, %v2510
  %v2525 = vld [vmem:[%s1882 + $0x6] sm:$0xff]
  %v2526 = vld [vmem:[%s1882 + $0xe] sm:$0xff]
  %v2527 = vld [vmem:[%s1882 + $0x16] sm:$0xff]
  %v2528 = vld [vmem:[%s1882 + $0x1e] sm:$0xff]
  %v2529 = vld [vmem:[%s1882 + $0x26] sm:$0xff]
  %v2530 = vld [vmem:[%s1882 + $0x2e] sm:$0xff]
  %v2531 = vld [vmem:[%s1882 + $0x36] sm:$0xff]
  %v2532 = vld [vmem:[%s1882 + $0x3e] sm:$0xff]
  %v2533 = vld [vmem:[%s1882 + $0x46] sm:$0xff]
  %v2534 = vld [vmem:[%s1882 + $0x4e] sm:$0xff]
  %v2535 = vld [vmem:[%s1882 + $0x56] sm:$0xff]
  %v2536 = vld [vmem:[%s1882 + $0x5e] sm:$0x3]
  %v2537 = vpack.c.bf16 %v2526, %v2525
  %v2538 = vpack.c.bf16 %v2528, %v2527
  %v2539 = vpack.c.bf16 %v2530, %v2529
  %v2540 = vpack.c.bf16 %v2532, %v2531
  %v2541 = vpack.c.bf16 %v2534, %v2533
  %v2542 = vpack.c.bf16 %v2536, %v2535
  %2543 = vmatprep.subr.bf16.mxu0 0
  %2544 = vmatpush1.bf16.msra.mxu0 %v1141
  %2545 = vmatprep.subr.bf16.mxu0 0
  %2546 = vmatpush1.bf16.msra.mxu0 %v1140
  %2547 = vmatprep.subr.bf16.mxu0 0
  %2548 = vmatpush1.bf16.msra.mxu0 %v1139
  %2549 = vmatprep.subr.bf16.mxu0 0
  %2550 = vmatpush1.bf16.msra.mxu0 %v1138
  %2551 = vmatprep.subr.bf16.mxu0 0
  %2552 = vmatpush1.bf16.msra.mxu0 %v1137
  %2553 = vmatprep.subr.bf16.mxu0 0
  %2554 = vmatpush1.bf16.msra.mxu0 %v1136
  %2555 = vmatprep.subr.bf16.mxu0 0
  %2556 = vmatpush1.bf16.msra.mxu0 %v1135
  %2557 = vmatprep.subr.bf16.mxu0 0
  %2558 = vmatpush1.bf16.msra.mxu0 %v1134
  %2559 = vmatprep.subr.bf16.mxu0 0
  %2560 = vmatpush2.bf16.msra.mxu0 0
  %2561 = vmatprep.subr.bf16.mxu0 0
  %2562 = vmatpush2.bf16.msra.mxu0 0
  %2563 = vmatprep.subr.bf16.mxu0 0
  %2564 = vmatpush2.bf16.msra.mxu0 0
  %2565 = vmatprep.subr.bf16.mxu0 0
  %2566 = vmatpush2.bf16.msra.mxu0 0
  %2567 = vmatprep.subr.bf16.mxu0 0
  %2568 = vmatpush2.bf16.msra.mxu0 0
  %2569 = vmatprep.subr.bf16.mxu0 0
  %2570 = vmatpush2.bf16.msra.mxu0 0
  %2571 = vmatprep.subr.bf16.mxu0 0
  %2572 = vmatpush2.bf16.msra.mxu0 0
  %2573 = vmatprep.subr.bf16.mxu0 0
  %2574 = vmatpush2.bf16.msra.mxu0 0
  %2575 = vmatprep.mubr.bf16.mxu0 0
  %2576 = vmatmul.mubr.bf16.gmra.mxu0 %v2537
  %v2577 = vpop.f32.mrf.mxu0
  %v2578 = vadd.f32 0.0, %v2577
  %v2579 = vpop.f32.mrf.mxu0
  %v2580 = vpop.f32.mrf.mxu0
  %v2581 = vadd.f32 0.0, %v2580
  %v2582 = vpop.f32.mrf.mxu0
  %2583 = vmatprep.mubr.bf16.mxu0 0
  %2584 = vmatmul.mubr.bf16.gmra.mxu0 %v2538
  %v2585 = vpop.f32.mrf.mxu0
  %v2586 = vadd.f32 0.0, %v2585
  %v2587 = vpop.f32.mrf.mxu0
  %v2588 = vpop.f32.mrf.mxu0
  %v2589 = vadd.f32 0.0, %v2588
  %v2590 = vpop.f32.mrf.mxu0
  %2591 = vmatprep.mubr.bf16.mxu0 0
  %2592 = vmatmul.mubr.bf16.gmra.mxu0 %v2539
  %v2593 = vpop.f32.mrf.mxu0
  %v2594 = vadd.f32 0.0, %v2593
  %v2595 = vpop.f32.mrf.mxu0
  %v2596 = vpop.f32.mrf.mxu0
  %v2597 = vadd.f32 0.0, %v2596
  %v2598 = vpop.f32.mrf.mxu0
  %2599 = vmatprep.mubr.bf16.mxu0 0
  %2600 = vmatmul.mubr.bf16.gmra.mxu0 %v2540
  %v2601 = vpop.f32.mrf.mxu0
  %v2602 = vadd.f32 0.0, %v2601
  %v2603 = vpop.f32.mrf.mxu0
  %v2604 = vpop.f32.mrf.mxu0
  %v2605 = vadd.f32 0.0, %v2604
  %v2606 = vpop.f32.mrf.mxu0
  %2607 = vmatprep.mubr.bf16.mxu0 0
  %2608 = vmatmul.mubr.bf16.gmra.mxu0 %v2541
  %v2609 = vpop.f32.mrf.mxu0
  %v2610 = vadd.f32 0.0, %v2609
  %v2611 = vpop.f32.mrf.mxu0
  %v2612 = vpop.f32.mrf.mxu0
  %v2613 = vadd.f32 0.0, %v2612
  %v2614 = vpop.f32.mrf.mxu0
  %2615 = vmatprep.mubr.bf16.mxu0 0
  %2616 = vmatmul.mubr.bf16.gmra.mxu0 %v2542
  %v2617 = vpop.f32.mrf.mxu0
  %v2618 = vadd.f32 0.0, %v2617
  %v2619 = vpop.f32.mrf.mxu0
  %v2620 = vpop.f32.mrf.mxu0
  %v2621 = vadd.f32 0.0, %v2620
  %v2622 = vpop.f32.mrf.mxu0
  %2623 = vdwg.mxu0
  %v2624 = vadd.f32 %v2513, %v2578
  %v2625 = vadd.f32 %v2514, %v2581
  %v2626 = vadd.f32 %v2515, %v2586
  %v2627 = vadd.f32 %v2516, %v2589
  %v2628 = vadd.f32 %v2517, %v2594
  %v2629 = vadd.f32 %v2518, %v2597
  %v2630 = vadd.f32 %v2519, %v2602
  %v2631 = vadd.f32 %v2520, %v2605
  %v2632 = vadd.f32 %v2521, %v2610
  %v2633 = vadd.f32 %v2522, %v2613
  %v2634 = vadd.f32 %v2523, %v2618
  %v2635 = vadd.f32 %v2524, %v2621
  %v2636 = vld [vmem:[%s1882 + $0x7] sm:$0xff]
  %v2637 = vld [vmem:[%s1882 + $0xf] sm:$0xff]
  %v2638 = vld [vmem:[%s1882 + $0x17] sm:$0xff]
  %v2639 = vld [vmem:[%s1882 + $0x1f] sm:$0xff]
  %v2640 = vld [vmem:[%s1882 + $0x27] sm:$0xff]
  %v2641 = vld [vmem:[%s1882 + $0x2f] sm:$0xff]
  %v2642 = vld [vmem:[%s1882 + $0x37] sm:$0xff]
  %v2643 = vld [vmem:[%s1882 + $0x3f] sm:$0xff]
  %v2644 = vld [vmem:[%s1882 + $0x47] sm:$0xff]
  %v2645 = vld [vmem:[%s1882 + $0x4f] sm:$0xff]
  %v2646 = vld [vmem:[%s1882 + $0x57] sm:$0xff]
  %v2647 = vld [vmem:[%s1882 + $0x5f] sm:$0x3]
  %v2648 = vpack.c.bf16 %v2637, %v2636
  %v2649 = vpack.c.bf16 %v2639, %v2638
  %v2650 = vpack.c.bf16 %v2641, %v2640
  %v2651 = vpack.c.bf16 %v2643, %v2642
  %v2652 = vpack.c.bf16 %v2645, %v2644
  %v2653 = vpack.c.bf16 %v2647, %v2646
  %2654 = vmatprep.subr.bf16.mxu0 0
  %2655 = vmatpush1.bf16.msra.mxu0 %v1317
  %2656 = vmatprep.subr.bf16.mxu0 0
  %2657 = vmatpush1.bf16.msra.mxu0 %v1316
  %2658 = vmatprep.subr.bf16.mxu0 0
  %2659 = vmatpush1.bf16.msra.mxu0 %v1315
  %2660 = vmatprep.subr.bf16.mxu0 0
  %2661 = vmatpush1.bf16.msra.mxu0 %v1314
  %2662 = vmatprep.subr.bf16.mxu0 0
  %2663 = vmatpush1.bf16.msra.mxu0 %v1313
  %2664 = vmatprep.subr.bf16.mxu0 0
  %2665 = vmatpush1.bf16.msra.mxu0 %v1312
  %2666 = vmatprep.subr.bf16.mxu0 0
  %2667 = vmatpush1.bf16.msra.mxu0 %v1311
  %2668 = vmatprep.subr.bf16.mxu0 0
  %2669 = vmatpush1.bf16.msra.mxu0 %v1310
  %2670 = vmatprep.subr.bf16.mxu0 0
  %2671 = vmatpush2.bf16.msra.mxu0 0
  %2672 = vmatprep.subr.bf16.mxu0 0
  %2673 = vmatpush2.bf16.msra.mxu0 0
  %2674 = vmatprep.subr.bf16.mxu0 0
  %2675 = vmatpush2.bf16.msra.mxu0 0
  %2676 = vmatprep.subr.bf16.mxu0 0
  %2677 = vmatpush2.bf16.msra.mxu0 0
  %2678 = vmatprep.subr.bf16.mxu0 0
  %2679 = vmatpush2.bf16.msra.mxu0 0
  %2680 = vmatprep.subr.bf16.mxu0 0
  %2681 = vmatpush2.bf16.msra.mxu0 0
  %2682 = vmatprep.subr.bf16.mxu0 0
  %2683 = vmatpush2.bf16.msra.mxu0 0
  %2684 = vmatprep.subr.bf16.mxu0 0
  %2685 = vmatpush2.bf16.msra.mxu0 0
  %2686 = vmatprep.mubr.bf16.mxu0 0
  %2687 = vmatmul.mubr.bf16.gmra.mxu0 %v2648
  %v2688 = vpop.f32.mrf.mxu0
  %v2689 = vadd.f32 0.0, %v2688
  %v2690 = vpop.f32.mrf.mxu0
  %v2691 = vpop.f32.mrf.mxu0
  %v2692 = vadd.f32 0.0, %v2691
  %v2693 = vpop.f32.mrf.mxu0
  %2694 = vmatprep.mubr.bf16.mxu0 0
  %2695 = vmatmul.mubr.bf16.gmra.mxu0 %v2649
  %v2696 = vpop.f32.mrf.mxu0
  %v2697 = vadd.f32 0.0, %v2696
  %v2698 = vpop.f32.mrf.mxu0
  %v2699 = vpop.f32.mrf.mxu0
  %v2700 = vadd.f32 0.0, %v2699
  %v2701 = vpop.f32.mrf.mxu0
  %2702 = vmatprep.mubr.bf16.mxu0 0
  %2703 = vmatmul.mubr.bf16.gmra.mxu0 %v2650
  %v2704 = vpop.f32.mrf.mxu0
  %v2705 = vadd.f32 0.0, %v2704
  %v2706 = vpop.f32.mrf.mxu0
  %v2707 = vpop.f32.mrf.mxu0
  %v2708 = vadd.f32 0.0, %v2707
  %v2709 = vpop.f32.mrf.mxu0
  %2710 = vmatprep.mubr.bf16.mxu0 0
  %2711 = vmatmul.mubr.bf16.gmra.mxu0 %v2651
  %v2712 = vpop.f32.mrf.mxu0
  %v2713 = vadd.f32 0.0, %v2712
  %v2714 = vpop.f32.mrf.mxu0
  %v2715 = vpop.f32.mrf.mxu0
  %v2716 = vadd.f32 0.0, %v2715
  %v2717 = vpop.f32.mrf.mxu0
  %2718 = vmatprep.mubr.bf16.mxu0 0
  %2719 = vmatmul.mubr.bf16.gmra.mxu0 %v2652
  %v2720 = vpop.f32.mrf.mxu0
  %v2721 = vadd.f32 0.0, %v2720
  %v2722 = vpop.f32.mrf.mxu0
  %v2723 = vpop.f32.mrf.mxu0
  %v2724 = vadd.f32 0.0, %v2723
  %v2725 = vpop.f32.mrf.mxu0
  %2726 = vmatprep.mubr.bf16.mxu0 0
  %2727 = vmatmul.mubr.bf16.gmra.mxu0 %v2653
  %v2728 = vpop.f32.mrf.mxu0
  %v2729 = vadd.f32 0.0, %v2728
  %v2730 = vpop.f32.mrf.mxu0
  %v2731 = vpop.f32.mrf.mxu0
  %v2732 = vadd.f32 0.0, %v2731
  %v2733 = vpop.f32.mrf.mxu0
  %2734 = vdwg.mxu0
  %v2735 = vadd.f32 %v2624, %v2689
  %v2736 = vadd.f32 %v2625, %v2692
  %v2737 = vadd.f32 %v2626, %v2697
  %v2738 = vadd.f32 %v2627, %v2700
  %v2739 = vadd.f32 %v2628, %v2705
  %v2740 = vadd.f32 %v2629, %v2708
  %v2741 = vadd.f32 %v2630, %v2713
  %v2742 = vadd.f32 %v2631, %v2716
  %v2743 = vadd.f32 %v2632, %v2721
  %v2744 = vadd.f32 %v2633, %v2724
  %v2745 = vadd.f32 %v2634, %v2729
  %v2746 = vadd.f32 %v2635, %v2732
  %v2747 = vld [vmem:[%s1882 + $0x8] sm:$0xff]
  %v2748 = vld [vmem:[%s1882 + $0x10] sm:$0xff]
  %v2749 = vld [vmem:[%s1882 + $0x18] sm:$0xff]
  %v2750 = vld [vmem:[%s1882 + $0x20] sm:$0xff]
  %v2751 = vld [vmem:[%s1882 + $0x28] sm:$0xff]
  %v2752 = vld [vmem:[%s1882 + $0x30] sm:$0xff]
  %v2753 = vld [vmem:[%s1882 + $0x38] sm:$0xff]
  %v2754 = vld [vmem:[%s1882 + $0x40] sm:$0xff]
  %v2755 = vld [vmem:[%s1882 + $0x48] sm:$0xff]
  %v2756 = vld [vmem:[%s1882 + $0x50] sm:$0xff]
  %v2757 = vld [vmem:[%s1882 + $0x58] sm:$0xff]
  %v2758 = vld [vmem:[%s1882 + $0x60] sm:$0x3]
  %v2759 = vpack.c.bf16 %v2748, %v2747
  %v2760 = vpack.c.bf16 %v2750, %v2749
  %v2761 = vpack.c.bf16 %v2752, %v2751
  %v2762 = vpack.c.bf16 %v2754, %v2753
  %v2763 = vpack.c.bf16 %v2756, %v2755
  %v2764 = vpack.c.bf16 %v2758, %v2757
  %2765 = vmatprep.subr.bf16.mxu0 0
  %2766 = vmatpush1.bf16.msra.mxu0 %v1493
  %2767 = vmatprep.subr.bf16.mxu0 0
  %2768 = vmatpush1.bf16.msra.mxu0 %v1492
  %2769 = vmatprep.subr.bf16.mxu0 0
  %2770 = vmatpush1.bf16.msra.mxu0 %v1491
  %2771 = vmatprep.subr.bf16.mxu0 0
  %2772 = vmatpush1.bf16.msra.mxu0 %v1490
  %2773 = vmatprep.subr.bf16.mxu0 0
  %2774 = vmatpush1.bf16.msra.mxu0 %v1489
  %2775 = vmatprep.subr.bf16.mxu0 0
  %2776 = vmatpush1.bf16.msra.mxu0 %v1488
  %2777 = vmatprep.subr.bf16.mxu0 0
  %2778 = vmatpush1.bf16.msra.mxu0 %v1487
  %2779 = vmatprep.subr.bf16.mxu0 0
  %2780 = vmatpush1.bf16.msra.mxu0 %v1486
  %2781 = vmatprep.subr.bf16.mxu0 0
  %2782 = vmatpush2.bf16.msra.mxu0 0
  %2783 = vmatprep.subr.bf16.mxu0 0
  %2784 = vmatpush2.bf16.msra.mxu0 0
  %2785 = vmatprep.subr.bf16.mxu0 0
  %2786 = vmatpush2.bf16.msra.mxu0 0
  %2787 = vmatprep.subr.bf16.mxu0 0
  %2788 = vmatpush2.bf16.msra.mxu0 0
  %2789 = vmatprep.subr.bf16.mxu0 0
  %2790 = vmatpush2.bf16.msra.mxu0 0
  %2791 = vmatprep.subr.bf16.mxu0 0
  %2792 = vmatpush2.bf16.msra.mxu0 0
  %2793 = vmatprep.subr.bf16.mxu0 0
  %2794 = vmatpush2.bf16.msra.mxu0 0
  %2795 = vmatprep.subr.bf16.mxu0 0
  %2796 = vmatpush2.bf16.msra.mxu0 0
  %2797 = vmatprep.mubr.bf16.mxu0 0
  %2798 = vmatmul.mubr.bf16.gmra.mxu0 %v2759
  %v2799 = vpop.f32.mrf.mxu0
  %v2800 = vadd.f32 0.0, %v2799
  %v2801 = vpop.f32.mrf.mxu0
  %v2802 = vpop.f32.mrf.mxu0
  %v2803 = vadd.f32 0.0, %v2802
  %v2804 = vpop.f32.mrf.mxu0
  %2805 = vmatprep.mubr.bf16.mxu0 0
  %2806 = vmatmul.mubr.bf16.gmra.mxu0 %v2760
  %v2807 = vpop.f32.mrf.mxu0
  %v2808 = vadd.f32 0.0, %v2807
  %v2809 = vpop.f32.mrf.mxu0
  %v2810 = vpop.f32.mrf.mxu0
  %v2811 = vadd.f32 0.0, %v2810
  %v2812 = vpop.f32.mrf.mxu0
  %2813 = vmatprep.mubr.bf16.mxu0 0
  %2814 = vmatmul.mubr.bf16.gmra.mxu0 %v2761
  %v2815 = vpop.f32.mrf.mxu0
  %v2816 = vadd.f32 0.0, %v2815
  %v2817 = vpop.f32.mrf.mxu0
  %v2818 = vpop.f32.mrf.mxu0
  %v2819 = vadd.f32 0.0, %v2818
  %v2820 = vpop.f32.mrf.mxu0
  %2821 = vmatprep.mubr.bf16.mxu0 0
  %2822 = vmatmul.mubr.bf16.gmra.mxu0 %v2762
  %v2823 = vpop.f32.mrf.mxu0
  %v2824 = vadd.f32 0.0, %v2823
  %v2825 = vpop.f32.mrf.mxu0
  %v2826 = vpop.f32.mrf.mxu0
  %v2827 = vadd.f32 0.0, %v2826
  %v2828 = vpop.f32.mrf.mxu0
  %2829 = vmatprep.mubr.bf16.mxu0 0
  %2830 = vmatmul.mubr.bf16.gmra.mxu0 %v2763
  %v2831 = vpop.f32.mrf.mxu0
  %v2832 = vadd.f32 0.0, %v2831
  %v2833 = vpop.f32.mrf.mxu0
  %v2834 = vpop.f32.mrf.mxu0
  %v2835 = vadd.f32 0.0, %v2834
  %v2836 = vpop.f32.mrf.mxu0
  %2837 = vmatprep.mubr.bf16.mxu0 0
  %2838 = vmatmul.mubr.bf16.gmra.mxu0 %v2764
  %v2839 = vpop.f32.mrf.mxu0
  %v2840 = vadd.f32 0.0, %v2839
  %v2841 = vpop.f32.mrf.mxu0
  %v2842 = vpop.f32.mrf.mxu0
  %v2843 = vadd.f32 0.0, %v2842
  %v2844 = vpop.f32.mrf.mxu0
  %2845 = vdwg.mxu0
  %v2846 = vadd.f32 %v2735, %v2800
  %v2847 = vadd.f32 %v2736, %v2803
  %v2848 = vadd.f32 %v2737, %v2808
  %v2849 = vadd.f32 %v2738, %v2811
  %v2850 = vadd.f32 %v2739, %v2816
  %v2851 = vadd.f32 %v2740, %v2819
  %v2852 = vadd.f32 %v2741, %v2824
  %v2853 = vadd.f32 %v2742, %v2827
  %v2854 = vadd.f32 %v2743, %v2832
  %v2855 = vadd.f32 %v2744, %v2835
  %v2856 = vadd.f32 %v2745, %v2840
  %v2857 = vadd.f32 %v2746, %v2843
  %v2858 = vadd.f32 %v2846, %v1600
  %v2859 = vadd.f32 %v2847, %v1600
  %v2860 = vadd.f32 %v2848, %v1600
  %v2861 = vadd.f32 %v2849, %v1600
  %v2862 = vadd.f32 %v2850, %v1600
  %v2863 = vadd.f32 %v2851, %v1600
  %v2864 = vadd.f32 %v2852, %v1600
  %v2865 = vadd.f32 %v2853, %v1600
  %v2866 = vadd.f32 %v2854, %v1600
  %v2867 = vadd.f32 %v2855, %v1600
  %v2868 = vadd.f32 %v2856, %v1600
  %v2869 = vadd.f32 %v2857, %v1600
  %v2870 = vmax.f32 %v2858, 0.0
  %v2871 = vmax.f32 %v2859, 0.0
  %v2872 = vmax.f32 %v2860, 0.0
  %v2873 = vmax.f32 %v2861, 0.0
  %v2874 = vmax.f32 %v2862, 0.0
  %v2875 = vmax.f32 %v2863, 0.0
  %v2876 = vmax.f32 %v2864, 0.0
  %v2877 = vmax.f32 %v2865, 0.0
  %v2878 = vmax.f32 %v2866, 0.0
  %v2879 = vmax.f32 %v2867, 0.0
  %v2880 = vmax.f32 %v2868, 0.0
  %v2881 = vmax.f32 %v2869, 0.0
  %v2893 = vrot.slane %v2870, 1
  %v2894 = vrot.slane %v2871, 1
  %v2895 = vsel %vm1637, %v2893, %v2894
  %v2896 = vrot.slane %v2872, 1
  %v2897 = vsel %vm1637, %v2894, %v2896
  %v2898 = vrot.slane %v2873, 1
  %v2899 = vsel %vm1637, %v2896, %v2898
  %v2900 = vrot.slane %v2874, 1
  %v2901 = vsel %vm1637, %v2898, %v2900
  %v2902 = vrot.slane %v2875, 1
  %v2903 = vsel %vm1637, %v2900, %v2902
  %v2904 = vrot.slane %v2876, 1
  %v2905 = vsel %vm1637, %v2902, %v2904
  %v2906 = vrot.slane %v2877, 1
  %v2907 = vsel %vm1637, %v2904, %v2906
  %v2908 = vrot.slane %v2878, 1
  %v2909 = vsel %vm1637, %v2906, %v2908
  %v2910 = vrot.slane %v2879, 1
  %v2911 = vsel %vm1637, %v2908, %v2910
  %v2912 = vrot.slane %v2880, 1
  %v2913 = vsel %vm1637, %v2910, %v2912
  %v2925 = vmax.f32 %v2870, %v2895
  %v2926 = vmax.f32 %v2871, %v2897
  %v2927 = vmax.f32 %v2872, %v2899
  %v2928 = vmax.f32 %v2873, %v2901
  %v2929 = vmax.f32 %v2874, %v2903
  %v2930 = vmax.f32 %v2875, %v2905
  %v2931 = vmax.f32 %v2876, %v2907
  %v2932 = vmax.f32 %v2877, %v2909
  %v2933 = vmax.f32 %v2878, %v2911
  %v2934 = vmax.f32 %v2879, %v2913
  %v2935 = vmax.f32 %v2880, %v2912
  %v2937 = vrot.slane %v2881, 1
  %v2938 = vsel %vm1637, %v2912, %v2937
  %v2941 = vmax.f32 %v2880, %v2938
  %v2942 = vmax.f32 %v2881, %v2937
  %v2955 = vrot.slane %v2925, 2
  %v2956 = vrot.slane %v2926, 2
  %v2957 = vsel %vm1700, %v2955, %v2956
  %v2958 = vrot.slane %v2927, 2
  %v2959 = vsel %vm1700, %v2956, %v2958
  %v2960 = vrot.slane %v2928, 2
  %v2961 = vsel %vm1700, %v2958, %v2960
  %v2962 = vrot.slane %v2929, 2
  %v2963 = vsel %vm1700, %v2960, %v2962
  %v2964 = vrot.slane %v2930, 2
  %v2965 = vsel %vm1700, %v2962, %v2964
  %v2966 = vrot.slane %v2931, 2
  %v2967 = vsel %vm1700, %v2964, %v2966
  %v2968 = vrot.slane %v2932, 2
  %v2969 = vsel %vm1700, %v2966, %v2968
  %v2970 = vrot.slane %v2933, 2
  %v2971 = vsel %vm1700, %v2968, %v2970
  %v2972 = vrot.slane %v2934, 2
  %v2973 = vsel %vm1700, %v2970, %v2972
  %v2974 = vrot.slane %v2941, 2
  %v2975 = vsel %vm1700, %v2972, %v2974
  %v2976 = vrot.slane %v2942, 2
  %v2977 = vsel %vm1700, %v2974, %v2976
  %v2989 = vmax.f32 %v2925, %v2957
  %v2990 = vmax.f32 %v2926, %v2959
  %v2991 = vmax.f32 %v2927, %v2961
  %v2992 = vmax.f32 %v2928, %v2963
  %v2993 = vmax.f32 %v2929, %v2965
  %v2994 = vmax.f32 %v2930, %v2967
  %v2995 = vmax.f32 %v2931, %v2969
  %v2996 = vmax.f32 %v2932, %v2971
  %v2997 = vmax.f32 %v2933, %v2973
  %v2998 = vmax.f32 %v2934, %v2975
  %v2999 = vmax.f32 %v2935, %v2977
  %v3001 = vsel %vm1637, %v2999, 0
  %3003 = vmatprep.subr.mxu0 0.0
  %3004 = vmatpush1.msra.mxu0 0.0
  %3005 = vmatprep.subr.mxu0 0.0
  %3006 = vmatpush1.msra.mxu0 0.0
  %3007 = vmatprep.subr.mxu0 0.0
  %3008 = vmatpush1.msra.mxu0 0.0
  %3009 = vmatprep.subr.mxu0 0.0
  %3010 = vmatpush1.msra.mxu0 0.0
  %3011 = vmatprep.subr.mxu0 0.0
  %3012 = vmatpush1.msra.mxu0 0.0
  %3013 = vmatprep.subr.mxu0 0.0
  %3014 = vmatpush1.msra.mxu0 %v3001
  %3015 = vmatprep.subr.mxu0 0.0
  %3016 = vmatpush1.msra.mxu0 %v2998
  %3017 = vmatprep.subr.mxu0 0.0
  %3018 = vmatpush1.msra.mxu0 %v2997
  %3019 = vmatprep.subr.mxu0 0.0
  %3020 = vmatpush1.msra.mxu0 %v2996
  %3021 = vmatprep.subr.mxu0 0.0
  %3022 = vmatpush1.msra.mxu0 %v2995
  %3023 = vmatprep.subr.mxu0 0.0
  %3024 = vmatpush1.msra.mxu0 %v2994
  %3025 = vmatprep.subr.mxu0 0.0
  %3026 = vmatpush1.msra.mxu0 %v2993
  %3027 = vmatprep.subr.mxu0 0.0
  %3028 = vmatpush1.msra.mxu0 %v2992
  %3029 = vmatprep.subr.mxu0 0.0
  %3030 = vmatpush1.msra.mxu0 %v2991
  %3031 = vmatprep.subr.mxu0 0.0
  %3032 = vmatpush1.msra.mxu0 %v2990
  %3033 = vmatprep.subr.mxu0 0.0
  %3034 = vmatpush1.msra.mxu0 %v2989
  %3035 = vmatprep.subr.mxu0 0.0
  %3036 = vmatpush2.msra.mxu0 0.0
  %3037 = vmatprep.subr.mxu0 0.0
  %3038 = vmatpush2.msra.mxu0 0.0
  %3039 = vmatprep.subr.mxu0 0.0
  %3040 = vmatpush2.msra.mxu0 0.0
  %3041 = vmatprep.subr.mxu0 0.0
  %3042 = vmatpush2.msra.mxu0 0.0
  %3043 = vmatprep.subr.mxu0 0.0
  %3044 = vmatpush2.msra.mxu0 0.0
  %3045 = vmatprep.subr.mxu0 0.0
  %3046 = vmatpush2.msra.mxu0 0.0
  %3047 = vmatprep.subr.mxu0 0.0
  %3048 = vmatpush2.msra.mxu0 0.0
  %3049 = vmatprep.subr.mxu0 0.0
  %3050 = vmatpush2.msra.mxu0 0.0
  %3051 = vmatprep.subr.mxu0 0.0
  %3052 = vmatpush2.msra.mxu0 0.0
  %3053 = vmatprep.subr.mxu0 0.0
  %3054 = vmatpush2.msra.mxu0 0.0
  %3055 = vmatprep.subr.mxu0 0.0
  %3056 = vmatpush2.msra.mxu0 0.0
  %3057 = vmatprep.subr.mxu0 0.0
  %3058 = vmatpush2.msra.mxu0 0.0
  %3059 = vmatprep.subr.mxu0 0.0
  %3060 = vmatpush2.msra.mxu0 0.0
  %3061 = vmatprep.subr.mxu0 0.0
  %3062 = vmatpush2.msra.mxu0 0.0
  %3063 = vmatprep.subr.mxu0 0.0
  %3064 = vmatpush2.msra.mxu0 0.0
  %3065 = vmatprep.subr.mxu0 0.0
  %3066 = vmatpush2.msra.mxu0 0.0
  %3067 = vmatprep.mubr.f32.mxu0 0.0
  %3068 = vmatmul.mubr.f32.gmra.mxu0 %v1754
  %v3069 = vpop.f32.mrf.mxu0
  %v3070 = vadd.f32 0.0, %v3069
  %v3071 = vpop.f32.mrf.mxu0
  %3072 = vmatprep.mubr.f32.mxu0 0.0
  %3073 = vmatmul.mubr.f32.gmra.mxu0 %v1757
  %v3074 = vpop.f32.mrf.mxu0
  %v3075 = vadd.f32 0.0, %v3074
  %v3076 = vpop.f32.mrf.mxu0
  %3077 = vmatprep.mubr.f32.mxu0 0.0
  %3078 = vmatmul.mubr.f32.gmra.mxu0 %v1760
  %v3079 = vpop.f32.mrf.mxu0
  %v3080 = vadd.f32 0.0, %v3079
  %v3081 = vpop.f32.mrf.mxu0
  %3082 = vmatprep.mubr.f32.mxu0 0.0
  %3083 = vmatmul.mubr.f32.gmra.mxu0 %v1763
  %v3084 = vpop.f32.mrf.mxu0
  %v3085 = vadd.f32 0.0, %v3084
  %v3086 = vpop.f32.mrf.mxu0
  %3087 = vmatprep.mubr.f32.mxu0 0.0
  %3088 = vmatmul.mubr.f32.gmra.mxu0 %v1766
  %v3089 = vpop.f32.mrf.mxu0
  %v3090 = vadd.f32 0.0, %v3089
  %v3091 = vpop.f32.mrf.mxu0
  %3092 = vmatprep.mubr.f32.mxu0 0.0
  %3093 = vmatmul.mubr.f32.gmra.mxu0 %v1769
  %v3094 = vpop.f32.mrf.mxu0
  %v3095 = vadd.f32 0.0, %v3094
  %v3096 = vpop.f32.mrf.mxu0
  %3097 = vdwg.mxu0
  %v3098 = vadd.f32 %v3070, %v3075
  %v3099 = vadd.f32 %v3098, %v3080
  %v3100 = vadd.f32 %v3099, %v3085
  %v3101 = vadd.f32 %v3100, %v3090
  %v3102 = vsel %vm1873, %v3095, 0.0
  %v3103 = vadd.f32 %v3101, %v3102
  %v3104 = vrot.slane %v3103, 4
  %v3105 = vadd.f32 %v3103, %v3104
  %v3106 = vrot.slane %v3105, 2
  %v3107 = vadd.f32 %v3105, %v3106
  %v3108 = vrot.slane %v3107, 1
  %v3109 = vadd.f32 %v3107, %v3108
  %v3110 = vadd.f32 %v1881, %v3109
  %v3111 = vmul.f32 %v3110, 0.011363637
  %v3112 = vsub.f32 %v1841, %v3111
  %v3113 = vsub.f32 %v1846, %v3111
  %v3114 = vsub.f32 %v1851, %v3111
  %v3115 = vsub.f32 %v1856, %v3111
  %v3116 = vsub.f32 %v1861, %v3111
  %v3117 = vsub.f32 %v1866, %v3111
  %v3118 = vmul.f32 %v3112, %v3112
  %v3119 = vmul.f32 %v3113, %v3113
  %v3120 = vmul.f32 %v3114, %v3114
  %v3121 = vmul.f32 %v3115, %v3115
  %v3122 = vmul.f32 %v3116, %v3116
  %v3123 = vmul.f32 %v3117, %v3117
  %v3124 = vadd.f32 %v3118, %v3119
  %v3125 = vadd.f32 %v3124, %v3120
  %v3126 = vadd.f32 %v3125, %v3121
  %v3127 = vadd.f32 %v3126, %v3122
  %v3128 = vsel %vm1873, %v3123, 0.0
  %v3129 = vadd.f32 %v3127, %v3128
  %v3130 = vrot.slane %v3129, 4
  %v3131 = vadd.f32 %v3129, %v3130
  %v3132 = vrot.slane %v3131, 2
  %v3133 = vadd.f32 %v3131, %v3132
  %v3134 = vrot.slane %v3133, 1
  %v3135 = vadd.f32 %v3133, %v3134
  %v3136 = vsub.f32 %v3070, %v3111
  %v3137 = vsub.f32 %v3075, %v3111
  %v3138 = vsub.f32 %v3080, %v3111
  %v3139 = vsub.f32 %v3085, %v3111
  %v3140 = vsub.f32 %v3090, %v3111
  %v3141 = vsub.f32 %v3095, %v3111
  %v3142 = vmul.f32 %v3136, %v3136
  %v3143 = vmul.f32 %v3137, %v3137
  %v3144 = vmul.f32 %v3138, %v3138
  %v3145 = vmul.f32 %v3139, %v3139
  %v3146 = vmul.f32 %v3140, %v3140
  %v3147 = vmul.f32 %v3141, %v3141
  %v3148 = vadd.f32 %v3142, %v3143
  %v3149 = vadd.f32 %v3148, %v3144
  %v3150 = vadd.f32 %v3149, %v3145
  %v3151 = vadd.f32 %v3150, %v3146
  %v3152 = vsel %vm1873, %v3147, 0.0
  %v3153 = vadd.f32 %v3151, %v3152
  %v3154 = vrot.slane %v3153, 4
  %v3155 = vadd.f32 %v3153, %v3154
  %v3156 = vrot.slane %v3155, 2
  %v3157 = vadd.f32 %v3155, %v3156
  %v3158 = vrot.slane %v3157, 1
  %v3159 = vadd.f32 %v3157, %v3158
  %v3160 = vadd.f32 %v3135, %v3159
  %v3161 = vmul.f32 %v3160, 0.011363637
  %v3162 = vld [vmem:[%s3] sm:$0x1]
  %v3163 = vadd.f32 %v3161, 1e-05
  %v3164 = vrsqrt.pop %v3163
  %v3165 = vmul.f32 %v3162, %v3164
  %v3166 = vld [vmem:[%s4] sm:$0x1]
  %v3167 = vmul.f32 %v3111, %v3165
  %v3168 = vsub.f32 %v3166, %v3167
  %v3170 = vlaneseq
  %v3171 = vshrl.u32 %v3170, 7
  %v3172 = vsub.s32 0, %v3171
  %v3173 = vrot.slane %v3165, %v3172
  %v3175 = vmul.f32 %v1841, %v3173
  %v3176 = vmul.f32 %v1846, %v3173
  %v3177 = vmul.f32 %v1851, %v3173
  %v3178 = vmul.f32 %v1856, %v3173
  %v3179 = vmul.f32 %v1861, %v3173
  %v3180 = vmul.f32 %v1866, %v3173
  %v3182 = vlaneseq
  %v3183 = vshrl.u32 %v3182, 7
  %v3184 = vsub.s32 0, %v3183
  %v3185 = vrot.slane %v3168, %v3184
  %v3187 = vadd.f32 %v3175, %v3185
  %v3188 = vadd.f32 %v3176, %v3185
  %v3189 = vadd.f32 %v3177, %v3185
  %v3190 = vadd.f32 %v3178, %v3185
  %v3191 = vadd.f32 %v3179, %v3185
  %v3192 = vadd.f32 %v3180, %v3185
  %3193 = vst [vmem:[%s6 + $0x1] sm:$0xff] %v3187
  %3194 = vst [vmem:[%s6 + $0x9] sm:$0xff] %v3188
  %3195 = vst [vmem:[%s6 + $0x11] sm:$0xff] %v3189
  %3196 = vst [vmem:[%s6 + $0x19] sm:$0xff] %v3190
  %3197 = vst [vmem:[%s6 + $0x21] sm:$0xff] %v3191
  %3198 = vst [vmem:[%s6 + $0x29] sm:$0xf] %v3192
  %v3199 = vmul.f32 %v3070, %v3173
  %v3200 = vmul.f32 %v3075, %v3173
  %v3201 = vmul.f32 %v3080, %v3173
  %v3202 = vmul.f32 %v3085, %v3173
  %v3203 = vmul.f32 %v3090, %v3173
  %v3204 = vmul.f32 %v3095, %v3173
  %v3205 = vadd.f32 %v3199, %v3185
  %v3206 = vadd.f32 %v3200, %v3185
  %v3207 = vadd.f32 %v3201, %v3185
  %v3208 = vadd.f32 %v3202, %v3185
  %v3209 = vadd.f32 %v3203, %v3185
  %v3210 = vadd.f32 %v3204, %v3185
  %s3211 = scalar_lea.vmem %s6, 48
  %3212 = vst [vmem:[%s3211 + $0x1] sm:$0xff] %v3205
  %3213 = vst [vmem:[%s3211 + $0x9] sm:$0xff] %v3206
  %3214 = vst [vmem:[%s3211 + $0x11] sm:$0xff] %v3207
  %3215 = vst [vmem:[%s3211 + $0x19] sm:$0xff] %v3208
  %3216 = vst [vmem:[%s3211 + $0x21] sm:$0xff] %v3209
  %3217 = vst [vmem:[%s3211 + $0x29] sm:$0xf] %v3210
  // Predicated region
  $region26: #{cnn_feature_extractor.3} parent=0 // pred_check
    _
  $region27: #{cnn_feature_extractor.3} parent=0 // pred_check_branch
    %3219 = sbr.rel (0) target = $region29
  $region28: #{cnn_feature_extractor.3} parent=0 // pred_region
    _
  $region29: #{cnn_feature_extractor.3} parent=0 // pred_fallthru
    _
  // Predicated region
  $region30: #{cnn_feature_extractor.3} parent=0 // pred_check
    _
  $region31: #{cnn_feature_extractor.3} parent=0 // pred_check_branch
    %3221 = sbr.rel (0) target = $region33
  $region32: #{cnn_feature_extractor.3} parent=0 // pred_region
    _
  $region33: #{cnn_feature_extractor.3} parent=0 // pred_fallthru
    _

</llo_original>
